<compile_context>
chip_gen: v7x
topology: tpu7x:2x2x1
jax: 0.10.0
libtpu: 0.0.40
codegen_flags: <defaults>
</compile_context>

<pallas_src>
import functools

import jax
import jax.numpy as jnp
from jax.experimental import pallas as pl
from jax.experimental.pallas import tpu as pltpu


# ----------------------------- Pallas kernel --------------------------------
def decoder_kernel(feat_ref, emb_ref,
                   w_h0_ref, b_h0_ref, w_c0_ref, b_c0_ref,
                   w_u_ref, b_uw_ref, w_w_ref, w_a_ref,
                   w_ch_ref, w_ie_ref, b_g_ref,
                   w_fcn_ref, b_fcn_ref,
                   preds_ref, attnw_ref,
                   emb_proj_ref):
    f32 = jnp.float32
    bf16 = jnp.bfloat16

    feats = feat_ref[...]                                    # (Bb, N, E) f32
    Bb, N, E = feats.shape
    seq_len = emb_ref.shape[0]
    H = w_h0_ref.shape[1]

    # ---- init_hidden_state(features): h/c from mean over encoder locations ----
    mf = jnp.mean(feats, axis=1)                             # (Bb, E)
    h0 = jnp.dot(mf, w_h0_ref[...],
                 preferred_element_type=f32) + b_h0_ref[...]                  # (Bb, H)
    c0 = jnp.dot(mf, w_c0_ref[...],
                 preferred_element_type=f32) + b_c0_ref[...]                  # (Bb, H)

    # ---- time-invariant attention projection, hoisted; b_u + b_w folded in ----
    u3 = (jnp.dot(feats.reshape(Bb * N, E).astype(bf16), w_u_ref[...],
                  preferred_element_type=f32)
          + b_uw_ref[...]).reshape(Bb, N, -1)                # (Bb, N, A)

    # ---- hoisted embedding gate projection (+ gate bias), once for all t ----
    emb_flat = emb_ref[...].reshape(seq_len * Bb, -1)        # (T*Bb, emb)
    emb_proj_ref[...] = (jnp.dot(emb_flat.astype(bf16), w_ie_ref[...],
                                 preferred_element_type=f32)
                         + b_g_ref[...]).reshape(seq_len, Bb, -1)   # (T, Bb, 4H)

    def step(t, carry):
        h, c = carry                                         # (Bb, H) f32 each

        # ----- additive (Bahdanau) attention; N stays on sublanes throughout -----
        wq = jnp.dot(h.astype(bf16), w_w_ref[...],
                     preferred_element_type=f32)                               # (Bb, A)
        e_act = jnp.tanh(u3 + wq[:, None, :])                                  # (Bb, N, A)
        scores = jnp.sum(e_act * w_a_ref[...], axis=-1, keepdims=True)         # (Bb, N, 1)
        # (b_a dropped: a constant shift cancels exactly under softmax)
        m = jnp.max(scores, axis=1, keepdims=True)                             # (Bb, 1, 1)
        ex = jnp.exp(scores - m)
        denom = jnp.sum(ex, axis=1, keepdims=True)
        alpha = ex * pl.reciprocal(denom, approx=True)                         # (Bb, N, 1)
        context = jnp.sum(alpha * feat_ref[...], axis=1)                       # (Bb, E)

        # ----- fused LSTMCell gates (i, f, g, o); K = E + H = 256 lane aligned -----
        x = jnp.concatenate([context, h], axis=-1).astype(bf16)                # (Bb, E+H)
        gates = (jnp.dot(x, w_ch_ref[...], preferred_element_type=f32)
                 + emb_proj_ref[t])                                            # (Bb, 4H)
        i_g = jax.nn.sigmoid(gates[:, 0 * H:1 * H])
        f_g = jax.nn.sigmoid(gates[:, 1 * H:2 * H])
        g_g = jnp.tanh(gates[:, 2 * H:3 * H])
        o_g = jax.nn.sigmoid(gates[:, 3 * H:4 * H])
        c_new = f_g * c + i_g * g_g
        h_new = o_g * jnp.tanh(c_new)

        # TODO(synk): nn.Dropout(0.3) is identity in eval mode; training-mode
        # dropout (PyTorch RNG) has no faithful Pallas equivalent, omitted.
        logits = (jnp.dot(h_new.astype(bf16), w_fcn_ref[...],
                          preferred_element_type=f32) + b_fcn_ref[...])        # (Bb, V)
        preds_ref[t] = logits                     # contiguous (Bb, 128) full-tile store
        attnw_ref[t] = alpha[:, :, 0]             # squeeze is off the critical path
        return (h_new, c_new)

    # Full unroll only for short captions; partial unroll bounds vreg pressure.
    unroll = True if seq_len <= 8 else 4
    jax.lax.fori_loop(0, seq_len, step, (h0, c0), unroll=unroll)


# ------------------------------- wrapper -------------------------------------
def decoder_forward(params, features, captions, *, batch_blocks=None):
    B, T = captions.shape
    seq_len = T - 1
    N, E = features.shape[1], features.shape[2]
    emb_tbl = params['embedding']                            # (V, emb)
    V, EMB = emb_tbl.shape
    H = params['w_h0'].shape[1]
    f32 = jnp.float32
    bf16 = jnp.bfloat16

    # Embedding lookup (gather) is glue, done in plain JAX, then time-major.
    embeds = jnp.transpose(emb_tbl[captions[:, :seq_len]], (1, 0, 2)).astype(f32)

    # v7x: split the batch across the two TensorCores when each half still fills
    # 8 sublanes; on v5e/v6e (single TC) the extra grid step is a short serial loop.
    if batch_blocks is None:
        batch_blocks = 2 if (B % 2 == 0 and (B // 2) % 8 == 0) else 1
    bb = B // batch_blocks

    # Pack only the time-recurrent gate weights [context | h] -> 4H (K = E + H).
    w_ch = jnp.concatenate([params['w_ih_c'], params['w_hh']], axis=0).astype(bf16)

    # Hot-path matmul weights in bf16 (native MXU input); biases stay f32.
    weights = [
        params['w_h0'].astype(f32), params['b_h0'].astype(f32),
        params['w_c0'].astype(f32), params['b_c0'].astype(f32),
        params['w_u'].astype(bf16),
        (params['b_u'] + params['b_w']).astype(f32),        # folded into hoisted U-proj
        params['w_w'].astype(bf16), params['w_a'].astype(f32),
        w_ch, params['w_ih_e'].astype(bf16), params['b_g'].astype(f32),
        params['w_fcn'].astype(bf16), params['b_fcn'].astype(f32),
    ]
    # NOTE: b_a (bias of the scalar score head) is a constant shift under softmax
    # and is dropped from the kernel — exactly equivalent.

    def weight_spec(shape):
        # Grid-invariant weights: single-buffer (no pointless double-buffering).
        return pl.BlockSpec(shape, lambda b: (0,) * len(shape),
                            pipeline_mode=pl.Buffered(1))

    in_specs = (
        [pl.BlockSpec((bb, N, E), lambda b: (b, 0, 0)),          # features (batch-split)
         pl.BlockSpec((seq_len, bb, EMB), lambda b: (0, b, 0))]  # embeddings, resident
        + [weight_spec(w.shape) for w in weights])

    out_specs = [pl.BlockSpec((seq_len, bb, V), lambda b: (0, b, 0)),   # preds (time-major)
                 pl.BlockSpec((seq_len, bb, N), lambda b: (0, b, 0))]   # attn weights

    grid_spec = pltpu.PrefetchScalarGridSpec(
        num_scalar_prefetch=0,
        grid=(batch_blocks,),
        in_specs=in_specs,
        out_specs=out_specs,
        scratch_shapes=[pltpu.VMEM((seq_len, bb, 4 * H), f32)],  # hoisted emb gate proj
    )

    preds_t, attn_t = pl.pallas_call(
        decoder_kernel,
        out_shape=(jax.ShapeDtypeStruct((seq_len, B, V), f32),
                   jax.ShapeDtypeStruct((seq_len, B, N), f32)),
        grid_spec=grid_spec,
        compiler_params=pltpu.CompilerParams(
            dimension_semantics=("parallel",),                   # batch blocks -> v7x TCs
            vmem_limit_bytes=32 * 1024 * 1024),
    )(features.astype(f32), embeds, *weights)

    # Time-major in-kernel stores keep each per-step writeback one contiguous
    # full-tile vst; these transposes are tiny one-off XLA ops.
    preds = jnp.transpose(preds_t, (1, 0, 2))                # (B, seq_len, V)
    attn_weights = jnp.transpose(attn_t, (1, 0, 2))          # (B, seq_len, N)
    return preds, attn_weights


# ------------------------- pure-JAX reference ---------------------------------
def decoder_reference(params, features, captions):
    B, T = captions.shape
    seq_len = T - 1
    emb_tbl = params['embedding']
    embeds = emb_tbl[captions]                               # (B, T, emb)
    mf = jnp.mean(features, axis=1)
    h = mf @ params['w_h0'] + params['b_h0']
    c = mf @ params['w_c0'] + params['b_c0']
    preds, attns = [], []
    H = h.shape[-1]
    for t in range(seq_len):
        u = jnp.einsum('bne,ea->bna', features, params['w_u']) + params['b_u']
        wq = h @ params['w_w'] + params['b_w']
        scores = jnp.sum(jnp.tanh(u + wq[:, None, :]) * params['w_a'][None], axis=-1) + params['b_a']
        alpha = jax.nn.softmax(scores, axis=-1)
        context = jnp.sum(alpha[:, :, None] * features, axis=1)
        gates = (embeds[:, t] @ params['w_ih_e'] + context @ params['w_ih_c']
                 + h @ params['w_hh'] + params['b_g'])
        i_g = jax.nn.sigmoid(gates[:, 0:H])
        f_g = jax.nn.sigmoid(gates[:, H:2 * H])
        g_g = jnp.tanh(gates[:, 2 * H:3 * H])
        o_g = jax.nn.sigmoid(gates[:, 3 * H:4 * H])
        c = f_g * c + i_g * g_g
        h = o_g * jnp.tanh(c)
        preds.append(h @ params['w_fcn'] + params['b_fcn'])
        attns.append(alpha)
    return jnp.stack(preds, axis=1), jnp.stack(attns, axis=1)


# --------------------------------- main ---------------------------------------
if __name__ == "__main__":
    # Small, TPU-friendly sizes (B=16 so the batch splits into two 8-row blocks).
    B, N = 16, 8           # batch, number of encoder feature locations
    E = 128                # enc_hidden_size
    H = 128                # dec_hidden_size
    A = 128                # attn_size
    EMB = 32               # emb_size
    V = 128                # vocab_size
    T = 6                  # caption length -> seq_len = 5

    key = jax.random.PRNGKey(0)
    ks = jax.random.split(key, 24)
    f32 = jnp.float32

    def init(k, shape, scale=0.05):
        return jax.random.normal(k, shape, f32) * scale

    params = {
        'embedding': init(ks[0], (V, EMB), 0.1),
        # init_h / init_c  (Linear(E, H)), weights stored (in, out)
        'w_h0': init(ks[1], (E, H)), 'b_h0': init(ks[2], (1, H)),
        'w_c0': init(ks[3], (E, H)), 'b_c0': init(ks[4], (1, H)),
        # Attention: U: Linear(E, A), W: Linear(H, A), A: Linear(A, 1)
        'w_u': init(ks[5], (E, A)), 'b_u': init(ks[6], (1, A)),
        'w_w': init(ks[7], (H, A)), 'b_w': init(ks[8], (1, A)),
        'w_a': init(ks[9], (1, A)), 'b_a': init(ks[10], (1, 1)),
        # LSTMCell(emb + E, H): weight_ih split by input rows (emb part / context part),
        # biases b_ih + b_hh folded into one (1, 4H) vector.
        'w_ih_e': init(ks[11], (EMB, 4 * H)),
        'w_ih_c': init(ks[12], (E, 4 * H)),
        'w_hh': init(ks[13], (H, 4 * H)),
        'b_g': init(ks[14], (1, 4 * H)),
        # fcn: Linear(H, V)
        'w_fcn': init(ks[15], (H, V)), 'b_fcn': init(ks[16], (1, V)),
    }

    features = jax.random.normal(ks[17], (B, N, E), f32)
    captions = jax.random.randint(ks[18], (B, T), 0, V, dtype=jnp.int32)

    fwd = jax.jit(functools.partial(decoder_forward, params))
    preds, attn_w = fwd(features, captions)
    jax.block_until_ready((preds, attn_w))

    # Sanity check vs. a pure-f32 JAX reference (tolerance absorbs bf16 MXU
    # inputs + approx reciprocal in the attention softmax).
    preds_ref, attn_ref = decoder_reference(params, features, captions)
    assert preds.shape == (B, T - 1, V) and attn_w.shape == (B, T - 1, N)
    assert jnp.max(jnp.abs(preds - preds_ref)) < 3e-2
    assert jnp.max(jnp.abs(attn_w - attn_ref)) < 2e-2

    print("KERNEL_OK")
</pallas_src>

<mosaic_0001>
module attributes {stable_mosaic.version = 11 : i64} {
  func.func @decoder_kernel(%arg0: i32, %arg1: memref<8x8x128xf32, #tpu.memory_space<vmem>>, %arg2: memref<5x8x32xf32, #tpu.memory_space<vmem>>, %arg3: memref<128x128xf32, #tpu.memory_space<vmem>>, %arg4: memref<1x128xf32, #tpu.memory_space<vmem>>, %arg5: memref<128x128xf32, #tpu.memory_space<vmem>>, %arg6: memref<1x128xf32, #tpu.memory_space<vmem>>, %arg7: memref<128x128xbf16, #tpu.memory_space<vmem>>, %arg8: memref<1x128xf32, #tpu.memory_space<vmem>>, %arg9: memref<128x128xbf16, #tpu.memory_space<vmem>>, %arg10: memref<1x128xf32, #tpu.memory_space<vmem>>, %arg11: memref<256x512xbf16, #tpu.memory_space<vmem>>, %arg12: memref<32x512xbf16, #tpu.memory_space<vmem>>, %arg13: memref<1x512xf32, #tpu.memory_space<vmem>>, %arg14: memref<128x128xbf16, #tpu.memory_space<vmem>>, %arg15: memref<1x128xf32, #tpu.memory_space<vmem>>, %arg16: memref<5x8x128xf32, #tpu.memory_space<vmem>>, %arg17: memref<5x8x8xf32, #tpu.memory_space<vmem>>, %arg18: memref<5x8x512xf32, #tpu.memory_space<vmem>>) attributes {dimension_semantics = [#tpu.dimension_semantics<parallel>], iteration_bounds = array<i64: 2>, scalar_prefetch = 0 : i64, scratch_operands = 1 : i64, tpu.core_type = #tpu.core_type<tc>, window_params = [{transform_indices = @transform_0, window_bounds = array<i64: 8, 8, 128>}, {transform_indices = @transform_1, window_bounds = array<i64: 5, 8, 32>}, {pipeline_mode = #tpu.pipeline_mode<synchronous>, transform_indices = @transform_2, window_bounds = array<i64: 128, 128>}, {pipeline_mode = #tpu.pipeline_mode<synchronous>, transform_indices = @transform_3, window_bounds = array<i64: 1, 128>}, {pipeline_mode = #tpu.pipeline_mode<synchronous>, transform_indices = @transform_4, window_bounds = array<i64: 128, 128>}, {pipeline_mode = #tpu.pipeline_mode<synchronous>, transform_indices = @transform_5, window_bounds = array<i64: 1, 128>}, {pipeline_mode = #tpu.pipeline_mode<synchronous>, transform_indices = @transform_6, window_bounds = array<i64: 128, 128>}, {pipeline_mode = #tpu.pipeline_mode<synchronous>, transform_indices = @transform_7, window_bounds = array<i64: 1, 128>}, {pipeline_mode = #tpu.pipeline_mode<synchronous>, transform_indices = @transform_8, window_bounds = array<i64: 128, 128>}, {pipeline_mode = #tpu.pipeline_mode<synchronous>, transform_indices = @transform_9, window_bounds = array<i64: 1, 128>}, {pipeline_mode = #tpu.pipeline_mode<synchronous>, transform_indices = @transform_10, window_bounds = array<i64: 256, 512>}, {pipeline_mode = #tpu.pipeline_mode<synchronous>, transform_indices = @transform_11, window_bounds = array<i64: 32, 512>}, {pipeline_mode = #tpu.pipeline_mode<synchronous>, transform_indices = @transform_12, window_bounds = array<i64: 1, 512>}, {pipeline_mode = #tpu.pipeline_mode<synchronous>, transform_indices = @transform_13, window_bounds = array<i64: 128, 128>}, {pipeline_mode = #tpu.pipeline_mode<synchronous>, transform_indices = @transform_14, window_bounds = array<i64: 1, 128>}, {transform_indices = @transform_15, window_bounds = array<i64: 5, 8, 128>}, {transform_indices = @transform_16, window_bounds = array<i64: 5, 8, 8>}]} {
    %c0 = arith.constant 0 : index
    %c0_0 = arith.constant 0 : index
    %c0_1 = arith.constant 0 : index
    %0 = vector.load %arg1[%c0, %c0_0, %c0_1] : memref<8x8x128xf32, #tpu.memory_space<vmem>>, vector<8x8x128xf32>
    %cst = arith.constant dense<0.000000e+00> : vector<8x128xf32>
    %1 = vector.multi_reduction <add>, %0, %cst [1] : vector<8x8x128xf32> to vector<8x128xf32>
    %cst_2 = arith.constant 8.000000e+00 : f32
    %2 = vector.broadcast %cst_2 : f32 to vector<8x128xf32>
    %3 = arith.divf %1, %2 : vector<8x128xf32>
    %c0_3 = arith.constant 0 : index
    %c0_4 = arith.constant 0 : index
    %4 = vector.load %arg3[%c0_3, %c0_4] : memref<128x128xf32, #tpu.memory_space<vmem>>, vector<128x128xf32>
    %cst_5 = arith.constant dense<0.000000e+00> : vector<8x128xf32>
    %5 = tpu.matmul %3, %4, %cst_5 {dimension_numbers = #tpu.dot_dimension_numbers<[1], [0], [0], [1], [0, 0, 1, 1], [], []>} : vector<8x128xf32>, vector<128x128xf32>, vector<8x128xf32> -> vector<8x128xf32>
    %c0_6 = arith.constant 0 : index
    %c0_7 = arith.constant 0 : index
    %6 = vector.load %arg4[%c0_6, %c0_7] : memref<1x128xf32, #tpu.memory_space<vmem>>, vector<1x128xf32>
    %7 = vector.broadcast %6 : vector<1x128xf32> to vector<8x128xf32>
    %8 = arith.addf %5, %7 : vector<8x128xf32>
    %c0_8 = arith.constant 0 : index
    %c0_9 = arith.constant 0 : index
    %9 = vector.load %arg5[%c0_8, %c0_9] : memref<128x128xf32, #tpu.memory_space<vmem>>, vector<128x128xf32>
    %cst_10 = arith.constant dense<0.000000e+00> : vector<8x128xf32>
    %10 = tpu.matmul %3, %9, %cst_10 {dimension_numbers = #tpu.dot_dimension_numbers<[1], [0], [0], [1], [0, 0, 1, 1], [], []>} : vector<8x128xf32>, vector<128x128xf32>, vector<8x128xf32> -> vector<8x128xf32>
    %c0_11 = arith.constant 0 : index
    %c0_12 = arith.constant 0 : index
    %11 = vector.load %arg6[%c0_11, %c0_12] : memref<1x128xf32, #tpu.memory_space<vmem>>, vector<1x128xf32>
    %12 = vector.broadcast %11 : vector<1x128xf32> to vector<8x128xf32>
    %13 = arith.addf %10, %12 : vector<8x128xf32>
    %14 = vector.shape_cast %0 : vector<8x8x128xf32> to vector<64x128xf32>
    %15 = arith.truncf %14 : vector<64x128xf32> to vector<64x128xbf16>
    %c0_13 = arith.constant 0 : index
    %c0_14 = arith.constant 0 : index
    %16 = vector.load %arg7[%c0_13, %c0_14] : memref<128x128xbf16, #tpu.memory_space<vmem>>, vector<128x128xbf16>
    %cst_15 = arith.constant dense<0.000000e+00> : vector<64x128xf32>
    %17 = tpu.matmul %15, %16, %cst_15 {dimension_numbers = #tpu.dot_dimension_numbers<[1], [0], [0], [1], [0, 0, 1, 1], [], []>} : vector<64x128xbf16>, vector<128x128xbf16>, vector<64x128xf32> -> vector<64x128xf32>
    %c0_16 = arith.constant 0 : index
    %c0_17 = arith.constant 0 : index
    %18 = vector.load %arg8[%c0_16, %c0_17] : memref<1x128xf32, #tpu.memory_space<vmem>>, vector<1x128xf32>
    %19 = vector.broadcast %18 : vector<1x128xf32> to vector<64x128xf32>
    %20 = arith.addf %17, %19 : vector<64x128xf32>
    %21 = vector.shape_cast %20 : vector<64x128xf32> to vector<8x8x128xf32>
    %c0_18 = arith.constant 0 : index
    %c0_19 = arith.constant 0 : index
    %c0_20 = arith.constant 0 : index
    %22 = vector.load %arg2[%c0_18, %c0_19, %c0_20] : memref<5x8x32xf32, #tpu.memory_space<vmem>>, vector<5x8x32xf32>
    %23 = vector.shape_cast %22 : vector<5x8x32xf32> to vector<40x32xf32>
    %24 = arith.truncf %23 : vector<40x32xf32> to vector<40x32xbf16>
    %c0_21 = arith.constant 0 : index
    %c0_22 = arith.constant 0 : index
    %25 = vector.load %arg12[%c0_21, %c0_22] : memref<32x512xbf16, #tpu.memory_space<vmem>>, vector<32x512xbf16>
    %cst_23 = arith.constant dense<0.000000e+00> : vector<40x512xf32>
    %26 = tpu.matmul %24, %25, %cst_23 {dimension_numbers = #tpu.dot_dimension_numbers<[1], [0], [0], [1], [0, 0, 1, 1], [], []>} : vector<40x32xbf16>, vector<32x512xbf16>, vector<40x512xf32> -> vector<40x512xf32>
    %c0_24 = arith.constant 0 : index
    %c0_25 = arith.constant 0 : index
    %27 = vector.load %arg13[%c0_24, %c0_25] : memref<1x512xf32, #tpu.memory_space<vmem>>, vector<1x512xf32>
    %28 = vector.broadcast %27 : vector<1x512xf32> to vector<40x512xf32>
    %29 = arith.addf %26, %28 : vector<40x512xf32>
    %30 = vector.shape_cast %29 : vector<40x512xf32> to vector<5x8x512xf32>
    %c0_26 = arith.constant 0 : index
    %c0_27 = arith.constant 0 : index
    %c0_28 = arith.constant 0 : index
    %31 = vector.load %arg18[%c0_26, %c0_27, %c0_28] : memref<5x8x512xf32, #tpu.memory_space<vmem>>, vector<5x8x512xf32>
    tpu.vector_store %arg18[%c0_26, %c0_27, %c0_28], %30 {strides = array<i32>} : memref<5x8x512xf32, #tpu.memory_space<vmem>>, vector<5x8x512xf32>,
    %c0_i32 = arith.constant 0 : i32
    %32 = arith.truncf %8 : vector<8x128xf32> to vector<8x128xbf16>
    %c0_29 = arith.constant 0 : index
    %c0_30 = arith.constant 0 : index
    %33 = vector.load %arg9[%c0_29, %c0_30] : memref<128x128xbf16, #tpu.memory_space<vmem>>, vector<128x128xbf16>
    %cst_31 = arith.constant dense<0.000000e+00> : vector<8x128xf32>
    %34 = tpu.matmul %32, %33, %cst_31 {dimension_numbers = #tpu.dot_dimension_numbers<[1], [0], [0], [1], [0, 0, 1, 1], [], []>} : vector<8x128xbf16>, vector<128x128xbf16>, vector<8x128xf32> -> vector<8x128xf32>
    %35 = vector.shape_cast %34 : vector<8x128xf32> to vector<8x1x128xf32>
    %36 = vector.broadcast %35 : vector<8x1x128xf32> to vector<8x8x128xf32>
    %37 = arith.addf %21, %36 : vector<8x8x128xf32>
    %38 = math.tanh %37 : vector<8x8x128xf32>
    %c0_32 = arith.constant 0 : index
    %c0_33 = arith.constant 0 : index
    %39 = vector.load %arg10[%c0_32, %c0_33] : memref<1x128xf32, #tpu.memory_space<vmem>>, vector<1x128xf32>
    %40 = vector.shape_cast %39 : vector<1x128xf32> to vector<1x1x128xf32>
    %41 = vector.broadcast %40 : vector<1x1x128xf32> to vector<8x8x128xf32>
    %42 = arith.mulf %38, %41 : vector<8x8x128xf32>
    %cst_34 = arith.constant dense<0.000000e+00> : vector<8x8xf32>
    %43 = vector.multi_reduction <add>, %42, %cst_34 [2] : vector<8x8x128xf32> to vector<8x8xf32>
    %44 = vector.shape_cast %43 : vector<8x8xf32> to vector<8x8x1xf32>
    %cst_35 = arith.constant dense<0xFF800000> : vector<8x1xf32>
    %45 = vector.multi_reduction <maximumf>, %44, %cst_35 [1] : vector<8x8x1xf32> to vector<8x1xf32>
    %46 = vector.shape_cast %45 : vector<8x1xf32> to vector<8x1x1xf32>
    %47 = vector.broadcast %46 : vector<8x1x1xf32> to vector<8x8x1xf32>
    %48 = arith.subf %44, %47 : vector<8x8x1xf32>
    %49 = math.exp %48 : vector<8x8x1xf32>
    %cst_36 = arith.constant dense<0.000000e+00> : vector<8x1xf32>
    %50 = vector.multi_reduction <add>, %49, %cst_36 [1] : vector<8x8x1xf32> to vector<8x1xf32>
    %51 = vector.shape_cast %50 : vector<8x1xf32> to vector<8x1x1xf32>
    %52 = tpu.reciprocal %51 {approx = true} : vector<8x1x1xf32> -> vector<8x1x1xf32>
    %53 = vector.broadcast %52 : vector<8x1x1xf32> to vector<8x8x1xf32>
    %54 = arith.mulf %49, %53 : vector<8x8x1xf32>
    %c0_37 = arith.constant 0 : index
    %c0_38 = arith.constant 0 : index
    %c0_39 = arith.constant 0 : index
    %55 = vector.load %arg1[%c0_37, %c0_38, %c0_39] : memref<8x8x128xf32, #tpu.memory_space<vmem>>, vector<8x8x128xf32>
    %56 = vector.broadcast %54 : vector<8x8x1xf32> to vector<8x8x128xf32>
    %57 = arith.mulf %56, %55 : vector<8x8x128xf32>
    %cst_40 = arith.constant dense<0.000000e+00> : vector<8x128xf32>
    %58 = vector.multi_reduction <add>, %57, %cst_40 [1] : vector<8x8x128xf32> to vector<8x128xf32>
    %59 = tpu.concatenate %58, %8 in 1 : vector<8x128xf32>, vector<8x128xf32> -> vector<8x256xf32>
    %60 = arith.truncf %59 : vector<8x256xf32> to vector<8x256xbf16>
    %c0_41 = arith.constant 0 : index
    %c0_42 = arith.constant 0 : index
    %61 = vector.load %arg11[%c0_41, %c0_42] : memref<256x512xbf16, #tpu.memory_space<vmem>>, vector<256x512xbf16>
    %cst_43 = arith.constant dense<0.000000e+00> : vector<8x512xf32>
    %62 = tpu.matmul %60, %61, %cst_43 {dimension_numbers = #tpu.dot_dimension_numbers<[1], [0], [0], [1], [0, 0, 1, 1], [], []>} : vector<8x256xbf16>, vector<256x512xbf16>, vector<8x512xf32> -> vector<8x512xf32>
    %63 = arith.index_cast %c0_i32 : i32 to index
    %c0_44 = arith.constant 0 : index
    %c0_45 = arith.constant 0 : index
    %64 = vector.load %arg18[%63, %c0_44, %c0_45] : memref<5x8x512xf32, #tpu.memory_space<vmem>>, vector<1x8x512xf32>
    %65 = vector.shape_cast %64 : vector<1x8x512xf32> to vector<8x512xf32>
    %66 = arith.addf %62, %65 : vector<8x512xf32>
    %67 = vector.extract_strided_slice %66 {offsets = [0, 0], sizes = [8, 128], strides = [1, 1]} : vector<8x512xf32> to vector<8x128xf32>
    %68 = arith.negf %67 : vector<8x128xf32>
    %69 = math.exp %68 : vector<8x128xf32>
    %cst_46 = arith.constant 1.000000e+00 : f32
    %70 = vector.broadcast %cst_46 : f32 to vector<8x128xf32>
    %71 = arith.addf %70, %69 : vector<8x128xf32>
    %72 = arith.divf %70, %71 : vector<8x128xf32>
    %73 = vector.extract_strided_slice %66 {offsets = [0, 128], sizes = [8, 128], strides = [1, 1]} : vector<8x512xf32> to vector<8x128xf32>
    %74 = arith.negf %73 : vector<8x128xf32>
    %75 = math.exp %74 : vector<8x128xf32>
    %cst_47 = arith.constant 1.000000e+00 : f32
    %76 = vector.broadcast %cst_47 : f32 to vector<8x128xf32>
    %77 = arith.addf %76, %75 : vector<8x128xf32>
    %78 = arith.divf %76, %77 : vector<8x128xf32>
    %79 = vector.extract_strided_slice %66 {offsets = [0, 256], sizes = [8, 128], strides = [1, 1]} : vector<8x512xf32> to vector<8x128xf32>
    %80 = math.tanh %79 : vector<8x128xf32>
    %81 = vector.extract_strided_slice %66 {offsets = [0, 384], sizes = [8, 128], strides = [1, 1]} : vector<8x512xf32> to vector<8x128xf32>
    %82 = arith.negf %81 : vector<8x128xf32>
    %83 = math.exp %82 : vector<8x128xf32>
    %cst_48 = arith.constant 1.000000e+00 : f32
    %84 = vector.broadcast %cst_48 : f32 to vector<8x128xf32>
    %85 = arith.addf %84, %83 : vector<8x128xf32>
    %86 = arith.divf %84, %85 : vector<8x128xf32>
    %87 = arith.mulf %78, %13 : vector<8x128xf32>
    %88 = arith.mulf %72, %80 : vector<8x128xf32>
    %89 = arith.addf %87, %88 : vector<8x128xf32>
    %90 = math.tanh %89 : vector<8x128xf32>
    %91 = arith.mulf %86, %90 : vector<8x128xf32>
    %92 = arith.truncf %91 : vector<8x128xf32> to vector<8x128xbf16>
    %c0_49 = arith.constant 0 : index
    %c0_50 = arith.constant 0 : index
    %93 = vector.load %arg14[%c0_49, %c0_50] : memref<128x128xbf16, #tpu.memory_space<vmem>>, vector<128x128xbf16>
    %cst_51 = arith.constant dense<0.000000e+00> : vector<8x128xf32>
    %94 = tpu.matmul %92, %93, %cst_51 {dimension_numbers = #tpu.dot_dimension_numbers<[1], [0], [0], [1], [0, 0, 1, 1], [], []>} : vector<8x128xbf16>, vector<128x128xbf16>, vector<8x128xf32> -> vector<8x128xf32>
    %c0_52 = arith.constant 0 : index
    %c0_53 = arith.constant 0 : index
    %95 = vector.load %arg15[%c0_52, %c0_53] : memref<1x128xf32, #tpu.memory_space<vmem>>, vector<1x128xf32>
    %96 = vector.broadcast %95 : vector<1x128xf32> to vector<8x128xf32>
    %97 = arith.addf %94, %96 : vector<8x128xf32>
    %98 = arith.index_cast %c0_i32 : i32 to index
    %c0_54 = arith.constant 0 : index
    %c0_55 = arith.constant 0 : index
    %99 = vector.load %arg16[%98, %c0_54, %c0_55] : memref<5x8x128xf32, #tpu.memory_space<vmem>>, vector<1x8x128xf32>
    %100 = vector.shape_cast %99 : vector<1x8x128xf32> to vector<8x128xf32>
    %101 = vector.shape_cast %97 : vector<8x128xf32> to vector<1x8x128xf32>
    tpu.vector_store %arg16[%98, %c0_54, %c0_55], %101 {strides = array<i32>} : memref<5x8x128xf32, #tpu.memory_space<vmem>>, vector<1x8x128xf32>,
    %102 = vector.shape_cast %54 : vector<8x8x1xf32> to vector<8x8xf32>
    %103 = arith.index_cast %c0_i32 : i32 to index
    %c0_56 = arith.constant 0 : index
    %c0_57 = arith.constant 0 : index
    %104 = vector.load %arg17[%103, %c0_56, %c0_57] : memref<5x8x8xf32, #tpu.memory_space<vmem>>, vector<1x8x8xf32>
    %105 = vector.shape_cast %104 : vector<1x8x8xf32> to vector<8x8xf32>
    %106 = vector.shape_cast %102 : vector<8x8xf32> to vector<1x8x8xf32>
    tpu.vector_store %arg17[%103, %c0_56, %c0_57], %106 {strides = array<i32>} : memref<5x8x8xf32, #tpu.memory_space<vmem>>, vector<1x8x8xf32>,
    %c1_i32 = arith.constant 1 : i32
    %107 = arith.truncf %91 : vector<8x128xf32> to vector<8x128xbf16>
    %c0_58 = arith.constant 0 : index
    %c0_59 = arith.constant 0 : index
    %108 = vector.load %arg9[%c0_58, %c0_59] : memref<128x128xbf16, #tpu.memory_space<vmem>>, vector<128x128xbf16>
    %cst_60 = arith.constant dense<0.000000e+00> : vector<8x128xf32>
    %109 = tpu.matmul %107, %108, %cst_60 {dimension_numbers = #tpu.dot_dimension_numbers<[1], [0], [0], [1], [0, 0, 1, 1], [], []>} : vector<8x128xbf16>, vector<128x128xbf16>, vector<8x128xf32> -> vector<8x128xf32>
    %110 = vector.shape_cast %109 : vector<8x128xf32> to vector<8x1x128xf32>
    %111 = vector.broadcast %110 : vector<8x1x128xf32> to vector<8x8x128xf32>
    %112 = arith.addf %21, %111 : vector<8x8x128xf32>
    %113 = math.tanh %112 : vector<8x8x128xf32>
    %c0_61 = arith.constant 0 : index
    %c0_62 = arith.constant 0 : index
    %114 = vector.load %arg10[%c0_61, %c0_62] : memref<1x128xf32, #tpu.memory_space<vmem>>, vector<1x128xf32>
    %115 = vector.shape_cast %114 : vector<1x128xf32> to vector<1x1x128xf32>
    %116 = vector.broadcast %115 : vector<1x1x128xf32> to vector<8x8x128xf32>
    %117 = arith.mulf %113, %116 : vector<8x8x128xf32>
    %cst_63 = arith.constant dense<0.000000e+00> : vector<8x8xf32>
    %118 = vector.multi_reduction <add>, %117, %cst_63 [2] : vector<8x8x128xf32> to vector<8x8xf32>
    %119 = vector.shape_cast %118 : vector<8x8xf32> to vector<8x8x1xf32>
    %cst_64 = arith.constant dense<0xFF800000> : vector<8x1xf32>
    %120 = vector.multi_reduction <maximumf>, %119, %cst_64 [1] : vector<8x8x1xf32> to vector<8x1xf32>
    %121 = vector.shape_cast %120 : vector<8x1xf32> to vector<8x1x1xf32>
    %122 = vector.broadcast %121 : vector<8x1x1xf32> to vector<8x8x1xf32>
    %123 = arith.subf %119, %122 : vector<8x8x1xf32>
    %124 = math.exp %123 : vector<8x8x1xf32>
    %cst_65 = arith.constant dense<0.000000e+00> : vector<8x1xf32>
    %125 = vector.multi_reduction <add>, %124, %cst_65 [1] : vector<8x8x1xf32> to vector<8x1xf32>
    %126 = vector.shape_cast %125 : vector<8x1xf32> to vector<8x1x1xf32>
    %127 = tpu.reciprocal %126 {approx = true} : vector<8x1x1xf32> -> vector<8x1x1xf32>
    %128 = vector.broadcast %127 : vector<8x1x1xf32> to vector<8x8x1xf32>
    %129 = arith.mulf %124, %128 : vector<8x8x1xf32>
    %c0_66 = arith.constant 0 : index
    %c0_67 = arith.constant 0 : index
    %c0_68 = arith.constant 0 : index
    %130 = vector.load %arg1[%c0_66, %c0_67, %c0_68] : memref<8x8x128xf32, #tpu.memory_space<vmem>>, vector<8x8x128xf32>
    %131 = vector.broadcast %129 : vector<8x8x1xf32> to vector<8x8x128xf32>
    %132 = arith.mulf %131, %130 : vector<8x8x128xf32>
    %cst_69 = arith.constant dense<0.000000e+00> : vector<8x128xf32>
    %133 = vector.multi_reduction <add>, %132, %cst_69 [1] : vector<8x8x128xf32> to vector<8x128xf32>
    %134 = tpu.concatenate %133, %91 in 1 : vector<8x128xf32>, vector<8x128xf32> -> vector<8x256xf32>
    %135 = arith.truncf %134 : vector<8x256xf32> to vector<8x256xbf16>
    %c0_70 = arith.constant 0 : index
    %c0_71 = arith.constant 0 : index
    %136 = vector.load %arg11[%c0_70, %c0_71] : memref<256x512xbf16, #tpu.memory_space<vmem>>, vector<256x512xbf16>
    %cst_72 = arith.constant dense<0.000000e+00> : vector<8x512xf32>
    %137 = tpu.matmul %135, %136, %cst_72 {dimension_numbers = #tpu.dot_dimension_numbers<[1], [0], [0], [1], [0, 0, 1, 1], [], []>} : vector<8x256xbf16>, vector<256x512xbf16>, vector<8x512xf32> -> vector<8x512xf32>
    %138 = arith.index_cast %c1_i32 : i32 to index
    %c0_73 = arith.constant 0 : index
    %c0_74 = arith.constant 0 : index
    %139 = vector.load %arg18[%138, %c0_73, %c0_74] : memref<5x8x512xf32, #tpu.memory_space<vmem>>, vector<1x8x512xf32>
    %140 = vector.shape_cast %139 : vector<1x8x512xf32> to vector<8x512xf32>
    %141 = arith.addf %137, %140 : vector<8x512xf32>
    %142 = vector.extract_strided_slice %141 {offsets = [0, 0], sizes = [8, 128], strides = [1, 1]} : vector<8x512xf32> to vector<8x128xf32>
    %143 = arith.negf %142 : vector<8x128xf32>
    %144 = math.exp %143 : vector<8x128xf32>
    %cst_75 = arith.constant 1.000000e+00 : f32
    %145 = vector.broadcast %cst_75 : f32 to vector<8x128xf32>
    %146 = arith.addf %145, %144 : vector<8x128xf32>
    %147 = arith.divf %145, %146 : vector<8x128xf32>
    %148 = vector.extract_strided_slice %141 {offsets = [0, 128], sizes = [8, 128], strides = [1, 1]} : vector<8x512xf32> to vector<8x128xf32>
    %149 = arith.negf %148 : vector<8x128xf32>
    %150 = math.exp %149 : vector<8x128xf32>
    %cst_76 = arith.constant 1.000000e+00 : f32
    %151 = vector.broadcast %cst_76 : f32 to vector<8x128xf32>
    %152 = arith.addf %151, %150 : vector<8x128xf32>
    %153 = arith.divf %151, %152 : vector<8x128xf32>
    %154 = vector.extract_strided_slice %141 {offsets = [0, 256], sizes = [8, 128], strides = [1, 1]} : vector<8x512xf32> to vector<8x128xf32>
    %155 = math.tanh %154 : vector<8x128xf32>
    %156 = vector.extract_strided_slice %141 {offsets = [0, 384], sizes = [8, 128], strides = [1, 1]} : vector<8x512xf32> to vector<8x128xf32>
    %157 = arith.negf %156 : vector<8x128xf32>
    %158 = math.exp %157 : vector<8x128xf32>
    %cst_77 = arith.constant 1.000000e+00 : f32
    %159 = vector.broadcast %cst_77 : f32 to vector<8x128xf32>
    %160 = arith.addf %159, %158 : vector<8x128xf32>
    %161 = arith.divf %159, %160 : vector<8x128xf32>
    %162 = arith.mulf %153, %89 : vector<8x128xf32>
    %163 = arith.mulf %147, %155 : vector<8x128xf32>
    %164 = arith.addf %162, %163 : vector<8x128xf32>
    %165 = math.tanh %164 : vector<8x128xf32>
    %166 = arith.mulf %161, %165 : vector<8x128xf32>
    %167 = arith.truncf %166 : vector<8x128xf32> to vector<8x128xbf16>
    %c0_78 = arith.constant 0 : index
    %c0_79 = arith.constant 0 : index
    %168 = vector.load %arg14[%c0_78, %c0_79] : memref<128x128xbf16, #tpu.memory_space<vmem>>, vector<128x128xbf16>
    %cst_80 = arith.constant dense<0.000000e+00> : vector<8x128xf32>
    %169 = tpu.matmul %167, %168, %cst_80 {dimension_numbers = #tpu.dot_dimension_numbers<[1], [0], [0], [1], [0, 0, 1, 1], [], []>} : vector<8x128xbf16>, vector<128x128xbf16>, vector<8x128xf32> -> vector<8x128xf32>
    %c0_81 = arith.constant 0 : index
    %c0_82 = arith.constant 0 : index
    %170 = vector.load %arg15[%c0_81, %c0_82] : memref<1x128xf32, #tpu.memory_space<vmem>>, vector<1x128xf32>
    %171 = vector.broadcast %170 : vector<1x128xf32> to vector<8x128xf32>
    %172 = arith.addf %169, %171 : vector<8x128xf32>
    %173 = arith.index_cast %c1_i32 : i32 to index
    %c0_83 = arith.constant 0 : index
    %c0_84 = arith.constant 0 : index
    %174 = vector.load %arg16[%173, %c0_83, %c0_84] : memref<5x8x128xf32, #tpu.memory_space<vmem>>, vector<1x8x128xf32>
    %175 = vector.shape_cast %174 : vector<1x8x128xf32> to vector<8x128xf32>
    %176 = vector.shape_cast %172 : vector<8x128xf32> to vector<1x8x128xf32>
    tpu.vector_store %arg16[%173, %c0_83, %c0_84], %176 {strides = array<i32>} : memref<5x8x128xf32, #tpu.memory_space<vmem>>, vector<1x8x128xf32>,
    %177 = vector.shape_cast %129 : vector<8x8x1xf32> to vector<8x8xf32>
    %178 = arith.index_cast %c1_i32 : i32 to index
    %c0_85 = arith.constant 0 : index
    %c0_86 = arith.constant 0 : index
    %179 = vector.load %arg17[%178, %c0_85, %c0_86] : memref<5x8x8xf32, #tpu.memory_space<vmem>>, vector<1x8x8xf32>
    %180 = vector.shape_cast %179 : vector<1x8x8xf32> to vector<8x8xf32>
    %181 = vector.shape_cast %177 : vector<8x8xf32> to vector<1x8x8xf32>
    tpu.vector_store %arg17[%178, %c0_85, %c0_86], %181 {strides = array<i32>} : memref<5x8x8xf32, #tpu.memory_space<vmem>>, vector<1x8x8xf32>,
    %c2_i32 = arith.constant 2 : i32
    %182 = arith.truncf %166 : vector<8x128xf32> to vector<8x128xbf16>
    %c0_87 = arith.constant 0 : index
    %c0_88 = arith.constant 0 : index
    %183 = vector.load %arg9[%c0_87, %c0_88] : memref<128x128xbf16, #tpu.memory_space<vmem>>, vector<128x128xbf16>
    %cst_89 = arith.constant dense<0.000000e+00> : vector<8x128xf32>
    %184 = tpu.matmul %182, %183, %cst_89 {dimension_numbers = #tpu.dot_dimension_numbers<[1], [0], [0], [1], [0, 0, 1, 1], [], []>} : vector<8x128xbf16>, vector<128x128xbf16>, vector<8x128xf32> -> vector<8x128xf32>
    %185 = vector.shape_cast %184 : vector<8x128xf32> to vector<8x1x128xf32>
    %186 = vector.broadcast %185 : vector<8x1x128xf32> to vector<8x8x128xf32>
    %187 = arith.addf %21, %186 : vector<8x8x128xf32>
    %188 = math.tanh %187 : vector<8x8x128xf32>
    %c0_90 = arith.constant 0 : index
    %c0_91 = arith.constant 0 : index
    %189 = vector.load %arg10[%c0_90, %c0_91] : memref<1x128xf32, #tpu.memory_space<vmem>>, vector<1x128xf32>
    %190 = vector.shape_cast %189 : vector<1x128xf32> to vector<1x1x128xf32>
    %191 = vector.broadcast %190 : vector<1x1x128xf32> to vector<8x8x128xf32>
    %192 = arith.mulf %188, %191 : vector<8x8x128xf32>
    %cst_92 = arith.constant dense<0.000000e+00> : vector<8x8xf32>
    %193 = vector.multi_reduction <add>, %192, %cst_92 [2] : vector<8x8x128xf32> to vector<8x8xf32>
    %194 = vector.shape_cast %193 : vector<8x8xf32> to vector<8x8x1xf32>
    %cst_93 = arith.constant dense<0xFF800000> : vector<8x1xf32>
    %195 = vector.multi_reduction <maximumf>, %194, %cst_93 [1] : vector<8x8x1xf32> to vector<8x1xf32>
    %196 = vector.shape_cast %195 : vector<8x1xf32> to vector<8x1x1xf32>
    %197 = vector.broadcast %196 : vector<8x1x1xf32> to vector<8x8x1xf32>
    %198 = arith.subf %194, %197 : vector<8x8x1xf32>
    %199 = math.exp %198 : vector<8x8x1xf32>
    %cst_94 = arith.constant dense<0.000000e+00> : vector<8x1xf32>
    %200 = vector.multi_reduction <add>, %199, %cst_94 [1] : vector<8x8x1xf32> to vector<8x1xf32>
    %201 = vector.shape_cast %200 : vector<8x1xf32> to vector<8x1x1xf32>
    %202 = tpu.reciprocal %201 {approx = true} : vector<8x1x1xf32> -> vector<8x1x1xf32>
    %203 = vector.broadcast %202 : vector<8x1x1xf32> to vector<8x8x1xf32>
    %204 = arith.mulf %199, %203 : vector<8x8x1xf32>
    %c0_95 = arith.constant 0 : index
    %c0_96 = arith.constant 0 : index
    %c0_97 = arith.constant 0 : index
    %205 = vector.load %arg1[%c0_95, %c0_96, %c0_97] : memref<8x8x128xf32, #tpu.memory_space<vmem>>, vector<8x8x128xf32>
    %206 = vector.broadcast %204 : vector<8x8x1xf32> to vector<8x8x128xf32>
    %207 = arith.mulf %206, %205 : vector<8x8x128xf32>
    %cst_98 = arith.constant dense<0.000000e+00> : vector<8x128xf32>
    %208 = vector.multi_reduction <add>, %207, %cst_98 [1] : vector<8x8x128xf32> to vector<8x128xf32>
    %209 = tpu.concatenate %208, %166 in 1 : vector<8x128xf32>, vector<8x128xf32> -> vector<8x256xf32>
    %210 = arith.truncf %209 : vector<8x256xf32> to vector<8x256xbf16>
    %c0_99 = arith.constant 0 : index
    %c0_100 = arith.constant 0 : index
    %211 = vector.load %arg11[%c0_99, %c0_100] : memref<256x512xbf16, #tpu.memory_space<vmem>>, vector<256x512xbf16>
    %cst_101 = arith.constant dense<0.000000e+00> : vector<8x512xf32>
    %212 = tpu.matmul %210, %211, %cst_101 {dimension_numbers = #tpu.dot_dimension_numbers<[1], [0], [0], [1], [0, 0, 1, 1], [], []>} : vector<8x256xbf16>, vector<256x512xbf16>, vector<8x512xf32> -> vector<8x512xf32>
    %213 = arith.index_cast %c2_i32 : i32 to index
    %c0_102 = arith.constant 0 : index
    %c0_103 = arith.constant 0 : index
    %214 = vector.load %arg18[%213, %c0_102, %c0_103] : memref<5x8x512xf32, #tpu.memory_space<vmem>>, vector<1x8x512xf32>
    %215 = vector.shape_cast %214 : vector<1x8x512xf32> to vector<8x512xf32>
    %216 = arith.addf %212, %215 : vector<8x512xf32>
    %217 = vector.extract_strided_slice %216 {offsets = [0, 0], sizes = [8, 128], strides = [1, 1]} : vector<8x512xf32> to vector<8x128xf32>
    %218 = arith.negf %217 : vector<8x128xf32>
    %219 = math.exp %218 : vector<8x128xf32>
    %cst_104 = arith.constant 1.000000e+00 : f32
    %220 = vector.broadcast %cst_104 : f32 to vector<8x128xf32>
    %221 = arith.addf %220, %219 : vector<8x128xf32>
    %222 = arith.divf %220, %221 : vector<8x128xf32>
    %223 = vector.extract_strided_slice %216 {offsets = [0, 128], sizes = [8, 128], strides = [1, 1]} : vector<8x512xf32> to vector<8x128xf32>
    %224 = arith.negf %223 : vector<8x128xf32>
    %225 = math.exp %224 : vector<8x128xf32>
    %cst_105 = arith.constant 1.000000e+00 : f32
    %226 = vector.broadcast %cst_105 : f32 to vector<8x128xf32>
    %227 = arith.addf %226, %225 : vector<8x128xf32>
    %228 = arith.divf %226, %227 : vector<8x128xf32>
    %229 = vector.extract_strided_slice %216 {offsets = [0, 256], sizes = [8, 128], strides = [1, 1]} : vector<8x512xf32> to vector<8x128xf32>
    %230 = math.tanh %229 : vector<8x128xf32>
    %231 = vector.extract_strided_slice %216 {offsets = [0, 384], sizes = [8, 128], strides = [1, 1]} : vector<8x512xf32> to vector<8x128xf32>
    %232 = arith.negf %231 : vector<8x128xf32>
    %233 = math.exp %232 : vector<8x128xf32>
    %cst_106 = arith.constant 1.000000e+00 : f32
    %234 = vector.broadcast %cst_106 : f32 to vector<8x128xf32>
    %235 = arith.addf %234, %233 : vector<8x128xf32>
    %236 = arith.divf %234, %235 : vector<8x128xf32>
    %237 = arith.mulf %228, %164 : vector<8x128xf32>
    %238 = arith.mulf %222, %230 : vector<8x128xf32>
    %239 = arith.addf %237, %238 : vector<8x128xf32>
    %240 = math.tanh %239 : vector<8x128xf32>
    %241 = arith.mulf %236, %240 : vector<8x128xf32>
    %242 = arith.truncf %241 : vector<8x128xf32> to vector<8x128xbf16>
    %c0_107 = arith.constant 0 : index
    %c0_108 = arith.constant 0 : index
    %243 = vector.load %arg14[%c0_107, %c0_108] : memref<128x128xbf16, #tpu.memory_space<vmem>>, vector<128x128xbf16>
    %cst_109 = arith.constant dense<0.000000e+00> : vector<8x128xf32>
    %244 = tpu.matmul %242, %243, %cst_109 {dimension_numbers = #tpu.dot_dimension_numbers<[1], [0], [0], [1], [0, 0, 1, 1], [], []>} : vector<8x128xbf16>, vector<128x128xbf16>, vector<8x128xf32> -> vector<8x128xf32>
    %c0_110 = arith.constant 0 : index
    %c0_111 = arith.constant 0 : index
    %245 = vector.load %arg15[%c0_110, %c0_111] : memref<1x128xf32, #tpu.memory_space<vmem>>, vector<1x128xf32>
    %246 = vector.broadcast %245 : vector<1x128xf32> to vector<8x128xf32>
    %247 = arith.addf %244, %246 : vector<8x128xf32>
    %248 = arith.index_cast %c2_i32 : i32 to index
    %c0_112 = arith.constant 0 : index
    %c0_113 = arith.constant 0 : index
    %249 = vector.load %arg16[%248, %c0_112, %c0_113] : memref<5x8x128xf32, #tpu.memory_space<vmem>>, vector<1x8x128xf32>
    %250 = vector.shape_cast %249 : vector<1x8x128xf32> to vector<8x128xf32>
    %251 = vector.shape_cast %247 : vector<8x128xf32> to vector<1x8x128xf32>
    tpu.vector_store %arg16[%248, %c0_112, %c0_113], %251 {strides = array<i32>} : memref<5x8x128xf32, #tpu.memory_space<vmem>>, vector<1x8x128xf32>,
    %252 = vector.shape_cast %204 : vector<8x8x1xf32> to vector<8x8xf32>
    %253 = arith.index_cast %c2_i32 : i32 to index
    %c0_114 = arith.constant 0 : index
    %c0_115 = arith.constant 0 : index
    %254 = vector.load %arg17[%253, %c0_114, %c0_115] : memref<5x8x8xf32, #tpu.memory_space<vmem>>, vector<1x8x8xf32>
    %255 = vector.shape_cast %254 : vector<1x8x8xf32> to vector<8x8xf32>
    %256 = vector.shape_cast %252 : vector<8x8xf32> to vector<1x8x8xf32>
    tpu.vector_store %arg17[%253, %c0_114, %c0_115], %256 {strides = array<i32>} : memref<5x8x8xf32, #tpu.memory_space<vmem>>, vector<1x8x8xf32>,
    %c3_i32 = arith.constant 3 : i32
    %257 = arith.truncf %241 : vector<8x128xf32> to vector<8x128xbf16>
    %c0_116 = arith.constant 0 : index
    %c0_117 = arith.constant 0 : index
    %258 = vector.load %arg9[%c0_116, %c0_117] : memref<128x128xbf16, #tpu.memory_space<vmem>>, vector<128x128xbf16>
    %cst_118 = arith.constant dense<0.000000e+00> : vector<8x128xf32>
    %259 = tpu.matmul %257, %258, %cst_118 {dimension_numbers = #tpu.dot_dimension_numbers<[1], [0], [0], [1], [0, 0, 1, 1], [], []>} : vector<8x128xbf16>, vector<128x128xbf16>, vector<8x128xf32> -> vector<8x128xf32>
    %260 = vector.shape_cast %259 : vector<8x128xf32> to vector<8x1x128xf32>
    %261 = vector.broadcast %260 : vector<8x1x128xf32> to vector<8x8x128xf32>
    %262 = arith.addf %21, %261 : vector<8x8x128xf32>
    %263 = math.tanh %262 : vector<8x8x128xf32>
    %c0_119 = arith.constant 0 : index
    %c0_120 = arith.constant 0 : index
    %264 = vector.load %arg10[%c0_119, %c0_120] : memref<1x128xf32, #tpu.memory_space<vmem>>, vector<1x128xf32>
    %265 = vector.shape_cast %264 : vector<1x128xf32> to vector<1x1x128xf32>
    %266 = vector.broadcast %265 : vector<1x1x128xf32> to vector<8x8x128xf32>
    %267 = arith.mulf %263, %266 : vector<8x8x128xf32>
    %cst_121 = arith.constant dense<0.000000e+00> : vector<8x8xf32>
    %268 = vector.multi_reduction <add>, %267, %cst_121 [2] : vector<8x8x128xf32> to vector<8x8xf32>
    %269 = vector.shape_cast %268 : vector<8x8xf32> to vector<8x8x1xf32>
    %cst_122 = arith.constant dense<0xFF800000> : vector<8x1xf32>
    %270 = vector.multi_reduction <maximumf>, %269, %cst_122 [1] : vector<8x8x1xf32> to vector<8x1xf32>
    %271 = vector.shape_cast %270 : vector<8x1xf32> to vector<8x1x1xf32>
    %272 = vector.broadcast %271 : vector<8x1x1xf32> to vector<8x8x1xf32>
    %273 = arith.subf %269, %272 : vector<8x8x1xf32>
    %274 = math.exp %273 : vector<8x8x1xf32>
    %cst_123 = arith.constant dense<0.000000e+00> : vector<8x1xf32>
    %275 = vector.multi_reduction <add>, %274, %cst_123 [1] : vector<8x8x1xf32> to vector<8x1xf32>
    %276 = vector.shape_cast %275 : vector<8x1xf32> to vector<8x1x1xf32>
    %277 = tpu.reciprocal %276 {approx = true} : vector<8x1x1xf32> -> vector<8x1x1xf32>
    %278 = vector.broadcast %277 : vector<8x1x1xf32> to vector<8x8x1xf32>
    %279 = arith.mulf %274, %278 : vector<8x8x1xf32>
    %c0_124 = arith.constant 0 : index
    %c0_125 = arith.constant 0 : index
    %c0_126 = arith.constant 0 : index
    %280 = vector.load %arg1[%c0_124, %c0_125, %c0_126] : memref<8x8x128xf32, #tpu.memory_space<vmem>>, vector<8x8x128xf32>
    %281 = vector.broadcast %279 : vector<8x8x1xf32> to vector<8x8x128xf32>
    %282 = arith.mulf %281, %280 : vector<8x8x128xf32>
    %cst_127 = arith.constant dense<0.000000e+00> : vector<8x128xf32>
    %283 = vector.multi_reduction <add>, %282, %cst_127 [1] : vector<8x8x128xf32> to vector<8x128xf32>
    %284 = tpu.concatenate %283, %241 in 1 : vector<8x128xf32>, vector<8x128xf32> -> vector<8x256xf32>
    %285 = arith.truncf %284 : vector<8x256xf32> to vector<8x256xbf16>
    %c0_128 = arith.constant 0 : index
    %c0_129 = arith.constant 0 : index
    %286 = vector.load %arg11[%c0_128, %c0_129] : memref<256x512xbf16, #tpu.memory_space<vmem>>, vector<256x512xbf16>
    %cst_130 = arith.constant dense<0.000000e+00> : vector<8x512xf32>
    %287 = tpu.matmul %285, %286, %cst_130 {dimension_numbers = #tpu.dot_dimension_numbers<[1], [0], [0], [1], [0, 0, 1, 1], [], []>} : vector<8x256xbf16>, vector<256x512xbf16>, vector<8x512xf32> -> vector<8x512xf32>
    %288 = arith.index_cast %c3_i32 : i32 to index
    %c0_131 = arith.constant 0 : index
    %c0_132 = arith.constant 0 : index
    %289 = vector.load %arg18[%288, %c0_131, %c0_132] : memref<5x8x512xf32, #tpu.memory_space<vmem>>, vector<1x8x512xf32>
    %290 = vector.shape_cast %289 : vector<1x8x512xf32> to vector<8x512xf32>
    %291 = arith.addf %287, %290 : vector<8x512xf32>
    %292 = vector.extract_strided_slice %291 {offsets = [0, 0], sizes = [8, 128], strides = [1, 1]} : vector<8x512xf32> to vector<8x128xf32>
    %293 = arith.negf %292 : vector<8x128xf32>
    %294 = math.exp %293 : vector<8x128xf32>
    %cst_133 = arith.constant 1.000000e+00 : f32
    %295 = vector.broadcast %cst_133 : f32 to vector<8x128xf32>
    %296 = arith.addf %295, %294 : vector<8x128xf32>
    %297 = arith.divf %295, %296 : vector<8x128xf32>
    %298 = vector.extract_strided_slice %291 {offsets = [0, 128], sizes = [8, 128], strides = [1, 1]} : vector<8x512xf32> to vector<8x128xf32>
    %299 = arith.negf %298 : vector<8x128xf32>
    %300 = math.exp %299 : vector<8x128xf32>
    %cst_134 = arith.constant 1.000000e+00 : f32
    %301 = vector.broadcast %cst_134 : f32 to vector<8x128xf32>
    %302 = arith.addf %301, %300 : vector<8x128xf32>
    %303 = arith.divf %301, %302 : vector<8x128xf32>
    %304 = vector.extract_strided_slice %291 {offsets = [0, 256], sizes = [8, 128], strides = [1, 1]} : vector<8x512xf32> to vector<8x128xf32>
    %305 = math.tanh %304 : vector<8x128xf32>
    %306 = vector.extract_strided_slice %291 {offsets = [0, 384], sizes = [8, 128], strides = [1, 1]} : vector<8x512xf32> to vector<8x128xf32>
    %307 = arith.negf %306 : vector<8x128xf32>
    %308 = math.exp %307 : vector<8x128xf32>
    %cst_135 = arith.constant 1.000000e+00 : f32
    %309 = vector.broadcast %cst_135 : f32 to vector<8x128xf32>
    %310 = arith.addf %309, %308 : vector<8x128xf32>
    %311 = arith.divf %309, %310 : vector<8x128xf32>
    %312 = arith.mulf %303, %239 : vector<8x128xf32>
    %313 = arith.mulf %297, %305 : vector<8x128xf32>
    %314 = arith.addf %312, %313 : vector<8x128xf32>
    %315 = math.tanh %314 : vector<8x128xf32>
    %316 = arith.mulf %311, %315 : vector<8x128xf32>
    %317 = arith.truncf %316 : vector<8x128xf32> to vector<8x128xbf16>
    %c0_136 = arith.constant 0 : index
    %c0_137 = arith.constant 0 : index
    %318 = vector.load %arg14[%c0_136, %c0_137] : memref<128x128xbf16, #tpu.memory_space<vmem>>, vector<128x128xbf16>
    %cst_138 = arith.constant dense<0.000000e+00> : vector<8x128xf32>
    %319 = tpu.matmul %317, %318, %cst_138 {dimension_numbers = #tpu.dot_dimension_numbers<[1], [0], [0], [1], [0, 0, 1, 1], [], []>} : vector<8x128xbf16>, vector<128x128xbf16>, vector<8x128xf32> -> vector<8x128xf32>
    %c0_139 = arith.constant 0 : index
    %c0_140 = arith.constant 0 : index
    %320 = vector.load %arg15[%c0_139, %c0_140] : memref<1x128xf32, #tpu.memory_space<vmem>>, vector<1x128xf32>
    %321 = vector.broadcast %320 : vector<1x128xf32> to vector<8x128xf32>
    %322 = arith.addf %319, %321 : vector<8x128xf32>
    %323 = arith.index_cast %c3_i32 : i32 to index
    %c0_141 = arith.constant 0 : index
    %c0_142 = arith.constant 0 : index
    %324 = vector.load %arg16[%323, %c0_141, %c0_142] : memref<5x8x128xf32, #tpu.memory_space<vmem>>, vector<1x8x128xf32>
    %325 = vector.shape_cast %324 : vector<1x8x128xf32> to vector<8x128xf32>
    %326 = vector.shape_cast %322 : vector<8x128xf32> to vector<1x8x128xf32>
    tpu.vector_store %arg16[%323, %c0_141, %c0_142], %326 {strides = array<i32>} : memref<5x8x128xf32, #tpu.memory_space<vmem>>, vector<1x8x128xf32>,
    %327 = vector.shape_cast %279 : vector<8x8x1xf32> to vector<8x8xf32>
    %328 = arith.index_cast %c3_i32 : i32 to index
    %c0_143 = arith.constant 0 : index
    %c0_144 = arith.constant 0 : index
    %329 = vector.load %arg17[%328, %c0_143, %c0_144] : memref<5x8x8xf32, #tpu.memory_space<vmem>>, vector<1x8x8xf32>
    %330 = vector.shape_cast %329 : vector<1x8x8xf32> to vector<8x8xf32>
    %331 = vector.shape_cast %327 : vector<8x8xf32> to vector<1x8x8xf32>
    tpu.vector_store %arg17[%328, %c0_143, %c0_144], %331 {strides = array<i32>} : memref<5x8x8xf32, #tpu.memory_space<vmem>>, vector<1x8x8xf32>,
    %c4_i32 = arith.constant 4 : i32
    %332 = arith.truncf %316 : vector<8x128xf32> to vector<8x128xbf16>
    %c0_145 = arith.constant 0 : index
    %c0_146 = arith.constant 0 : index
    %333 = vector.load %arg9[%c0_145, %c0_146] : memref<128x128xbf16, #tpu.memory_space<vmem>>, vector<128x128xbf16>
    %cst_147 = arith.constant dense<0.000000e+00> : vector<8x128xf32>
    %334 = tpu.matmul %332, %333, %cst_147 {dimension_numbers = #tpu.dot_dimension_numbers<[1], [0], [0], [1], [0, 0, 1, 1], [], []>} : vector<8x128xbf16>, vector<128x128xbf16>, vector<8x128xf32> -> vector<8x128xf32>
    %335 = vector.shape_cast %334 : vector<8x128xf32> to vector<8x1x128xf32>
    %336 = vector.broadcast %335 : vector<8x1x128xf32> to vector<8x8x128xf32>
    %337 = arith.addf %21, %336 : vector<8x8x128xf32>
    %338 = math.tanh %337 : vector<8x8x128xf32>
    %c0_148 = arith.constant 0 : index
    %c0_149 = arith.constant 0 : index
    %339 = vector.load %arg10[%c0_148, %c0_149] : memref<1x128xf32, #tpu.memory_space<vmem>>, vector<1x128xf32>
    %340 = vector.shape_cast %339 : vector<1x128xf32> to vector<1x1x128xf32>
    %341 = vector.broadcast %340 : vector<1x1x128xf32> to vector<8x8x128xf32>
    %342 = arith.mulf %338, %341 : vector<8x8x128xf32>
    %cst_150 = arith.constant dense<0.000000e+00> : vector<8x8xf32>
    %343 = vector.multi_reduction <add>, %342, %cst_150 [2] : vector<8x8x128xf32> to vector<8x8xf32>
    %344 = vector.shape_cast %343 : vector<8x8xf32> to vector<8x8x1xf32>
    %cst_151 = arith.constant dense<0xFF800000> : vector<8x1xf32>
    %345 = vector.multi_reduction <maximumf>, %344, %cst_151 [1] : vector<8x8x1xf32> to vector<8x1xf32>
    %346 = vector.shape_cast %345 : vector<8x1xf32> to vector<8x1x1xf32>
    %347 = vector.broadcast %346 : vector<8x1x1xf32> to vector<8x8x1xf32>
    %348 = arith.subf %344, %347 : vector<8x8x1xf32>
    %349 = math.exp %348 : vector<8x8x1xf32>
    %cst_152 = arith.constant dense<0.000000e+00> : vector<8x1xf32>
    %350 = vector.multi_reduction <add>, %349, %cst_152 [1] : vector<8x8x1xf32> to vector<8x1xf32>
    %351 = vector.shape_cast %350 : vector<8x1xf32> to vector<8x1x1xf32>
    %352 = tpu.reciprocal %351 {approx = true} : vector<8x1x1xf32> -> vector<8x1x1xf32>
    %353 = vector.broadcast %352 : vector<8x1x1xf32> to vector<8x8x1xf32>
    %354 = arith.mulf %349, %353 : vector<8x8x1xf32>
    %c0_153 = arith.constant 0 : index
    %c0_154 = arith.constant 0 : index
    %c0_155 = arith.constant 0 : index
    %355 = vector.load %arg1[%c0_153, %c0_154, %c0_155] : memref<8x8x128xf32, #tpu.memory_space<vmem>>, vector<8x8x128xf32>
    %356 = vector.broadcast %354 : vector<8x8x1xf32> to vector<8x8x128xf32>
    %357 = arith.mulf %356, %355 : vector<8x8x128xf32>
    %cst_156 = arith.constant dense<0.000000e+00> : vector<8x128xf32>
    %358 = vector.multi_reduction <add>, %357, %cst_156 [1] : vector<8x8x128xf32> to vector<8x128xf32>
    %359 = tpu.concatenate %358, %316 in 1 : vector<8x128xf32>, vector<8x128xf32> -> vector<8x256xf32>
    %360 = arith.truncf %359 : vector<8x256xf32> to vector<8x256xbf16>
    %c0_157 = arith.constant 0 : index
    %c0_158 = arith.constant 0 : index
    %361 = vector.load %arg11[%c0_157, %c0_158] : memref<256x512xbf16, #tpu.memory_space<vmem>>, vector<256x512xbf16>
    %cst_159 = arith.constant dense<0.000000e+00> : vector<8x512xf32>
    %362 = tpu.matmul %360, %361, %cst_159 {dimension_numbers = #tpu.dot_dimension_numbers<[1], [0], [0], [1], [0, 0, 1, 1], [], []>} : vector<8x256xbf16>, vector<256x512xbf16>, vector<8x512xf32> -> vector<8x512xf32>
    %363 = arith.index_cast %c4_i32 : i32 to index
    %c0_160 = arith.constant 0 : index
    %c0_161 = arith.constant 0 : index
    %364 = vector.load %arg18[%363, %c0_160, %c0_161] : memref<5x8x512xf32, #tpu.memory_space<vmem>>, vector<1x8x512xf32>
    %365 = vector.shape_cast %364 : vector<1x8x512xf32> to vector<8x512xf32>
    %366 = arith.addf %362, %365 : vector<8x512xf32>
    %367 = vector.extract_strided_slice %366 {offsets = [0, 0], sizes = [8, 128], strides = [1, 1]} : vector<8x512xf32> to vector<8x128xf32>
    %368 = arith.negf %367 : vector<8x128xf32>
    %369 = math.exp %368 : vector<8x128xf32>
    %cst_162 = arith.constant 1.000000e+00 : f32
    %370 = vector.broadcast %cst_162 : f32 to vector<8x128xf32>
    %371 = arith.addf %370, %369 : vector<8x128xf32>
    %372 = arith.divf %370, %371 : vector<8x128xf32>
    %373 = vector.extract_strided_slice %366 {offsets = [0, 128], sizes = [8, 128], strides = [1, 1]} : vector<8x512xf32> to vector<8x128xf32>
    %374 = arith.negf %373 : vector<8x128xf32>
    %375 = math.exp %374 : vector<8x128xf32>
    %cst_163 = arith.constant 1.000000e+00 : f32
    %376 = vector.broadcast %cst_163 : f32 to vector<8x128xf32>
    %377 = arith.addf %376, %375 : vector<8x128xf32>
    %378 = arith.divf %376, %377 : vector<8x128xf32>
    %379 = vector.extract_strided_slice %366 {offsets = [0, 256], sizes = [8, 128], strides = [1, 1]} : vector<8x512xf32> to vector<8x128xf32>
    %380 = math.tanh %379 : vector<8x128xf32>
    %381 = vector.extract_strided_slice %366 {offsets = [0, 384], sizes = [8, 128], strides = [1, 1]} : vector<8x512xf32> to vector<8x128xf32>
    %382 = arith.negf %381 : vector<8x128xf32>
    %383 = math.exp %382 : vector<8x128xf32>
    %cst_164 = arith.constant 1.000000e+00 : f32
    %384 = vector.broadcast %cst_164 : f32 to vector<8x128xf32>
    %385 = arith.addf %384, %383 : vector<8x128xf32>
    %386 = arith.divf %384, %385 : vector<8x128xf32>
    %387 = arith.mulf %378, %314 : vector<8x128xf32>
    %388 = arith.mulf %372, %380 : vector<8x128xf32>
    %389 = arith.addf %387, %388 : vector<8x128xf32>
    %390 = math.tanh %389 : vector<8x128xf32>
    %391 = arith.mulf %386, %390 : vector<8x128xf32>
    %392 = arith.truncf %391 : vector<8x128xf32> to vector<8x128xbf16>
    %c0_165 = arith.constant 0 : index
    %c0_166 = arith.constant 0 : index
    %393 = vector.load %arg14[%c0_165, %c0_166] : memref<128x128xbf16, #tpu.memory_space<vmem>>, vector<128x128xbf16>
    %cst_167 = arith.constant dense<0.000000e+00> : vector<8x128xf32>
    %394 = tpu.matmul %392, %393, %cst_167 {dimension_numbers = #tpu.dot_dimension_numbers<[1], [0], [0], [1], [0, 0, 1, 1], [], []>} : vector<8x128xbf16>, vector<128x128xbf16>, vector<8x128xf32> -> vector<8x128xf32>
    %c0_168 = arith.constant 0 : index
    %c0_169 = arith.constant 0 : index
    %395 = vector.load %arg15[%c0_168, %c0_169] : memref<1x128xf32, #tpu.memory_space<vmem>>, vector<1x128xf32>
    %396 = vector.broadcast %395 : vector<1x128xf32> to vector<8x128xf32>
    %397 = arith.addf %394, %396 : vector<8x128xf32>
    %398 = arith.index_cast %c4_i32 : i32 to index
    %c0_170 = arith.constant 0 : index
    %c0_171 = arith.constant 0 : index
    %399 = vector.load %arg16[%398, %c0_170, %c0_171] : memref<5x8x128xf32, #tpu.memory_space<vmem>>, vector<1x8x128xf32>
    %400 = vector.shape_cast %399 : vector<1x8x128xf32> to vector<8x128xf32>
    %401 = vector.shape_cast %397 : vector<8x128xf32> to vector<1x8x128xf32>
    tpu.vector_store %arg16[%398, %c0_170, %c0_171], %401 {strides = array<i32>} : memref<5x8x128xf32, #tpu.memory_space<vmem>>, vector<1x8x128xf32>,
    %402 = vector.shape_cast %354 : vector<8x8x1xf32> to vector<8x8xf32>
    %403 = arith.index_cast %c4_i32 : i32 to index
    %c0_172 = arith.constant 0 : index
    %c0_173 = arith.constant 0 : index
    %404 = vector.load %arg17[%403, %c0_172, %c0_173] : memref<5x8x8xf32, #tpu.memory_space<vmem>>, vector<1x8x8xf32>
    %405 = vector.shape_cast %404 : vector<1x8x8xf32> to vector<8x8xf32>
    %406 = vector.shape_cast %402 : vector<8x8xf32> to vector<1x8x8xf32>
    tpu.vector_store %arg17[%403, %c0_172, %c0_173], %406 {strides = array<i32>} : memref<5x8x8xf32, #tpu.memory_space<vmem>>, vector<1x8x8xf32>,
    %c5_i32 = arith.constant 5 : i32
    return
  }
  func.func @transform_0(%arg0: i32) -> (i32, i32, i32) {
    %c0_i32 = arith.constant 0 : i32
    %c0_i32_0 = arith.constant 0 : i32
    %c0_i32_1 = arith.constant 0 : i32
    return %arg0, %c0_i32, %c0_i32_0 : i32, i32, i32
  }
  func.func @transform_1(%arg0: i32) -> (i32, i32, i32) {
    %c0_i32 = arith.constant 0 : i32
    %c0_i32_0 = arith.constant 0 : i32
    %c0_i32_1 = arith.constant 0 : i32
    return %c0_i32, %arg0, %c0_i32_0 : i32, i32, i32
  }
  func.func @transform_2(%arg0: i32) -> (i32, i32) {
    %c0_i32 = arith.constant 0 : i32
    %c0_i32_0 = arith.constant 0 : i32
    %c0_i32_1 = arith.constant 0 : i32
    return %c0_i32, %c0_i32_0 : i32, i32
  }
  func.func @transform_3(%arg0: i32) -> (i32, i32) {
    %c0_i32 = arith.constant 0 : i32
    %c0_i32_0 = arith.constant 0 : i32
    %c0_i32_1 = arith.constant 0 : i32
    return %c0_i32, %c0_i32_0 : i32, i32
  }
  func.func @transform_4(%arg0: i32) -> (i32, i32) {
    %c0_i32 = arith.constant 0 : i32
    %c0_i32_0 = arith.constant 0 : i32
    %c0_i32_1 = arith.constant 0 : i32
    return %c0_i32, %c0_i32_0 : i32, i32
  }
  func.func @transform_5(%arg0: i32) -> (i32, i32) {
    %c0_i32 = arith.constant 0 : i32
    %c0_i32_0 = arith.constant 0 : i32
    %c0_i32_1 = arith.constant 0 : i32
    return %c0_i32, %c0_i32_0 : i32, i32
  }
  func.func @transform_6(%arg0: i32) -> (i32, i32) {
    %c0_i32 = arith.constant 0 : i32
    %c0_i32_0 = arith.constant 0 : i32
    %c0_i32_1 = arith.constant 0 : i32
    return %c0_i32, %c0_i32_0 : i32, i32
  }
  func.func @transform_7(%arg0: i32) -> (i32, i32) {
    %c0_i32 = arith.constant 0 : i32
    %c0_i32_0 = arith.constant 0 : i32
    %c0_i32_1 = arith.constant 0 : i32
    return %c0_i32, %c0_i32_0 : i32, i32
  }
  func.func @transform_8(%arg0: i32) -> (i32, i32) {
    %c0_i32 = arith.constant 0 : i32
    %c0_i32_0 = arith.constant 0 : i32
    %c0_i32_1 = arith.constant 0 : i32
    return %c0_i32, %c0_i32_0 : i32, i32
  }
  func.func @transform_9(%arg0: i32) -> (i32, i32) {
    %c0_i32 = arith.constant 0 : i32
    %c0_i32_0 = arith.constant 0 : i32
    %c0_i32_1 = arith.constant 0 : i32
    return %c0_i32, %c0_i32_0 : i32, i32
  }
  func.func @transform_10(%arg0: i32) -> (i32, i32) {
    %c0_i32 = arith.constant 0 : i32
    %c0_i32_0 = arith.constant 0 : i32
    %c0_i32_1 = arith.constant 0 : i32
    return %c0_i32, %c0_i32_0 : i32, i32
  }
  func.func @transform_11(%arg0: i32) -> (i32, i32) {
    %c0_i32 = arith.constant 0 : i32
    %c0_i32_0 = arith.constant 0 : i32
    %c0_i32_1 = arith.constant 0 : i32
    return %c0_i32, %c0_i32_0 : i32, i32
  }
  func.func @transform_12(%arg0: i32) -> (i32, i32) {
    %c0_i32 = arith.constant 0 : i32
    %c0_i32_0 = arith.constant 0 : i32
    %c0_i32_1 = arith.constant 0 : i32
    return %c0_i32, %c0_i32_0 : i32, i32
  }
  func.func @transform_13(%arg0: i32) -> (i32, i32) {
    %c0_i32 = arith.constant 0 : i32
    %c0_i32_0 = arith.constant 0 : i32
    %c0_i32_1 = arith.constant 0 : i32
    return %c0_i32, %c0_i32_0 : i32, i32
  }
  func.func @transform_14(%arg0: i32) -> (i32, i32) {
    %c0_i32 = arith.constant 0 : i32
    %c0_i32_0 = arith.constant 0 : i32
    %c0_i32_1 = arith.constant 0 : i32
    return %c0_i32, %c0_i32_0 : i32, i32
  }
  func.func @transform_15(%arg0: i32) -> (i32, i32, i32) {
    %c0_i32 = arith.constant 0 : i32
    %c0_i32_0 = arith.constant 0 : i32
    %c0_i32_1 = arith.constant 0 : i32
    return %c0_i32, %arg0, %c0_i32_0 : i32, i32, i32
  }
  func.func @transform_16(%arg0: i32) -> (i32, i32, i32) {
    %c0_i32 = arith.constant 0 : i32
    %c0_i32_0 = arith.constant 0 : i32
    %c0_i32_1 = arith.constant 0 : i32
    return %c0_i32, %arg0, %c0_i32_0 : i32, i32, i32
  }
}

</mosaic_0001>

<llo_original>
// kernel: decoder_forward.1
$region0: #{decoder_forward.1}
  #allocation0 [shape = 'u32[]', space=smem, size = 0x4, offset = 0x4, fixed_abs, tag = 'smem constant byte address 0x4 - core index']
  #allocation1 [shape = 'u32[144,128]{1,0:T(1,128)}', space=vmem, size = 0x12000, scoped, tag = 'internal scratch']
  #allocation2 [shape = 'f32[5,8,512]{2,1,0:T(8,128)}', space=vmem, size = 0x14000, scoped, tag = 'scratch operand']
  %s0 = inlined_call_operand.vmem [shape: f32[16,8,128], index: 0, kind: input, shape index: {}]
  %s1 = inlined_call_operand.vmem [shape: f32[5,16,32], index: 1, kind: input, shape index: {}]
  %s2 = inlined_call_operand.vmem [shape: f32[128,128], index: 2, kind: input, shape index: {}]
  %s3 = inlined_call_operand.vmem [shape: f32[1,128], index: 3, kind: input, shape index: {}]
  %s4 = inlined_call_operand.vmem [shape: f32[128,128], index: 4, kind: input, shape index: {}]
  %s5 = inlined_call_operand.vmem [shape: f32[1,128], index: 5, kind: input, shape index: {}]
  %s6 = inlined_call_operand.vmem [shape: bf16[128,128], index: 6, kind: input, shape index: {}]
  %s7 = inlined_call_operand.vmem [shape: f32[1,128], index: 7, kind: input, shape index: {}]
  %s8 = inlined_call_operand.vmem [shape: bf16[128,128], index: 8, kind: input, shape index: {}]
  %s9 = inlined_call_operand.vmem [shape: f32[1,128], index: 9, kind: input, shape index: {}]
  %s10 = inlined_call_operand.vmem [shape: bf16[256,512], index: 10, kind: input, shape index: {}]
  %s11 = inlined_call_operand.vmem [shape: bf16[32,512], index: 11, kind: input, shape index: {}]
  %s12 = inlined_call_operand.vmem [shape: f32[1,512], index: 12, kind: input, shape index: {}]
  %s13 = inlined_call_operand.vmem [shape: bf16[128,128], index: 13, kind: input, shape index: {}]
  %s14 = inlined_call_operand.vmem [shape: f32[1,128], index: 14, kind: input, shape index: {}]
  %s15 = inlined_call_operand.hbm [shape: f32[5,16,128], index: 15, kind: output, shape index: {0}]
  %s16 = inlined_call_operand.vmem [shape: f32[5,16,8], index: 16, kind: output, shape index: {1}]
  %17 = xla_tuple %s15, %s16
  %s18 = sld [smem:[#allocation0]]
  $region173: #{decoder_forward.1} parent=0
    _
  %s20 = ssub.s32 1, %s18
  %s21 = scalar_select 0, %s20, %s18
  $region1: #{decoder_forward.1} parent=0
    #allocation3 [shape = 'u8[40960]{0}', space=vmem, size = 0xa000, scoped, tag = 'input window, operand 1']
    #allocation4 [shape = 'u8[40960]{0}', space=vmem, size = 0xa000, scoped, tag = 'output window, operand 0']
    #allocation5 [shape = 's32[2]{0}', space=sflag, size = 0x8, scoped, tag = 'scoped memory for decoder_forward.1']
    #allocation6 [shape = 'u8[40960]{0}', space=vmem, size = 0xa000, scoped, tag = 'output window, operand 1']
    %22 = vsyncpa [#allocation5], 0
    %s23 = scalar_lea.sflag [#allocation5], 1
    %24 = vsyncpa %s23, 0
    loop: start=0, step=1, limit=4
    $region2: #{decoder_forward.1} parent=1 // loop_pre_header
      _
    $region3: #{decoder_forward.1} parent=1 // loop_header
      %s26 = sphi 0, %s30
      %p27 = scmp.ge.s32.totalorder %s26, 4
      %s36 = sphi 0, %s38
      %s39 = sphi 0, %s36
      %s40 = sphi 0, %s39
      %s56 = sphi 0, %s40
      %s62 = sphi 0, %s64
      %s65 = sphi 0, %s62
      %s66 = sphi 0, %s65
      %s82 = sphi 0, %s66
      %s86 = sphi 0, %s86
      %s88 = sphi 0, %s86
      %s89 = sphi 0, %s88
      %s103 = sphi 0, %s89
      %s107 = sphi 0, %s107
      %s109 = sphi 0, %s107
      %s110 = sphi 0, %s109
      %s124 = sphi 0, %s110
      %s128 = sphi 0, %s128
      %s130 = sphi 0, %s128
      %s131 = sphi 0, %s130
      %s145 = sphi 0, %s131
      %s149 = sphi 0, %s149
      %s151 = sphi 0, %s149
      %s152 = sphi 0, %s151
      %s166 = sphi 0, %s152
      %s170 = sphi 0, %s170
      %s172 = sphi 0, %s170
      %s173 = sphi 0, %s172
      %s187 = sphi 0, %s173
      %s191 = sphi 0, %s191
      %s193 = sphi 0, %s191
      %s194 = sphi 0, %s193
      %s208 = sphi 0, %s194
      %s212 = sphi 0, %s212
      %s214 = sphi 0, %s212
      %s215 = sphi 0, %s214
      %s229 = sphi 0, %s215
      %s233 = sphi 0, %s233
      %s235 = sphi 0, %s233
      %s236 = sphi 0, %s235
      %s250 = sphi 0, %s236
      %s254 = sphi 0, %s254
      %s256 = sphi 0, %s254
      %s257 = sphi 0, %s256
      %s271 = sphi 0, %s257
      %s275 = sphi 0, %s275
      %s277 = sphi 0, %s275
      %s278 = sphi 0, %s277
      %s292 = sphi 0, %s278
      %s296 = sphi 0, %s296
      %s298 = sphi 0, %s296
      %s299 = sphi 0, %s298
      %s313 = sphi 0, %s299
      %s317 = sphi 0, %s317
      %s319 = sphi 0, %s317
      %s320 = sphi 0, %s319
      %s334 = sphi 0, %s320
      %s338 = sphi 0, %s338
      %s340 = sphi 0, %s338
      %s341 = sphi 0, %s340
      %s355 = sphi 0, %s341
      %s361 = sphi 0, %s363
      %s364 = sphi 0, %s361
      %s365 = sphi 0, %s364
      %s381 = sphi 0, %s365
      %s387 = sphi 0, %s389
      %s390 = sphi 0, %s387
      %s391 = sphi 0, %s390
      %s407 = sphi 0, %s391
    $region4: #{decoder_forward.1} parent=1 // loop_header_branch
      %29 = sbr.rel (%p27) target = $region8
    $region5: #{decoder_forward.1} parent=1 // loop_body
      %s31 = ssub.s32 %s26, 1
      %s32 = ssub.s32 %s26, 2
      %s33 = sadd.s32 %s26, 1
      %s34 = ssub.s32 %s26, %s33
      %p35 = scmp.eq.s32.totalorder %s34, 0
      %s37 = sadd.s32 %s36, 1
      %s38 = scalar_select %p35, %s36, %s37
      %p41 = pneg %p35
      %p42 = scmp.eq.s32.totalorder %s26, 1
      %p43 = por %p41, %p42
      %p44 = scmp.ne.s32.totalorder %s36, %s39
      %p45 = scmp.eq.s32.totalorder %s26, 0
      %p46 = por %p44, %p45
      %p47 = scmp.ne.s32.totalorder %s36, %s39
      %p48 = scmp.eq.s32.totalorder %s31, 1
      %p49 = por %p47, %p48
      %p50 = scmp.ne.s32.totalorder %s39, %s40
      %p51 = scmp.eq.s32.totalorder %s31, 0
      %p52 = por %p50, %p51
      %p53 = scmp.ne.s32.totalorder %s39, %s40
      %p54 = scmp.eq.s32.totalorder %s32, 1
      %p55 = por %p53, %p54
      %p57 = scmp.ne.s32.totalorder %s40, %s56
      %p58 = scmp.eq.s32.totalorder %s32, 0
      %p59 = por %p57, %p58
      %s60 = ssub.s32 %s26, %s33
      %p61 = scmp.eq.s32.totalorder %s60, 0
      %s63 = sadd.s32 %s62, 1
      %s64 = scalar_select %p61, %s62, %s63
      %p67 = pneg %p61
      %p68 = scmp.eq.s32.totalorder %s26, 1
      %p69 = por %p67, %p68
      %p70 = scmp.ne.s32.totalorder %s62, %s65
      %p71 = scmp.eq.s32.totalorder %s26, 0
      %p72 = por %p70, %p71
      %p73 = scmp.ne.s32.totalorder %s62, %s65
      %p74 = scmp.eq.s32.totalorder %s31, 1
      %p75 = por %p73, %p74
      %p76 = scmp.ne.s32.totalorder %s65, %s66
      %p77 = scmp.eq.s32.totalorder %s31, 0
      %p78 = por %p76, %p77
      %p79 = scmp.ne.s32.totalorder %s65, %s66
      %p80 = scmp.eq.s32.totalorder %s32, 1
      %p81 = por %p79, %p80
      %p83 = scmp.ne.s32.totalorder %s66, %s82
      %p84 = scmp.eq.s32.totalorder %s32, 0
      %p85 = por %p83, %p84
      %s87 = sadd.s32 %s86, 1
      %p90 = scmp.eq.s32.totalorder %s26, 1
      %p91 = scmp.ne.s32.totalorder %s86, %s88
      %p92 = scmp.eq.s32.totalorder %s26, 0
      %p93 = por %p91, %p92
      %p94 = scmp.ne.s32.totalorder %s86, %s88
      %p95 = scmp.eq.s32.totalorder %s31, 1
      %p96 = por %p94, %p95
      %p97 = scmp.ne.s32.totalorder %s88, %s89
      %p98 = scmp.eq.s32.totalorder %s31, 0
      %p99 = por %p97, %p98
      %p100 = scmp.ne.s32.totalorder %s88, %s89
      %p101 = scmp.eq.s32.totalorder %s32, 1
      %p102 = por %p100, %p101
      %p104 = scmp.ne.s32.totalorder %s89, %s103
      %p105 = scmp.eq.s32.totalorder %s32, 0
      %p106 = por %p104, %p105
      %s108 = sadd.s32 %s107, 1
      %p111 = scmp.eq.s32.totalorder %s26, 1
      %p112 = scmp.ne.s32.totalorder %s107, %s109
      %p113 = scmp.eq.s32.totalorder %s26, 0
      %p114 = por %p112, %p113
      %p115 = scmp.ne.s32.totalorder %s107, %s109
      %p116 = scmp.eq.s32.totalorder %s31, 1
      %p117 = por %p115, %p116
      %p118 = scmp.ne.s32.totalorder %s109, %s110
      %p119 = scmp.eq.s32.totalorder %s31, 0
      %p120 = por %p118, %p119
      %p121 = scmp.ne.s32.totalorder %s109, %s110
      %p122 = scmp.eq.s32.totalorder %s32, 1
      %p123 = por %p121, %p122
      %p125 = scmp.ne.s32.totalorder %s110, %s124
      %p126 = scmp.eq.s32.totalorder %s32, 0
      %p127 = por %p125, %p126
      %s129 = sadd.s32 %s128, 1
      %p132 = scmp.eq.s32.totalorder %s26, 1
      %p133 = scmp.ne.s32.totalorder %s128, %s130
      %p134 = scmp.eq.s32.totalorder %s26, 0
      %p135 = por %p133, %p134
      %p136 = scmp.ne.s32.totalorder %s128, %s130
      %p137 = scmp.eq.s32.totalorder %s31, 1
      %p138 = por %p136, %p137
      %p139 = scmp.ne.s32.totalorder %s130, %s131
      %p140 = scmp.eq.s32.totalorder %s31, 0
      %p141 = por %p139, %p140
      %p142 = scmp.ne.s32.totalorder %s130, %s131
      %p143 = scmp.eq.s32.totalorder %s32, 1
      %p144 = por %p142, %p143
      %p146 = scmp.ne.s32.totalorder %s131, %s145
      %p147 = scmp.eq.s32.totalorder %s32, 0
      %p148 = por %p146, %p147
      %s150 = sadd.s32 %s149, 1
      %p153 = scmp.eq.s32.totalorder %s26, 1
      %p154 = scmp.ne.s32.totalorder %s149, %s151
      %p155 = scmp.eq.s32.totalorder %s26, 0
      %p156 = por %p154, %p155
      %p157 = scmp.ne.s32.totalorder %s149, %s151
      %p158 = scmp.eq.s32.totalorder %s31, 1
      %p159 = por %p157, %p158
      %p160 = scmp.ne.s32.totalorder %s151, %s152
      %p161 = scmp.eq.s32.totalorder %s31, 0
      %p162 = por %p160, %p161
      %p163 = scmp.ne.s32.totalorder %s151, %s152
      %p164 = scmp.eq.s32.totalorder %s32, 1
      %p165 = por %p163, %p164
      %p167 = scmp.ne.s32.totalorder %s152, %s166
      %p168 = scmp.eq.s32.totalorder %s32, 0
      %p169 = por %p167, %p168
      %s171 = sadd.s32 %s170, 1
      %p174 = scmp.eq.s32.totalorder %s26, 1
      %p175 = scmp.ne.s32.totalorder %s170, %s172
      %p176 = scmp.eq.s32.totalorder %s26, 0
      %p177 = por %p175, %p176
      %p178 = scmp.ne.s32.totalorder %s170, %s172
      %p179 = scmp.eq.s32.totalorder %s31, 1
      %p180 = por %p178, %p179
      %p181 = scmp.ne.s32.totalorder %s172, %s173
      %p182 = scmp.eq.s32.totalorder %s31, 0
      %p183 = por %p181, %p182
      %p184 = scmp.ne.s32.totalorder %s172, %s173
      %p185 = scmp.eq.s32.totalorder %s32, 1
      %p186 = por %p184, %p185
      %p188 = scmp.ne.s32.totalorder %s173, %s187
      %p189 = scmp.eq.s32.totalorder %s32, 0
      %p190 = por %p188, %p189
      %s192 = sadd.s32 %s191, 1
      %p195 = scmp.eq.s32.totalorder %s26, 1
      %p196 = scmp.ne.s32.totalorder %s191, %s193
      %p197 = scmp.eq.s32.totalorder %s26, 0
      %p198 = por %p196, %p197
      %p199 = scmp.ne.s32.totalorder %s191, %s193
      %p200 = scmp.eq.s32.totalorder %s31, 1
      %p201 = por %p199, %p200
      %p202 = scmp.ne.s32.totalorder %s193, %s194
      %p203 = scmp.eq.s32.totalorder %s31, 0
      %p204 = por %p202, %p203
      %p205 = scmp.ne.s32.totalorder %s193, %s194
      %p206 = scmp.eq.s32.totalorder %s32, 1
      %p207 = por %p205, %p206
      %p209 = scmp.ne.s32.totalorder %s194, %s208
      %p210 = scmp.eq.s32.totalorder %s32, 0
      %p211 = por %p209, %p210
      %s213 = sadd.s32 %s212, 1
      %p216 = scmp.eq.s32.totalorder %s26, 1
      %p217 = scmp.ne.s32.totalorder %s212, %s214
      %p218 = scmp.eq.s32.totalorder %s26, 0
      %p219 = por %p217, %p218
      %p220 = scmp.ne.s32.totalorder %s212, %s214
      %p221 = scmp.eq.s32.totalorder %s31, 1
      %p222 = por %p220, %p221
      %p223 = scmp.ne.s32.totalorder %s214, %s215
      %p224 = scmp.eq.s32.totalorder %s31, 0
      %p225 = por %p223, %p224
      %p226 = scmp.ne.s32.totalorder %s214, %s215
      %p227 = scmp.eq.s32.totalorder %s32, 1
      %p228 = por %p226, %p227
      %p230 = scmp.ne.s32.totalorder %s215, %s229
      %p231 = scmp.eq.s32.totalorder %s32, 0
      %p232 = por %p230, %p231
      %s234 = sadd.s32 %s233, 1
      %p237 = scmp.eq.s32.totalorder %s26, 1
      %p238 = scmp.ne.s32.totalorder %s233, %s235
      %p239 = scmp.eq.s32.totalorder %s26, 0
      %p240 = por %p238, %p239
      %p241 = scmp.ne.s32.totalorder %s233, %s235
      %p242 = scmp.eq.s32.totalorder %s31, 1
      %p243 = por %p241, %p242
      %p244 = scmp.ne.s32.totalorder %s235, %s236
      %p245 = scmp.eq.s32.totalorder %s31, 0
      %p246 = por %p244, %p245
      %p247 = scmp.ne.s32.totalorder %s235, %s236
      %p248 = scmp.eq.s32.totalorder %s32, 1
      %p249 = por %p247, %p248
      %p251 = scmp.ne.s32.totalorder %s236, %s250
      %p252 = scmp.eq.s32.totalorder %s32, 0
      %p253 = por %p251, %p252
      %s255 = sadd.s32 %s254, 1
      %p258 = scmp.eq.s32.totalorder %s26, 1
      %p259 = scmp.ne.s32.totalorder %s254, %s256
      %p260 = scmp.eq.s32.totalorder %s26, 0
      %p261 = por %p259, %p260
      %p262 = scmp.ne.s32.totalorder %s254, %s256
      %p263 = scmp.eq.s32.totalorder %s31, 1
      %p264 = por %p262, %p263
      %p265 = scmp.ne.s32.totalorder %s256, %s257
      %p266 = scmp.eq.s32.totalorder %s31, 0
      %p267 = por %p265, %p266
      %p268 = scmp.ne.s32.totalorder %s256, %s257
      %p269 = scmp.eq.s32.totalorder %s32, 1
      %p270 = por %p268, %p269
      %p272 = scmp.ne.s32.totalorder %s257, %s271
      %p273 = scmp.eq.s32.totalorder %s32, 0
      %p274 = por %p272, %p273
      %s276 = sadd.s32 %s275, 1
      %p279 = scmp.eq.s32.totalorder %s26, 1
      %p280 = scmp.ne.s32.totalorder %s275, %s277
      %p281 = scmp.eq.s32.totalorder %s26, 0
      %p282 = por %p280, %p281
      %p283 = scmp.ne.s32.totalorder %s275, %s277
      %p284 = scmp.eq.s32.totalorder %s31, 1
      %p285 = por %p283, %p284
      %p286 = scmp.ne.s32.totalorder %s277, %s278
      %p287 = scmp.eq.s32.totalorder %s31, 0
      %p288 = por %p286, %p287
      %p289 = scmp.ne.s32.totalorder %s277, %s278
      %p290 = scmp.eq.s32.totalorder %s32, 1
      %p291 = por %p289, %p290
      %p293 = scmp.ne.s32.totalorder %s278, %s292
      %p294 = scmp.eq.s32.totalorder %s32, 0
      %p295 = por %p293, %p294
      %s297 = sadd.s32 %s296, 1
      %p300 = scmp.eq.s32.totalorder %s26, 1
      %p301 = scmp.ne.s32.totalorder %s296, %s298
      %p302 = scmp.eq.s32.totalorder %s26, 0
      %p303 = por %p301, %p302
      %p304 = scmp.ne.s32.totalorder %s296, %s298
      %p305 = scmp.eq.s32.totalorder %s31, 1
      %p306 = por %p304, %p305
      %p307 = scmp.ne.s32.totalorder %s298, %s299
      %p308 = scmp.eq.s32.totalorder %s31, 0
      %p309 = por %p307, %p308
      %p310 = scmp.ne.s32.totalorder %s298, %s299
      %p311 = scmp.eq.s32.totalorder %s32, 1
      %p312 = por %p310, %p311
      %p314 = scmp.ne.s32.totalorder %s299, %s313
      %p315 = scmp.eq.s32.totalorder %s32, 0
      %p316 = por %p314, %p315
      %s318 = sadd.s32 %s317, 1
      %p321 = scmp.eq.s32.totalorder %s26, 1
      %p322 = scmp.ne.s32.totalorder %s317, %s319
      %p323 = scmp.eq.s32.totalorder %s26, 0
      %p324 = por %p322, %p323
      %p325 = scmp.ne.s32.totalorder %s317, %s319
      %p326 = scmp.eq.s32.totalorder %s31, 1
      %p327 = por %p325, %p326
      %p328 = scmp.ne.s32.totalorder %s319, %s320
      %p329 = scmp.eq.s32.totalorder %s31, 0
      %p330 = por %p328, %p329
      %p331 = scmp.ne.s32.totalorder %s319, %s320
      %p332 = scmp.eq.s32.totalorder %s32, 1
      %p333 = por %p331, %p332
      %p335 = scmp.ne.s32.totalorder %s320, %s334
      %p336 = scmp.eq.s32.totalorder %s32, 0
      %p337 = por %p335, %p336
      %s339 = sadd.s32 %s338, 1
      %p342 = scmp.eq.s32.totalorder %s26, 1
      %p343 = scmp.ne.s32.totalorder %s338, %s340
      %p344 = scmp.eq.s32.totalorder %s26, 0
      %p345 = por %p343, %p344
      %p346 = scmp.ne.s32.totalorder %s338, %s340
      %p347 = scmp.eq.s32.totalorder %s31, 1
      %p348 = por %p346, %p347
      %p349 = scmp.ne.s32.totalorder %s340, %s341
      %p350 = scmp.eq.s32.totalorder %s31, 0
      %p351 = por %p349, %p350
      %p352 = scmp.ne.s32.totalorder %s340, %s341
      %p353 = scmp.eq.s32.totalorder %s32, 1
      %p354 = por %p352, %p353
      %p356 = scmp.ne.s32.totalorder %s341, %s355
      %p357 = scmp.eq.s32.totalorder %s32, 0
      %p358 = por %p356, %p357
      %s359 = ssub.s32 %s26, %s33
      %p360 = scmp.eq.s32.totalorder %s359, 0
      %s362 = sadd.s32 %s361, 1
      %s363 = scalar_select %p360, %s361, %s362
      %p366 = pneg %p360
      %p367 = scmp.eq.s32.totalorder %s26, 1
      %p368 = por %p366, %p367
      %p369 = scmp.ne.s32.totalorder %s361, %s364
      %p370 = scmp.eq.s32.totalorder %s26, 0
      %p371 = por %p369, %p370
      %p372 = scmp.ne.s32.totalorder %s361, %s364
      %p373 = scmp.eq.s32.totalorder %s31, 1
      %p374 = por %p372, %p373
      %p375 = scmp.ne.s32.totalorder %s364, %s365
      %p376 = scmp.eq.s32.totalorder %s31, 0
      %p377 = por %p375, %p376
      %p378 = scmp.ne.s32.totalorder %s364, %s365
      %p379 = scmp.eq.s32.totalorder %s32, 1
      %p380 = por %p378, %p379
      %p382 = scmp.ne.s32.totalorder %s365, %s381
      %p383 = scmp.eq.s32.totalorder %s32, 0
      %p384 = por %p382, %p383
      %s385 = ssub.s32 %s26, %s33
      %p386 = scmp.eq.s32.totalorder %s385, 0
      %s388 = sadd.s32 %s387, 1
      %s389 = scalar_select %p386, %s387, %s388
      %p392 = pneg %p386
      %p393 = scmp.eq.s32.totalorder %s26, 1
      %p394 = por %p392, %p393
      %p395 = scmp.ne.s32.totalorder %s387, %s390
      %p396 = scmp.eq.s32.totalorder %s26, 0
      %p397 = por %p395, %p396
      %p398 = scmp.ne.s32.totalorder %s387, %s390
      %p399 = scmp.eq.s32.totalorder %s31, 1
      %p400 = por %p398, %p399
      %p401 = scmp.ne.s32.totalorder %s390, %s391
      %p402 = scmp.eq.s32.totalorder %s31, 0
      %p403 = por %p401, %p402
      %p404 = scmp.ne.s32.totalorder %s390, %s391
      %p405 = scmp.eq.s32.totalorder %s32, 1
      %p406 = por %p404, %p405
      %p408 = scmp.ne.s32.totalorder %s391, %s407
      %p409 = scmp.eq.s32.totalorder %s32, 0
      %p410 = por %p408, %p409
      %p411 = scmp.le.s32.totalorder 1, %s26
      %p412 = scmp.lt.s32.totalorder %s26, 3
      %p413 = pnand %p411, %p412
      %p414 = pneg %p413
      // Predicated region
      $region9: #{decoder_forward.1} parent=5 // pred_check
        _
      $region10: #{decoder_forward.1} parent=5 // pred_check_branch
        %416 = sbr.rel (%p413) target = $region12
      $region11: #{decoder_forward.1} parent=5 // pred_region
        %s417 = ssub.s32 %s26, 1
        // Predicated region
        $region13: #{decoder_forward.1} parent=11 // pred_check
          %p418 = pneg %p99
        $region14: #{decoder_forward.1} parent=11 // pred_check_branch
          %420 = sbr.rel (%p418) target = $region16
        $region15: #{decoder_forward.1} parent=11 // pred_region
          _
        $region16: #{decoder_forward.1} parent=11 // pred_fallthru
          _
        // Predicated region
        $region17: #{decoder_forward.1} parent=11 // pred_check
          %p421 = pneg %p120
        $region18: #{decoder_forward.1} parent=11 // pred_check_branch
          %423 = sbr.rel (%p421) target = $region20
        $region19: #{decoder_forward.1} parent=11 // pred_region
          _
        $region20: #{decoder_forward.1} parent=11 // pred_fallthru
          _
        // Predicated region
        $region21: #{decoder_forward.1} parent=11 // pred_check
          %p424 = pneg %p141
        $region22: #{decoder_forward.1} parent=11 // pred_check_branch
          %426 = sbr.rel (%p424) target = $region24
        $region23: #{decoder_forward.1} parent=11 // pred_region
          _
        $region24: #{decoder_forward.1} parent=11 // pred_fallthru
          _
        // Predicated region
        $region25: #{decoder_forward.1} parent=11 // pred_check
          %p427 = pneg %p162
        $region26: #{decoder_forward.1} parent=11 // pred_check_branch
          %429 = sbr.rel (%p427) target = $region28
        $region27: #{decoder_forward.1} parent=11 // pred_region
          _
        $region28: #{decoder_forward.1} parent=11 // pred_fallthru
          _
        // Predicated region
        $region29: #{decoder_forward.1} parent=11 // pred_check
          %p430 = pneg %p183
        $region30: #{decoder_forward.1} parent=11 // pred_check_branch
          %432 = sbr.rel (%p430) target = $region32
        $region31: #{decoder_forward.1} parent=11 // pred_region
          _
        $region32: #{decoder_forward.1} parent=11 // pred_fallthru
          _
        // Predicated region
        $region33: #{decoder_forward.1} parent=11 // pred_check
          %p433 = pneg %p204
        $region34: #{decoder_forward.1} parent=11 // pred_check_branch
          %435 = sbr.rel (%p433) target = $region36
        $region35: #{decoder_forward.1} parent=11 // pred_region
          _
        $region36: #{decoder_forward.1} parent=11 // pred_fallthru
          _
        // Predicated region
        $region37: #{decoder_forward.1} parent=11 // pred_check
          %p436 = pneg %p225
        $region38: #{decoder_forward.1} parent=11 // pred_check_branch
          %438 = sbr.rel (%p436) target = $region40
        $region39: #{decoder_forward.1} parent=11 // pred_region
          _
        $region40: #{decoder_forward.1} parent=11 // pred_fallthru
          _
        // Predicated region
        $region41: #{decoder_forward.1} parent=11 // pred_check
          %p439 = pneg %p246
        $region42: #{decoder_forward.1} parent=11 // pred_check_branch
          %441 = sbr.rel (%p439) target = $region44
        $region43: #{decoder_forward.1} parent=11 // pred_region
          _
        $region44: #{decoder_forward.1} parent=11 // pred_fallthru
          _
        // Predicated region
        $region45: #{decoder_forward.1} parent=11 // pred_check
          %p442 = pneg %p267
        $region46: #{decoder_forward.1} parent=11 // pred_check_branch
          %444 = sbr.rel (%p442) target = $region48
        $region47: #{decoder_forward.1} parent=11 // pred_region
          _
        $region48: #{decoder_forward.1} parent=11 // pred_fallthru
          _
        // Predicated region
        $region49: #{decoder_forward.1} parent=11 // pred_check
          %p445 = pneg %p288
        $region50: #{decoder_forward.1} parent=11 // pred_check_branch
          %447 = sbr.rel (%p445) target = $region52
        $region51: #{decoder_forward.1} parent=11 // pred_region
          _
        $region52: #{decoder_forward.1} parent=11 // pred_fallthru
          _
        // Predicated region
        $region53: #{decoder_forward.1} parent=11 // pred_check
          %p448 = pneg %p309
        $region54: #{decoder_forward.1} parent=11 // pred_check_branch
          %450 = sbr.rel (%p448) target = $region56
        $region55: #{decoder_forward.1} parent=11 // pred_region
          _
        $region56: #{decoder_forward.1} parent=11 // pred_fallthru
          _
        // Predicated region
        $region57: #{decoder_forward.1} parent=11 // pred_check
          %p451 = pneg %p330
        $region58: #{decoder_forward.1} parent=11 // pred_check_branch
          %453 = sbr.rel (%p451) target = $region60
        $region59: #{decoder_forward.1} parent=11 // pred_region
          _
        $region60: #{decoder_forward.1} parent=11 // pred_fallthru
          _
        // Predicated region
        $region61: #{decoder_forward.1} parent=11 // pred_check
          %p454 = pneg %p351
        $region62: #{decoder_forward.1} parent=11 // pred_check_branch
          %456 = sbr.rel (%p454) target = $region64
        $region63: #{decoder_forward.1} parent=11 // pred_region
          _
        $region64: #{decoder_forward.1} parent=11 // pred_fallthru
          _
      $region12: #{decoder_forward.1} parent=5 // pred_fallthru
        _
      %p457 = scmp.lt.s32.totalorder %s26, 2
      // Predicated region
      $region65: #{decoder_forward.1} parent=5 // pred_check
        %p458 = pneg %p457
      $region66: #{decoder_forward.1} parent=5 // pred_check_branch
        %460 = sbr.rel (%p458) target = $region68
      $region67: #{decoder_forward.1} parent=5 // pred_region
        // Predicated region
        $region69: #{decoder_forward.1} parent=67 // pred_check
          %p461 = pneg %p46
        $region70: #{decoder_forward.1} parent=67 // pred_check_branch
          %463 = sbr.rel (%p461) target = $region72
        $region71: #{decoder_forward.1} parent=67 // pred_region
          %s464 = smul.u32 8, %s26
          %p465 = scmp.lt.s32.totalorder %s464, 15
          %s466 = scalar_select %p465, %s464, 15
          %s467 = smul.addr %s466, 8
          %s468 = scalar_lea.vmem %s0, %s467
          %s469 = smul.u32 8, %s26
        $region72: #{decoder_forward.1} parent=67 // pred_fallthru
          _
        // Predicated region
        $region73: #{decoder_forward.1} parent=67 // pred_check
          %p470 = pneg %p72
        $region74: #{decoder_forward.1} parent=67 // pred_check_branch
          %472 = sbr.rel (%p470) target = $region76
        $region75: #{decoder_forward.1} parent=67 // pred_region
          %s473 = sand.u32 %s62, 1
          %s474 = sand.u32 %s62, 1
          %s475 = smul.addr %s474, 40
          %s476 = scalar_lea.vmem [#allocation3], %s475
          %s477 = smul.addr %s26, 8
          %s478 = scalar_lea.vmem %s1, %s477
          // Predicated region
          $region77: #{decoder_forward.1} parent=75 // pred_check
            _
          $region78: #{decoder_forward.1} parent=75 // pred_check_branch
            %480 = sbr.rel (0) target = $region80
          $region79: #{decoder_forward.1} parent=75 // pred_region
            // Predicated region
            $region81: #{decoder_forward.1} parent=79 // pred_check
              _
            $region82: #{decoder_forward.1} parent=79 // pred_check_branch
              %482 = sbr.rel (0) target = $region84
            $region83: #{decoder_forward.1} parent=79 // pred_region
              // Predicated region
              $region96: #{decoder_forward.1} parent=83 // pred_check
                _
              $region97: #{decoder_forward.1} parent=83 // pred_check_branch
                %505 = sbr.rel (0) target = $region99
              $region98: #{decoder_forward.1} parent=83 // pred_region
                loop: start=0, step=1, limit=1
                $region100: #{decoder_forward.1} parent=98 // loop_pre_header
                  _
                $region101: #{decoder_forward.1} parent=98 // loop_header
                  %s507 = sphi 0, %s511
                  %p508 = scmp.ge.s32.totalorder %s507, 1
                  %s512 = sphi %s478, %s478
                  %s513 = sphi %s476, %s476
                $region102: #{decoder_forward.1} parent=98 // loop_header_branch
                  %510 = sbr.rel (%p508) target = $region106
                $region103: #{decoder_forward.1} parent=98 // loop_body
                  %v514 = vld [vmem:[%s512] sm:$0xff]
                  %515 = vst [vmem:[%s513] sm:$0xff] %v514
                  %v516 = vld [vmem:[%s512 + $0x10] sm:$0xff]
                  %517 = vst [vmem:[%s513 + $0x8] sm:$0xff] %v516
                  %v518 = vld [vmem:[%s512 + $0x20] sm:$0xff]
                  %519 = vst [vmem:[%s513 + $0x10] sm:$0xff] %v518
                  %v520 = vld [vmem:[%s512 + $0x30] sm:$0xff]
                  %521 = vst [vmem:[%s513 + $0x18] sm:$0xff] %v520
                  %v522 = vld [vmem:[%s512 + $0x40] sm:$0xff]
                  %523 = vst [vmem:[%s513 + $0x20] sm:$0xff] %v522
                $region104: #{decoder_forward.1} parent=98 // loop_footer
                  %s511 = sadd.s32 1, %s507
                $region105: #{decoder_forward.1} parent=98 // loop_footer_branch
                  %506 = sbr.rel target = $region101
                $region106: #{decoder_forward.1} parent=98 // loop_exit
                  _
              $region99: #{decoder_forward.1} parent=83 // pred_fallthru
                _
              // Predicated region
              $region107: #{decoder_forward.1} parent=83 // pred_check
                _
              $region108: #{decoder_forward.1} parent=83 // pred_check_branch
                %525 = sbr.rel target = $region110
              $region109: #{decoder_forward.1} parent=83 // pred_region
                _
              $region110: #{decoder_forward.1} parent=83 // pred_fallthru
                _
            $region84: #{decoder_forward.1} parent=79 // pred_fallthru
              _
            // Predicated region
            $region85: #{decoder_forward.1} parent=79 // pred_check
              _
            $region86: #{decoder_forward.1} parent=79 // pred_check_branch
              %484 = sbr.rel target = $region88
            $region87: #{decoder_forward.1} parent=79 // pred_region
              loop: start=0, step=1, limit=1
              $region89: #{decoder_forward.1} parent=87 // loop_pre_header
                _
              $region90: #{decoder_forward.1} parent=87 // loop_header
                %s487 = sphi 0, %s491
                %p488 = scmp.ge.s32.totalorder %s487, 1
                %s492 = sphi %s478, %s478
                %s493 = sphi %s476, %s476
              $region91: #{decoder_forward.1} parent=87 // loop_header_branch
                %490 = sbr.rel (%p488) target = $region95
              $region92: #{decoder_forward.1} parent=87 // loop_body
                %v494 = vld [vmem:[%s492] sm:$0xff]
                %495 = vst [vmem:[%s493] sm:$0xff] %v494
                %v496 = vld [vmem:[%s492 + $0x10] sm:$0xff]
                %497 = vst [vmem:[%s493 + $0x8] sm:$0xff] %v496
                %v498 = vld [vmem:[%s492 + $0x20] sm:$0xff]
                %499 = vst [vmem:[%s493 + $0x10] sm:$0xff] %v498
                %v500 = vld [vmem:[%s492 + $0x30] sm:$0xff]
                %501 = vst [vmem:[%s493 + $0x18] sm:$0xff] %v500
                %v502 = vld [vmem:[%s492 + $0x40] sm:$0xff]
                %503 = vst [vmem:[%s493 + $0x20] sm:$0xff] %v502
              $region93: #{decoder_forward.1} parent=87 // loop_footer
                %s491 = sadd.s32 1, %s487
              $region94: #{decoder_forward.1} parent=87 // loop_footer_branch
                %486 = sbr.rel target = $region90
              $region95: #{decoder_forward.1} parent=87 // loop_exit
                _
            $region88: #{decoder_forward.1} parent=79 // pred_fallthru
              _
          $region80: #{decoder_forward.1} parent=75 // pred_fallthru
            _
          %526 = vnop
        $region76: #{decoder_forward.1} parent=67 // pred_fallthru
          _
      $region68: #{decoder_forward.1} parent=5 // pred_fallthru
        _
      %p527 = scmp.le.s32.totalorder 1, %s26
      %p528 = scmp.lt.s32.totalorder %s26, 3
      %p529 = pnand %p527, %p528
      %p530 = pneg %p529
      // Predicated region
      $region111: #{decoder_forward.1} parent=5 // pred_check
        _
      $region112: #{decoder_forward.1} parent=5 // pred_check_branch
        %532 = sbr.rel (%p529) target = $region114
      $region113: #{decoder_forward.1} parent=5 // pred_region
        %s533 = ssub.s32 %s26, 1
        %s534 = sand.u32 %s65, 1
        %s535 = sand.u32 %s65, 1
        %s536 = smul.addr %s535, 40
        %s537 = scalar_lea.vmem [#allocation3], %s536
        // Predicated region
        $region115: #{decoder_forward.1} parent=113 // pred_check
          %p538 = pneg %p78
        $region116: #{decoder_forward.1} parent=113 // pred_check_branch
          %540 = sbr.rel (%p538) target = $region118
        $region117: #{decoder_forward.1} parent=113 // pred_region
          _
        $region118: #{decoder_forward.1} parent=113 // pred_fallthru
          _
        %s541 = smul.u32 8, %s31
        %p542 = scmp.lt.s32.totalorder %s541, 15
        %s543 = scalar_select %p542, %s541, 15
        %s544 = smul.addr %s543, 8
        %s545 = scalar_lea.vmem %s0, %s544
        %p546 = pneg %p52
        %p547 = pneg %p49
        %s548 = sand.u32 %s65, 1
        %s549 = sand.u32 %s65, 1
        %s550 = smul.addr %s549, 40
        %s551 = scalar_lea.vmem [#allocation3], %s550
        %p552 = pneg %p78
        %p553 = pneg %p75
        %p554 = pneg %p99
        %p555 = pneg %p96
        %p556 = pneg %p120
        %p557 = pneg %p117
        %p558 = pneg %p141
        %p559 = pneg %p138
        %p560 = pneg %p162
        %p561 = pneg %p159
        %p562 = pneg %p183
        %p563 = pneg %p180
        %p564 = pneg %p204
        %p565 = pneg %p201
        %p566 = pneg %p225
        %p567 = pneg %p222
        %p568 = pneg %p246
        %p569 = pneg %p243
        %p570 = pneg %p267
        %p571 = pneg %p264
        %p572 = pneg %p288
        %p573 = pneg %p285
        %p574 = pneg %p309
        %p575 = pneg %p306
        %p576 = pneg %p330
        %p577 = pneg %p327
        %p578 = pneg %p351
        %p579 = pneg %p348
        %p580 = pneg %p377
        %p581 = pneg %p374
        %s582 = sand.u32 %s364, 1
        %s583 = scalar_lea.sflag [#allocation5], %s582
        %s584 = sand.u32 %s364, 1
        %s585 = smul.addr %s584, 40
        %s586 = scalar_lea.vmem [#allocation4], %s585
        %p587 = pneg %p403
        %p588 = pneg %p400
        %s589 = sand.u32 %s390, 1
        %s590 = sand.u32 %s390, 1
        %s591 = smul.addr %s590, 40
        %s592 = scalar_lea.vmem [#allocation6], %s591
        %s593 = smul.u32 8, %s31
        %p594 = scmp.lt.s32.totalorder %s593, 15
        %s595 = scalar_select %p594, %s593, 15
        %s596 = smul.addr %s595, 8
        %s597 = scalar_lea.vmem %s0, %s596
        %s598 = smul.u32 8, %s31
        %v600 = vld [vmem:[%s597] sm:$0xff]
        %v601 = vld [vmem:[%s597 + $0x8] sm:$0xff]
        %v602 = vld [vmem:[%s597 + $0x10] sm:$0xff]
        %v603 = vld [vmem:[%s597 + $0x18] sm:$0xff]
        %v604 = vld [vmem:[%s597 + $0x20] sm:$0xff]
        %v605 = vld [vmem:[%s597 + $0x28] sm:$0xff]
        %v606 = vld [vmem:[%s597 + $0x30] sm:$0xff]
        %v607 = vld [vmem:[%s597 + $0x38] sm:$0xff]
        %v608 = vrot.slane %v600, 4
        %v609 = vadd.f32 %v600, %v608
        %v610 = vrot.slane %v609, 2
        %v611 = vadd.f32 %v609, %v610
        %v612 = vrot.slane %v611, 1
        %v613 = vadd.f32 %v611, %v612
        %v614 = vrot.slane %v601, 4
        %v615 = vadd.f32 %v601, %v614
        %v616 = vrot.slane %v615, 2
        %v617 = vadd.f32 %v615, %v616
        %v618 = vrot.slane %v617, 1
        %v619 = vadd.f32 %v617, %v618
        %v620 = vrot.slane %v602, 4
        %v621 = vadd.f32 %v602, %v620
        %v622 = vrot.slane %v621, 2
        %v623 = vadd.f32 %v621, %v622
        %v624 = vrot.slane %v623, 1
        %v625 = vadd.f32 %v623, %v624
        %v626 = vrot.slane %v603, 4
        %v627 = vadd.f32 %v603, %v626
        %v628 = vrot.slane %v627, 2
        %v629 = vadd.f32 %v627, %v628
        %v630 = vrot.slane %v629, 1
        %v631 = vadd.f32 %v629, %v630
        %v632 = vrot.slane %v604, 4
        %v633 = vadd.f32 %v604, %v632
        %v634 = vrot.slane %v633, 2
        %v635 = vadd.f32 %v633, %v634
        %v636 = vrot.slane %v635, 1
        %v637 = vadd.f32 %v635, %v636
        %v638 = vrot.slane %v605, 4
        %v639 = vadd.f32 %v605, %v638
        %v640 = vrot.slane %v639, 2
        %v641 = vadd.f32 %v639, %v640
        %v642 = vrot.slane %v641, 1
        %v643 = vadd.f32 %v641, %v642
        %v644 = vrot.slane %v606, 4
        %v645 = vadd.f32 %v606, %v644
        %v646 = vrot.slane %v645, 2
        %v647 = vadd.f32 %v645, %v646
        %v648 = vrot.slane %v647, 1
        %v649 = vadd.f32 %v647, %v648
        %v650 = vrot.slane %v607, 4
        %v651 = vadd.f32 %v607, %v650
        %v652 = vrot.slane %v651, 2
        %v653 = vadd.f32 %v651, %v652
        %v654 = vrot.slane %v653, 1
        %v655 = vadd.f32 %v653, %v654
        %v656 = vrcp.pop 8.0
        %v657 = vmul.f32 %v613, %v656
        %v658 = vmul.f32 %v619, %v656
        %v659 = vmul.f32 %v625, %v656
        %v660 = vmul.f32 %v631, %v656
        %v661 = vmul.f32 %v637, %v656
        %v662 = vmul.f32 %v643, %v656
        %v663 = vmul.f32 %v649, %v656
        %v664 = vmul.f32 %v655, %v656
        %v665 = vld [vmem:[%s2] sm:$0xff]
        %v666 = vld [vmem:[%s2 + $0x8] sm:$0xff]
        %v667 = vld [vmem:[%s2 + $0x10] sm:$0xff]
        %v668 = vld [vmem:[%s2 + $0x18] sm:$0xff]
        %v669 = vld [vmem:[%s2 + $0x20] sm:$0xff]
        %v670 = vld [vmem:[%s2 + $0x28] sm:$0xff]
        %v671 = vld [vmem:[%s2 + $0x30] sm:$0xff]
        %v672 = vld [vmem:[%s2 + $0x38] sm:$0xff]
        %v673 = vld [vmem:[%s2 + $0x40] sm:$0xff]
        %v674 = vld [vmem:[%s2 + $0x48] sm:$0xff]
        %v675 = vld [vmem:[%s2 + $0x50] sm:$0xff]
        %v676 = vld [vmem:[%s2 + $0x58] sm:$0xff]
        %v677 = vld [vmem:[%s2 + $0x60] sm:$0xff]
        %v678 = vld [vmem:[%s2 + $0x68] sm:$0xff]
        %v679 = vld [vmem:[%s2 + $0x70] sm:$0xff]
        %v680 = vld [vmem:[%s2 + $0x78] sm:$0xff]
        %v681 = vld [vmem:[%s3] sm:$0x1]
        %v683 = vlaneseq
        %v684 = vshrl.u32 %v683, 7
        %v685 = vsub.s32 0, %v684
        %v686 = vrot.slane %v681, %v685
        %vm696 = vcmask 1041409
        %v697 = vsel %vm696, %v658, %v657
        %vm698 = vcmask 1042434
        %v699 = vsel %vm698, %v659, %v697
        %vm700 = vcmask 1043459
        %v701 = vsel %vm700, %v660, %v699
        %vm702 = vcmask 1044484
        %v703 = vsel %vm702, %v661, %v701
        %vm704 = vcmask 1045509
        %v705 = vsel %vm704, %v662, %v703
        %vm706 = vcmask 1046534
        %v707 = vsel %vm706, %v663, %v705
        %vm708 = vcmask 1047559
        %v709 = vsel %vm708, %v664, %v707
        %711 = vmatprep.subr.mxu0 0.0
        %712 = vmatpush1.msra.mxu0 %v665
        %713 = vmatprep.subr.mxu0 0.0
        %714 = vmatpush1.msra.mxu0 %v666
        %715 = vmatprep.subr.mxu0 0.0
        %716 = vmatpush1.msra.mxu0 %v667
        %717 = vmatprep.subr.mxu0 0.0
        %718 = vmatpush1.msra.mxu0 %v668
        %719 = vmatprep.subr.mxu0 0.0
        %720 = vmatpush1.msra.mxu0 %v669
        %721 = vmatprep.subr.mxu0 0.0
        %722 = vmatpush1.msra.mxu0 %v670
        %723 = vmatprep.subr.mxu0 0.0
        %724 = vmatpush1.msra.mxu0 %v671
        %725 = vmatprep.subr.mxu0 0.0
        %726 = vmatpush1.msra.mxu0 %v672
        %727 = vmatprep.subr.mxu0 0.0
        %728 = vmatpush1.msra.mxu0 %v673
        %729 = vmatprep.subr.mxu0 0.0
        %730 = vmatpush1.msra.mxu0 %v674
        %731 = vmatprep.subr.mxu0 0.0
        %732 = vmatpush1.msra.mxu0 %v675
        %733 = vmatprep.subr.mxu0 0.0
        %734 = vmatpush1.msra.mxu0 %v676
        %735 = vmatprep.subr.mxu0 0.0
        %736 = vmatpush1.msra.mxu0 %v677
        %737 = vmatprep.subr.mxu0 0.0
        %738 = vmatpush1.msra.mxu0 %v678
        %739 = vmatprep.subr.mxu0 0.0
        %740 = vmatpush1.msra.mxu0 %v679
        %741 = vmatprep.subr.mxu0 0.0
        %742 = vmatpush1.msra.mxu0 %v680
        %743 = vmatprep.subr.mxu0 0.0
        %744 = vmatpush1.msra.mxu0 0.0
        %745 = vmatprep.subr.mxu0 0.0
        %746 = vmatpush1.msra.mxu0 0.0
        %747 = vmatprep.subr.mxu0 0.0
        %748 = vmatpush1.msra.mxu0 0.0
        %749 = vmatprep.subr.mxu0 0.0
        %750 = vmatpush1.msra.mxu0 0.0
        %751 = vmatprep.subr.mxu0 0.0
        %752 = vmatpush1.msra.mxu0 0.0
        %753 = vmatprep.subr.mxu0 0.0
        %754 = vmatpush1.msra.mxu0 0.0
        %755 = vmatprep.subr.mxu0 0.0
        %756 = vmatpush1.msra.mxu0 0.0
        %757 = vmatprep.subr.mxu0 0.0
        %758 = vmatpush1.msra.mxu0 0.0
        %759 = vmatprep.subr.mxu0 0.0
        %760 = vmatpush1.msra.mxu0 0.0
        %761 = vmatprep.subr.mxu0 0.0
        %762 = vmatpush1.msra.mxu0 0.0
        %763 = vmatprep.subr.mxu0 0.0
        %764 = vmatpush1.msra.mxu0 0.0
        %765 = vmatprep.subr.mxu0 0.0
        %766 = vmatpush1.msra.mxu0 0.0
        %767 = vmatprep.subr.mxu0 0.0
        %768 = vmatpush1.msra.mxu0 0.0
        %769 = vmatprep.subr.mxu0 0.0
        %770 = vmatpush1.msra.mxu0 0.0
        %771 = vmatprep.subr.mxu0 0.0
        %772 = vmatpush1.msra.mxu0 0.0
        %773 = vmatprep.subr.mxu0 0.0
        %774 = vmatpush1.msra.mxu0 0.0
        %775 = vmatprep.mubr.f32.mxu0 0.0
        %776 = vmatmul.mubr.f32.gmra.mrb[0].mxu0 %v709
        %v777 = vpop.f32.mrb[0].mxu0
        %v778 = vadd.f32 %v686, %v777
        %v779 = vpop.f32.mrb[0].mxu0
        %780 = vdwg.mxu0
        %v781 = vld [vmem:[%s4] sm:$0xff]
        %v782 = vld [vmem:[%s4 + $0x8] sm:$0xff]
        %v783 = vld [vmem:[%s4 + $0x10] sm:$0xff]
        %v784 = vld [vmem:[%s4 + $0x18] sm:$0xff]
        %v785 = vld [vmem:[%s4 + $0x20] sm:$0xff]
        %v786 = vld [vmem:[%s4 + $0x28] sm:$0xff]
        %v787 = vld [vmem:[%s4 + $0x30] sm:$0xff]
        %v788 = vld [vmem:[%s4 + $0x38] sm:$0xff]
        %v789 = vld [vmem:[%s4 + $0x40] sm:$0xff]
        %v790 = vld [vmem:[%s4 + $0x48] sm:$0xff]
        %v791 = vld [vmem:[%s4 + $0x50] sm:$0xff]
        %v792 = vld [vmem:[%s4 + $0x58] sm:$0xff]
        %v793 = vld [vmem:[%s4 + $0x60] sm:$0xff]
        %v794 = vld [vmem:[%s4 + $0x68] sm:$0xff]
        %v795 = vld [vmem:[%s4 + $0x70] sm:$0xff]
        %v796 = vld [vmem:[%s4 + $0x78] sm:$0xff]
        %v797 = vld [vmem:[%s5] sm:$0x1]
        %v799 = vlaneseq
        %v800 = vshrl.u32 %v799, 7
        %v801 = vsub.s32 0, %v800
        %v802 = vrot.slane %v797, %v801
        %804 = vmatprep.subr.mxu0 0.0
        %805 = vmatpush1.msra.mxu0 %v781
        %806 = vmatprep.subr.mxu0 0.0
        %807 = vmatpush1.msra.mxu0 %v782
        %808 = vmatprep.subr.mxu0 0.0
        %809 = vmatpush1.msra.mxu0 %v783
        %810 = vmatprep.subr.mxu0 0.0
        %811 = vmatpush1.msra.mxu0 %v784
        %812 = vmatprep.subr.mxu0 0.0
        %813 = vmatpush1.msra.mxu0 %v785
        %814 = vmatprep.subr.mxu0 0.0
        %815 = vmatpush1.msra.mxu0 %v786
        %816 = vmatprep.subr.mxu0 0.0
        %817 = vmatpush1.msra.mxu0 %v787
        %818 = vmatprep.subr.mxu0 0.0
        %819 = vmatpush1.msra.mxu0 %v788
        %820 = vmatprep.subr.mxu0 0.0
        %821 = vmatpush1.msra.mxu0 %v789
        %822 = vmatprep.subr.mxu0 0.0
        %823 = vmatpush1.msra.mxu0 %v790
        %824 = vmatprep.subr.mxu0 0.0
        %825 = vmatpush1.msra.mxu0 %v791
        %826 = vmatprep.subr.mxu0 0.0
        %827 = vmatpush1.msra.mxu0 %v792
        %828 = vmatprep.subr.mxu0 0.0
        %829 = vmatpush1.msra.mxu0 %v793
        %830 = vmatprep.subr.mxu0 0.0
        %831 = vmatpush1.msra.mxu0 %v794
        %832 = vmatprep.subr.mxu0 0.0
        %833 = vmatpush1.msra.mxu0 %v795
        %834 = vmatprep.subr.mxu0 0.0
        %835 = vmatpush1.msra.mxu0 %v796
        %836 = vmatprep.subr.mxu0 0.0
        %837 = vmatpush1.msra.mxu0 0.0
        %838 = vmatprep.subr.mxu0 0.0
        %839 = vmatpush1.msra.mxu0 0.0
        %840 = vmatprep.subr.mxu0 0.0
        %841 = vmatpush1.msra.mxu0 0.0
        %842 = vmatprep.subr.mxu0 0.0
        %843 = vmatpush1.msra.mxu0 0.0
        %844 = vmatprep.subr.mxu0 0.0
        %845 = vmatpush1.msra.mxu0 0.0
        %846 = vmatprep.subr.mxu0 0.0
        %847 = vmatpush1.msra.mxu0 0.0
        %848 = vmatprep.subr.mxu0 0.0
        %849 = vmatpush1.msra.mxu0 0.0
        %850 = vmatprep.subr.mxu0 0.0
        %851 = vmatpush1.msra.mxu0 0.0
        %852 = vmatprep.subr.mxu0 0.0
        %853 = vmatpush1.msra.mxu0 0.0
        %854 = vmatprep.subr.mxu0 0.0
        %855 = vmatpush1.msra.mxu0 0.0
        %856 = vmatprep.subr.mxu0 0.0
        %857 = vmatpush1.msra.mxu0 0.0
        %858 = vmatprep.subr.mxu0 0.0
        %859 = vmatpush1.msra.mxu0 0.0
        %860 = vmatprep.subr.mxu0 0.0
        %861 = vmatpush1.msra.mxu0 0.0
        %862 = vmatprep.subr.mxu0 0.0
        %863 = vmatpush1.msra.mxu0 0.0
        %864 = vmatprep.subr.mxu0 0.0
        %865 = vmatpush1.msra.mxu0 0.0
        %866 = vmatprep.subr.mxu0 0.0
        %867 = vmatpush1.msra.mxu0 0.0
        %868 = vmatprep.mubr.f32.mxu0 0.0
        %869 = vmatmul.mubr.f32.gmra.mrb[0].mxu0 %v709
        %v870 = vpop.f32.mrb[0].mxu0
        %v871 = vadd.f32 %v802, %v870
        %v872 = vpop.f32.mrb[0].mxu0
        %873 = vdwg.mxu0
        %v874 = vpack.c.bf16 %v601, %v600
        %v875 = vpack.c.bf16 %v603, %v602
        %v876 = vpack.c.bf16 %v605, %v604
        %v877 = vpack.c.bf16 %v607, %v606
        %v878 = vld [vmem:[%s6] sm:$0xf]
        %v879 = vld [vmem:[%s6 + $0x4] sm:$0xf]
        %v880 = vld [vmem:[%s6 + $0x8] sm:$0xf]
        %v881 = vld [vmem:[%s6 + $0xc] sm:$0xf]
        %v882 = vld [vmem:[%s6 + $0x10] sm:$0xf]
        %v883 = vld [vmem:[%s6 + $0x14] sm:$0xf]
        %v884 = vld [vmem:[%s6 + $0x18] sm:$0xf]
        %v885 = vld [vmem:[%s6 + $0x1c] sm:$0xf]
        %v886 = vld [vmem:[%s6 + $0x20] sm:$0xf]
        %v887 = vld [vmem:[%s6 + $0x24] sm:$0xf]
        %v888 = vld [vmem:[%s6 + $0x28] sm:$0xf]
        %v889 = vld [vmem:[%s6 + $0x2c] sm:$0xf]
        %v890 = vld [vmem:[%s6 + $0x30] sm:$0xf]
        %v891 = vld [vmem:[%s6 + $0x34] sm:$0xf]
        %v892 = vld [vmem:[%s6 + $0x38] sm:$0xf]
        %v893 = vld [vmem:[%s6 + $0x3c] sm:$0xf]
        %v894 = vld [vmem:[%s7] sm:$0x1]
        %v896 = vlaneseq
        %v897 = vshrl.u32 %v896, 7
        %v898 = vsub.s32 0, %v897
        %v899 = vrot.slane %v894, %v898
        %v917 = vunpack.c.l.b16 %v878
        %v918 = vunpack.c.l.b16 %v879
        %v919 = vunpack.c.l.b16 %v880
        %v920 = vunpack.c.l.b16 %v881
        %v921 = vunpack.c.l.b16 %v882
        %v922 = vunpack.c.l.b16 %v883
        %v923 = vunpack.c.l.b16 %v884
        %v924 = vunpack.c.l.b16 %v885
        %v925 = vunpack.c.l.b16 %v886
        %v926 = vunpack.c.l.b16 %v887
        %v927 = vunpack.c.l.b16 %v888
        %v928 = vunpack.c.l.b16 %v889
        %v929 = vunpack.c.l.b16 %v890
        %v930 = vunpack.c.l.b16 %v891
        %v931 = vunpack.c.l.b16 %v892
        %v932 = vunpack.c.l.b16 %v893
        %v933 = vpack.c.b16 %v918, %v917
        %v934 = vpack.c.b16 %v920, %v919
        %v935 = vpack.c.b16 %v922, %v921
        %v936 = vpack.c.b16 %v924, %v923
        %v937 = vpack.c.b16 %v926, %v925
        %v938 = vpack.c.b16 %v928, %v927
        %v939 = vpack.c.b16 %v930, %v929
        %v940 = vpack.c.b16 %v932, %v931
        %949 = vmatprep.subr.bf16.mxu0 0
        %950 = vmatpush1.bf16.msra.mxu0 %v933
        %951 = vmatprep.subr.bf16.mxu0 0
        %952 = vmatpush1.bf16.msra.mxu0 %v934
        %953 = vmatprep.subr.bf16.mxu0 0
        %954 = vmatpush1.bf16.msra.mxu0 %v935
        %955 = vmatprep.subr.bf16.mxu0 0
        %956 = vmatpush1.bf16.msra.mxu0 %v936
        %957 = vmatprep.subr.bf16.mxu0 0
        %958 = vmatpush1.bf16.msra.mxu0 %v937
        %959 = vmatprep.subr.bf16.mxu0 0
        %960 = vmatpush1.bf16.msra.mxu0 %v938
        %961 = vmatprep.subr.bf16.mxu0 0
        %962 = vmatpush1.bf16.msra.mxu0 %v939
        %963 = vmatprep.subr.bf16.mxu0 0
        %964 = vmatpush1.bf16.msra.mxu0 %v940
        %965 = vmatprep.subr.bf16.mxu0 0
        %966 = vmatpush1.bf16.msra.mxu0 0
        %967 = vmatprep.subr.bf16.mxu0 0
        %968 = vmatpush1.bf16.msra.mxu0 0
        %969 = vmatprep.subr.bf16.mxu0 0
        %970 = vmatpush1.bf16.msra.mxu0 0
        %971 = vmatprep.subr.bf16.mxu0 0
        %972 = vmatpush1.bf16.msra.mxu0 0
        %973 = vmatprep.subr.bf16.mxu0 0
        %974 = vmatpush1.bf16.msra.mxu0 0
        %975 = vmatprep.subr.bf16.mxu0 0
        %976 = vmatpush1.bf16.msra.mxu0 0
        %977 = vmatprep.subr.bf16.mxu0 0
        %978 = vmatpush1.bf16.msra.mxu0 0
        %979 = vmatprep.subr.bf16.mxu0 0
        %980 = vmatpush1.bf16.msra.mxu0 0
        %981 = vmatprep.mubr.bf16.mxu0 0
        %982 = vmatmul.mubr.bf16.gmra.mrb[0].mxu0 %v874
        %v983 = vpop.f32.mrb[0].mxu0
        %v984 = vadd.f32 %v899, %v983
        %v985 = vpop.f32.mrb[0].mxu0
        %v986 = vpop.f32.mrb[0].mxu0
        %v987 = vadd.f32 %v899, %v986
        %v988 = vpop.f32.mrb[0].mxu0
        %989 = vmatprep.mubr.bf16.mxu0 0
        %990 = vmatmul.mubr.bf16.gmra.mrb[0].mxu0 %v875
        %v991 = vpop.f32.mrb[0].mxu0
        %v992 = vadd.f32 %v899, %v991
        %v993 = vpop.f32.mrb[0].mxu0
        %v994 = vpop.f32.mrb[0].mxu0
        %v995 = vadd.f32 %v899, %v994
        %v996 = vpop.f32.mrb[0].mxu0
        %997 = vmatprep.mubr.bf16.mxu0 0
        %998 = vmatmul.mubr.bf16.gmra.mrb[0].mxu0 %v876
        %v999 = vpop.f32.mrb[0].mxu0
        %v1000 = vadd.f32 %v899, %v999
        %v1001 = vpop.f32.mrb[0].mxu0
        %v1002 = vpop.f32.mrb[0].mxu0
        %v1003 = vadd.f32 %v899, %v1002
        %v1004 = vpop.f32.mrb[0].mxu0
        %1005 = vmatprep.mubr.bf16.mxu0 0
        %1006 = vmatmul.mubr.bf16.gmra.mrb[0].mxu0 %v877
        %v1007 = vpop.f32.mrb[0].mxu0
        %v1008 = vadd.f32 %v899, %v1007
        %v1009 = vpop.f32.mrb[0].mxu0
        %v1010 = vpop.f32.mrb[0].mxu0
        %v1011 = vadd.f32 %v899, %v1010
        %v1012 = vpop.f32.mrb[0].mxu0
        %1013 = vdwg.mxu0
        %v1014 = vld [vmem:[%s537] sm:$0xff]
        %v1015 = vld [vmem:[%s537 + $0x8] sm:$0xff]
        %v1016 = vld [vmem:[%s537 + $0x10] sm:$0xff]
        %v1017 = vld [vmem:[%s537 + $0x18] sm:$0xff]
        %v1018 = vld [vmem:[%s537 + $0x20] sm:$0xff]
        %v1019 = vpack.c.bf16 %v1015, %v1014
        %v1020 = vpack.c.bf16 %v1017, %v1016
        %v1021 = vpack.c.bf16 %v1018, %v1018
        %v1022 = vld [vmem:[%s11] sm:$0xff]
        %v1023 = vld [vmem:[%s11 + $0x8] sm:$0xff]
        %v1024 = vld [vmem:[%s11 + $0x10] sm:$0xff]
        %v1025 = vld [vmem:[%s11 + $0x18] sm:$0xff]
        %v1026 = vld [vmem:[%s11 + $0x20] sm:$0xff]
        %v1027 = vld [vmem:[%s11 + $0x28] sm:$0xff]
        %v1028 = vld [vmem:[%s11 + $0x30] sm:$0xff]
        %v1029 = vld [vmem:[%s11 + $0x38] sm:$0xff]
        %v1030 = vld [vmem:[%s12] sm:$0xf]
        %v1032 = vlaneseq
        %v1033 = vshrl.u32 %v1032, 7
        %v1034 = vsub.s32 0, %v1033
        %v1035 = vrot.slane %v1030, %v1034
        %v1036 = vlaneseq
        %v1037 = vshrl.u32 %v1036, 7
        %v1038 = vsub.s32 1, %v1037
        %v1039 = vrot.slane %v1030, %v1038
        %v1040 = vlaneseq
        %v1041 = vshrl.u32 %v1040, 7
        %v1042 = vsub.s32 2, %v1041
        %v1043 = vrot.slane %v1030, %v1042
        %v1044 = vlaneseq
        %v1045 = vshrl.u32 %v1044, 7
        %v1046 = vsub.s32 3, %v1045
        %v1047 = vrot.slane %v1030, %v1046
        %v1060 = vunpack.c.l.b16 %v1022
        %v1061 = vunpack.c.h.b16 %v1022
        %v1062 = vunpack.c.l.b16 %v1023
        %v1063 = vunpack.c.h.b16 %v1023
        %v1064 = vunpack.c.l.b16 %v1024
        %v1065 = vunpack.c.h.b16 %v1024
        %v1066 = vunpack.c.l.b16 %v1025
        %v1067 = vunpack.c.h.b16 %v1025
        %v1068 = vunpack.c.l.b16 %v1026
        %v1069 = vunpack.c.h.b16 %v1026
        %v1070 = vunpack.c.l.b16 %v1027
        %v1071 = vunpack.c.h.b16 %v1027
        %v1072 = vunpack.c.l.b16 %v1028
        %v1073 = vunpack.c.h.b16 %v1028
        %v1074 = vunpack.c.l.b16 %v1029
        %v1075 = vunpack.c.h.b16 %v1029
        %v1076 = vpack.c.b16 %v1064, %v1060
        %v1077 = vpack.c.b16 %v1065, %v1061
        %v1078 = vpack.c.b16 %v1066, %v1062
        %v1079 = vpack.c.b16 %v1067, %v1063
        %v1080 = vpack.c.b16 %v1072, %v1068
        %v1081 = vpack.c.b16 %v1073, %v1069
        %v1082 = vpack.c.b16 %v1074, %v1070
        %v1083 = vpack.c.b16 %v1075, %v1071
        %vm1092 = vcmask 261120
        %v1094 = vsel %vm1092, %v1019, 0
        %v1097 = vsel %vm1092, %v1020, 0
        %v1100 = vsel %vm1092, %v1021, 0
        %1102 = vmatprep.subr.bf16.mxu0 %v1077
        %1103 = vmatpush1.bf16.msra.mxu0 %v1076
        %1104 = vmatprep.subr.bf16.mxu0 %v1081
        %1105 = vmatpush1.bf16.msra.mxu0 %v1080
        %1106 = vmatprep.subr.bf16.mxu0 0
        %1107 = vmatpush1.bf16.msra.mxu0 0
        %1108 = vmatprep.subr.bf16.mxu0 0
        %1109 = vmatpush1.bf16.msra.mxu0 0
        %1110 = vmatprep.subr.bf16.mxu0 0
        %1111 = vmatpush1.bf16.msra.mxu0 0
        %1112 = vmatprep.subr.bf16.mxu0 0
        %1113 = vmatpush1.bf16.msra.mxu0 0
        %1114 = vmatprep.subr.bf16.mxu0 0
        %1115 = vmatpush1.bf16.msra.mxu0 0
        %1116 = vmatprep.subr.bf16.mxu0 0
        %1117 = vmatpush1.bf16.msra.mxu0 0
        %1118 = vmatprep.subr.bf16.mxu0 0
        %1119 = vmatpush1.bf16.msra.mxu0 0
        %1120 = vmatprep.subr.bf16.mxu0 0
        %1121 = vmatpush1.bf16.msra.mxu0 0
        %1122 = vmatprep.subr.bf16.mxu0 0
        %1123 = vmatpush1.bf16.msra.mxu0 0
        %1124 = vmatprep.subr.bf16.mxu0 0
        %1125 = vmatpush1.bf16.msra.mxu0 0
        %1126 = vmatprep.subr.bf16.mxu0 0
        %1127 = vmatpush1.bf16.msra.mxu0 0
        %1128 = vmatprep.subr.bf16.mxu0 0
        %1129 = vmatpush1.bf16.msra.mxu0 0
        %1130 = vmatprep.subr.bf16.mxu0 0
        %1131 = vmatpush1.bf16.msra.mxu0 0
        %1132 = vmatprep.subr.bf16.mxu0 0
        %1133 = vmatpush1.bf16.msra.mxu0 0
        %1134 = vmatprep.mubr.bf16.mxu0 0
        %1135 = vmatmul.mubr.bf16.gmra.mrb[0].mxu0 %v1094
        %v1136 = vpop.f32.mrb[0].mxu0
        %v1137 = vadd.f32 %v1035, %v1136
        %v1138 = vpop.f32.mrb[0].mxu0
        %v1139 = vadd.f32 %v1039, %v1138
        %v1140 = vpop.f32.mrb[0].mxu0
        %v1141 = vadd.f32 %v1035, %v1140
        %v1142 = vpop.f32.mrb[0].mxu0
        %v1143 = vadd.f32 %v1039, %v1142
        %1144 = vmatprep.mubr.bf16.mxu0 0
        %1145 = vmatmul.mubr.bf16.gmra.mrb[0].mxu0 %v1097
        %v1146 = vpop.f32.mrb[0].mxu0
        %v1147 = vadd.f32 %v1035, %v1146
        %v1148 = vpop.f32.mrb[0].mxu0
        %v1149 = vadd.f32 %v1039, %v1148
        %v1150 = vpop.f32.mrb[0].mxu0
        %v1151 = vadd.f32 %v1035, %v1150
        %v1152 = vpop.f32.mrb[0].mxu0
        %v1153 = vadd.f32 %v1039, %v1152
        %1154 = vmatprep.mubr.bf16.mxu0 0
        %1155 = vmatmul.mubr.bf16.gmra.mrb[0].mxu0 %v1100
        %v1156 = vpop.f32.mrb[0].mxu0
        %v1157 = vadd.f32 %v1035, %v1156
        %v1158 = vpop.f32.mrb[0].mxu0
        %v1159 = vadd.f32 %v1039, %v1158
        %v1160 = vpop.f32.mrb[0].mxu0
        %v1161 = vpop.f32.mrb[0].mxu0
        %1162 = vdwg.mxu0
        %1163 = vmatprep.subr.bf16.mxu0 %v1079
        %1164 = vmatpush1.bf16.msra.mxu0 %v1078
        %1165 = vmatprep.subr.bf16.mxu0 %v1083
        %1166 = vmatpush1.bf16.msra.mxu0 %v1082
        %1167 = vmatprep.subr.bf16.mxu0 0
        %1168 = vmatpush1.bf16.msra.mxu0 0
        %1169 = vmatprep.subr.bf16.mxu0 0
        %1170 = vmatpush1.bf16.msra.mxu0 0
        %1171 = vmatprep.subr.bf16.mxu0 0
        %1172 = vmatpush1.bf16.msra.mxu0 0
        %1173 = vmatprep.subr.bf16.mxu0 0
        %1174 = vmatpush1.bf16.msra.mxu0 0
        %1175 = vmatprep.subr.bf16.mxu0 0
        %1176 = vmatpush1.bf16.msra.mxu0 0
        %1177 = vmatprep.subr.bf16.mxu0 0
        %1178 = vmatpush1.bf16.msra.mxu0 0
        %1179 = vmatprep.subr.bf16.mxu0 0
        %1180 = vmatpush1.bf16.msra.mxu0 0
        %1181 = vmatprep.subr.bf16.mxu0 0
        %1182 = vmatpush1.bf16.msra.mxu0 0
        %1183 = vmatprep.subr.bf16.mxu0 0
        %1184 = vmatpush1.bf16.msra.mxu0 0
        %1185 = vmatprep.subr.bf16.mxu0 0
        %1186 = vmatpush1.bf16.msra.mxu0 0
        %1187 = vmatprep.subr.bf16.mxu0 0
        %1188 = vmatpush1.bf16.msra.mxu0 0
        %1189 = vmatprep.subr.bf16.mxu0 0
        %1190 = vmatpush1.bf16.msra.mxu0 0
        %1191 = vmatprep.subr.bf16.mxu0 0
        %1192 = vmatpush1.bf16.msra.mxu0 0
        %1193 = vmatprep.subr.bf16.mxu0 0
        %1194 = vmatpush1.bf16.msra.mxu0 0
        %1195 = vmatprep.mubr.bf16.mxu0 0
        %1196 = vmatmul.mubr.bf16.gmra.mrb[0].mxu0 %v1094
        %v1197 = vpop.f32.mrb[0].mxu0
        %v1198 = vadd.f32 %v1043, %v1197
        %v1199 = vpop.f32.mrb[0].mxu0
        %v1200 = vadd.f32 %v1047, %v1199
        %v1201 = vpop.f32.mrb[0].mxu0
        %v1202 = vadd.f32 %v1043, %v1201
        %v1203 = vpop.f32.mrb[0].mxu0
        %v1204 = vadd.f32 %v1047, %v1203
        %1205 = vmatprep.mubr.bf16.mxu0 0
        %1206 = vmatmul.mubr.bf16.gmra.mrb[0].mxu0 %v1097
        %v1207 = vpop.f32.mrb[0].mxu0
        %v1208 = vadd.f32 %v1043, %v1207
        %v1209 = vpop.f32.mrb[0].mxu0
        %v1210 = vadd.f32 %v1047, %v1209
        %v1211 = vpop.f32.mrb[0].mxu0
        %v1212 = vadd.f32 %v1043, %v1211
        %v1213 = vpop.f32.mrb[0].mxu0
        %v1214 = vadd.f32 %v1047, %v1213
        %1215 = vmatprep.mubr.bf16.mxu0 0
        %1216 = vmatmul.mubr.bf16.gmra.mrb[0].mxu0 %v1100
        %v1217 = vpop.f32.mrb[0].mxu0
        %v1218 = vadd.f32 %v1043, %v1217
        %v1219 = vpop.f32.mrb[0].mxu0
        %v1220 = vadd.f32 %v1047, %v1219
        %v1221 = vpop.f32.mrb[0].mxu0
        %v1222 = vpop.f32.mrb[0].mxu0
        %1223 = vdwg.mxu0
        %1224 = vst [vmem:[#allocation2] sm:$0xff] %v1137
        %1225 = vst [vmem:[#allocation2 + $0x8] sm:$0xff] %v1139
        %1226 = vst [vmem:[#allocation2 + $0x10] sm:$0xff] %v1198
        %1227 = vst [vmem:[#allocation2 + $0x18] sm:$0xff] %v1200
        %1228 = vst [vmem:[#allocation2 + $0x20] sm:$0xff] %v1141
        %1229 = vst [vmem:[#allocation2 + $0x28] sm:$0xff] %v1143
        %1230 = vst [vmem:[#allocation2 + $0x30] sm:$0xff] %v1202
        %1231 = vst [vmem:[#allocation2 + $0x38] sm:$0xff] %v1204
        %1232 = vst [vmem:[#allocation2 + $0x40] sm:$0xff] %v1147
        %1233 = vst [vmem:[#allocation2 + $0x48] sm:$0xff] %v1149
        %1234 = vst [vmem:[#allocation2 + $0x50] sm:$0xff] %v1208
        %1235 = vst [vmem:[#allocation2 + $0x58] sm:$0xff] %v1210
        %1236 = vst [vmem:[#allocation2 + $0x60] sm:$0xff] %v1151
        %1237 = vst [vmem:[#allocation2 + $0x68] sm:$0xff] %v1153
        %1238 = vst [vmem:[#allocation2 + $0x70] sm:$0xff] %v1212
        %1239 = vst [vmem:[#allocation2 + $0x78] sm:$0xff] %v1214
        %1240 = vst [vmem:[#allocation2 + $0x80] sm:$0xff] %v1157
        %1241 = vst [vmem:[#allocation2 + $0x88] sm:$0xff] %v1159
        %1242 = vst [vmem:[#allocation2 + $0x90] sm:$0xff] %v1218
        %1243 = vst [vmem:[#allocation2 + $0x98] sm:$0xff] %v1220
        %v1244 = vpack.c.bf16 %v778, %v778
        %v1245 = vld [vmem:[%s8] sm:$0xf]
        %v1246 = vld [vmem:[%s8 + $0x4] sm:$0xf]
        %v1247 = vld [vmem:[%s8 + $0x8] sm:$0xf]
        %v1248 = vld [vmem:[%s8 + $0xc] sm:$0xf]
        %v1249 = vld [vmem:[%s8 + $0x10] sm:$0xf]
        %v1250 = vld [vmem:[%s8 + $0x14] sm:$0xf]
        %v1251 = vld [vmem:[%s8 + $0x18] sm:$0xf]
        %v1252 = vld [vmem:[%s8 + $0x1c] sm:$0xf]
        %v1253 = vld [vmem:[%s8 + $0x20] sm:$0xf]
        %v1254 = vld [vmem:[%s8 + $0x24] sm:$0xf]
        %v1255 = vld [vmem:[%s8 + $0x28] sm:$0xf]
        %v1256 = vld [vmem:[%s8 + $0x2c] sm:$0xf]
        %v1257 = vld [vmem:[%s8 + $0x30] sm:$0xf]
        %v1258 = vld [vmem:[%s8 + $0x34] sm:$0xf]
        %v1259 = vld [vmem:[%s8 + $0x38] sm:$0xf]
        %v1260 = vld [vmem:[%s8 + $0x3c] sm:$0xf]
        %v1277 = vunpack.c.l.b16 %v1245
        %v1278 = vunpack.c.l.b16 %v1246
        %v1279 = vunpack.c.l.b16 %v1247
        %v1280 = vunpack.c.l.b16 %v1248
        %v1281 = vunpack.c.l.b16 %v1249
        %v1282 = vunpack.c.l.b16 %v1250
        %v1283 = vunpack.c.l.b16 %v1251
        %v1284 = vunpack.c.l.b16 %v1252
        %v1285 = vunpack.c.l.b16 %v1253
        %v1286 = vunpack.c.l.b16 %v1254
        %v1287 = vunpack.c.l.b16 %v1255
        %v1288 = vunpack.c.l.b16 %v1256
        %v1289 = vunpack.c.l.b16 %v1257
        %v1290 = vunpack.c.l.b16 %v1258
        %v1291 = vunpack.c.l.b16 %v1259
        %v1292 = vunpack.c.l.b16 %v1260
        %v1293 = vpack.c.b16 %v1278, %v1277
        %v1294 = vpack.c.b16 %v1280, %v1279
        %v1295 = vpack.c.b16 %v1282, %v1281
        %v1296 = vpack.c.b16 %v1284, %v1283
        %v1297 = vpack.c.b16 %v1286, %v1285
        %v1298 = vpack.c.b16 %v1288, %v1287
        %v1299 = vpack.c.b16 %v1290, %v1289
        %v1300 = vpack.c.b16 %v1292, %v1291
        %1309 = vmatprep.subr.bf16.mxu0 0
        %1310 = vmatpush1.bf16.msra.mxu0 %v1293
        %1311 = vmatprep.subr.bf16.mxu0 0
        %1312 = vmatpush1.bf16.msra.mxu0 %v1294
        %1313 = vmatprep.subr.bf16.mxu0 0
        %1314 = vmatpush1.bf16.msra.mxu0 %v1295
        %1315 = vmatprep.subr.bf16.mxu0 0
        %1316 = vmatpush1.bf16.msra.mxu0 %v1296
        %1317 = vmatprep.subr.bf16.mxu0 0
        %1318 = vmatpush1.bf16.msra.mxu0 %v1297
        %1319 = vmatprep.subr.bf16.mxu0 0
        %1320 = vmatpush1.bf16.msra.mxu0 %v1298
        %1321 = vmatprep.subr.bf16.mxu0 0
        %1322 = vmatpush1.bf16.msra.mxu0 %v1299
        %1323 = vmatprep.subr.bf16.mxu0 0
        %1324 = vmatpush1.bf16.msra.mxu0 %v1300
        %1325 = vmatprep.subr.bf16.mxu0 0
        %1326 = vmatpush1.bf16.msra.mxu0 0
        %1327 = vmatprep.subr.bf16.mxu0 0
        %1328 = vmatpush1.bf16.msra.mxu0 0
        %1329 = vmatprep.subr.bf16.mxu0 0
        %1330 = vmatpush1.bf16.msra.mxu0 0
        %1331 = vmatprep.subr.bf16.mxu0 0
        %1332 = vmatpush1.bf16.msra.mxu0 0
        %1333 = vmatprep.subr.bf16.mxu0 0
        %1334 = vmatpush1.bf16.msra.mxu0 0
        %1335 = vmatprep.subr.bf16.mxu0 0
        %1336 = vmatpush1.bf16.msra.mxu0 0
        %1337 = vmatprep.subr.bf16.mxu0 0
        %1338 = vmatpush1.bf16.msra.mxu0 0
        %1339 = vmatprep.subr.bf16.mxu0 0
        %1340 = vmatpush1.bf16.msra.mxu0 0
        %1341 = vmatprep.mubr.bf16.mxu0 0
        %1342 = vmatmul.mubr.bf16.gmra.mrb[0].mxu0 %v1244
        %v1343 = vpop.f32.mrb[0].mxu0
        %v1344 = vadd.f32 0.0, %v1343
        %v1345 = vpop.f32.mrb[0].mxu0
        %v1346 = vpop.f32.mrb[0].mxu0
        %v1347 = vpop.f32.mrb[0].mxu0
        %1348 = vdwg.mxu0
        %v1350 = vcombine.high %v1344, %v1344
        %v1352 = vunpack.c.l.s4 1966171168
        %v1353 = vunpack.c.0.s8 %v1352
        %v1354 = vlaneseq
        %v1355 = vshrl.u32 %v1354, 7
        %v1356 = vsub.s32 %v1353, %v1355
        %v1357 = vrot.slane %v1344, %v1356
        %v1359 = vunpack.c.l.s4 1966171168
        %v1360 = vunpack.c.0.s8 %v1359
        %v1361 = vlaneseq
        %v1362 = vshrl.u32 %v1361, 7
        %v1363 = vsub.s32 %v1360, %v1362
        %v1364 = vrot.slane %v1350, %v1363
        %v1365 = vcombine.high %v1357, %v1357
        %v1366 = vcombine.high %v1364, %v1364
        %v1368 = vunpack.c.l.s4 1966171168
        %v1369 = vunpack.c.0.s8 %v1368
        %v1370 = vlaneseq
        %v1371 = vshrl.u32 %v1370, 7
        %v1372 = vsub.s32 %v1369, %v1371
        %v1373 = vrot.slane %v1357, %v1372
        %v1375 = vunpack.c.l.s4 1966171168
        %v1376 = vunpack.c.0.s8 %v1375
        %v1377 = vlaneseq
        %v1378 = vshrl.u32 %v1377, 7
        %v1379 = vsub.s32 %v1376, %v1378
        %v1380 = vrot.slane %v1364, %v1379
        %v1382 = vunpack.c.l.s4 1966171168
        %v1383 = vunpack.c.0.s8 %v1382
        %v1384 = vlaneseq
        %v1385 = vshrl.u32 %v1384, 7
        %v1386 = vsub.s32 %v1383, %v1385
        %v1387 = vrot.slane %v1365, %v1386
        %v1389 = vunpack.c.l.s4 1966171168
        %v1390 = vunpack.c.0.s8 %v1389
        %v1391 = vlaneseq
        %v1392 = vshrl.u32 %v1391, 7
        %v1393 = vsub.s32 %v1390, %v1392
        %v1394 = vrot.slane %v1366, %v1393
        %v1395 = vcombine.high %v1373, %v1373
        %v1396 = vcombine.high %v1380, %v1380
        %v1397 = vcombine.high %v1387, %v1387
        %v1398 = vcombine.high %v1394, %v1394
        %v1399 = vlaneseq
        %v1400 = vshrl.u32 %v1399, 7
        %v1401 = vsub.s32 0, %v1400
        %v1402 = vrot.slane %v1373, %v1401
        %v1403 = vlaneseq
        %v1404 = vshrl.u32 %v1403, 7
        %v1405 = vsub.s32 0, %v1404
        %v1406 = vrot.slane %v1387, %v1405
        %v1407 = vlaneseq
        %v1408 = vshrl.u32 %v1407, 7
        %v1409 = vsub.s32 0, %v1408
        %v1410 = vrot.slane %v1395, %v1409
        %v1411 = vlaneseq
        %v1412 = vshrl.u32 %v1411, 7
        %v1413 = vsub.s32 0, %v1412
        %v1414 = vrot.slane %v1397, %v1413
        %v1415 = vlaneseq
        %v1416 = vshrl.u32 %v1415, 7
        %v1417 = vsub.s32 0, %v1416
        %v1418 = vrot.slane %v1380, %v1417
        %v1419 = vlaneseq
        %v1420 = vshrl.u32 %v1419, 7
        %v1421 = vsub.s32 0, %v1420
        %v1422 = vrot.slane %v1394, %v1421
        %v1423 = vlaneseq
        %v1424 = vshrl.u32 %v1423, 7
        %v1425 = vsub.s32 0, %v1424
        %v1426 = vrot.slane %v1396, %v1425
        %v1427 = vlaneseq
        %v1428 = vshrl.u32 %v1427, 7
        %v1429 = vsub.s32 0, %v1428
        %v1430 = vrot.slane %v1398, %v1429
        %v1439 = vadd.f32 %v984, %v1402
        %v1440 = vadd.f32 %v987, %v1406
        %v1441 = vadd.f32 %v992, %v1410
        %v1442 = vadd.f32 %v995, %v1414
        %v1443 = vadd.f32 %v1000, %v1418
        %v1444 = vadd.f32 %v1003, %v1422
        %v1445 = vadd.f32 %v1008, %v1426
        %v1446 = vadd.f32 %v1011, %v1430
        %v1447 = vtanh.pop %v1439
        %v1448 = vtanh.pop %v1440
        %v1449 = vtanh.pop %v1441
        %v1450 = vtanh.pop %v1442
        %v1451 = vtanh.pop %v1443
        %v1452 = vtanh.pop %v1444
        %v1453 = vtanh.pop %v1445
        %v1454 = vtanh.pop %v1446
        %v1455 = vld [vmem:[%s9] sm:$0x1]
        %v1457 = vlaneseq
        %v1458 = vshrl.u32 %v1457, 7
        %v1459 = vsub.s32 0, %v1458
        %v1460 = vrot.slane %v1455, %v1459
        %v1462 = vmul.f32 %v1447, %v1460
        %v1463 = vmul.f32 %v1448, %v1460
        %v1464 = vmul.f32 %v1449, %v1460
        %v1465 = vmul.f32 %v1450, %v1460
        %v1466 = vmul.f32 %v1451, %v1460
        %v1467 = vmul.f32 %v1452, %v1460
        %v1468 = vmul.f32 %v1453, %v1460
        %v1469 = vmul.f32 %v1454, %v1460
        %1470 = vadd.xlane.f32.xlu0 %v1462
        %v1471 = vpop.xlane.xlu0 %1470
        %1472 = vadd.xlane.f32.xlu0 %v1463
        %v1473 = vpop.xlane.xlu0 %1472
        %1474 = vadd.xlane.f32.xlu0 %v1464
        %v1475 = vpop.xlane.xlu0 %1474
        %1476 = vadd.xlane.f32.xlu0 %v1465
        %v1477 = vpop.xlane.xlu0 %1476
        %1478 = vadd.xlane.f32.xlu0 %v1466
        %v1479 = vpop.xlane.xlu0 %1478
        %1480 = vadd.xlane.f32.xlu0 %v1467
        %v1481 = vpop.xlane.xlu0 %1480
        %1482 = vadd.xlane.f32.xlu0 %v1468
        %v1483 = vpop.xlane.xlu0 %1482
        %1484 = vadd.xlane.f32.xlu0 %v1469
        %v1485 = vpop.xlane.xlu0 %1484
        %v1486 = vrot.slane %v1471, 4
        %v1487 = vmax.f32 %v1471, %v1486
        %v1488 = vrot.slane %v1487, 2
        %v1489 = vmax.f32 %v1487, %v1488
        %v1490 = vrot.slane %v1489, 1
        %v1491 = vmax.f32 %v1489, %v1490
        %v1492 = vrot.slane %v1473, 4
        %v1493 = vmax.f32 %v1473, %v1492
        %v1494 = vrot.slane %v1493, 2
        %v1495 = vmax.f32 %v1493, %v1494
        %v1496 = vrot.slane %v1495, 1
        %v1497 = vmax.f32 %v1495, %v1496
        %v1498 = vrot.slane %v1475, 4
        %v1499 = vmax.f32 %v1475, %v1498
        %v1500 = vrot.slane %v1499, 2
        %v1501 = vmax.f32 %v1499, %v1500
        %v1502 = vrot.slane %v1501, 1
        %v1503 = vmax.f32 %v1501, %v1502
        %v1504 = vrot.slane %v1477, 4
        %v1505 = vmax.f32 %v1477, %v1504
        %v1506 = vrot.slane %v1505, 2
        %v1507 = vmax.f32 %v1505, %v1506
        %v1508 = vrot.slane %v1507, 1
        %v1509 = vmax.f32 %v1507, %v1508
        %v1510 = vrot.slane %v1479, 4
        %v1511 = vmax.f32 %v1479, %v1510
        %v1512 = vrot.slane %v1511, 2
        %v1513 = vmax.f32 %v1511, %v1512
        %v1514 = vrot.slane %v1513, 1
        %v1515 = vmax.f32 %v1513, %v1514
        %v1516 = vrot.slane %v1481, 4
        %v1517 = vmax.f32 %v1481, %v1516
        %v1518 = vrot.slane %v1517, 2
        %v1519 = vmax.f32 %v1517, %v1518
        %v1520 = vrot.slane %v1519, 1
        %v1521 = vmax.f32 %v1519, %v1520
        %v1522 = vrot.slane %v1483, 4
        %v1523 = vmax.f32 %v1483, %v1522
        %v1524 = vrot.slane %v1523, 2
        %v1525 = vmax.f32 %v1523, %v1524
        %v1526 = vrot.slane %v1525, 1
        %v1527 = vmax.f32 %v1525, %v1526
        %v1528 = vrot.slane %v1485, 4
        %v1529 = vmax.f32 %v1485, %v1528
        %v1530 = vrot.slane %v1529, 2
        %v1531 = vmax.f32 %v1529, %v1530
        %v1532 = vrot.slane %v1531, 1
        %v1533 = vmax.f32 %v1531, %v1532
        %v1534 = vsub.f32 %v1471, %v1491
        %v1535 = vsub.f32 %v1473, %v1497
        %v1536 = vsub.f32 %v1475, %v1503
        %v1537 = vsub.f32 %v1477, %v1509
        %v1538 = vsub.f32 %v1479, %v1515
        %v1539 = vsub.f32 %v1481, %v1521
        %v1540 = vsub.f32 %v1483, %v1527
        %v1541 = vsub.f32 %v1485, %v1533
        %v1542 = vmul.f32 %v1534, 1.442695
        %v1543 = vpow.pop %v1542
        %v1544 = vmul.f32 %v1535, 1.442695
        %v1545 = vpow.pop %v1544
        %v1546 = vmul.f32 %v1536, 1.442695
        %v1547 = vpow.pop %v1546
        %v1548 = vmul.f32 %v1537, 1.442695
        %v1549 = vpow.pop %v1548
        %v1550 = vmul.f32 %v1538, 1.442695
        %v1551 = vpow.pop %v1550
        %v1552 = vmul.f32 %v1539, 1.442695
        %v1553 = vpow.pop %v1552
        %v1554 = vmul.f32 %v1540, 1.442695
        %v1555 = vpow.pop %v1554
        %v1556 = vmul.f32 %v1541, 1.442695
        %v1557 = vpow.pop %v1556
        %v1558 = vrot.slane %v1543, 4
        %v1559 = vadd.f32 %v1543, %v1558
        %v1560 = vrot.slane %v1559, 2
        %v1561 = vadd.f32 %v1559, %v1560
        %v1562 = vrot.slane %v1561, 1
        %v1563 = vadd.f32 %v1561, %v1562
        %v1564 = vrot.slane %v1545, 4
        %v1565 = vadd.f32 %v1545, %v1564
        %v1566 = vrot.slane %v1565, 2
        %v1567 = vadd.f32 %v1565, %v1566
        %v1568 = vrot.slane %v1567, 1
        %v1569 = vadd.f32 %v1567, %v1568
        %v1570 = vrot.slane %v1547, 4
        %v1571 = vadd.f32 %v1547, %v1570
        %v1572 = vrot.slane %v1571, 2
        %v1573 = vadd.f32 %v1571, %v1572
        %v1574 = vrot.slane %v1573, 1
        %v1575 = vadd.f32 %v1573, %v1574
        %v1576 = vrot.slane %v1549, 4
        %v1577 = vadd.f32 %v1549, %v1576
        %v1578 = vrot.slane %v1577, 2
        %v1579 = vadd.f32 %v1577, %v1578
        %v1580 = vrot.slane %v1579, 1
        %v1581 = vadd.f32 %v1579, %v1580
        %v1582 = vrot.slane %v1551, 4
        %v1583 = vadd.f32 %v1551, %v1582
        %v1584 = vrot.slane %v1583, 2
        %v1585 = vadd.f32 %v1583, %v1584
        %v1586 = vrot.slane %v1585, 1
        %v1587 = vadd.f32 %v1585, %v1586
        %v1588 = vrot.slane %v1553, 4
        %v1589 = vadd.f32 %v1553, %v1588
        %v1590 = vrot.slane %v1589, 2
        %v1591 = vadd.f32 %v1589, %v1590
        %v1592 = vrot.slane %v1591, 1
        %v1593 = vadd.f32 %v1591, %v1592
        %v1594 = vrot.slane %v1555, 4
        %v1595 = vadd.f32 %v1555, %v1594
        %v1596 = vrot.slane %v1595, 2
        %v1597 = vadd.f32 %v1595, %v1596
        %v1598 = vrot.slane %v1597, 1
        %v1599 = vadd.f32 %v1597, %v1598
        %v1600 = vrot.slane %v1557, 4
        %v1601 = vadd.f32 %v1557, %v1600
        %v1602 = vrot.slane %v1601, 2
        %v1603 = vadd.f32 %v1601, %v1602
        %v1604 = vrot.slane %v1603, 1
        %v1605 = vadd.f32 %v1603, %v1604
        %v1606 = vrcp.pop %v1563
        %v1607 = vrcp.pop %v1569
        %v1608 = vrcp.pop %v1575
        %v1609 = vrcp.pop %v1581
        %v1610 = vrcp.pop %v1587
        %v1611 = vrcp.pop %v1593
        %v1612 = vrcp.pop %v1599
        %v1613 = vrcp.pop %v1605
        %v1614 = vmul.f32 %v1543, %v1606
        %v1615 = vmul.f32 %v1545, %v1607
        %v1616 = vmul.f32 %v1547, %v1608
        %v1617 = vmul.f32 %v1549, %v1609
        %v1618 = vmul.f32 %v1551, %v1610
        %v1619 = vmul.f32 %v1553, %v1611
        %v1620 = vmul.f32 %v1555, %v1612
        %v1621 = vmul.f32 %v1557, %v1613
        %v1622 = vld [vmem:[%s597] sm:$0xff]
        %v1623 = vld [vmem:[%s597 + $0x8] sm:$0xff]
        %v1624 = vld [vmem:[%s597 + $0x10] sm:$0xff]
        %v1625 = vld [vmem:[%s597 + $0x18] sm:$0xff]
        %v1626 = vld [vmem:[%s597 + $0x20] sm:$0xff]
        %v1627 = vld [vmem:[%s597 + $0x28] sm:$0xff]
        %v1628 = vld [vmem:[%s597 + $0x30] sm:$0xff]
        %v1629 = vld [vmem:[%s597 + $0x38] sm:$0xff]
        %v1630 = vmul.f32 %v1614, %v1622
        %v1631 = vmul.f32 %v1615, %v1623
        %v1632 = vmul.f32 %v1616, %v1624
        %v1633 = vmul.f32 %v1617, %v1625
        %v1634 = vmul.f32 %v1618, %v1626
        %v1635 = vmul.f32 %v1619, %v1627
        %v1636 = vmul.f32 %v1620, %v1628
        %v1637 = vmul.f32 %v1621, %v1629
        %v1638 = vrot.slane %v1630, 4
        %v1639 = vadd.f32 %v1630, %v1638
        %v1640 = vrot.slane %v1639, 2
        %v1641 = vadd.f32 %v1639, %v1640
        %v1642 = vrot.slane %v1641, 1
        %v1643 = vadd.f32 %v1641, %v1642
        %v1644 = vrot.slane %v1631, 4
        %v1645 = vadd.f32 %v1631, %v1644
        %v1646 = vrot.slane %v1645, 2
        %v1647 = vadd.f32 %v1645, %v1646
        %v1648 = vrot.slane %v1647, 1
        %v1649 = vadd.f32 %v1647, %v1648
        %v1650 = vrot.slane %v1632, 4
        %v1651 = vadd.f32 %v1632, %v1650
        %v1652 = vrot.slane %v1651, 2
        %v1653 = vadd.f32 %v1651, %v1652
        %v1654 = vrot.slane %v1653, 1
        %v1655 = vadd.f32 %v1653, %v1654
        %v1656 = vrot.slane %v1633, 4
        %v1657 = vadd.f32 %v1633, %v1656
        %v1658 = vrot.slane %v1657, 2
        %v1659 = vadd.f32 %v1657, %v1658
        %v1660 = vrot.slane %v1659, 1
        %v1661 = vadd.f32 %v1659, %v1660
        %v1662 = vrot.slane %v1634, 4
        %v1663 = vadd.f32 %v1634, %v1662
        %v1664 = vrot.slane %v1663, 2
        %v1665 = vadd.f32 %v1663, %v1664
        %v1666 = vrot.slane %v1665, 1
        %v1667 = vadd.f32 %v1665, %v1666
        %v1668 = vrot.slane %v1635, 4
        %v1669 = vadd.f32 %v1635, %v1668
        %v1670 = vrot.slane %v1669, 2
        %v1671 = vadd.f32 %v1669, %v1670
        %v1672 = vrot.slane %v1671, 1
        %v1673 = vadd.f32 %v1671, %v1672
        %v1674 = vrot.slane %v1636, 4
        %v1675 = vadd.f32 %v1636, %v1674
        %v1676 = vrot.slane %v1675, 2
        %v1677 = vadd.f32 %v1675, %v1676
        %v1678 = vrot.slane %v1677, 1
        %v1679 = vadd.f32 %v1677, %v1678
        %v1680 = vrot.slane %v1637, 4
        %v1681 = vadd.f32 %v1637, %v1680
        %v1682 = vrot.slane %v1681, 2
        %v1683 = vadd.f32 %v1681, %v1682
        %v1684 = vrot.slane %v1683, 1
        %v1685 = vadd.f32 %v1683, %v1684
        %v1694 = vsel %vm696, %v1649, %v1643
        %v1695 = vsel %vm698, %v1655, %v1694
        %v1696 = vsel %vm700, %v1661, %v1695
        %v1697 = vsel %vm702, %v1667, %v1696
        %v1698 = vsel %vm704, %v1673, %v1697
        %v1699 = vsel %vm706, %v1679, %v1698
        %v1700 = vsel %vm708, %v1685, %v1699
        %v1702 = vpack.c.bf16 %v1700, %v1700
        %v1703 = vld [vmem:[%s10] sm:$0xff]
        %v1704 = vld [vmem:[%s10 + $0x8] sm:$0xff]
        %v1705 = vld [vmem:[%s10 + $0x10] sm:$0xff]
        %v1706 = vld [vmem:[%s10 + $0x18] sm:$0xff]
        %v1707 = vld [vmem:[%s10 + $0x20] sm:$0xff]
        %v1708 = vld [vmem:[%s10 + $0x28] sm:$0xff]
        %v1709 = vld [vmem:[%s10 + $0x30] sm:$0xff]
        %v1710 = vld [vmem:[%s10 + $0x38] sm:$0xff]
        %v1711 = vld [vmem:[%s10 + $0x40] sm:$0xff]
        %v1712 = vld [vmem:[%s10 + $0x48] sm:$0xff]
        %v1713 = vld [vmem:[%s10 + $0x50] sm:$0xff]
        %v1714 = vld [vmem:[%s10 + $0x58] sm:$0xff]
        %v1715 = vld [vmem:[%s10 + $0x60] sm:$0xff]
        %v1716 = vld [vmem:[%s10 + $0x68] sm:$0xff]
        %v1717 = vld [vmem:[%s10 + $0x70] sm:$0xff]
        %v1718 = vld [vmem:[%s10 + $0x78] sm:$0xff]
        %v1719 = vld [vmem:[%s10 + $0x80] sm:$0xff]
        %v1720 = vld [vmem:[%s10 + $0x88] sm:$0xff]
        %v1721 = vld [vmem:[%s10 + $0x90] sm:$0xff]
        %v1722 = vld [vmem:[%s10 + $0x98] sm:$0xff]
        %v1723 = vld [vmem:[%s10 + $0xa0] sm:$0xff]
        %v1724 = vld [vmem:[%s10 + $0xa8] sm:$0xff]
        %v1725 = vld [vmem:[%s10 + $0xb0] sm:$0xff]
        %v1726 = vld [vmem:[%s10 + $0xb8] sm:$0xff]
        %v1727 = vld [vmem:[%s10 + $0xc0] sm:$0xff]
        %v1728 = vld [vmem:[%s10 + $0xc8] sm:$0xff]
        %v1729 = vld [vmem:[%s10 + $0xd0] sm:$0xff]
        %v1730 = vld [vmem:[%s10 + $0xd8] sm:$0xff]
        %v1731 = vld [vmem:[%s10 + $0xe0] sm:$0xff]
        %v1732 = vld [vmem:[%s10 + $0xe8] sm:$0xff]
        %v1733 = vld [vmem:[%s10 + $0xf0] sm:$0xff]
        %v1734 = vld [vmem:[%s10 + $0xf8] sm:$0xff]
        %v1735 = vld [vmem:[%s10 + $0x100] sm:$0xff]
        %v1736 = vld [vmem:[%s10 + $0x108] sm:$0xff]
        %v1737 = vld [vmem:[%s10 + $0x110] sm:$0xff]
        %v1738 = vld [vmem:[%s10 + $0x118] sm:$0xff]
        %v1739 = vld [vmem:[%s10 + $0x120] sm:$0xff]
        %v1740 = vld [vmem:[%s10 + $0x128] sm:$0xff]
        %v1741 = vld [vmem:[%s10 + $0x130] sm:$0xff]
        %v1742 = vld [vmem:[%s10 + $0x138] sm:$0xff]
        %v1743 = vld [vmem:[%s10 + $0x140] sm:$0xff]
        %v1744 = vld [vmem:[%s10 + $0x148] sm:$0xff]
        %v1745 = vld [vmem:[%s10 + $0x150] sm:$0xff]
        %v1746 = vld [vmem:[%s10 + $0x158] sm:$0xff]
        %v1747 = vld [vmem:[%s10 + $0x160] sm:$0xff]
        %v1748 = vld [vmem:[%s10 + $0x168] sm:$0xff]
        %v1749 = vld [vmem:[%s10 + $0x170] sm:$0xff]
        %v1750 = vld [vmem:[%s10 + $0x178] sm:$0xff]
        %v1751 = vld [vmem:[%s10 + $0x180] sm:$0xff]
        %v1752 = vld [vmem:[%s10 + $0x188] sm:$0xff]
        %v1753 = vld [vmem:[%s10 + $0x190] sm:$0xff]
        %v1754 = vld [vmem:[%s10 + $0x198] sm:$0xff]
        %v1755 = vld [vmem:[%s10 + $0x1a0] sm:$0xff]
        %v1756 = vld [vmem:[%s10 + $0x1a8] sm:$0xff]
        %v1757 = vld [vmem:[%s10 + $0x1b0] sm:$0xff]
        %v1758 = vld [vmem:[%s10 + $0x1b8] sm:$0xff]
        %v1759 = vld [vmem:[%s10 + $0x1c0] sm:$0xff]
        %v1760 = vld [vmem:[%s10 + $0x1c8] sm:$0xff]
        %v1761 = vld [vmem:[%s10 + $0x1d0] sm:$0xff]
        %v1762 = vld [vmem:[%s10 + $0x1d8] sm:$0xff]
        %v1763 = vld [vmem:[%s10 + $0x1e0] sm:$0xff]
        %v1764 = vld [vmem:[%s10 + $0x1e8] sm:$0xff]
        %v1765 = vld [vmem:[%s10 + $0x1f0] sm:$0xff]
        %v1766 = vld [vmem:[%s10 + $0x1f8] sm:$0xff]
        %v1767 = vld [vmem:[#allocation2] sm:$0xff]
        %v1768 = vld [vmem:[#allocation2 + $0x8] sm:$0xff]
        %v1769 = vld [vmem:[#allocation2 + $0x10] sm:$0xff]
        %v1770 = vld [vmem:[#allocation2 + $0x18] sm:$0xff]
        %v1835 = vunpack.c.l.b16 %v1703
        %v1836 = vunpack.c.h.b16 %v1703
        %v1837 = vunpack.c.l.b16 %v1704
        %v1838 = vunpack.c.h.b16 %v1704
        %v1839 = vunpack.c.l.b16 %v1705
        %v1840 = vunpack.c.h.b16 %v1705
        %v1841 = vunpack.c.l.b16 %v1706
        %v1842 = vunpack.c.h.b16 %v1706
        %v1843 = vunpack.c.l.b16 %v1707
        %v1844 = vunpack.c.h.b16 %v1707
        %v1845 = vunpack.c.l.b16 %v1708
        %v1846 = vunpack.c.h.b16 %v1708
        %v1847 = vunpack.c.l.b16 %v1709
        %v1848 = vunpack.c.h.b16 %v1709
        %v1849 = vunpack.c.l.b16 %v1710
        %v1850 = vunpack.c.h.b16 %v1710
        %v1851 = vunpack.c.l.b16 %v1711
        %v1852 = vunpack.c.h.b16 %v1711
        %v1853 = vunpack.c.l.b16 %v1712
        %v1854 = vunpack.c.h.b16 %v1712
        %v1855 = vunpack.c.l.b16 %v1713
        %v1856 = vunpack.c.h.b16 %v1713
        %v1857 = vunpack.c.l.b16 %v1714
        %v1858 = vunpack.c.h.b16 %v1714
        %v1859 = vunpack.c.l.b16 %v1715
        %v1860 = vunpack.c.h.b16 %v1715
        %v1861 = vunpack.c.l.b16 %v1716
        %v1862 = vunpack.c.h.b16 %v1716
        %v1863 = vunpack.c.l.b16 %v1717
        %v1864 = vunpack.c.h.b16 %v1717
        %v1865 = vunpack.c.l.b16 %v1718
        %v1866 = vunpack.c.h.b16 %v1718
        %v1867 = vunpack.c.l.b16 %v1719
        %v1868 = vunpack.c.h.b16 %v1719
        %v1869 = vunpack.c.l.b16 %v1720
        %v1870 = vunpack.c.h.b16 %v1720
        %v1871 = vunpack.c.l.b16 %v1721
        %v1872 = vunpack.c.h.b16 %v1721
        %v1873 = vunpack.c.l.b16 %v1722
        %v1874 = vunpack.c.h.b16 %v1722
        %v1875 = vunpack.c.l.b16 %v1723
        %v1876 = vunpack.c.h.b16 %v1723
        %v1877 = vunpack.c.l.b16 %v1724
        %v1878 = vunpack.c.h.b16 %v1724
        %v1879 = vunpack.c.l.b16 %v1725
        %v1880 = vunpack.c.h.b16 %v1725
        %v1881 = vunpack.c.l.b16 %v1726
        %v1882 = vunpack.c.h.b16 %v1726
        %v1883 = vunpack.c.l.b16 %v1727
        %v1884 = vunpack.c.h.b16 %v1727
        %v1885 = vunpack.c.l.b16 %v1728
        %v1886 = vunpack.c.h.b16 %v1728
        %v1887 = vunpack.c.l.b16 %v1729
        %v1888 = vunpack.c.h.b16 %v1729
        %v1889 = vunpack.c.l.b16 %v1730
        %v1890 = vunpack.c.h.b16 %v1730
        %v1891 = vunpack.c.l.b16 %v1731
        %v1892 = vunpack.c.h.b16 %v1731
        %v1893 = vunpack.c.l.b16 %v1732
        %v1894 = vunpack.c.h.b16 %v1732
        %v1895 = vunpack.c.l.b16 %v1733
        %v1896 = vunpack.c.h.b16 %v1733
        %v1897 = vunpack.c.l.b16 %v1734
        %v1898 = vunpack.c.h.b16 %v1734
        %v1899 = vunpack.c.l.b16 %v1735
        %v1900 = vunpack.c.h.b16 %v1735
        %v1901 = vunpack.c.l.b16 %v1736
        %v1902 = vunpack.c.h.b16 %v1736
        %v1903 = vunpack.c.l.b16 %v1737
        %v1904 = vunpack.c.h.b16 %v1737
        %v1905 = vunpack.c.l.b16 %v1738
        %v1906 = vunpack.c.h.b16 %v1738
        %v1907 = vunpack.c.l.b16 %v1739
        %v1908 = vunpack.c.h.b16 %v1739
        %v1909 = vunpack.c.l.b16 %v1740
        %v1910 = vunpack.c.h.b16 %v1740
        %v1911 = vunpack.c.l.b16 %v1741
        %v1912 = vunpack.c.h.b16 %v1741
        %v1913 = vunpack.c.l.b16 %v1742
        %v1914 = vunpack.c.h.b16 %v1742
        %v1915 = vunpack.c.l.b16 %v1743
        %v1916 = vunpack.c.h.b16 %v1743
        %v1917 = vunpack.c.l.b16 %v1744
        %v1918 = vunpack.c.h.b16 %v1744
        %v1919 = vunpack.c.l.b16 %v1745
        %v1920 = vunpack.c.h.b16 %v1745
        %v1921 = vunpack.c.l.b16 %v1746
        %v1922 = vunpack.c.h.b16 %v1746
        %v1923 = vunpack.c.l.b16 %v1747
        %v1924 = vunpack.c.h.b16 %v1747
        %v1925 = vunpack.c.l.b16 %v1748
        %v1926 = vunpack.c.h.b16 %v1748
        %v1927 = vunpack.c.l.b16 %v1749
        %v1928 = vunpack.c.h.b16 %v1749
        %v1929 = vunpack.c.l.b16 %v1750
        %v1930 = vunpack.c.h.b16 %v1750
        %v1931 = vunpack.c.l.b16 %v1751
        %v1932 = vunpack.c.h.b16 %v1751
        %v1933 = vunpack.c.l.b16 %v1752
        %v1934 = vunpack.c.h.b16 %v1752
        %v1935 = vunpack.c.l.b16 %v1753
        %v1936 = vunpack.c.h.b16 %v1753
        %v1937 = vunpack.c.l.b16 %v1754
        %v1938 = vunpack.c.h.b16 %v1754
        %v1939 = vunpack.c.l.b16 %v1755
        %v1940 = vunpack.c.h.b16 %v1755
        %v1941 = vunpack.c.l.b16 %v1756
        %v1942 = vunpack.c.h.b16 %v1756
        %v1943 = vunpack.c.l.b16 %v1757
        %v1944 = vunpack.c.h.b16 %v1757
        %v1945 = vunpack.c.l.b16 %v1758
        %v1946 = vunpack.c.h.b16 %v1758
        %v1947 = vunpack.c.l.b16 %v1759
        %v1948 = vunpack.c.h.b16 %v1759
        %v1949 = vunpack.c.l.b16 %v1760
        %v1950 = vunpack.c.h.b16 %v1760
        %v1951 = vunpack.c.l.b16 %v1761
        %v1952 = vunpack.c.h.b16 %v1761
        %v1953 = vunpack.c.l.b16 %v1762
        %v1954 = vunpack.c.h.b16 %v1762
        %v1955 = vunpack.c.l.b16 %v1763
        %v1956 = vunpack.c.h.b16 %v1763
        %v1957 = vunpack.c.l.b16 %v1764
        %v1958 = vunpack.c.h.b16 %v1764
        %v1959 = vunpack.c.l.b16 %v1765
        %v1960 = vunpack.c.h.b16 %v1765
        %v1961 = vunpack.c.l.b16 %v1766
        %v1962 = vunpack.c.h.b16 %v1766
        %v1963 = vpack.c.b16 %v1839, %v1835
        %v1964 = vpack.c.b16 %v1840, %v1836
        %v1965 = vpack.c.b16 %v1841, %v1837
        %v1966 = vpack.c.b16 %v1842, %v1838
        %v1967 = vpack.c.b16 %v1847, %v1843
        %v1968 = vpack.c.b16 %v1848, %v1844
        %v1969 = vpack.c.b16 %v1849, %v1845
        %v1970 = vpack.c.b16 %v1850, %v1846
        %v1971 = vpack.c.b16 %v1855, %v1851
        %v1972 = vpack.c.b16 %v1856, %v1852
        %v1973 = vpack.c.b16 %v1857, %v1853
        %v1974 = vpack.c.b16 %v1858, %v1854
        %v1975 = vpack.c.b16 %v1863, %v1859
        %v1976 = vpack.c.b16 %v1864, %v1860
        %v1977 = vpack.c.b16 %v1865, %v1861
        %v1978 = vpack.c.b16 %v1866, %v1862
        %v1979 = vpack.c.b16 %v1871, %v1867
        %v1980 = vpack.c.b16 %v1872, %v1868
        %v1981 = vpack.c.b16 %v1873, %v1869
        %v1982 = vpack.c.b16 %v1874, %v1870
        %v1983 = vpack.c.b16 %v1879, %v1875
        %v1984 = vpack.c.b16 %v1880, %v1876
        %v1985 = vpack.c.b16 %v1881, %v1877
        %v1986 = vpack.c.b16 %v1882, %v1878
        %v1987 = vpack.c.b16 %v1887, %v1883
        %v1988 = vpack.c.b16 %v1888, %v1884
        %v1989 = vpack.c.b16 %v1889, %v1885
        %v1990 = vpack.c.b16 %v1890, %v1886
        %v1991 = vpack.c.b16 %v1895, %v1891
        %v1992 = vpack.c.b16 %v1896, %v1892
        %v1993 = vpack.c.b16 %v1897, %v1893
        %v1994 = vpack.c.b16 %v1898, %v1894
        %v1995 = vpack.c.b16 %v1903, %v1899
        %v1996 = vpack.c.b16 %v1904, %v1900
        %v1997 = vpack.c.b16 %v1905, %v1901
        %v1998 = vpack.c.b16 %v1906, %v1902
        %v1999 = vpack.c.b16 %v1911, %v1907
        %v2000 = vpack.c.b16 %v1912, %v1908
        %v2001 = vpack.c.b16 %v1913, %v1909
        %v2002 = vpack.c.b16 %v1914, %v1910
        %v2003 = vpack.c.b16 %v1919, %v1915
        %v2004 = vpack.c.b16 %v1920, %v1916
        %v2005 = vpack.c.b16 %v1921, %v1917
        %v2006 = vpack.c.b16 %v1922, %v1918
        %v2007 = vpack.c.b16 %v1927, %v1923
        %v2008 = vpack.c.b16 %v1928, %v1924
        %v2009 = vpack.c.b16 %v1929, %v1925
        %v2010 = vpack.c.b16 %v1930, %v1926
        %v2011 = vpack.c.b16 %v1935, %v1931
        %v2012 = vpack.c.b16 %v1936, %v1932
        %v2013 = vpack.c.b16 %v1937, %v1933
        %v2014 = vpack.c.b16 %v1938, %v1934
        %v2015 = vpack.c.b16 %v1943, %v1939
        %v2016 = vpack.c.b16 %v1944, %v1940
        %v2017 = vpack.c.b16 %v1945, %v1941
        %v2018 = vpack.c.b16 %v1946, %v1942
        %v2019 = vpack.c.b16 %v1951, %v1947
        %v2020 = vpack.c.b16 %v1952, %v1948
        %v2021 = vpack.c.b16 %v1953, %v1949
        %v2022 = vpack.c.b16 %v1954, %v1950
        %v2023 = vpack.c.b16 %v1959, %v1955
        %v2024 = vpack.c.b16 %v1960, %v1956
        %v2025 = vpack.c.b16 %v1961, %v1957
        %v2026 = vpack.c.b16 %v1962, %v1958
        %2091 = vmatprep.subr.bf16.mxu0 %v1964
        %2092 = vmatpush1.bf16.msra.mxu0 %v1963
        %2093 = vmatprep.subr.bf16.mxu0 %v1968
        %2094 = vmatpush1.bf16.msra.mxu0 %v1967
        %2095 = vmatprep.subr.bf16.mxu0 %v1972
        %2096 = vmatpush1.bf16.msra.mxu0 %v1971
        %2097 = vmatprep.subr.bf16.mxu0 %v1976
        %2098 = vmatpush1.bf16.msra.mxu0 %v1975
        %2099 = vmatprep.subr.bf16.mxu0 %v1980
        %2100 = vmatpush1.bf16.msra.mxu0 %v1979
        %2101 = vmatprep.subr.bf16.mxu0 %v1984
        %2102 = vmatpush1.bf16.msra.mxu0 %v1983
        %2103 = vmatprep.subr.bf16.mxu0 %v1988
        %2104 = vmatpush1.bf16.msra.mxu0 %v1987
        %2105 = vmatprep.subr.bf16.mxu0 %v1992
        %2106 = vmatpush1.bf16.msra.mxu0 %v1991
        %2107 = vmatprep.subr.bf16.mxu0 %v1996
        %2108 = vmatpush1.bf16.msra.mxu0 %v1995
        %2109 = vmatprep.subr.bf16.mxu0 %v2000
        %2110 = vmatpush1.bf16.msra.mxu0 %v1999
        %2111 = vmatprep.subr.bf16.mxu0 %v2004
        %2112 = vmatpush1.bf16.msra.mxu0 %v2003
        %2113 = vmatprep.subr.bf16.mxu0 %v2008
        %2114 = vmatpush1.bf16.msra.mxu0 %v2007
        %2115 = vmatprep.subr.bf16.mxu0 %v2012
        %2116 = vmatpush1.bf16.msra.mxu0 %v2011
        %2117 = vmatprep.subr.bf16.mxu0 %v2016
        %2118 = vmatpush1.bf16.msra.mxu0 %v2015
        %2119 = vmatprep.subr.bf16.mxu0 %v2020
        %2120 = vmatpush1.bf16.msra.mxu0 %v2019
        %2121 = vmatprep.subr.bf16.mxu0 %v2024
        %2122 = vmatpush1.bf16.msra.mxu0 %v2023
        %2123 = vmatprep.mubr.bf16.mxu0 %v1244
        %2124 = vmatmul.mubr.bf16.gmra.mrb[0].mxu0 %v1702
        %v2125 = vpop.f32.mrb[0].mxu0
        %v2126 = vadd.f32 %v1767, %v2125
        %v2127 = vpop.f32.mrb[0].mxu0
        %v2128 = vadd.f32 %v1768, %v2127
        %v2129 = vpop.f32.mrb[0].mxu0
        %v2130 = vpop.f32.mrb[0].mxu0
        %2131 = vdwg.mxu0
        %2132 = vmatprep.subr.bf16.mxu0 %v1966
        %2133 = vmatpush1.bf16.msra.mxu0 %v1965
        %2134 = vmatprep.subr.bf16.mxu0 %v1970
        %2135 = vmatpush1.bf16.msra.mxu0 %v1969
        %2136 = vmatprep.subr.bf16.mxu0 %v1974
        %2137 = vmatpush1.bf16.msra.mxu0 %v1973
        %2138 = vmatprep.subr.bf16.mxu0 %v1978
        %2139 = vmatpush1.bf16.msra.mxu0 %v1977
        %2140 = vmatprep.subr.bf16.mxu0 %v1982
        %2141 = vmatpush1.bf16.msra.mxu0 %v1981
        %2142 = vmatprep.subr.bf16.mxu0 %v1986
        %2143 = vmatpush1.bf16.msra.mxu0 %v1985
        %2144 = vmatprep.subr.bf16.mxu0 %v1990
        %2145 = vmatpush1.bf16.msra.mxu0 %v1989
        %2146 = vmatprep.subr.bf16.mxu0 %v1994
        %2147 = vmatpush1.bf16.msra.mxu0 %v1993
        %2148 = vmatprep.subr.bf16.mxu0 %v1998
        %2149 = vmatpush1.bf16.msra.mxu0 %v1997
        %2150 = vmatprep.subr.bf16.mxu0 %v2002
        %2151 = vmatpush1.bf16.msra.mxu0 %v2001
        %2152 = vmatprep.subr.bf16.mxu0 %v2006
        %2153 = vmatpush1.bf16.msra.mxu0 %v2005
        %2154 = vmatprep.subr.bf16.mxu0 %v2010
        %2155 = vmatpush1.bf16.msra.mxu0 %v2009
        %2156 = vmatprep.subr.bf16.mxu0 %v2014
        %2157 = vmatpush1.bf16.msra.mxu0 %v2013
        %2158 = vmatprep.subr.bf16.mxu0 %v2018
        %2159 = vmatpush1.bf16.msra.mxu0 %v2017
        %2160 = vmatprep.subr.bf16.mxu0 %v2022
        %2161 = vmatpush1.bf16.msra.mxu0 %v2021
        %2162 = vmatprep.subr.bf16.mxu0 %v2026
        %2163 = vmatpush1.bf16.msra.mxu0 %v2025
        %2164 = vmatprep.mubr.bf16.mxu0 %v1244
        %2165 = vmatmul.mubr.bf16.gmra.mrb[0].mxu0 %v1702
        %v2166 = vpop.f32.mrb[0].mxu0
        %v2167 = vadd.f32 %v1769, %v2166
        %v2168 = vpop.f32.mrb[0].mxu0
        %v2169 = vadd.f32 %v1770, %v2168
        %v2170 = vpop.f32.mrb[0].mxu0
        %v2171 = vpop.f32.mrb[0].mxu0
        %2172 = vdwg.mxu0
        %v2173 = vxor.u32 %v2126, 2147483648
        %v2174 = vmul.f32 %v2173, 1.442695
        %v2175 = vpow.pop %v2174
        %v2176 = vadd.f32 %v2175, 1.0
        %v2177 = vrcp.pop %v2176
        %v2178 = vmul.f32 1.0, %v2177
        %v2179 = vxor.u32 %v2128, 2147483648
        %v2180 = vmul.f32 %v2179, 1.442695
        %v2181 = vpow.pop %v2180
        %v2182 = vadd.f32 %v2181, 1.0
        %v2183 = vrcp.pop %v2182
        %v2184 = vmul.f32 1.0, %v2183
        %v2185 = vtanh.pop %v2167
        %v2186 = vxor.u32 %v2169, 2147483648
        %v2187 = vmul.f32 %v2186, 1.442695
        %v2188 = vpow.pop %v2187
        %v2189 = vadd.f32 %v2188, 1.0
        %v2190 = vrcp.pop %v2189
        %v2191 = vmul.f32 1.0, %v2190
        %v2192 = vmul.f32 %v2184, %v871
        %v2193 = vmul.f32 %v2178, %v2185
        %v2194 = vadd.f32 %v2192, %v2193
        %v2195 = vtanh.pop %v2194
        %v2196 = vmul.f32 %v2191, %v2195
        %v2197 = vpack.c.bf16 %v2196, %v2196
        %v2198 = vld [vmem:[%s13] sm:$0xf]
        %v2199 = vld [vmem:[%s13 + $0x4] sm:$0xf]
        %v2200 = vld [vmem:[%s13 + $0x8] sm:$0xf]
        %v2201 = vld [vmem:[%s13 + $0xc] sm:$0xf]
        %v2202 = vld [vmem:[%s13 + $0x10] sm:$0xf]
        %v2203 = vld [vmem:[%s13 + $0x14] sm:$0xf]
        %v2204 = vld [vmem:[%s13 + $0x18] sm:$0xf]
        %v2205 = vld [vmem:[%s13 + $0x1c] sm:$0xf]
        %v2206 = vld [vmem:[%s13 + $0x20] sm:$0xf]
        %v2207 = vld [vmem:[%s13 + $0x24] sm:$0xf]
        %v2208 = vld [vmem:[%s13 + $0x28] sm:$0xf]
        %v2209 = vld [vmem:[%s13 + $0x2c] sm:$0xf]
        %v2210 = vld [vmem:[%s13 + $0x30] sm:$0xf]
        %v2211 = vld [vmem:[%s13 + $0x34] sm:$0xf]
        %v2212 = vld [vmem:[%s13 + $0x38] sm:$0xf]
        %v2213 = vld [vmem:[%s13 + $0x3c] sm:$0xf]
        %v2214 = vld [vmem:[%s14] sm:$0x1]
        %v2216 = vlaneseq
        %v2217 = vshrl.u32 %v2216, 7
        %v2218 = vsub.s32 0, %v2217
        %v2219 = vrot.slane %v2214, %v2218
        %v2237 = vunpack.c.l.b16 %v2198
        %v2238 = vunpack.c.l.b16 %v2199
        %v2239 = vunpack.c.l.b16 %v2200
        %v2240 = vunpack.c.l.b16 %v2201
        %v2241 = vunpack.c.l.b16 %v2202
        %v2242 = vunpack.c.l.b16 %v2203
        %v2243 = vunpack.c.l.b16 %v2204
        %v2244 = vunpack.c.l.b16 %v2205
        %v2245 = vunpack.c.l.b16 %v2206
        %v2246 = vunpack.c.l.b16 %v2207
        %v2247 = vunpack.c.l.b16 %v2208
        %v2248 = vunpack.c.l.b16 %v2209
        %v2249 = vunpack.c.l.b16 %v2210
        %v2250 = vunpack.c.l.b16 %v2211
        %v2251 = vunpack.c.l.b16 %v2212
        %v2252 = vunpack.c.l.b16 %v2213
        %v2253 = vpack.c.b16 %v2238, %v2237
        %v2254 = vpack.c.b16 %v2240, %v2239
        %v2255 = vpack.c.b16 %v2242, %v2241
        %v2256 = vpack.c.b16 %v2244, %v2243
        %v2257 = vpack.c.b16 %v2246, %v2245
        %v2258 = vpack.c.b16 %v2248, %v2247
        %v2259 = vpack.c.b16 %v2250, %v2249
        %v2260 = vpack.c.b16 %v2252, %v2251
        %2269 = vmatprep.subr.bf16.mxu0 0
        %2270 = vmatpush1.bf16.msra.mxu0 %v2253
        %2271 = vmatprep.subr.bf16.mxu0 0
        %2272 = vmatpush1.bf16.msra.mxu0 %v2254
        %2273 = vmatprep.subr.bf16.mxu0 0
        %2274 = vmatpush1.bf16.msra.mxu0 %v2255
        %2275 = vmatprep.subr.bf16.mxu0 0
        %2276 = vmatpush1.bf16.msra.mxu0 %v2256
        %2277 = vmatprep.subr.bf16.mxu0 0
        %2278 = vmatpush1.bf16.msra.mxu0 %v2257
        %2279 = vmatprep.subr.bf16.mxu0 0
        %2280 = vmatpush1.bf16.msra.mxu0 %v2258
        %2281 = vmatprep.subr.bf16.mxu0 0
        %2282 = vmatpush1.bf16.msra.mxu0 %v2259
        %2283 = vmatprep.subr.bf16.mxu0 0
        %2284 = vmatpush1.bf16.msra.mxu0 %v2260
        %2285 = vmatprep.subr.bf16.mxu0 0
        %2286 = vmatpush1.bf16.msra.mxu0 0
        %2287 = vmatprep.subr.bf16.mxu0 0
        %2288 = vmatpush1.bf16.msra.mxu0 0
        %2289 = vmatprep.subr.bf16.mxu0 0
        %2290 = vmatpush1.bf16.msra.mxu0 0
        %2291 = vmatprep.subr.bf16.mxu0 0
        %2292 = vmatpush1.bf16.msra.mxu0 0
        %2293 = vmatprep.subr.bf16.mxu0 0
        %2294 = vmatpush1.bf16.msra.mxu0 0
        %2295 = vmatprep.subr.bf16.mxu0 0
        %2296 = vmatpush1.bf16.msra.mxu0 0
        %2297 = vmatprep.subr.bf16.mxu0 0
        %2298 = vmatpush1.bf16.msra.mxu0 0
        %2299 = vmatprep.subr.bf16.mxu0 0
        %2300 = vmatpush1.bf16.msra.mxu0 0
        %2301 = vmatprep.mubr.bf16.mxu0 0
        %2302 = vmatmul.mubr.bf16.gmra.mrb[0].mxu0 %v2197
        %v2303 = vpop.f32.mrb[0].mxu0
        %v2304 = vadd.f32 %v2219, %v2303
        %v2305 = vpop.f32.mrb[0].mxu0
        %v2306 = vpop.f32.mrb[0].mxu0
        %v2307 = vpop.f32.mrb[0].mxu0
        %2308 = vdwg.mxu0
        %2309 = vst [vmem:[%s586] sm:$0xff] %v2304
        %v2318 = vlaneseq
        %v2319 = vand.u32 %v2318, 127
        %v2320 = vlaneseq
        %v2321 = vshrl.u32 %v2320, 7
        %v2322 = vsub.s32 %v2319, %v2321
        %v2323 = vrot.slane %v1614, %v2322
        %v2324 = vlaneseq
        %v2325 = vshrl.u32 %v2324, 7
        %v2326 = vsub.s32 %v2319, %v2325
        %v2327 = vrot.slane %v1615, %v2326
        %v2328 = vlaneseq
        %v2329 = vshrl.u32 %v2328, 7
        %v2330 = vsub.s32 %v2319, %v2329
        %v2331 = vrot.slane %v1616, %v2330
        %v2332 = vlaneseq
        %v2333 = vshrl.u32 %v2332, 7
        %v2334 = vsub.s32 %v2319, %v2333
        %v2335 = vrot.slane %v1617, %v2334
        %v2336 = vlaneseq
        %v2337 = vshrl.u32 %v2336, 7
        %v2338 = vsub.s32 %v2319, %v2337
        %v2339 = vrot.slane %v1618, %v2338
        %v2340 = vlaneseq
        %v2341 = vshrl.u32 %v2340, 7
        %v2342 = vsub.s32 %v2319, %v2341
        %v2343 = vrot.slane %v1619, %v2342
        %v2344 = vlaneseq
        %v2345 = vshrl.u32 %v2344, 7
        %v2346 = vsub.s32 %v2319, %v2345
        %v2347 = vrot.slane %v1620, %v2346
        %v2348 = vlaneseq
        %v2349 = vshrl.u32 %v2348, 7
        %v2350 = vsub.s32 %v2319, %v2349
        %v2351 = vrot.slane %v1621, %v2350
        %v2352 = vsel %vm696, %v2327, %v2323
        %v2353 = vsel %vm698, %v2331, %v2352
        %v2354 = vsel %vm700, %v2335, %v2353
        %v2355 = vsel %vm702, %v2339, %v2354
        %v2356 = vsel %vm704, %v2343, %v2355
        %v2357 = vsel %vm706, %v2347, %v2356
        %v2358 = vsel %vm708, %v2351, %v2357
        %vm2360 = vcmask 64512
        %2361 = vst.msk [vmem:[%s592] sm:$0xff] %vm2360, %v2358
        %v2362 = vld [vmem:[%s8] sm:$0xf]
        %v2363 = vld [vmem:[%s8 + $0x4] sm:$0xf]
        %v2364 = vld [vmem:[%s8 + $0x8] sm:$0xf]
        %v2365 = vld [vmem:[%s8 + $0xc] sm:$0xf]
        %v2366 = vld [vmem:[%s8 + $0x10] sm:$0xf]
        %v2367 = vld [vmem:[%s8 + $0x14] sm:$0xf]
        %v2368 = vld [vmem:[%s8 + $0x18] sm:$0xf]
        %v2369 = vld [vmem:[%s8 + $0x1c] sm:$0xf]
        %v2370 = vld [vmem:[%s8 + $0x20] sm:$0xf]
        %v2371 = vld [vmem:[%s8 + $0x24] sm:$0xf]
        %v2372 = vld [vmem:[%s8 + $0x28] sm:$0xf]
        %v2373 = vld [vmem:[%s8 + $0x2c] sm:$0xf]
        %v2374 = vld [vmem:[%s8 + $0x30] sm:$0xf]
        %v2375 = vld [vmem:[%s8 + $0x34] sm:$0xf]
        %v2376 = vld [vmem:[%s8 + $0x38] sm:$0xf]
        %v2377 = vld [vmem:[%s8 + $0x3c] sm:$0xf]
        %v2394 = vunpack.c.l.b16 %v2362
        %v2395 = vunpack.c.l.b16 %v2363
        %v2396 = vunpack.c.l.b16 %v2364
        %v2397 = vunpack.c.l.b16 %v2365
        %v2398 = vunpack.c.l.b16 %v2366
        %v2399 = vunpack.c.l.b16 %v2367
        %v2400 = vunpack.c.l.b16 %v2368
        %v2401 = vunpack.c.l.b16 %v2369
        %v2402 = vunpack.c.l.b16 %v2370
        %v2403 = vunpack.c.l.b16 %v2371
        %v2404 = vunpack.c.l.b16 %v2372
        %v2405 = vunpack.c.l.b16 %v2373
        %v2406 = vunpack.c.l.b16 %v2374
        %v2407 = vunpack.c.l.b16 %v2375
        %v2408 = vunpack.c.l.b16 %v2376
        %v2409 = vunpack.c.l.b16 %v2377
        %v2410 = vpack.c.b16 %v2395, %v2394
        %v2411 = vpack.c.b16 %v2397, %v2396
        %v2412 = vpack.c.b16 %v2399, %v2398
        %v2413 = vpack.c.b16 %v2401, %v2400
        %v2414 = vpack.c.b16 %v2403, %v2402
        %v2415 = vpack.c.b16 %v2405, %v2404
        %v2416 = vpack.c.b16 %v2407, %v2406
        %v2417 = vpack.c.b16 %v2409, %v2408
        %2426 = vmatprep.subr.bf16.mxu0 0
        %2427 = vmatpush1.bf16.msra.mxu0 %v2410
        %2428 = vmatprep.subr.bf16.mxu0 0
        %2429 = vmatpush1.bf16.msra.mxu0 %v2411
        %2430 = vmatprep.subr.bf16.mxu0 0
        %2431 = vmatpush1.bf16.msra.mxu0 %v2412
        %2432 = vmatprep.subr.bf16.mxu0 0
        %2433 = vmatpush1.bf16.msra.mxu0 %v2413
        %2434 = vmatprep.subr.bf16.mxu0 0
        %2435 = vmatpush1.bf16.msra.mxu0 %v2414
        %2436 = vmatprep.subr.bf16.mxu0 0
        %2437 = vmatpush1.bf16.msra.mxu0 %v2415
        %2438 = vmatprep.subr.bf16.mxu0 0
        %2439 = vmatpush1.bf16.msra.mxu0 %v2416
        %2440 = vmatprep.subr.bf16.mxu0 0
        %2441 = vmatpush1.bf16.msra.mxu0 %v2417
        %2442 = vmatprep.subr.bf16.mxu0 0
        %2443 = vmatpush1.bf16.msra.mxu0 0
        %2444 = vmatprep.subr.bf16.mxu0 0
        %2445 = vmatpush1.bf16.msra.mxu0 0
        %2446 = vmatprep.subr.bf16.mxu0 0
        %2447 = vmatpush1.bf16.msra.mxu0 0
        %2448 = vmatprep.subr.bf16.mxu0 0
        %2449 = vmatpush1.bf16.msra.mxu0 0
        %2450 = vmatprep.subr.bf16.mxu0 0
        %2451 = vmatpush1.bf16.msra.mxu0 0
        %2452 = vmatprep.subr.bf16.mxu0 0
        %2453 = vmatpush1.bf16.msra.mxu0 0
        %2454 = vmatprep.subr.bf16.mxu0 0
        %2455 = vmatpush1.bf16.msra.mxu0 0
        %2456 = vmatprep.subr.bf16.mxu0 0
        %2457 = vmatpush1.bf16.msra.mxu0 0
        %2458 = vmatprep.mubr.bf16.mxu0 0
        %2459 = vmatmul.mubr.bf16.gmra.mrb[0].mxu0 %v2197
        %v2460 = vpop.f32.mrb[0].mxu0
        %v2461 = vadd.f32 0.0, %v2460
        %v2462 = vpop.f32.mrb[0].mxu0
        %v2463 = vpop.f32.mrb[0].mxu0
        %v2464 = vpop.f32.mrb[0].mxu0
        %2465 = vdwg.mxu0
        %v2467 = vcombine.high %v2461, %v2461
        %v2469 = vunpack.c.l.s4 1966171168
        %v2470 = vunpack.c.0.s8 %v2469
        %v2471 = vlaneseq
        %v2472 = vshrl.u32 %v2471, 7
        %v2473 = vsub.s32 %v2470, %v2472
        %v2474 = vrot.slane %v2461, %v2473
        %v2476 = vunpack.c.l.s4 1966171168
        %v2477 = vunpack.c.0.s8 %v2476
        %v2478 = vlaneseq
        %v2479 = vshrl.u32 %v2478, 7
        %v2480 = vsub.s32 %v2477, %v2479
        %v2481 = vrot.slane %v2467, %v2480
        %v2482 = vcombine.high %v2474, %v2474
        %v2483 = vcombine.high %v2481, %v2481
        %v2485 = vunpack.c.l.s4 1966171168
        %v2486 = vunpack.c.0.s8 %v2485
        %v2487 = vlaneseq
        %v2488 = vshrl.u32 %v2487, 7
        %v2489 = vsub.s32 %v2486, %v2488
        %v2490 = vrot.slane %v2474, %v2489
        %v2492 = vunpack.c.l.s4 1966171168
        %v2493 = vunpack.c.0.s8 %v2492
        %v2494 = vlaneseq
        %v2495 = vshrl.u32 %v2494, 7
        %v2496 = vsub.s32 %v2493, %v2495
        %v2497 = vrot.slane %v2481, %v2496
        %v2499 = vunpack.c.l.s4 1966171168
        %v2500 = vunpack.c.0.s8 %v2499
        %v2501 = vlaneseq
        %v2502 = vshrl.u32 %v2501, 7
        %v2503 = vsub.s32 %v2500, %v2502
        %v2504 = vrot.slane %v2482, %v2503
        %v2506 = vunpack.c.l.s4 1966171168
        %v2507 = vunpack.c.0.s8 %v2506
        %v2508 = vlaneseq
        %v2509 = vshrl.u32 %v2508, 7
        %v2510 = vsub.s32 %v2507, %v2509
        %v2511 = vrot.slane %v2483, %v2510
        %v2512 = vcombine.high %v2490, %v2490
        %v2513 = vcombine.high %v2497, %v2497
        %v2514 = vcombine.high %v2504, %v2504
        %v2515 = vcombine.high %v2511, %v2511
        %v2516 = vlaneseq
        %v2517 = vshrl.u32 %v2516, 7
        %v2518 = vsub.s32 0, %v2517
        %v2519 = vrot.slane %v2490, %v2518
        %v2520 = vlaneseq
        %v2521 = vshrl.u32 %v2520, 7
        %v2522 = vsub.s32 0, %v2521
        %v2523 = vrot.slane %v2504, %v2522
        %v2524 = vlaneseq
        %v2525 = vshrl.u32 %v2524, 7
        %v2526 = vsub.s32 0, %v2525
        %v2527 = vrot.slane %v2512, %v2526
        %v2528 = vlaneseq
        %v2529 = vshrl.u32 %v2528, 7
        %v2530 = vsub.s32 0, %v2529
        %v2531 = vrot.slane %v2514, %v2530
        %v2532 = vlaneseq
        %v2533 = vshrl.u32 %v2532, 7
        %v2534 = vsub.s32 0, %v2533
        %v2535 = vrot.slane %v2497, %v2534
        %v2536 = vlaneseq
        %v2537 = vshrl.u32 %v2536, 7
        %v2538 = vsub.s32 0, %v2537
        %v2539 = vrot.slane %v2511, %v2538
        %v2540 = vlaneseq
        %v2541 = vshrl.u32 %v2540, 7
        %v2542 = vsub.s32 0, %v2541
        %v2543 = vrot.slane %v2513, %v2542
        %v2544 = vlaneseq
        %v2545 = vshrl.u32 %v2544, 7
        %v2546 = vsub.s32 0, %v2545
        %v2547 = vrot.slane %v2515, %v2546
        %v2556 = vadd.f32 %v984, %v2519
        %v2557 = vadd.f32 %v987, %v2523
        %v2558 = vadd.f32 %v992, %v2527
        %v2559 = vadd.f32 %v995, %v2531
        %v2560 = vadd.f32 %v1000, %v2535
        %v2561 = vadd.f32 %v1003, %v2539
        %v2562 = vadd.f32 %v1008, %v2543
        %v2563 = vadd.f32 %v1011, %v2547
        %v2564 = vtanh.pop %v2556
        %v2565 = vtanh.pop %v2557
        %v2566 = vtanh.pop %v2558
        %v2567 = vtanh.pop %v2559
        %v2568 = vtanh.pop %v2560
        %v2569 = vtanh.pop %v2561
        %v2570 = vtanh.pop %v2562
        %v2571 = vtanh.pop %v2563
        %v2572 = vld [vmem:[%s9] sm:$0x1]
        %v2574 = vlaneseq
        %v2575 = vshrl.u32 %v2574, 7
        %v2576 = vsub.s32 0, %v2575
        %v2577 = vrot.slane %v2572, %v2576
        %v2579 = vmul.f32 %v2564, %v2577
        %v2580 = vmul.f32 %v2565, %v2577
        %v2581 = vmul.f32 %v2566, %v2577
        %v2582 = vmul.f32 %v2567, %v2577
        %v2583 = vmul.f32 %v2568, %v2577
        %v2584 = vmul.f32 %v2569, %v2577
        %v2585 = vmul.f32 %v2570, %v2577
        %v2586 = vmul.f32 %v2571, %v2577
        %2587 = vadd.xlane.f32.xlu0 %v2579
        %v2588 = vpop.xlane.xlu0 %2587
        %2589 = vadd.xlane.f32.xlu0 %v2580
        %v2590 = vpop.xlane.xlu0 %2589
        %2591 = vadd.xlane.f32.xlu0 %v2581
        %v2592 = vpop.xlane.xlu0 %2591
        %2593 = vadd.xlane.f32.xlu0 %v2582
        %v2594 = vpop.xlane.xlu0 %2593
        %2595 = vadd.xlane.f32.xlu0 %v2583
        %v2596 = vpop.xlane.xlu0 %2595
        %2597 = vadd.xlane.f32.xlu0 %v2584
        %v2598 = vpop.xlane.xlu0 %2597
        %2599 = vadd.xlane.f32.xlu0 %v2585
        %v2600 = vpop.xlane.xlu0 %2599
        %2601 = vadd.xlane.f32.xlu0 %v2586
        %v2602 = vpop.xlane.xlu0 %2601
        %v2603 = vrot.slane %v2588, 4
        %v2604 = vmax.f32 %v2588, %v2603
        %v2605 = vrot.slane %v2604, 2
        %v2606 = vmax.f32 %v2604, %v2605
        %v2607 = vrot.slane %v2606, 1
        %v2608 = vmax.f32 %v2606, %v2607
        %v2609 = vrot.slane %v2590, 4
        %v2610 = vmax.f32 %v2590, %v2609
        %v2611 = vrot.slane %v2610, 2
        %v2612 = vmax.f32 %v2610, %v2611
        %v2613 = vrot.slane %v2612, 1
        %v2614 = vmax.f32 %v2612, %v2613
        %v2615 = vrot.slane %v2592, 4
        %v2616 = vmax.f32 %v2592, %v2615
        %v2617 = vrot.slane %v2616, 2
        %v2618 = vmax.f32 %v2616, %v2617
        %v2619 = vrot.slane %v2618, 1
        %v2620 = vmax.f32 %v2618, %v2619
        %v2621 = vrot.slane %v2594, 4
        %v2622 = vmax.f32 %v2594, %v2621
        %v2623 = vrot.slane %v2622, 2
        %v2624 = vmax.f32 %v2622, %v2623
        %v2625 = vrot.slane %v2624, 1
        %v2626 = vmax.f32 %v2624, %v2625
        %v2627 = vrot.slane %v2596, 4
        %v2628 = vmax.f32 %v2596, %v2627
        %v2629 = vrot.slane %v2628, 2
        %v2630 = vmax.f32 %v2628, %v2629
        %v2631 = vrot.slane %v2630, 1
        %v2632 = vmax.f32 %v2630, %v2631
        %v2633 = vrot.slane %v2598, 4
        %v2634 = vmax.f32 %v2598, %v2633
        %v2635 = vrot.slane %v2634, 2
        %v2636 = vmax.f32 %v2634, %v2635
        %v2637 = vrot.slane %v2636, 1
        %v2638 = vmax.f32 %v2636, %v2637
        %v2639 = vrot.slane %v2600, 4
        %v2640 = vmax.f32 %v2600, %v2639
        %v2641 = vrot.slane %v2640, 2
        %v2642 = vmax.f32 %v2640, %v2641
        %v2643 = vrot.slane %v2642, 1
        %v2644 = vmax.f32 %v2642, %v2643
        %v2645 = vrot.slane %v2602, 4
        %v2646 = vmax.f32 %v2602, %v2645
        %v2647 = vrot.slane %v2646, 2
        %v2648 = vmax.f32 %v2646, %v2647
        %v2649 = vrot.slane %v2648, 1
        %v2650 = vmax.f32 %v2648, %v2649
        %v2651 = vsub.f32 %v2588, %v2608
        %v2652 = vsub.f32 %v2590, %v2614
        %v2653 = vsub.f32 %v2592, %v2620
        %v2654 = vsub.f32 %v2594, %v2626
        %v2655 = vsub.f32 %v2596, %v2632
        %v2656 = vsub.f32 %v2598, %v2638
        %v2657 = vsub.f32 %v2600, %v2644
        %v2658 = vsub.f32 %v2602, %v2650
        %v2659 = vmul.f32 %v2651, 1.442695
        %v2660 = vpow.pop %v2659
        %v2661 = vmul.f32 %v2652, 1.442695
        %v2662 = vpow.pop %v2661
        %v2663 = vmul.f32 %v2653, 1.442695
        %v2664 = vpow.pop %v2663
        %v2665 = vmul.f32 %v2654, 1.442695
        %v2666 = vpow.pop %v2665
        %v2667 = vmul.f32 %v2655, 1.442695
        %v2668 = vpow.pop %v2667
        %v2669 = vmul.f32 %v2656, 1.442695
        %v2670 = vpow.pop %v2669
        %v2671 = vmul.f32 %v2657, 1.442695
        %v2672 = vpow.pop %v2671
        %v2673 = vmul.f32 %v2658, 1.442695
        %v2674 = vpow.pop %v2673
        %v2675 = vrot.slane %v2660, 4
        %v2676 = vadd.f32 %v2660, %v2675
        %v2677 = vrot.slane %v2676, 2
        %v2678 = vadd.f32 %v2676, %v2677
        %v2679 = vrot.slane %v2678, 1
        %v2680 = vadd.f32 %v2678, %v2679
        %v2681 = vrot.slane %v2662, 4
        %v2682 = vadd.f32 %v2662, %v2681
        %v2683 = vrot.slane %v2682, 2
        %v2684 = vadd.f32 %v2682, %v2683
        %v2685 = vrot.slane %v2684, 1
        %v2686 = vadd.f32 %v2684, %v2685
        %v2687 = vrot.slane %v2664, 4
        %v2688 = vadd.f32 %v2664, %v2687
        %v2689 = vrot.slane %v2688, 2
        %v2690 = vadd.f32 %v2688, %v2689
        %v2691 = vrot.slane %v2690, 1
        %v2692 = vadd.f32 %v2690, %v2691
        %v2693 = vrot.slane %v2666, 4
        %v2694 = vadd.f32 %v2666, %v2693
        %v2695 = vrot.slane %v2694, 2
        %v2696 = vadd.f32 %v2694, %v2695
        %v2697 = vrot.slane %v2696, 1
        %v2698 = vadd.f32 %v2696, %v2697
        %v2699 = vrot.slane %v2668, 4
        %v2700 = vadd.f32 %v2668, %v2699
        %v2701 = vrot.slane %v2700, 2
        %v2702 = vadd.f32 %v2700, %v2701
        %v2703 = vrot.slane %v2702, 1
        %v2704 = vadd.f32 %v2702, %v2703
        %v2705 = vrot.slane %v2670, 4
        %v2706 = vadd.f32 %v2670, %v2705
        %v2707 = vrot.slane %v2706, 2
        %v2708 = vadd.f32 %v2706, %v2707
        %v2709 = vrot.slane %v2708, 1
        %v2710 = vadd.f32 %v2708, %v2709
        %v2711 = vrot.slane %v2672, 4
        %v2712 = vadd.f32 %v2672, %v2711
        %v2713 = vrot.slane %v2712, 2
        %v2714 = vadd.f32 %v2712, %v2713
        %v2715 = vrot.slane %v2714, 1
        %v2716 = vadd.f32 %v2714, %v2715
        %v2717 = vrot.slane %v2674, 4
        %v2718 = vadd.f32 %v2674, %v2717
        %v2719 = vrot.slane %v2718, 2
        %v2720 = vadd.f32 %v2718, %v2719
        %v2721 = vrot.slane %v2720, 1
        %v2722 = vadd.f32 %v2720, %v2721
        %v2723 = vrcp.pop %v2680
        %v2724 = vrcp.pop %v2686
        %v2725 = vrcp.pop %v2692
        %v2726 = vrcp.pop %v2698
        %v2727 = vrcp.pop %v2704
        %v2728 = vrcp.pop %v2710
        %v2729 = vrcp.pop %v2716
        %v2730 = vrcp.pop %v2722
        %v2731 = vmul.f32 %v2660, %v2723
        %v2732 = vmul.f32 %v2662, %v2724
        %v2733 = vmul.f32 %v2664, %v2725
        %v2734 = vmul.f32 %v2666, %v2726
        %v2735 = vmul.f32 %v2668, %v2727
        %v2736 = vmul.f32 %v2670, %v2728
        %v2737 = vmul.f32 %v2672, %v2729
        %v2738 = vmul.f32 %v2674, %v2730
        %v2739 = vld [vmem:[%s597] sm:$0xff]
        %v2740 = vld [vmem:[%s597 + $0x8] sm:$0xff]
        %v2741 = vld [vmem:[%s597 + $0x10] sm:$0xff]
        %v2742 = vld [vmem:[%s597 + $0x18] sm:$0xff]
        %v2743 = vld [vmem:[%s597 + $0x20] sm:$0xff]
        %v2744 = vld [vmem:[%s597 + $0x28] sm:$0xff]
        %v2745 = vld [vmem:[%s597 + $0x30] sm:$0xff]
        %v2746 = vld [vmem:[%s597 + $0x38] sm:$0xff]
        %v2747 = vmul.f32 %v2731, %v2739
        %v2748 = vmul.f32 %v2732, %v2740
        %v2749 = vmul.f32 %v2733, %v2741
        %v2750 = vmul.f32 %v2734, %v2742
        %v2751 = vmul.f32 %v2735, %v2743
        %v2752 = vmul.f32 %v2736, %v2744
        %v2753 = vmul.f32 %v2737, %v2745
        %v2754 = vmul.f32 %v2738, %v2746
        %v2755 = vrot.slane %v2747, 4
        %v2756 = vadd.f32 %v2747, %v2755
        %v2757 = vrot.slane %v2756, 2
        %v2758 = vadd.f32 %v2756, %v2757
        %v2759 = vrot.slane %v2758, 1
        %v2760 = vadd.f32 %v2758, %v2759
        %v2761 = vrot.slane %v2748, 4
        %v2762 = vadd.f32 %v2748, %v2761
        %v2763 = vrot.slane %v2762, 2
        %v2764 = vadd.f32 %v2762, %v2763
        %v2765 = vrot.slane %v2764, 1
        %v2766 = vadd.f32 %v2764, %v2765
        %v2767 = vrot.slane %v2749, 4
        %v2768 = vadd.f32 %v2749, %v2767
        %v2769 = vrot.slane %v2768, 2
        %v2770 = vadd.f32 %v2768, %v2769
        %v2771 = vrot.slane %v2770, 1
        %v2772 = vadd.f32 %v2770, %v2771
        %v2773 = vrot.slane %v2750, 4
        %v2774 = vadd.f32 %v2750, %v2773
        %v2775 = vrot.slane %v2774, 2
        %v2776 = vadd.f32 %v2774, %v2775
        %v2777 = vrot.slane %v2776, 1
        %v2778 = vadd.f32 %v2776, %v2777
        %v2779 = vrot.slane %v2751, 4
        %v2780 = vadd.f32 %v2751, %v2779
        %v2781 = vrot.slane %v2780, 2
        %v2782 = vadd.f32 %v2780, %v2781
        %v2783 = vrot.slane %v2782, 1
        %v2784 = vadd.f32 %v2782, %v2783
        %v2785 = vrot.slane %v2752, 4
        %v2786 = vadd.f32 %v2752, %v2785
        %v2787 = vrot.slane %v2786, 2
        %v2788 = vadd.f32 %v2786, %v2787
        %v2789 = vrot.slane %v2788, 1
        %v2790 = vadd.f32 %v2788, %v2789
        %v2791 = vrot.slane %v2753, 4
        %v2792 = vadd.f32 %v2753, %v2791
        %v2793 = vrot.slane %v2792, 2
        %v2794 = vadd.f32 %v2792, %v2793
        %v2795 = vrot.slane %v2794, 1
        %v2796 = vadd.f32 %v2794, %v2795
        %v2797 = vrot.slane %v2754, 4
        %v2798 = vadd.f32 %v2754, %v2797
        %v2799 = vrot.slane %v2798, 2
        %v2800 = vadd.f32 %v2798, %v2799
        %v2801 = vrot.slane %v2800, 1
        %v2802 = vadd.f32 %v2800, %v2801
        %v2811 = vsel %vm696, %v2766, %v2760
        %v2812 = vsel %vm698, %v2772, %v2811
        %v2813 = vsel %vm700, %v2778, %v2812
        %v2814 = vsel %vm702, %v2784, %v2813
        %v2815 = vsel %vm704, %v2790, %v2814
        %v2816 = vsel %vm706, %v2796, %v2815
        %v2817 = vsel %vm708, %v2802, %v2816
        %v2819 = vpack.c.bf16 %v2817, %v2817
        %v2820 = vld [vmem:[%s10] sm:$0xff]
        %v2821 = vld [vmem:[%s10 + $0x8] sm:$0xff]
        %v2822 = vld [vmem:[%s10 + $0x10] sm:$0xff]
        %v2823 = vld [vmem:[%s10 + $0x18] sm:$0xff]
        %v2824 = vld [vmem:[%s10 + $0x20] sm:$0xff]
        %v2825 = vld [vmem:[%s10 + $0x28] sm:$0xff]
        %v2826 = vld [vmem:[%s10 + $0x30] sm:$0xff]
        %v2827 = vld [vmem:[%s10 + $0x38] sm:$0xff]
        %v2828 = vld [vmem:[%s10 + $0x40] sm:$0xff]
        %v2829 = vld [vmem:[%s10 + $0x48] sm:$0xff]
        %v2830 = vld [vmem:[%s10 + $0x50] sm:$0xff]
        %v2831 = vld [vmem:[%s10 + $0x58] sm:$0xff]
        %v2832 = vld [vmem:[%s10 + $0x60] sm:$0xff]
        %v2833 = vld [vmem:[%s10 + $0x68] sm:$0xff]
        %v2834 = vld [vmem:[%s10 + $0x70] sm:$0xff]
        %v2835 = vld [vmem:[%s10 + $0x78] sm:$0xff]
        %v2836 = vld [vmem:[%s10 + $0x80] sm:$0xff]
        %v2837 = vld [vmem:[%s10 + $0x88] sm:$0xff]
        %v2838 = vld [vmem:[%s10 + $0x90] sm:$0xff]
        %v2839 = vld [vmem:[%s10 + $0x98] sm:$0xff]
        %v2840 = vld [vmem:[%s10 + $0xa0] sm:$0xff]
        %v2841 = vld [vmem:[%s10 + $0xa8] sm:$0xff]
        %v2842 = vld [vmem:[%s10 + $0xb0] sm:$0xff]
        %v2843 = vld [vmem:[%s10 + $0xb8] sm:$0xff]
        %v2844 = vld [vmem:[%s10 + $0xc0] sm:$0xff]
        %v2845 = vld [vmem:[%s10 + $0xc8] sm:$0xff]
        %v2846 = vld [vmem:[%s10 + $0xd0] sm:$0xff]
        %v2847 = vld [vmem:[%s10 + $0xd8] sm:$0xff]
        %v2848 = vld [vmem:[%s10 + $0xe0] sm:$0xff]
        %v2849 = vld [vmem:[%s10 + $0xe8] sm:$0xff]
        %v2850 = vld [vmem:[%s10 + $0xf0] sm:$0xff]
        %v2851 = vld [vmem:[%s10 + $0xf8] sm:$0xff]
        %v2852 = vld [vmem:[%s10 + $0x100] sm:$0xff]
        %v2853 = vld [vmem:[%s10 + $0x108] sm:$0xff]
        %v2854 = vld [vmem:[%s10 + $0x110] sm:$0xff]
        %v2855 = vld [vmem:[%s10 + $0x118] sm:$0xff]
        %v2856 = vld [vmem:[%s10 + $0x120] sm:$0xff]
        %v2857 = vld [vmem:[%s10 + $0x128] sm:$0xff]
        %v2858 = vld [vmem:[%s10 + $0x130] sm:$0xff]
        %v2859 = vld [vmem:[%s10 + $0x138] sm:$0xff]
        %v2860 = vld [vmem:[%s10 + $0x140] sm:$0xff]
        %v2861 = vld [vmem:[%s10 + $0x148] sm:$0xff]
        %v2862 = vld [vmem:[%s10 + $0x150] sm:$0xff]
        %v2863 = vld [vmem:[%s10 + $0x158] sm:$0xff]
        %v2864 = vld [vmem:[%s10 + $0x160] sm:$0xff]
        %v2865 = vld [vmem:[%s10 + $0x168] sm:$0xff]
        %v2866 = vld [vmem:[%s10 + $0x170] sm:$0xff]
        %v2867 = vld [vmem:[%s10 + $0x178] sm:$0xff]
        %v2868 = vld [vmem:[%s10 + $0x180] sm:$0xff]
        %v2869 = vld [vmem:[%s10 + $0x188] sm:$0xff]
        %v2870 = vld [vmem:[%s10 + $0x190] sm:$0xff]
        %v2871 = vld [vmem:[%s10 + $0x198] sm:$0xff]
        %v2872 = vld [vmem:[%s10 + $0x1a0] sm:$0xff]
        %v2873 = vld [vmem:[%s10 + $0x1a8] sm:$0xff]
        %v2874 = vld [vmem:[%s10 + $0x1b0] sm:$0xff]
        %v2875 = vld [vmem:[%s10 + $0x1b8] sm:$0xff]
        %v2876 = vld [vmem:[%s10 + $0x1c0] sm:$0xff]
        %v2877 = vld [vmem:[%s10 + $0x1c8] sm:$0xff]
        %v2878 = vld [vmem:[%s10 + $0x1d0] sm:$0xff]
        %v2879 = vld [vmem:[%s10 + $0x1d8] sm:$0xff]
        %v2880 = vld [vmem:[%s10 + $0x1e0] sm:$0xff]
        %v2881 = vld [vmem:[%s10 + $0x1e8] sm:$0xff]
        %v2882 = vld [vmem:[%s10 + $0x1f0] sm:$0xff]
        %v2883 = vld [vmem:[%s10 + $0x1f8] sm:$0xff]
        %s2884 = scalar_lea.vmem [#allocation2], 32
        %v2885 = vld [vmem:[%s2884] sm:$0xff]
        %v2886 = vld [vmem:[%s2884 + $0x8] sm:$0xff]
        %v2887 = vld [vmem:[%s2884 + $0x10] sm:$0xff]
        %v2888 = vld [vmem:[%s2884 + $0x18] sm:$0xff]
        %v2953 = vunpack.c.l.b16 %v2820
        %v2954 = vunpack.c.h.b16 %v2820
        %v2955 = vunpack.c.l.b16 %v2821
        %v2956 = vunpack.c.h.b16 %v2821
        %v2957 = vunpack.c.l.b16 %v2822
        %v2958 = vunpack.c.h.b16 %v2822
        %v2959 = vunpack.c.l.b16 %v2823
        %v2960 = vunpack.c.h.b16 %v2823
        %v2961 = vunpack.c.l.b16 %v2824
        %v2962 = vunpack.c.h.b16 %v2824
        %v2963 = vunpack.c.l.b16 %v2825
        %v2964 = vunpack.c.h.b16 %v2825
        %v2965 = vunpack.c.l.b16 %v2826
        %v2966 = vunpack.c.h.b16 %v2826
        %v2967 = vunpack.c.l.b16 %v2827
        %v2968 = vunpack.c.h.b16 %v2827
        %v2969 = vunpack.c.l.b16 %v2828
        %v2970 = vunpack.c.h.b16 %v2828
        %v2971 = vunpack.c.l.b16 %v2829
        %v2972 = vunpack.c.h.b16 %v2829
        %v2973 = vunpack.c.l.b16 %v2830
        %v2974 = vunpack.c.h.b16 %v2830
        %v2975 = vunpack.c.l.b16 %v2831
        %v2976 = vunpack.c.h.b16 %v2831
        %v2977 = vunpack.c.l.b16 %v2832
        %v2978 = vunpack.c.h.b16 %v2832
        %v2979 = vunpack.c.l.b16 %v2833
        %v2980 = vunpack.c.h.b16 %v2833
        %v2981 = vunpack.c.l.b16 %v2834
        %v2982 = vunpack.c.h.b16 %v2834
        %v2983 = vunpack.c.l.b16 %v2835
        %v2984 = vunpack.c.h.b16 %v2835
        %v2985 = vunpack.c.l.b16 %v2836
        %v2986 = vunpack.c.h.b16 %v2836
        %v2987 = vunpack.c.l.b16 %v2837
        %v2988 = vunpack.c.h.b16 %v2837
        %v2989 = vunpack.c.l.b16 %v2838
        %v2990 = vunpack.c.h.b16 %v2838
        %v2991 = vunpack.c.l.b16 %v2839
        %v2992 = vunpack.c.h.b16 %v2839
        %v2993 = vunpack.c.l.b16 %v2840
        %v2994 = vunpack.c.h.b16 %v2840
        %v2995 = vunpack.c.l.b16 %v2841
        %v2996 = vunpack.c.h.b16 %v2841
        %v2997 = vunpack.c.l.b16 %v2842
        %v2998 = vunpack.c.h.b16 %v2842
        %v2999 = vunpack.c.l.b16 %v2843
        %v3000 = vunpack.c.h.b16 %v2843
        %v3001 = vunpack.c.l.b16 %v2844
        %v3002 = vunpack.c.h.b16 %v2844
        %v3003 = vunpack.c.l.b16 %v2845
        %v3004 = vunpack.c.h.b16 %v2845
        %v3005 = vunpack.c.l.b16 %v2846
        %v3006 = vunpack.c.h.b16 %v2846
        %v3007 = vunpack.c.l.b16 %v2847
        %v3008 = vunpack.c.h.b16 %v2847
        %v3009 = vunpack.c.l.b16 %v2848
        %v3010 = vunpack.c.h.b16 %v2848
        %v3011 = vunpack.c.l.b16 %v2849
        %v3012 = vunpack.c.h.b16 %v2849
        %v3013 = vunpack.c.l.b16 %v2850
        %v3014 = vunpack.c.h.b16 %v2850
        %v3015 = vunpack.c.l.b16 %v2851
        %v3016 = vunpack.c.h.b16 %v2851
        %v3017 = vunpack.c.l.b16 %v2852
        %v3018 = vunpack.c.h.b16 %v2852
        %v3019 = vunpack.c.l.b16 %v2853
        %v3020 = vunpack.c.h.b16 %v2853
        %v3021 = vunpack.c.l.b16 %v2854
        %v3022 = vunpack.c.h.b16 %v2854
        %v3023 = vunpack.c.l.b16 %v2855
        %v3024 = vunpack.c.h.b16 %v2855
        %v3025 = vunpack.c.l.b16 %v2856
        %v3026 = vunpack.c.h.b16 %v2856
        %v3027 = vunpack.c.l.b16 %v2857
        %v3028 = vunpack.c.h.b16 %v2857
        %v3029 = vunpack.c.l.b16 %v2858
        %v3030 = vunpack.c.h.b16 %v2858
        %v3031 = vunpack.c.l.b16 %v2859
        %v3032 = vunpack.c.h.b16 %v2859
        %v3033 = vunpack.c.l.b16 %v2860
        %v3034 = vunpack.c.h.b16 %v2860
        %v3035 = vunpack.c.l.b16 %v2861
        %v3036 = vunpack.c.h.b16 %v2861
        %v3037 = vunpack.c.l.b16 %v2862
        %v3038 = vunpack.c.h.b16 %v2862
        %v3039 = vunpack.c.l.b16 %v2863
        %v3040 = vunpack.c.h.b16 %v2863
        %v3041 = vunpack.c.l.b16 %v2864
        %v3042 = vunpack.c.h.b16 %v2864
        %v3043 = vunpack.c.l.b16 %v2865
        %v3044 = vunpack.c.h.b16 %v2865
        %v3045 = vunpack.c.l.b16 %v2866
        %v3046 = vunpack.c.h.b16 %v2866
        %v3047 = vunpack.c.l.b16 %v2867
        %v3048 = vunpack.c.h.b16 %v2867
        %v3049 = vunpack.c.l.b16 %v2868
        %v3050 = vunpack.c.h.b16 %v2868
        %v3051 = vunpack.c.l.b16 %v2869
        %v3052 = vunpack.c.h.b16 %v2869
        %v3053 = vunpack.c.l.b16 %v2870
        %v3054 = vunpack.c.h.b16 %v2870
        %v3055 = vunpack.c.l.b16 %v2871
        %v3056 = vunpack.c.h.b16 %v2871
        %v3057 = vunpack.c.l.b16 %v2872
        %v3058 = vunpack.c.h.b16 %v2872
        %v3059 = vunpack.c.l.b16 %v2873
        %v3060 = vunpack.c.h.b16 %v2873
        %v3061 = vunpack.c.l.b16 %v2874
        %v3062 = vunpack.c.h.b16 %v2874
        %v3063 = vunpack.c.l.b16 %v2875
        %v3064 = vunpack.c.h.b16 %v2875
        %v3065 = vunpack.c.l.b16 %v2876
        %v3066 = vunpack.c.h.b16 %v2876
        %v3067 = vunpack.c.l.b16 %v2877
        %v3068 = vunpack.c.h.b16 %v2877
        %v3069 = vunpack.c.l.b16 %v2878
        %v3070 = vunpack.c.h.b16 %v2878
        %v3071 = vunpack.c.l.b16 %v2879
        %v3072 = vunpack.c.h.b16 %v2879
        %v3073 = vunpack.c.l.b16 %v2880
        %v3074 = vunpack.c.h.b16 %v2880
        %v3075 = vunpack.c.l.b16 %v2881
        %v3076 = vunpack.c.h.b16 %v2881
        %v3077 = vunpack.c.l.b16 %v2882
        %v3078 = vunpack.c.h.b16 %v2882
        %v3079 = vunpack.c.l.b16 %v2883
        %v3080 = vunpack.c.h.b16 %v2883
        %v3081 = vpack.c.b16 %v2957, %v2953
        %v3082 = vpack.c.b16 %v2958, %v2954
        %v3083 = vpack.c.b16 %v2959, %v2955
        %v3084 = vpack.c.b16 %v2960, %v2956
        %v3085 = vpack.c.b16 %v2965, %v2961
        %v3086 = vpack.c.b16 %v2966, %v2962
        %v3087 = vpack.c.b16 %v2967, %v2963
        %v3088 = vpack.c.b16 %v2968, %v2964
        %v3089 = vpack.c.b16 %v2973, %v2969
        %v3090 = vpack.c.b16 %v2974, %v2970
        %v3091 = vpack.c.b16 %v2975, %v2971
        %v3092 = vpack.c.b16 %v2976, %v2972
        %v3093 = vpack.c.b16 %v2981, %v2977
        %v3094 = vpack.c.b16 %v2982, %v2978
        %v3095 = vpack.c.b16 %v2983, %v2979
        %v3096 = vpack.c.b16 %v2984, %v2980
        %v3097 = vpack.c.b16 %v2989, %v2985
        %v3098 = vpack.c.b16 %v2990, %v2986
        %v3099 = vpack.c.b16 %v2991, %v2987
        %v3100 = vpack.c.b16 %v2992, %v2988
        %v3101 = vpack.c.b16 %v2997, %v2993
        %v3102 = vpack.c.b16 %v2998, %v2994
        %v3103 = vpack.c.b16 %v2999, %v2995
        %v3104 = vpack.c.b16 %v3000, %v2996
        %v3105 = vpack.c.b16 %v3005, %v3001
        %v3106 = vpack.c.b16 %v3006, %v3002
        %v3107 = vpack.c.b16 %v3007, %v3003
        %v3108 = vpack.c.b16 %v3008, %v3004
        %v3109 = vpack.c.b16 %v3013, %v3009
        %v3110 = vpack.c.b16 %v3014, %v3010
        %v3111 = vpack.c.b16 %v3015, %v3011
        %v3112 = vpack.c.b16 %v3016, %v3012
        %v3113 = vpack.c.b16 %v3021, %v3017
        %v3114 = vpack.c.b16 %v3022, %v3018
        %v3115 = vpack.c.b16 %v3023, %v3019
        %v3116 = vpack.c.b16 %v3024, %v3020
        %v3117 = vpack.c.b16 %v3029, %v3025
        %v3118 = vpack.c.b16 %v3030, %v3026
        %v3119 = vpack.c.b16 %v3031, %v3027
        %v3120 = vpack.c.b16 %v3032, %v3028
        %v3121 = vpack.c.b16 %v3037, %v3033
        %v3122 = vpack.c.b16 %v3038, %v3034
        %v3123 = vpack.c.b16 %v3039, %v3035
        %v3124 = vpack.c.b16 %v3040, %v3036
        %v3125 = vpack.c.b16 %v3045, %v3041
        %v3126 = vpack.c.b16 %v3046, %v3042
        %v3127 = vpack.c.b16 %v3047, %v3043
        %v3128 = vpack.c.b16 %v3048, %v3044
        %v3129 = vpack.c.b16 %v3053, %v3049
        %v3130 = vpack.c.b16 %v3054, %v3050
        %v3131 = vpack.c.b16 %v3055, %v3051
        %v3132 = vpack.c.b16 %v3056, %v3052
        %v3133 = vpack.c.b16 %v3061, %v3057
        %v3134 = vpack.c.b16 %v3062, %v3058
        %v3135 = vpack.c.b16 %v3063, %v3059
        %v3136 = vpack.c.b16 %v3064, %v3060
        %v3137 = vpack.c.b16 %v3069, %v3065
        %v3138 = vpack.c.b16 %v3070, %v3066
        %v3139 = vpack.c.b16 %v3071, %v3067
        %v3140 = vpack.c.b16 %v3072, %v3068
        %v3141 = vpack.c.b16 %v3077, %v3073
        %v3142 = vpack.c.b16 %v3078, %v3074
        %v3143 = vpack.c.b16 %v3079, %v3075
        %v3144 = vpack.c.b16 %v3080, %v3076
        %3209 = vmatprep.subr.bf16.mxu0 %v3082
        %3210 = vmatpush1.bf16.msra.mxu0 %v3081
        %3211 = vmatprep.subr.bf16.mxu0 %v3086
        %3212 = vmatpush1.bf16.msra.mxu0 %v3085
        %3213 = vmatprep.subr.bf16.mxu0 %v3090
        %3214 = vmatpush1.bf16.msra.mxu0 %v3089
        %3215 = vmatprep.subr.bf16.mxu0 %v3094
        %3216 = vmatpush1.bf16.msra.mxu0 %v3093
        %3217 = vmatprep.subr.bf16.mxu0 %v3098
        %3218 = vmatpush1.bf16.msra.mxu0 %v3097
        %3219 = vmatprep.subr.bf16.mxu0 %v3102
        %3220 = vmatpush1.bf16.msra.mxu0 %v3101
        %3221 = vmatprep.subr.bf16.mxu0 %v3106
        %3222 = vmatpush1.bf16.msra.mxu0 %v3105
        %3223 = vmatprep.subr.bf16.mxu0 %v3110
        %3224 = vmatpush1.bf16.msra.mxu0 %v3109
        %3225 = vmatprep.subr.bf16.mxu0 %v3114
        %3226 = vmatpush1.bf16.msra.mxu0 %v3113
        %3227 = vmatprep.subr.bf16.mxu0 %v3118
        %3228 = vmatpush1.bf16.msra.mxu0 %v3117
        %3229 = vmatprep.subr.bf16.mxu0 %v3122
        %3230 = vmatpush1.bf16.msra.mxu0 %v3121
        %3231 = vmatprep.subr.bf16.mxu0 %v3126
        %3232 = vmatpush1.bf16.msra.mxu0 %v3125
        %3233 = vmatprep.subr.bf16.mxu0 %v3130
        %3234 = vmatpush1.bf16.msra.mxu0 %v3129
        %3235 = vmatprep.subr.bf16.mxu0 %v3134
        %3236 = vmatpush1.bf16.msra.mxu0 %v3133
        %3237 = vmatprep.subr.bf16.mxu0 %v3138
        %3238 = vmatpush1.bf16.msra.mxu0 %v3137
        %3239 = vmatprep.subr.bf16.mxu0 %v3142
        %3240 = vmatpush1.bf16.msra.mxu0 %v3141
        %3241 = vmatprep.mubr.bf16.mxu0 %v2197
        %3242 = vmatmul.mubr.bf16.gmra.mrb[0].mxu0 %v2819
        %v3243 = vpop.f32.mrb[0].mxu0
        %v3244 = vadd.f32 %v2885, %v3243
        %v3245 = vpop.f32.mrb[0].mxu0
        %v3246 = vadd.f32 %v2886, %v3245
        %v3247 = vpop.f32.mrb[0].mxu0
        %v3248 = vpop.f32.mrb[0].mxu0
        %3249 = vdwg.mxu0
        %3250 = vmatprep.subr.bf16.mxu0 %v3084
        %3251 = vmatpush1.bf16.msra.mxu0 %v3083
        %3252 = vmatprep.subr.bf16.mxu0 %v3088
        %3253 = vmatpush1.bf16.msra.mxu0 %v3087
        %3254 = vmatprep.subr.bf16.mxu0 %v3092
        %3255 = vmatpush1.bf16.msra.mxu0 %v3091
        %3256 = vmatprep.subr.bf16.mxu0 %v3096
        %3257 = vmatpush1.bf16.msra.mxu0 %v3095
        %3258 = vmatprep.subr.bf16.mxu0 %v3100
        %3259 = vmatpush1.bf16.msra.mxu0 %v3099
        %3260 = vmatprep.subr.bf16.mxu0 %v3104
        %3261 = vmatpush1.bf16.msra.mxu0 %v3103
        %3262 = vmatprep.subr.bf16.mxu0 %v3108
        %3263 = vmatpush1.bf16.msra.mxu0 %v3107
        %3264 = vmatprep.subr.bf16.mxu0 %v3112
        %3265 = vmatpush1.bf16.msra.mxu0 %v3111
        %3266 = vmatprep.subr.bf16.mxu0 %v3116
        %3267 = vmatpush1.bf16.msra.mxu0 %v3115
        %3268 = vmatprep.subr.bf16.mxu0 %v3120
        %3269 = vmatpush1.bf16.msra.mxu0 %v3119
        %3270 = vmatprep.subr.bf16.mxu0 %v3124
        %3271 = vmatpush1.bf16.msra.mxu0 %v3123
        %3272 = vmatprep.subr.bf16.mxu0 %v3128
        %3273 = vmatpush1.bf16.msra.mxu0 %v3127
        %3274 = vmatprep.subr.bf16.mxu0 %v3132
        %3275 = vmatpush1.bf16.msra.mxu0 %v3131
        %3276 = vmatprep.subr.bf16.mxu0 %v3136
        %3277 = vmatpush1.bf16.msra.mxu0 %v3135
        %3278 = vmatprep.subr.bf16.mxu0 %v3140
        %3279 = vmatpush1.bf16.msra.mxu0 %v3139
        %3280 = vmatprep.subr.bf16.mxu0 %v3144
        %3281 = vmatpush1.bf16.msra.mxu0 %v3143
        %3282 = vmatprep.mubr.bf16.mxu0 %v2197
        %3283 = vmatmul.mubr.bf16.gmra.mrb[0].mxu0 %v2819
        %v3284 = vpop.f32.mrb[0].mxu0
        %v3285 = vadd.f32 %v2887, %v3284
        %v3286 = vpop.f32.mrb[0].mxu0
        %v3287 = vadd.f32 %v2888, %v3286
        %v3288 = vpop.f32.mrb[0].mxu0
        %v3289 = vpop.f32.mrb[0].mxu0
        %3290 = vdwg.mxu0
        %v3291 = vxor.u32 %v3244, 2147483648
        %v3292 = vmul.f32 %v3291, 1.442695
        %v3293 = vpow.pop %v3292
        %v3294 = vadd.f32 %v3293, 1.0
        %v3295 = vrcp.pop %v3294
        %v3296 = vmul.f32 1.0, %v3295
        %v3297 = vxor.u32 %v3246, 2147483648
        %v3298 = vmul.f32 %v3297, 1.442695
        %v3299 = vpow.pop %v3298
        %v3300 = vadd.f32 %v3299, 1.0
        %v3301 = vrcp.pop %v3300
        %v3302 = vmul.f32 1.0, %v3301
        %v3303 = vtanh.pop %v3285
        %v3304 = vxor.u32 %v3287, 2147483648
        %v3305 = vmul.f32 %v3304, 1.442695
        %v3306 = vpow.pop %v3305
        %v3307 = vadd.f32 %v3306, 1.0
        %v3308 = vrcp.pop %v3307
        %v3309 = vmul.f32 1.0, %v3308
        %v3310 = vmul.f32 %v3302, %v2194
        %v3311 = vmul.f32 %v3296, %v3303
        %v3312 = vadd.f32 %v3310, %v3311
        %v3313 = vtanh.pop %v3312
        %v3314 = vmul.f32 %v3309, %v3313
        %v3315 = vpack.c.bf16 %v3314, %v3314
        %v3316 = vld [vmem:[%s13] sm:$0xf]
        %v3317 = vld [vmem:[%s13 + $0x4] sm:$0xf]
        %v3318 = vld [vmem:[%s13 + $0x8] sm:$0xf]
        %v3319 = vld [vmem:[%s13 + $0xc] sm:$0xf]
        %v3320 = vld [vmem:[%s13 + $0x10] sm:$0xf]
        %v3321 = vld [vmem:[%s13 + $0x14] sm:$0xf]
        %v3322 = vld [vmem:[%s13 + $0x18] sm:$0xf]
        %v3323 = vld [vmem:[%s13 + $0x1c] sm:$0xf]
        %v3324 = vld [vmem:[%s13 + $0x20] sm:$0xf]
        %v3325 = vld [vmem:[%s13 + $0x24] sm:$0xf]
        %v3326 = vld [vmem:[%s13 + $0x28] sm:$0xf]
        %v3327 = vld [vmem:[%s13 + $0x2c] sm:$0xf]
        %v3328 = vld [vmem:[%s13 + $0x30] sm:$0xf]
        %v3329 = vld [vmem:[%s13 + $0x34] sm:$0xf]
        %v3330 = vld [vmem:[%s13 + $0x38] sm:$0xf]
        %v3331 = vld [vmem:[%s13 + $0x3c] sm:$0xf]
        %v3332 = vld [vmem:[%s14] sm:$0x1]
        %v3334 = vlaneseq
        %v3335 = vshrl.u32 %v3334, 7
        %v3336 = vsub.s32 0, %v3335
        %v3337 = vrot.slane %v3332, %v3336
        %v3355 = vunpack.c.l.b16 %v3316
        %v3356 = vunpack.c.l.b16 %v3317
        %v3357 = vunpack.c.l.b16 %v3318
        %v3358 = vunpack.c.l.b16 %v3319
        %v3359 = vunpack.c.l.b16 %v3320
        %v3360 = vunpack.c.l.b16 %v3321
        %v3361 = vunpack.c.l.b16 %v3322
        %v3362 = vunpack.c.l.b16 %v3323
        %v3363 = vunpack.c.l.b16 %v3324
        %v3364 = vunpack.c.l.b16 %v3325
        %v3365 = vunpack.c.l.b16 %v3326
        %v3366 = vunpack.c.l.b16 %v3327
        %v3367 = vunpack.c.l.b16 %v3328
        %v3368 = vunpack.c.l.b16 %v3329
        %v3369 = vunpack.c.l.b16 %v3330
        %v3370 = vunpack.c.l.b16 %v3331
        %v3371 = vpack.c.b16 %v3356, %v3355
        %v3372 = vpack.c.b16 %v3358, %v3357
        %v3373 = vpack.c.b16 %v3360, %v3359
        %v3374 = vpack.c.b16 %v3362, %v3361
        %v3375 = vpack.c.b16 %v3364, %v3363
        %v3376 = vpack.c.b16 %v3366, %v3365
        %v3377 = vpack.c.b16 %v3368, %v3367
        %v3378 = vpack.c.b16 %v3370, %v3369
        %3387 = vmatprep.subr.bf16.mxu0 0
        %3388 = vmatpush1.bf16.msra.mxu0 %v3371
        %3389 = vmatprep.subr.bf16.mxu0 0
        %3390 = vmatpush1.bf16.msra.mxu0 %v3372
        %3391 = vmatprep.subr.bf16.mxu0 0
        %3392 = vmatpush1.bf16.msra.mxu0 %v3373
        %3393 = vmatprep.subr.bf16.mxu0 0
        %3394 = vmatpush1.bf16.msra.mxu0 %v3374
        %3395 = vmatprep.subr.bf16.mxu0 0
        %3396 = vmatpush1.bf16.msra.mxu0 %v3375
        %3397 = vmatprep.subr.bf16.mxu0 0
        %3398 = vmatpush1.bf16.msra.mxu0 %v3376
        %3399 = vmatprep.subr.bf16.mxu0 0
        %3400 = vmatpush1.bf16.msra.mxu0 %v3377
        %3401 = vmatprep.subr.bf16.mxu0 0
        %3402 = vmatpush1.bf16.msra.mxu0 %v3378
        %3403 = vmatprep.subr.bf16.mxu0 0
        %3404 = vmatpush1.bf16.msra.mxu0 0
        %3405 = vmatprep.subr.bf16.mxu0 0
        %3406 = vmatpush1.bf16.msra.mxu0 0
        %3407 = vmatprep.subr.bf16.mxu0 0
        %3408 = vmatpush1.bf16.msra.mxu0 0
        %3409 = vmatprep.subr.bf16.mxu0 0
        %3410 = vmatpush1.bf16.msra.mxu0 0
        %3411 = vmatprep.subr.bf16.mxu0 0
        %3412 = vmatpush1.bf16.msra.mxu0 0
        %3413 = vmatprep.subr.bf16.mxu0 0
        %3414 = vmatpush1.bf16.msra.mxu0 0
        %3415 = vmatprep.subr.bf16.mxu0 0
        %3416 = vmatpush1.bf16.msra.mxu0 0
        %3417 = vmatprep.subr.bf16.mxu0 0
        %3418 = vmatpush1.bf16.msra.mxu0 0
        %3419 = vmatprep.mubr.bf16.mxu0 0
        %3420 = vmatmul.mubr.bf16.gmra.mrb[0].mxu0 %v3315
        %v3421 = vpop.f32.mrb[0].mxu0
        %v3422 = vadd.f32 %v3337, %v3421
        %v3423 = vpop.f32.mrb[0].mxu0
        %v3424 = vpop.f32.mrb[0].mxu0
        %v3425 = vpop.f32.mrb[0].mxu0
        %3426 = vdwg.mxu0
        %s3427 = scalar_lea.vmem %s586, 8 [#allocation4]
        %3428 = vst [vmem:[%s3427] sm:$0xff] %v3422
        %v3437 = vlaneseq
        %v3438 = vshrl.u32 %v3437, 7
        %v3439 = vsub.s32 %v2319, %v3438
        %v3440 = vrot.slane %v2731, %v3439
        %v3441 = vlaneseq
        %v3442 = vshrl.u32 %v3441, 7
        %v3443 = vsub.s32 %v2319, %v3442
        %v3444 = vrot.slane %v2732, %v3443
        %v3445 = vlaneseq
        %v3446 = vshrl.u32 %v3445, 7
        %v3447 = vsub.s32 %v2319, %v3446
        %v3448 = vrot.slane %v2733, %v3447
        %v3449 = vlaneseq
        %v3450 = vshrl.u32 %v3449, 7
        %v3451 = vsub.s32 %v2319, %v3450
        %v3452 = vrot.slane %v2734, %v3451
        %v3453 = vlaneseq
        %v3454 = vshrl.u32 %v3453, 7
        %v3455 = vsub.s32 %v2319, %v3454
        %v3456 = vrot.slane %v2735, %v3455
        %v3457 = vlaneseq
        %v3458 = vshrl.u32 %v3457, 7
        %v3459 = vsub.s32 %v2319, %v3458
        %v3460 = vrot.slane %v2736, %v3459
        %v3461 = vlaneseq
        %v3462 = vshrl.u32 %v3461, 7
        %v3463 = vsub.s32 %v2319, %v3462
        %v3464 = vrot.slane %v2737, %v3463
        %v3465 = vlaneseq
        %v3466 = vshrl.u32 %v3465, 7
        %v3467 = vsub.s32 %v2319, %v3466
        %v3468 = vrot.slane %v2738, %v3467
        %v3469 = vsel %vm696, %v3444, %v3440
        %v3470 = vsel %vm698, %v3448, %v3469
        %v3471 = vsel %vm700, %v3452, %v3470
        %v3472 = vsel %vm702, %v3456, %v3471
        %v3473 = vsel %vm704, %v3460, %v3472
        %v3474 = vsel %vm706, %v3464, %v3473
        %v3475 = vsel %vm708, %v3468, %v3474
        %s3477 = scalar_lea.vmem %s592, 8 [#allocation6]
        %3478 = vst.msk [vmem:[%s3477] sm:$0xff] %vm2360, %v3475
        %v3479 = vld [vmem:[%s8] sm:$0xf]
        %v3480 = vld [vmem:[%s8 + $0x4] sm:$0xf]
        %v3481 = vld [vmem:[%s8 + $0x8] sm:$0xf]
        %v3482 = vld [vmem:[%s8 + $0xc] sm:$0xf]
        %v3483 = vld [vmem:[%s8 + $0x10] sm:$0xf]
        %v3484 = vld [vmem:[%s8 + $0x14] sm:$0xf]
        %v3485 = vld [vmem:[%s8 + $0x18] sm:$0xf]
        %v3486 = vld [vmem:[%s8 + $0x1c] sm:$0xf]
        %v3487 = vld [vmem:[%s8 + $0x20] sm:$0xf]
        %v3488 = vld [vmem:[%s8 + $0x24] sm:$0xf]
        %v3489 = vld [vmem:[%s8 + $0x28] sm:$0xf]
        %v3490 = vld [vmem:[%s8 + $0x2c] sm:$0xf]
        %v3491 = vld [vmem:[%s8 + $0x30] sm:$0xf]
        %v3492 = vld [vmem:[%s8 + $0x34] sm:$0xf]
        %v3493 = vld [vmem:[%s8 + $0x38] sm:$0xf]
        %v3494 = vld [vmem:[%s8 + $0x3c] sm:$0xf]
        %v3511 = vunpack.c.l.b16 %v3479
        %v3512 = vunpack.c.l.b16 %v3480
        %v3513 = vunpack.c.l.b16 %v3481
        %v3514 = vunpack.c.l.b16 %v3482
        %v3515 = vunpack.c.l.b16 %v3483
        %v3516 = vunpack.c.l.b16 %v3484
        %v3517 = vunpack.c.l.b16 %v3485
        %v3518 = vunpack.c.l.b16 %v3486
        %v3519 = vunpack.c.l.b16 %v3487
        %v3520 = vunpack.c.l.b16 %v3488
        %v3521 = vunpack.c.l.b16 %v3489
        %v3522 = vunpack.c.l.b16 %v3490
        %v3523 = vunpack.c.l.b16 %v3491
        %v3524 = vunpack.c.l.b16 %v3492
        %v3525 = vunpack.c.l.b16 %v3493
        %v3526 = vunpack.c.l.b16 %v3494
        %v3527 = vpack.c.b16 %v3512, %v3511
        %v3528 = vpack.c.b16 %v3514, %v3513
        %v3529 = vpack.c.b16 %v3516, %v3515
        %v3530 = vpack.c.b16 %v3518, %v3517
        %v3531 = vpack.c.b16 %v3520, %v3519
        %v3532 = vpack.c.b16 %v3522, %v3521
        %v3533 = vpack.c.b16 %v3524, %v3523
        %v3534 = vpack.c.b16 %v3526, %v3525
        %3543 = vmatprep.subr.bf16.mxu0 0
        %3544 = vmatpush1.bf16.msra.mxu0 %v3527
        %3545 = vmatprep.subr.bf16.mxu0 0
        %3546 = vmatpush1.bf16.msra.mxu0 %v3528
        %3547 = vmatprep.subr.bf16.mxu0 0
        %3548 = vmatpush1.bf16.msra.mxu0 %v3529
        %3549 = vmatprep.subr.bf16.mxu0 0
        %3550 = vmatpush1.bf16.msra.mxu0 %v3530
        %3551 = vmatprep.subr.bf16.mxu0 0
        %3552 = vmatpush1.bf16.msra.mxu0 %v3531
        %3553 = vmatprep.subr.bf16.mxu0 0
        %3554 = vmatpush1.bf16.msra.mxu0 %v3532
        %3555 = vmatprep.subr.bf16.mxu0 0
        %3556 = vmatpush1.bf16.msra.mxu0 %v3533
        %3557 = vmatprep.subr.bf16.mxu0 0
        %3558 = vmatpush1.bf16.msra.mxu0 %v3534
        %3559 = vmatprep.subr.bf16.mxu0 0
        %3560 = vmatpush1.bf16.msra.mxu0 0
        %3561 = vmatprep.subr.bf16.mxu0 0
        %3562 = vmatpush1.bf16.msra.mxu0 0
        %3563 = vmatprep.subr.bf16.mxu0 0
        %3564 = vmatpush1.bf16.msra.mxu0 0
        %3565 = vmatprep.subr.bf16.mxu0 0
        %3566 = vmatpush1.bf16.msra.mxu0 0
        %3567 = vmatprep.subr.bf16.mxu0 0
        %3568 = vmatpush1.bf16.msra.mxu0 0
        %3569 = vmatprep.subr.bf16.mxu0 0
        %3570 = vmatpush1.bf16.msra.mxu0 0
        %3571 = vmatprep.subr.bf16.mxu0 0
        %3572 = vmatpush1.bf16.msra.mxu0 0
        %3573 = vmatprep.subr.bf16.mxu0 0
        %3574 = vmatpush1.bf16.msra.mxu0 0
        %3575 = vmatprep.mubr.bf16.mxu0 0
        %3576 = vmatmul.mubr.bf16.gmra.mrb[0].mxu0 %v3315
        %v3577 = vpop.f32.mrb[0].mxu0
        %v3578 = vadd.f32 0.0, %v3577
        %v3579 = vpop.f32.mrb[0].mxu0
        %v3580 = vpop.f32.mrb[0].mxu0
        %v3581 = vpop.f32.mrb[0].mxu0
        %3582 = vdwg.mxu0
        %v3584 = vcombine.high %v3578, %v3578
        %v3586 = vunpack.c.l.s4 1966171168
        %v3587 = vunpack.c.0.s8 %v3586
        %v3588 = vlaneseq
        %v3589 = vshrl.u32 %v3588, 7
        %v3590 = vsub.s32 %v3587, %v3589
        %v3591 = vrot.slane %v3578, %v3590
        %v3593 = vunpack.c.l.s4 1966171168
        %v3594 = vunpack.c.0.s8 %v3593
        %v3595 = vlaneseq
        %v3596 = vshrl.u32 %v3595, 7
        %v3597 = vsub.s32 %v3594, %v3596
        %v3598 = vrot.slane %v3584, %v3597
        %v3599 = vcombine.high %v3591, %v3591
        %v3600 = vcombine.high %v3598, %v3598
        %v3602 = vunpack.c.l.s4 1966171168
        %v3603 = vunpack.c.0.s8 %v3602
        %v3604 = vlaneseq
        %v3605 = vshrl.u32 %v3604, 7
        %v3606 = vsub.s32 %v3603, %v3605
        %v3607 = vrot.slane %v3591, %v3606
        %v3609 = vunpack.c.l.s4 1966171168
        %v3610 = vunpack.c.0.s8 %v3609
        %v3611 = vlaneseq
        %v3612 = vshrl.u32 %v3611, 7
        %v3613 = vsub.s32 %v3610, %v3612
        %v3614 = vrot.slane %v3598, %v3613
        %v3616 = vunpack.c.l.s4 1966171168
        %v3617 = vunpack.c.0.s8 %v3616
        %v3618 = vlaneseq
        %v3619 = vshrl.u32 %v3618, 7
        %v3620 = vsub.s32 %v3617, %v3619
        %v3621 = vrot.slane %v3599, %v3620
        %v3623 = vunpack.c.l.s4 1966171168
        %v3624 = vunpack.c.0.s8 %v3623
        %v3625 = vlaneseq
        %v3626 = vshrl.u32 %v3625, 7
        %v3627 = vsub.s32 %v3624, %v3626
        %v3628 = vrot.slane %v3600, %v3627
        %v3629 = vcombine.high %v3607, %v3607
        %v3630 = vcombine.high %v3614, %v3614
        %v3631 = vcombine.high %v3621, %v3621
        %v3632 = vcombine.high %v3628, %v3628
        %v3633 = vlaneseq
        %v3634 = vshrl.u32 %v3633, 7
        %v3635 = vsub.s32 0, %v3634
        %v3636 = vrot.slane %v3607, %v3635
        %v3637 = vlaneseq
        %v3638 = vshrl.u32 %v3637, 7
        %v3639 = vsub.s32 0, %v3638
        %v3640 = vrot.slane %v3621, %v3639
        %v3641 = vlaneseq
        %v3642 = vshrl.u32 %v3641, 7
        %v3643 = vsub.s32 0, %v3642
        %v3644 = vrot.slane %v3629, %v3643
        %v3645 = vlaneseq
        %v3646 = vshrl.u32 %v3645, 7
        %v3647 = vsub.s32 0, %v3646
        %v3648 = vrot.slane %v3631, %v3647
        %v3649 = vlaneseq
        %v3650 = vshrl.u32 %v3649, 7
        %v3651 = vsub.s32 0, %v3650
        %v3652 = vrot.slane %v3614, %v3651
        %v3653 = vlaneseq
        %v3654 = vshrl.u32 %v3653, 7
        %v3655 = vsub.s32 0, %v3654
        %v3656 = vrot.slane %v3628, %v3655
        %v3657 = vlaneseq
        %v3658 = vshrl.u32 %v3657, 7
        %v3659 = vsub.s32 0, %v3658
        %v3660 = vrot.slane %v3630, %v3659
        %v3661 = vlaneseq
        %v3662 = vshrl.u32 %v3661, 7
        %v3663 = vsub.s32 0, %v3662
        %v3664 = vrot.slane %v3632, %v3663
        %v3673 = vadd.f32 %v984, %v3636
        %v3674 = vadd.f32 %v987, %v3640
        %v3675 = vadd.f32 %v992, %v3644
        %v3676 = vadd.f32 %v995, %v3648
        %v3677 = vadd.f32 %v1000, %v3652
        %v3678 = vadd.f32 %v1003, %v3656
        %v3679 = vadd.f32 %v1008, %v3660
        %v3680 = vadd.f32 %v1011, %v3664
        %v3681 = vtanh.pop %v3673
        %v3682 = vtanh.pop %v3674
        %v3683 = vtanh.pop %v3675
        %v3684 = vtanh.pop %v3676
        %v3685 = vtanh.pop %v3677
        %v3686 = vtanh.pop %v3678
        %v3687 = vtanh.pop %v3679
        %v3688 = vtanh.pop %v3680
        %v3689 = vld [vmem:[%s9] sm:$0x1]
        %v3691 = vlaneseq
        %v3692 = vshrl.u32 %v3691, 7
        %v3693 = vsub.s32 0, %v3692
        %v3694 = vrot.slane %v3689, %v3693
        %v3696 = vmul.f32 %v3681, %v3694
        %v3697 = vmul.f32 %v3682, %v3694
        %v3698 = vmul.f32 %v3683, %v3694
        %v3699 = vmul.f32 %v3684, %v3694
        %v3700 = vmul.f32 %v3685, %v3694
        %v3701 = vmul.f32 %v3686, %v3694
        %v3702 = vmul.f32 %v3687, %v3694
        %v3703 = vmul.f32 %v3688, %v3694
        %3704 = vadd.xlane.f32.xlu0 %v3696
        %v3705 = vpop.xlane.xlu0 %3704
        %3706 = vadd.xlane.f32.xlu0 %v3697
        %v3707 = vpop.xlane.xlu0 %3706
        %3708 = vadd.xlane.f32.xlu0 %v3698
        %v3709 = vpop.xlane.xlu0 %3708
        %3710 = vadd.xlane.f32.xlu0 %v3699
        %v3711 = vpop.xlane.xlu0 %3710
        %3712 = vadd.xlane.f32.xlu0 %v3700
        %v3713 = vpop.xlane.xlu0 %3712
        %3714 = vadd.xlane.f32.xlu0 %v3701
        %v3715 = vpop.xlane.xlu0 %3714
        %3716 = vadd.xlane.f32.xlu0 %v3702
        %v3717 = vpop.xlane.xlu0 %3716
        %3718 = vadd.xlane.f32.xlu0 %v3703
        %v3719 = vpop.xlane.xlu0 %3718
        %v3720 = vrot.slane %v3705, 4
        %v3721 = vmax.f32 %v3705, %v3720
        %v3722 = vrot.slane %v3721, 2
        %v3723 = vmax.f32 %v3721, %v3722
        %v3724 = vrot.slane %v3723, 1
        %v3725 = vmax.f32 %v3723, %v3724
        %v3726 = vrot.slane %v3707, 4
        %v3727 = vmax.f32 %v3707, %v3726
        %v3728 = vrot.slane %v3727, 2
        %v3729 = vmax.f32 %v3727, %v3728
        %v3730 = vrot.slane %v3729, 1
        %v3731 = vmax.f32 %v3729, %v3730
        %v3732 = vrot.slane %v3709, 4
        %v3733 = vmax.f32 %v3709, %v3732
        %v3734 = vrot.slane %v3733, 2
        %v3735 = vmax.f32 %v3733, %v3734
        %v3736 = vrot.slane %v3735, 1
        %v3737 = vmax.f32 %v3735, %v3736
        %v3738 = vrot.slane %v3711, 4
        %v3739 = vmax.f32 %v3711, %v3738
        %v3740 = vrot.slane %v3739, 2
        %v3741 = vmax.f32 %v3739, %v3740
        %v3742 = vrot.slane %v3741, 1
        %v3743 = vmax.f32 %v3741, %v3742
        %v3744 = vrot.slane %v3713, 4
        %v3745 = vmax.f32 %v3713, %v3744
        %v3746 = vrot.slane %v3745, 2
        %v3747 = vmax.f32 %v3745, %v3746
        %v3748 = vrot.slane %v3747, 1
        %v3749 = vmax.f32 %v3747, %v3748
        %v3750 = vrot.slane %v3715, 4
        %v3751 = vmax.f32 %v3715, %v3750
        %v3752 = vrot.slane %v3751, 2
        %v3753 = vmax.f32 %v3751, %v3752
        %v3754 = vrot.slane %v3753, 1
        %v3755 = vmax.f32 %v3753, %v3754
        %v3756 = vrot.slane %v3717, 4
        %v3757 = vmax.f32 %v3717, %v3756
        %v3758 = vrot.slane %v3757, 2
        %v3759 = vmax.f32 %v3757, %v3758
        %v3760 = vrot.slane %v3759, 1
        %v3761 = vmax.f32 %v3759, %v3760
        %v3762 = vrot.slane %v3719, 4
        %v3763 = vmax.f32 %v3719, %v3762
        %v3764 = vrot.slane %v3763, 2
        %v3765 = vmax.f32 %v3763, %v3764
        %v3766 = vrot.slane %v3765, 1
        %v3767 = vmax.f32 %v3765, %v3766
        %v3768 = vsub.f32 %v3705, %v3725
        %v3769 = vsub.f32 %v3707, %v3731
        %v3770 = vsub.f32 %v3709, %v3737
        %v3771 = vsub.f32 %v3711, %v3743
        %v3772 = vsub.f32 %v3713, %v3749
        %v3773 = vsub.f32 %v3715, %v3755
        %v3774 = vsub.f32 %v3717, %v3761
        %v3775 = vsub.f32 %v3719, %v3767
        %v3776 = vmul.f32 %v3768, 1.442695
        %v3777 = vpow.pop %v3776
        %v3778 = vmul.f32 %v3769, 1.442695
        %v3779 = vpow.pop %v3778
        %v3780 = vmul.f32 %v3770, 1.442695
        %v3781 = vpow.pop %v3780
        %v3782 = vmul.f32 %v3771, 1.442695
        %v3783 = vpow.pop %v3782
        %v3784 = vmul.f32 %v3772, 1.442695
        %v3785 = vpow.pop %v3784
        %v3786 = vmul.f32 %v3773, 1.442695
        %v3787 = vpow.pop %v3786
        %v3788 = vmul.f32 %v3774, 1.442695
        %v3789 = vpow.pop %v3788
        %v3790 = vmul.f32 %v3775, 1.442695
        %v3791 = vpow.pop %v3790
        %v3792 = vrot.slane %v3777, 4
        %v3793 = vadd.f32 %v3777, %v3792
        %v3794 = vrot.slane %v3793, 2
        %v3795 = vadd.f32 %v3793, %v3794
        %v3796 = vrot.slane %v3795, 1
        %v3797 = vadd.f32 %v3795, %v3796
        %v3798 = vrot.slane %v3779, 4
        %v3799 = vadd.f32 %v3779, %v3798
        %v3800 = vrot.slane %v3799, 2
        %v3801 = vadd.f32 %v3799, %v3800
        %v3802 = vrot.slane %v3801, 1
        %v3803 = vadd.f32 %v3801, %v3802
        %v3804 = vrot.slane %v3781, 4
        %v3805 = vadd.f32 %v3781, %v3804
        %v3806 = vrot.slane %v3805, 2
        %v3807 = vadd.f32 %v3805, %v3806
        %v3808 = vrot.slane %v3807, 1
        %v3809 = vadd.f32 %v3807, %v3808
        %v3810 = vrot.slane %v3783, 4
        %v3811 = vadd.f32 %v3783, %v3810
        %v3812 = vrot.slane %v3811, 2
        %v3813 = vadd.f32 %v3811, %v3812
        %v3814 = vrot.slane %v3813, 1
        %v3815 = vadd.f32 %v3813, %v3814
        %v3816 = vrot.slane %v3785, 4
        %v3817 = vadd.f32 %v3785, %v3816
        %v3818 = vrot.slane %v3817, 2
        %v3819 = vadd.f32 %v3817, %v3818
        %v3820 = vrot.slane %v3819, 1
        %v3821 = vadd.f32 %v3819, %v3820
        %v3822 = vrot.slane %v3787, 4
        %v3823 = vadd.f32 %v3787, %v3822
        %v3824 = vrot.slane %v3823, 2
        %v3825 = vadd.f32 %v3823, %v3824
        %v3826 = vrot.slane %v3825, 1
        %v3827 = vadd.f32 %v3825, %v3826
        %v3828 = vrot.slane %v3789, 4
        %v3829 = vadd.f32 %v3789, %v3828
        %v3830 = vrot.slane %v3829, 2
        %v3831 = vadd.f32 %v3829, %v3830
        %v3832 = vrot.slane %v3831, 1
        %v3833 = vadd.f32 %v3831, %v3832
        %v3834 = vrot.slane %v3791, 4
        %v3835 = vadd.f32 %v3791, %v3834
        %v3836 = vrot.slane %v3835, 2
        %v3837 = vadd.f32 %v3835, %v3836
        %v3838 = vrot.slane %v3837, 1
        %v3839 = vadd.f32 %v3837, %v3838
        %v3840 = vrcp.pop %v3797
        %v3841 = vrcp.pop %v3803
        %v3842 = vrcp.pop %v3809
        %v3843 = vrcp.pop %v3815
        %v3844 = vrcp.pop %v3821
        %v3845 = vrcp.pop %v3827
        %v3846 = vrcp.pop %v3833
        %v3847 = vrcp.pop %v3839
        %v3848 = vmul.f32 %v3777, %v3840
        %v3849 = vmul.f32 %v3779, %v3841
        %v3850 = vmul.f32 %v3781, %v3842
        %v3851 = vmul.f32 %v3783, %v3843
        %v3852 = vmul.f32 %v3785, %v3844
        %v3853 = vmul.f32 %v3787, %v3845
        %v3854 = vmul.f32 %v3789, %v3846
        %v3855 = vmul.f32 %v3791, %v3847
        %v3856 = vld [vmem:[%s597] sm:$0xff]
        %v3857 = vld [vmem:[%s597 + $0x8] sm:$0xff]
        %v3858 = vld [vmem:[%s597 + $0x10] sm:$0xff]
        %v3859 = vld [vmem:[%s597 + $0x18] sm:$0xff]
        %v3860 = vld [vmem:[%s597 + $0x20] sm:$0xff]
        %v3861 = vld [vmem:[%s597 + $0x28] sm:$0xff]
        %v3862 = vld [vmem:[%s597 + $0x30] sm:$0xff]
        %v3863 = vld [vmem:[%s597 + $0x38] sm:$0xff]
        %v3864 = vmul.f32 %v3848, %v3856
        %v3865 = vmul.f32 %v3849, %v3857
        %v3866 = vmul.f32 %v3850, %v3858
        %v3867 = vmul.f32 %v3851, %v3859
        %v3868 = vmul.f32 %v3852, %v3860
        %v3869 = vmul.f32 %v3853, %v3861
        %v3870 = vmul.f32 %v3854, %v3862
        %v3871 = vmul.f32 %v3855, %v3863
        %v3872 = vrot.slane %v3864, 4
        %v3873 = vadd.f32 %v3864, %v3872
        %v3874 = vrot.slane %v3873, 2
        %v3875 = vadd.f32 %v3873, %v3874
        %v3876 = vrot.slane %v3875, 1
        %v3877 = vadd.f32 %v3875, %v3876
        %v3878 = vrot.slane %v3865, 4
        %v3879 = vadd.f32 %v3865, %v3878
        %v3880 = vrot.slane %v3879, 2
        %v3881 = vadd.f32 %v3879, %v3880
        %v3882 = vrot.slane %v3881, 1
        %v3883 = vadd.f32 %v3881, %v3882
        %v3884 = vrot.slane %v3866, 4
        %v3885 = vadd.f32 %v3866, %v3884
        %v3886 = vrot.slane %v3885, 2
        %v3887 = vadd.f32 %v3885, %v3886
        %v3888 = vrot.slane %v3887, 1
        %v3889 = vadd.f32 %v3887, %v3888
        %v3890 = vrot.slane %v3867, 4
        %v3891 = vadd.f32 %v3867, %v3890
        %v3892 = vrot.slane %v3891, 2
        %v3893 = vadd.f32 %v3891, %v3892
        %v3894 = vrot.slane %v3893, 1
        %v3895 = vadd.f32 %v3893, %v3894
        %v3896 = vrot.slane %v3868, 4
        %v3897 = vadd.f32 %v3868, %v3896
        %v3898 = vrot.slane %v3897, 2
        %v3899 = vadd.f32 %v3897, %v3898
        %v3900 = vrot.slane %v3899, 1
        %v3901 = vadd.f32 %v3899, %v3900
        %v3902 = vrot.slane %v3869, 4
        %v3903 = vadd.f32 %v3869, %v3902
        %v3904 = vrot.slane %v3903, 2
        %v3905 = vadd.f32 %v3903, %v3904
        %v3906 = vrot.slane %v3905, 1
        %v3907 = vadd.f32 %v3905, %v3906
        %v3908 = vrot.slane %v3870, 4
        %v3909 = vadd.f32 %v3870, %v3908
        %v3910 = vrot.slane %v3909, 2
        %v3911 = vadd.f32 %v3909, %v3910
        %v3912 = vrot.slane %v3911, 1
        %v3913 = vadd.f32 %v3911, %v3912
        %v3914 = vrot.slane %v3871, 4
        %v3915 = vadd.f32 %v3871, %v3914
        %v3916 = vrot.slane %v3915, 2
        %v3917 = vadd.f32 %v3915, %v3916
        %v3918 = vrot.slane %v3917, 1
        %v3919 = vadd.f32 %v3917, %v3918
        %v3928 = vsel %vm696, %v3883, %v3877
        %v3929 = vsel %vm698, %v3889, %v3928
        %v3930 = vsel %vm700, %v3895, %v3929
        %v3931 = vsel %vm702, %v3901, %v3930
        %v3932 = vsel %vm704, %v3907, %v3931
        %v3933 = vsel %vm706, %v3913, %v3932
        %v3934 = vsel %vm708, %v3919, %v3933
        %v3936 = vpack.c.bf16 %v3934, %v3934
        %v3937 = vld [vmem:[%s10] sm:$0xff]
        %v3938 = vld [vmem:[%s10 + $0x8] sm:$0xff]
        %v3939 = vld [vmem:[%s10 + $0x10] sm:$0xff]
        %v3940 = vld [vmem:[%s10 + $0x18] sm:$0xff]
        %v3941 = vld [vmem:[%s10 + $0x20] sm:$0xff]
        %v3942 = vld [vmem:[%s10 + $0x28] sm:$0xff]
        %v3943 = vld [vmem:[%s10 + $0x30] sm:$0xff]
        %v3944 = vld [vmem:[%s10 + $0x38] sm:$0xff]
        %v3945 = vld [vmem:[%s10 + $0x40] sm:$0xff]
        %v3946 = vld [vmem:[%s10 + $0x48] sm:$0xff]
        %v3947 = vld [vmem:[%s10 + $0x50] sm:$0xff]
        %v3948 = vld [vmem:[%s10 + $0x58] sm:$0xff]
        %v3949 = vld [vmem:[%s10 + $0x60] sm:$0xff]
        %v3950 = vld [vmem:[%s10 + $0x68] sm:$0xff]
        %v3951 = vld [vmem:[%s10 + $0x70] sm:$0xff]
        %v3952 = vld [vmem:[%s10 + $0x78] sm:$0xff]
        %v3953 = vld [vmem:[%s10 + $0x80] sm:$0xff]
        %v3954 = vld [vmem:[%s10 + $0x88] sm:$0xff]
        %v3955 = vld [vmem:[%s10 + $0x90] sm:$0xff]
        %v3956 = vld [vmem:[%s10 + $0x98] sm:$0xff]
        %v3957 = vld [vmem:[%s10 + $0xa0] sm:$0xff]
        %v3958 = vld [vmem:[%s10 + $0xa8] sm:$0xff]
        %v3959 = vld [vmem:[%s10 + $0xb0] sm:$0xff]
        %v3960 = vld [vmem:[%s10 + $0xb8] sm:$0xff]
        %v3961 = vld [vmem:[%s10 + $0xc0] sm:$0xff]
        %v3962 = vld [vmem:[%s10 + $0xc8] sm:$0xff]
        %v3963 = vld [vmem:[%s10 + $0xd0] sm:$0xff]
        %v3964 = vld [vmem:[%s10 + $0xd8] sm:$0xff]
        %v3965 = vld [vmem:[%s10 + $0xe0] sm:$0xff]
        %v3966 = vld [vmem:[%s10 + $0xe8] sm:$0xff]
        %v3967 = vld [vmem:[%s10 + $0xf0] sm:$0xff]
        %v3968 = vld [vmem:[%s10 + $0xf8] sm:$0xff]
        %v3969 = vld [vmem:[%s10 + $0x100] sm:$0xff]
        %v3970 = vld [vmem:[%s10 + $0x108] sm:$0xff]
        %v3971 = vld [vmem:[%s10 + $0x110] sm:$0xff]
        %v3972 = vld [vmem:[%s10 + $0x118] sm:$0xff]
        %v3973 = vld [vmem:[%s10 + $0x120] sm:$0xff]
        %v3974 = vld [vmem:[%s10 + $0x128] sm:$0xff]
        %v3975 = vld [vmem:[%s10 + $0x130] sm:$0xff]
        %v3976 = vld [vmem:[%s10 + $0x138] sm:$0xff]
        %v3977 = vld [vmem:[%s10 + $0x140] sm:$0xff]
        %v3978 = vld [vmem:[%s10 + $0x148] sm:$0xff]
        %v3979 = vld [vmem:[%s10 + $0x150] sm:$0xff]
        %v3980 = vld [vmem:[%s10 + $0x158] sm:$0xff]
        %v3981 = vld [vmem:[%s10 + $0x160] sm:$0xff]
        %v3982 = vld [vmem:[%s10 + $0x168] sm:$0xff]
        %v3983 = vld [vmem:[%s10 + $0x170] sm:$0xff]
        %v3984 = vld [vmem:[%s10 + $0x178] sm:$0xff]
        %v3985 = vld [vmem:[%s10 + $0x180] sm:$0xff]
        %v3986 = vld [vmem:[%s10 + $0x188] sm:$0xff]
        %v3987 = vld [vmem:[%s10 + $0x190] sm:$0xff]
        %v3988 = vld [vmem:[%s10 + $0x198] sm:$0xff]
        %v3989 = vld [vmem:[%s10 + $0x1a0] sm:$0xff]
        %v3990 = vld [vmem:[%s10 + $0x1a8] sm:$0xff]
        %v3991 = vld [vmem:[%s10 + $0x1b0] sm:$0xff]
        %v3992 = vld [vmem:[%s10 + $0x1b8] sm:$0xff]
        %v3993 = vld [vmem:[%s10 + $0x1c0] sm:$0xff]
        %v3994 = vld [vmem:[%s10 + $0x1c8] sm:$0xff]
        %v3995 = vld [vmem:[%s10 + $0x1d0] sm:$0xff]
        %v3996 = vld [vmem:[%s10 + $0x1d8] sm:$0xff]
        %v3997 = vld [vmem:[%s10 + $0x1e0] sm:$0xff]
        %v3998 = vld [vmem:[%s10 + $0x1e8] sm:$0xff]
        %v3999 = vld [vmem:[%s10 + $0x1f0] sm:$0xff]
        %v4000 = vld [vmem:[%s10 + $0x1f8] sm:$0xff]
        %s4001 = scalar_lea.vmem [#allocation2], 64
        %v4002 = vld [vmem:[%s4001] sm:$0xff]
        %v4003 = vld [vmem:[%s4001 + $0x8] sm:$0xff]
        %v4004 = vld [vmem:[%s4001 + $0x10] sm:$0xff]
        %v4005 = vld [vmem:[%s4001 + $0x18] sm:$0xff]
        %v4070 = vunpack.c.l.b16 %v3937
        %v4071 = vunpack.c.h.b16 %v3937
        %v4072 = vunpack.c.l.b16 %v3938
        %v4073 = vunpack.c.h.b16 %v3938
        %v4074 = vunpack.c.l.b16 %v3939
        %v4075 = vunpack.c.h.b16 %v3939
        %v4076 = vunpack.c.l.b16 %v3940
        %v4077 = vunpack.c.h.b16 %v3940
        %v4078 = vunpack.c.l.b16 %v3941
        %v4079 = vunpack.c.h.b16 %v3941
        %v4080 = vunpack.c.l.b16 %v3942
        %v4081 = vunpack.c.h.b16 %v3942
        %v4082 = vunpack.c.l.b16 %v3943
        %v4083 = vunpack.c.h.b16 %v3943
        %v4084 = vunpack.c.l.b16 %v3944
        %v4085 = vunpack.c.h.b16 %v3944
        %v4086 = vunpack.c.l.b16 %v3945
        %v4087 = vunpack.c.h.b16 %v3945
        %v4088 = vunpack.c.l.b16 %v3946
        %v4089 = vunpack.c.h.b16 %v3946
        %v4090 = vunpack.c.l.b16 %v3947
        %v4091 = vunpack.c.h.b16 %v3947
        %v4092 = vunpack.c.l.b16 %v3948
        %v4093 = vunpack.c.h.b16 %v3948
        %v4094 = vunpack.c.l.b16 %v3949
        %v4095 = vunpack.c.h.b16 %v3949
        %v4096 = vunpack.c.l.b16 %v3950
        %v4097 = vunpack.c.h.b16 %v3950
        %v4098 = vunpack.c.l.b16 %v3951
        %v4099 = vunpack.c.h.b16 %v3951
        %v4100 = vunpack.c.l.b16 %v3952
        %v4101 = vunpack.c.h.b16 %v3952
        %v4102 = vunpack.c.l.b16 %v3953
        %v4103 = vunpack.c.h.b16 %v3953
        %v4104 = vunpack.c.l.b16 %v3954
        %v4105 = vunpack.c.h.b16 %v3954
        %v4106 = vunpack.c.l.b16 %v3955
        %v4107 = vunpack.c.h.b16 %v3955
        %v4108 = vunpack.c.l.b16 %v3956
        %v4109 = vunpack.c.h.b16 %v3956
        %v4110 = vunpack.c.l.b16 %v3957
        %v4111 = vunpack.c.h.b16 %v3957
        %v4112 = vunpack.c.l.b16 %v3958
        %v4113 = vunpack.c.h.b16 %v3958
        %v4114 = vunpack.c.l.b16 %v3959
        %v4115 = vunpack.c.h.b16 %v3959
        %v4116 = vunpack.c.l.b16 %v3960
        %v4117 = vunpack.c.h.b16 %v3960
        %v4118 = vunpack.c.l.b16 %v3961
        %v4119 = vunpack.c.h.b16 %v3961
        %v4120 = vunpack.c.l.b16 %v3962
        %v4121 = vunpack.c.h.b16 %v3962
        %v4122 = vunpack.c.l.b16 %v3963
        %v4123 = vunpack.c.h.b16 %v3963
        %v4124 = vunpack.c.l.b16 %v3964
        %v4125 = vunpack.c.h.b16 %v3964
        %v4126 = vunpack.c.l.b16 %v3965
        %v4127 = vunpack.c.h.b16 %v3965
        %v4128 = vunpack.c.l.b16 %v3966
        %v4129 = vunpack.c.h.b16 %v3966
        %v4130 = vunpack.c.l.b16 %v3967
        %v4131 = vunpack.c.h.b16 %v3967
        %v4132 = vunpack.c.l.b16 %v3968
        %v4133 = vunpack.c.h.b16 %v3968
        %v4134 = vunpack.c.l.b16 %v3969
        %v4135 = vunpack.c.h.b16 %v3969
        %v4136 = vunpack.c.l.b16 %v3970
        %v4137 = vunpack.c.h.b16 %v3970
        %v4138 = vunpack.c.l.b16 %v3971
        %v4139 = vunpack.c.h.b16 %v3971
        %v4140 = vunpack.c.l.b16 %v3972
        %v4141 = vunpack.c.h.b16 %v3972
        %v4142 = vunpack.c.l.b16 %v3973
        %v4143 = vunpack.c.h.b16 %v3973
        %v4144 = vunpack.c.l.b16 %v3974
        %v4145 = vunpack.c.h.b16 %v3974
        %v4146 = vunpack.c.l.b16 %v3975
        %v4147 = vunpack.c.h.b16 %v3975
        %v4148 = vunpack.c.l.b16 %v3976
        %v4149 = vunpack.c.h.b16 %v3976
        %v4150 = vunpack.c.l.b16 %v3977
        %v4151 = vunpack.c.h.b16 %v3977
        %v4152 = vunpack.c.l.b16 %v3978
        %v4153 = vunpack.c.h.b16 %v3978
        %v4154 = vunpack.c.l.b16 %v3979
        %v4155 = vunpack.c.h.b16 %v3979
        %v4156 = vunpack.c.l.b16 %v3980
        %v4157 = vunpack.c.h.b16 %v3980
        %v4158 = vunpack.c.l.b16 %v3981
        %v4159 = vunpack.c.h.b16 %v3981
        %v4160 = vunpack.c.l.b16 %v3982
        %v4161 = vunpack.c.h.b16 %v3982
        %v4162 = vunpack.c.l.b16 %v3983
        %v4163 = vunpack.c.h.b16 %v3983
        %v4164 = vunpack.c.l.b16 %v3984
        %v4165 = vunpack.c.h.b16 %v3984
        %v4166 = vunpack.c.l.b16 %v3985
        %v4167 = vunpack.c.h.b16 %v3985
        %v4168 = vunpack.c.l.b16 %v3986
        %v4169 = vunpack.c.h.b16 %v3986
        %v4170 = vunpack.c.l.b16 %v3987
        %v4171 = vunpack.c.h.b16 %v3987
        %v4172 = vunpack.c.l.b16 %v3988
        %v4173 = vunpack.c.h.b16 %v3988
        %v4174 = vunpack.c.l.b16 %v3989
        %v4175 = vunpack.c.h.b16 %v3989
        %v4176 = vunpack.c.l.b16 %v3990
        %v4177 = vunpack.c.h.b16 %v3990
        %v4178 = vunpack.c.l.b16 %v3991
        %v4179 = vunpack.c.h.b16 %v3991
        %v4180 = vunpack.c.l.b16 %v3992
        %v4181 = vunpack.c.h.b16 %v3992
        %v4182 = vunpack.c.l.b16 %v3993
        %v4183 = vunpack.c.h.b16 %v3993
        %v4184 = vunpack.c.l.b16 %v3994
        %v4185 = vunpack.c.h.b16 %v3994
        %v4186 = vunpack.c.l.b16 %v3995
        %v4187 = vunpack.c.h.b16 %v3995
        %v4188 = vunpack.c.l.b16 %v3996
        %v4189 = vunpack.c.h.b16 %v3996
        %v4190 = vunpack.c.l.b16 %v3997
        %v4191 = vunpack.c.h.b16 %v3997
        %v4192 = vunpack.c.l.b16 %v3998
        %v4193 = vunpack.c.h.b16 %v3998
        %v4194 = vunpack.c.l.b16 %v3999
        %v4195 = vunpack.c.h.b16 %v3999
        %v4196 = vunpack.c.l.b16 %v4000
        %v4197 = vunpack.c.h.b16 %v4000
        %v4198 = vpack.c.b16 %v4074, %v4070
        %v4199 = vpack.c.b16 %v4075, %v4071
        %v4200 = vpack.c.b16 %v4076, %v4072
        %v4201 = vpack.c.b16 %v4077, %v4073
        %v4202 = vpack.c.b16 %v4082, %v4078
        %v4203 = vpack.c.b16 %v4083, %v4079
        %v4204 = vpack.c.b16 %v4084, %v4080
        %v4205 = vpack.c.b16 %v4085, %v4081
        %v4206 = vpack.c.b16 %v4090, %v4086
        %v4207 = vpack.c.b16 %v4091, %v4087
        %v4208 = vpack.c.b16 %v4092, %v4088
        %v4209 = vpack.c.b16 %v4093, %v4089
        %v4210 = vpack.c.b16 %v4098, %v4094
        %v4211 = vpack.c.b16 %v4099, %v4095
        %v4212 = vpack.c.b16 %v4100, %v4096
        %v4213 = vpack.c.b16 %v4101, %v4097
        %v4214 = vpack.c.b16 %v4106, %v4102
        %v4215 = vpack.c.b16 %v4107, %v4103
        %v4216 = vpack.c.b16 %v4108, %v4104
        %v4217 = vpack.c.b16 %v4109, %v4105
        %v4218 = vpack.c.b16 %v4114, %v4110
        %v4219 = vpack.c.b16 %v4115, %v4111
        %v4220 = vpack.c.b16 %v4116, %v4112
        %v4221 = vpack.c.b16 %v4117, %v4113
        %v4222 = vpack.c.b16 %v4122, %v4118
        %v4223 = vpack.c.b16 %v4123, %v4119
        %v4224 = vpack.c.b16 %v4124, %v4120
        %v4225 = vpack.c.b16 %v4125, %v4121
        %v4226 = vpack.c.b16 %v4130, %v4126
        %v4227 = vpack.c.b16 %v4131, %v4127
        %v4228 = vpack.c.b16 %v4132, %v4128
        %v4229 = vpack.c.b16 %v4133, %v4129
        %v4230 = vpack.c.b16 %v4138, %v4134
        %v4231 = vpack.c.b16 %v4139, %v4135
        %v4232 = vpack.c.b16 %v4140, %v4136
        %v4233 = vpack.c.b16 %v4141, %v4137
        %v4234 = vpack.c.b16 %v4146, %v4142
        %v4235 = vpack.c.b16 %v4147, %v4143
        %v4236 = vpack.c.b16 %v4148, %v4144
        %v4237 = vpack.c.b16 %v4149, %v4145
        %v4238 = vpack.c.b16 %v4154, %v4150
        %v4239 = vpack.c.b16 %v4155, %v4151
        %v4240 = vpack.c.b16 %v4156, %v4152
        %v4241 = vpack.c.b16 %v4157, %v4153
        %v4242 = vpack.c.b16 %v4162, %v4158
        %v4243 = vpack.c.b16 %v4163, %v4159
        %v4244 = vpack.c.b16 %v4164, %v4160
        %v4245 = vpack.c.b16 %v4165, %v4161
        %v4246 = vpack.c.b16 %v4170, %v4166
        %v4247 = vpack.c.b16 %v4171, %v4167
        %v4248 = vpack.c.b16 %v4172, %v4168
        %v4249 = vpack.c.b16 %v4173, %v4169
        %v4250 = vpack.c.b16 %v4178, %v4174
        %v4251 = vpack.c.b16 %v4179, %v4175
        %v4252 = vpack.c.b16 %v4180, %v4176
        %v4253 = vpack.c.b16 %v4181, %v4177
        %v4254 = vpack.c.b16 %v4186, %v4182
        %v4255 = vpack.c.b16 %v4187, %v4183
        %v4256 = vpack.c.b16 %v4188, %v4184
        %v4257 = vpack.c.b16 %v4189, %v4185
        %v4258 = vpack.c.b16 %v4194, %v4190
        %v4259 = vpack.c.b16 %v4195, %v4191
        %v4260 = vpack.c.b16 %v4196, %v4192
        %v4261 = vpack.c.b16 %v4197, %v4193
        %4326 = vmatprep.subr.bf16.mxu0 %v4199
        %4327 = vmatpush1.bf16.msra.mxu0 %v4198
        %4328 = vmatprep.subr.bf16.mxu0 %v4203
        %4329 = vmatpush1.bf16.msra.mxu0 %v4202
        %4330 = vmatprep.subr.bf16.mxu0 %v4207
        %4331 = vmatpush1.bf16.msra.mxu0 %v4206
        %4332 = vmatprep.subr.bf16.mxu0 %v4211
        %4333 = vmatpush1.bf16.msra.mxu0 %v4210
        %4334 = vmatprep.subr.bf16.mxu0 %v4215
        %4335 = vmatpush1.bf16.msra.mxu0 %v4214
        %4336 = vmatprep.subr.bf16.mxu0 %v4219
        %4337 = vmatpush1.bf16.msra.mxu0 %v4218
        %4338 = vmatprep.subr.bf16.mxu0 %v4223
        %4339 = vmatpush1.bf16.msra.mxu0 %v4222
        %4340 = vmatprep.subr.bf16.mxu0 %v4227
        %4341 = vmatpush1.bf16.msra.mxu0 %v4226
        %4342 = vmatprep.subr.bf16.mxu0 %v4231
        %4343 = vmatpush1.bf16.msra.mxu0 %v4230
        %4344 = vmatprep.subr.bf16.mxu0 %v4235
        %4345 = vmatpush1.bf16.msra.mxu0 %v4234
        %4346 = vmatprep.subr.bf16.mxu0 %v4239
        %4347 = vmatpush1.bf16.msra.mxu0 %v4238
        %4348 = vmatprep.subr.bf16.mxu0 %v4243
        %4349 = vmatpush1.bf16.msra.mxu0 %v4242
        %4350 = vmatprep.subr.bf16.mxu0 %v4247
        %4351 = vmatpush1.bf16.msra.mxu0 %v4246
        %4352 = vmatprep.subr.bf16.mxu0 %v4251
        %4353 = vmatpush1.bf16.msra.mxu0 %v4250
        %4354 = vmatprep.subr.bf16.mxu0 %v4255
        %4355 = vmatpush1.bf16.msra.mxu0 %v4254
        %4356 = vmatprep.subr.bf16.mxu0 %v4259
        %4357 = vmatpush1.bf16.msra.mxu0 %v4258
        %4358 = vmatprep.mubr.bf16.mxu0 %v3315
        %4359 = vmatmul.mubr.bf16.gmra.mrb[0].mxu0 %v3936
        %v4360 = vpop.f32.mrb[0].mxu0
        %v4361 = vadd.f32 %v4002, %v4360
        %v4362 = vpop.f32.mrb[0].mxu0
        %v4363 = vadd.f32 %v4003, %v4362
        %v4364 = vpop.f32.mrb[0].mxu0
        %v4365 = vpop.f32.mrb[0].mxu0
        %4366 = vdwg.mxu0
        %4367 = vmatprep.subr.bf16.mxu0 %v4201
        %4368 = vmatpush1.bf16.msra.mxu0 %v4200
        %4369 = vmatprep.subr.bf16.mxu0 %v4205
        %4370 = vmatpush1.bf16.msra.mxu0 %v4204
        %4371 = vmatprep.subr.bf16.mxu0 %v4209
        %4372 = vmatpush1.bf16.msra.mxu0 %v4208
        %4373 = vmatprep.subr.bf16.mxu0 %v4213
        %4374 = vmatpush1.bf16.msra.mxu0 %v4212
        %4375 = vmatprep.subr.bf16.mxu0 %v4217
        %4376 = vmatpush1.bf16.msra.mxu0 %v4216
        %4377 = vmatprep.subr.bf16.mxu0 %v4221
        %4378 = vmatpush1.bf16.msra.mxu0 %v4220
        %4379 = vmatprep.subr.bf16.mxu0 %v4225
        %4380 = vmatpush1.bf16.msra.mxu0 %v4224
        %4381 = vmatprep.subr.bf16.mxu0 %v4229
        %4382 = vmatpush1.bf16.msra.mxu0 %v4228
        %4383 = vmatprep.subr.bf16.mxu0 %v4233
        %4384 = vmatpush1.bf16.msra.mxu0 %v4232
        %4385 = vmatprep.subr.bf16.mxu0 %v4237
        %4386 = vmatpush1.bf16.msra.mxu0 %v4236
        %4387 = vmatprep.subr.bf16.mxu0 %v4241
        %4388 = vmatpush1.bf16.msra.mxu0 %v4240
        %4389 = vmatprep.subr.bf16.mxu0 %v4245
        %4390 = vmatpush1.bf16.msra.mxu0 %v4244
        %4391 = vmatprep.subr.bf16.mxu0 %v4249
        %4392 = vmatpush1.bf16.msra.mxu0 %v4248
        %4393 = vmatprep.subr.bf16.mxu0 %v4253
        %4394 = vmatpush1.bf16.msra.mxu0 %v4252
        %4395 = vmatprep.subr.bf16.mxu0 %v4257
        %4396 = vmatpush1.bf16.msra.mxu0 %v4256
        %4397 = vmatprep.subr.bf16.mxu0 %v4261
        %4398 = vmatpush1.bf16.msra.mxu0 %v4260
        %4399 = vmatprep.mubr.bf16.mxu0 %v3315
        %4400 = vmatmul.mubr.bf16.gmra.mrb[0].mxu0 %v3936
        %v4401 = vpop.f32.mrb[0].mxu0
        %v4402 = vadd.f32 %v4004, %v4401
        %v4403 = vpop.f32.mrb[0].mxu0
        %v4404 = vadd.f32 %v4005, %v4403
        %v4405 = vpop.f32.mrb[0].mxu0
        %v4406 = vpop.f32.mrb[0].mxu0
        %4407 = vdwg.mxu0
        %v4408 = vxor.u32 %v4361, 2147483648
        %v4409 = vmul.f32 %v4408, 1.442695
        %v4410 = vpow.pop %v4409
        %v4411 = vadd.f32 %v4410, 1.0
        %v4412 = vrcp.pop %v4411
        %v4413 = vmul.f32 1.0, %v4412
        %v4414 = vxor.u32 %v4363, 2147483648
        %v4415 = vmul.f32 %v4414, 1.442695
        %v4416 = vpow.pop %v4415
        %v4417 = vadd.f32 %v4416, 1.0
        %v4418 = vrcp.pop %v4417
        %v4419 = vmul.f32 1.0, %v4418
        %v4420 = vtanh.pop %v4402
        %v4421 = vxor.u32 %v4404, 2147483648
        %v4422 = vmul.f32 %v4421, 1.442695
        %v4423 = vpow.pop %v4422
        %v4424 = vadd.f32 %v4423, 1.0
        %v4425 = vrcp.pop %v4424
        %v4426 = vmul.f32 1.0, %v4425
        %v4427 = vmul.f32 %v4419, %v3312
        %v4428 = vmul.f32 %v4413, %v4420
        %v4429 = vadd.f32 %v4427, %v4428
        %v4430 = vtanh.pop %v4429
        %v4431 = vmul.f32 %v4426, %v4430
        %v4432 = vpack.c.bf16 %v4431, %v4431
        %v4433 = vld [vmem:[%s13] sm:$0xf]
        %v4434 = vld [vmem:[%s13 + $0x4] sm:$0xf]
        %v4435 = vld [vmem:[%s13 + $0x8] sm:$0xf]
        %v4436 = vld [vmem:[%s13 + $0xc] sm:$0xf]
        %v4437 = vld [vmem:[%s13 + $0x10] sm:$0xf]
        %v4438 = vld [vmem:[%s13 + $0x14] sm:$0xf]
        %v4439 = vld [vmem:[%s13 + $0x18] sm:$0xf]
        %v4440 = vld [vmem:[%s13 + $0x1c] sm:$0xf]
        %v4441 = vld [vmem:[%s13 + $0x20] sm:$0xf]
        %v4442 = vld [vmem:[%s13 + $0x24] sm:$0xf]
        %v4443 = vld [vmem:[%s13 + $0x28] sm:$0xf]
        %v4444 = vld [vmem:[%s13 + $0x2c] sm:$0xf]
        %v4445 = vld [vmem:[%s13 + $0x30] sm:$0xf]
        %v4446 = vld [vmem:[%s13 + $0x34] sm:$0xf]
        %v4447 = vld [vmem:[%s13 + $0x38] sm:$0xf]
        %v4448 = vld [vmem:[%s13 + $0x3c] sm:$0xf]
        %v4449 = vld [vmem:[%s14] sm:$0x1]
        %v4451 = vlaneseq
        %v4452 = vshrl.u32 %v4451, 7
        %v4453 = vsub.s32 0, %v4452
        %v4454 = vrot.slane %v4449, %v4453
        %v4472 = vunpack.c.l.b16 %v4433
        %v4473 = vunpack.c.l.b16 %v4434
        %v4474 = vunpack.c.l.b16 %v4435
        %v4475 = vunpack.c.l.b16 %v4436
        %v4476 = vunpack.c.l.b16 %v4437
        %v4477 = vunpack.c.l.b16 %v4438
        %v4478 = vunpack.c.l.b16 %v4439
        %v4479 = vunpack.c.l.b16 %v4440
        %v4480 = vunpack.c.l.b16 %v4441
        %v4481 = vunpack.c.l.b16 %v4442
        %v4482 = vunpack.c.l.b16 %v4443
        %v4483 = vunpack.c.l.b16 %v4444
        %v4484 = vunpack.c.l.b16 %v4445
        %v4485 = vunpack.c.l.b16 %v4446
        %v4486 = vunpack.c.l.b16 %v4447
        %v4487 = vunpack.c.l.b16 %v4448
        %v4488 = vpack.c.b16 %v4473, %v4472
        %v4489 = vpack.c.b16 %v4475, %v4474
        %v4490 = vpack.c.b16 %v4477, %v4476
        %v4491 = vpack.c.b16 %v4479, %v4478
        %v4492 = vpack.c.b16 %v4481, %v4480
        %v4493 = vpack.c.b16 %v4483, %v4482
        %v4494 = vpack.c.b16 %v4485, %v4484
        %v4495 = vpack.c.b16 %v4487, %v4486
        %4504 = vmatprep.subr.bf16.mxu0 0
        %4505 = vmatpush1.bf16.msra.mxu0 %v4488
        %4506 = vmatprep.subr.bf16.mxu0 0
        %4507 = vmatpush1.bf16.msra.mxu0 %v4489
        %4508 = vmatprep.subr.bf16.mxu0 0
        %4509 = vmatpush1.bf16.msra.mxu0 %v4490
        %4510 = vmatprep.subr.bf16.mxu0 0
        %4511 = vmatpush1.bf16.msra.mxu0 %v4491
        %4512 = vmatprep.subr.bf16.mxu0 0
        %4513 = vmatpush1.bf16.msra.mxu0 %v4492
        %4514 = vmatprep.subr.bf16.mxu0 0
        %4515 = vmatpush1.bf16.msra.mxu0 %v4493
        %4516 = vmatprep.subr.bf16.mxu0 0
        %4517 = vmatpush1.bf16.msra.mxu0 %v4494
        %4518 = vmatprep.subr.bf16.mxu0 0
        %4519 = vmatpush1.bf16.msra.mxu0 %v4495
        %4520 = vmatprep.subr.bf16.mxu0 0
        %4521 = vmatpush1.bf16.msra.mxu0 0
        %4522 = vmatprep.subr.bf16.mxu0 0
        %4523 = vmatpush1.bf16.msra.mxu0 0
        %4524 = vmatprep.subr.bf16.mxu0 0
        %4525 = vmatpush1.bf16.msra.mxu0 0
        %4526 = vmatprep.subr.bf16.mxu0 0
        %4527 = vmatpush1.bf16.msra.mxu0 0
        %4528 = vmatprep.subr.bf16.mxu0 0
        %4529 = vmatpush1.bf16.msra.mxu0 0
        %4530 = vmatprep.subr.bf16.mxu0 0
        %4531 = vmatpush1.bf16.msra.mxu0 0
        %4532 = vmatprep.subr.bf16.mxu0 0
        %4533 = vmatpush1.bf16.msra.mxu0 0
        %4534 = vmatprep.subr.bf16.mxu0 0
        %4535 = vmatpush1.bf16.msra.mxu0 0
        %4536 = vmatprep.mubr.bf16.mxu0 0
        %4537 = vmatmul.mubr.bf16.gmra.mrb[0].mxu0 %v4432
        %v4538 = vpop.f32.mrb[0].mxu0
        %v4539 = vadd.f32 %v4454, %v4538
        %v4540 = vpop.f32.mrb[0].mxu0
        %v4541 = vpop.f32.mrb[0].mxu0
        %v4542 = vpop.f32.mrb[0].mxu0
        %4543 = vdwg.mxu0
        %s4544 = scalar_lea.vmem %s586, 16 [#allocation4]
        %4545 = vst [vmem:[%s4544] sm:$0xff] %v4539
        %v4554 = vlaneseq
        %v4555 = vshrl.u32 %v4554, 7
        %v4556 = vsub.s32 %v2319, %v4555
        %v4557 = vrot.slane %v3848, %v4556
        %v4558 = vlaneseq
        %v4559 = vshrl.u32 %v4558, 7
        %v4560 = vsub.s32 %v2319, %v4559
        %v4561 = vrot.slane %v3849, %v4560
        %v4562 = vlaneseq
        %v4563 = vshrl.u32 %v4562, 7
        %v4564 = vsub.s32 %v2319, %v4563
        %v4565 = vrot.slane %v3850, %v4564
        %v4566 = vlaneseq
        %v4567 = vshrl.u32 %v4566, 7
        %v4568 = vsub.s32 %v2319, %v4567
        %v4569 = vrot.slane %v3851, %v4568
        %v4570 = vlaneseq
        %v4571 = vshrl.u32 %v4570, 7
        %v4572 = vsub.s32 %v2319, %v4571
        %v4573 = vrot.slane %v3852, %v4572
        %v4574 = vlaneseq
        %v4575 = vshrl.u32 %v4574, 7
        %v4576 = vsub.s32 %v2319, %v4575
        %v4577 = vrot.slane %v3853, %v4576
        %v4578 = vlaneseq
        %v4579 = vshrl.u32 %v4578, 7
        %v4580 = vsub.s32 %v2319, %v4579
        %v4581 = vrot.slane %v3854, %v4580
        %v4582 = vlaneseq
        %v4583 = vshrl.u32 %v4582, 7
        %v4584 = vsub.s32 %v2319, %v4583
        %v4585 = vrot.slane %v3855, %v4584
        %v4586 = vsel %vm696, %v4561, %v4557
        %v4587 = vsel %vm698, %v4565, %v4586
        %v4588 = vsel %vm700, %v4569, %v4587
        %v4589 = vsel %vm702, %v4573, %v4588
        %v4590 = vsel %vm704, %v4577, %v4589
        %v4591 = vsel %vm706, %v4581, %v4590
        %v4592 = vsel %vm708, %v4585, %v4591
        %s4594 = scalar_lea.vmem %s592, 16 [#allocation6]
        %4595 = vst.msk [vmem:[%s4594] sm:$0xff] %vm2360, %v4592
        %v4596 = vld [vmem:[%s8] sm:$0xf]
        %v4597 = vld [vmem:[%s8 + $0x4] sm:$0xf]
        %v4598 = vld [vmem:[%s8 + $0x8] sm:$0xf]
        %v4599 = vld [vmem:[%s8 + $0xc] sm:$0xf]
        %v4600 = vld [vmem:[%s8 + $0x10] sm:$0xf]
        %v4601 = vld [vmem:[%s8 + $0x14] sm:$0xf]
        %v4602 = vld [vmem:[%s8 + $0x18] sm:$0xf]
        %v4603 = vld [vmem:[%s8 + $0x1c] sm:$0xf]
        %v4604 = vld [vmem:[%s8 + $0x20] sm:$0xf]
        %v4605 = vld [vmem:[%s8 + $0x24] sm:$0xf]
        %v4606 = vld [vmem:[%s8 + $0x28] sm:$0xf]
        %v4607 = vld [vmem:[%s8 + $0x2c] sm:$0xf]
        %v4608 = vld [vmem:[%s8 + $0x30] sm:$0xf]
        %v4609 = vld [vmem:[%s8 + $0x34] sm:$0xf]
        %v4610 = vld [vmem:[%s8 + $0x38] sm:$0xf]
        %v4611 = vld [vmem:[%s8 + $0x3c] sm:$0xf]
        %v4628 = vunpack.c.l.b16 %v4596
        %v4629 = vunpack.c.l.b16 %v4597
        %v4630 = vunpack.c.l.b16 %v4598
        %v4631 = vunpack.c.l.b16 %v4599
        %v4632 = vunpack.c.l.b16 %v4600
        %v4633 = vunpack.c.l.b16 %v4601
        %v4634 = vunpack.c.l.b16 %v4602
        %v4635 = vunpack.c.l.b16 %v4603
        %v4636 = vunpack.c.l.b16 %v4604
        %v4637 = vunpack.c.l.b16 %v4605
        %v4638 = vunpack.c.l.b16 %v4606
        %v4639 = vunpack.c.l.b16 %v4607
        %v4640 = vunpack.c.l.b16 %v4608
        %v4641 = vunpack.c.l.b16 %v4609
        %v4642 = vunpack.c.l.b16 %v4610
        %v4643 = vunpack.c.l.b16 %v4611
        %v4644 = vpack.c.b16 %v4629, %v4628
        %v4645 = vpack.c.b16 %v4631, %v4630
        %v4646 = vpack.c.b16 %v4633, %v4632
        %v4647 = vpack.c.b16 %v4635, %v4634
        %v4648 = vpack.c.b16 %v4637, %v4636
        %v4649 = vpack.c.b16 %v4639, %v4638
        %v4650 = vpack.c.b16 %v4641, %v4640
        %v4651 = vpack.c.b16 %v4643, %v4642
        %4660 = vmatprep.subr.bf16.mxu0 0
        %4661 = vmatpush1.bf16.msra.mxu0 %v4644
        %4662 = vmatprep.subr.bf16.mxu0 0
        %4663 = vmatpush1.bf16.msra.mxu0 %v4645
        %4664 = vmatprep.subr.bf16.mxu0 0
        %4665 = vmatpush1.bf16.msra.mxu0 %v4646
        %4666 = vmatprep.subr.bf16.mxu0 0
        %4667 = vmatpush1.bf16.msra.mxu0 %v4647
        %4668 = vmatprep.subr.bf16.mxu0 0
        %4669 = vmatpush1.bf16.msra.mxu0 %v4648
        %4670 = vmatprep.subr.bf16.mxu0 0
        %4671 = vmatpush1.bf16.msra.mxu0 %v4649
        %4672 = vmatprep.subr.bf16.mxu0 0
        %4673 = vmatpush1.bf16.msra.mxu0 %v4650
        %4674 = vmatprep.subr.bf16.mxu0 0
        %4675 = vmatpush1.bf16.msra.mxu0 %v4651
        %4676 = vmatprep.subr.bf16.mxu0 0
        %4677 = vmatpush1.bf16.msra.mxu0 0
        %4678 = vmatprep.subr.bf16.mxu0 0
        %4679 = vmatpush1.bf16.msra.mxu0 0
        %4680 = vmatprep.subr.bf16.mxu0 0
        %4681 = vmatpush1.bf16.msra.mxu0 0
        %4682 = vmatprep.subr.bf16.mxu0 0
        %4683 = vmatpush1.bf16.msra.mxu0 0
        %4684 = vmatprep.subr.bf16.mxu0 0
        %4685 = vmatpush1.bf16.msra.mxu0 0
        %4686 = vmatprep.subr.bf16.mxu0 0
        %4687 = vmatpush1.bf16.msra.mxu0 0
        %4688 = vmatprep.subr.bf16.mxu0 0
        %4689 = vmatpush1.bf16.msra.mxu0 0
        %4690 = vmatprep.subr.bf16.mxu0 0
        %4691 = vmatpush1.bf16.msra.mxu0 0
        %4692 = vmatprep.mubr.bf16.mxu0 0
        %4693 = vmatmul.mubr.bf16.gmra.mrb[0].mxu0 %v4432
        %v4694 = vpop.f32.mrb[0].mxu0
        %v4695 = vadd.f32 0.0, %v4694
        %v4696 = vpop.f32.mrb[0].mxu0
        %v4697 = vpop.f32.mrb[0].mxu0
        %v4698 = vpop.f32.mrb[0].mxu0
        %4699 = vdwg.mxu0
        %v4701 = vcombine.high %v4695, %v4695
        %v4703 = vunpack.c.l.s4 1966171168
        %v4704 = vunpack.c.0.s8 %v4703
        %v4705 = vlaneseq
        %v4706 = vshrl.u32 %v4705, 7
        %v4707 = vsub.s32 %v4704, %v4706
        %v4708 = vrot.slane %v4695, %v4707
        %v4710 = vunpack.c.l.s4 1966171168
        %v4711 = vunpack.c.0.s8 %v4710
        %v4712 = vlaneseq
        %v4713 = vshrl.u32 %v4712, 7
        %v4714 = vsub.s32 %v4711, %v4713
        %v4715 = vrot.slane %v4701, %v4714
        %v4716 = vcombine.high %v4708, %v4708
        %v4717 = vcombine.high %v4715, %v4715
        %v4719 = vunpack.c.l.s4 1966171168
        %v4720 = vunpack.c.0.s8 %v4719
        %v4721 = vlaneseq
        %v4722 = vshrl.u32 %v4721, 7
        %v4723 = vsub.s32 %v4720, %v4722
        %v4724 = vrot.slane %v4708, %v4723
        %v4726 = vunpack.c.l.s4 1966171168
        %v4727 = vunpack.c.0.s8 %v4726
        %v4728 = vlaneseq
        %v4729 = vshrl.u32 %v4728, 7
        %v4730 = vsub.s32 %v4727, %v4729
        %v4731 = vrot.slane %v4715, %v4730
        %v4733 = vunpack.c.l.s4 1966171168
        %v4734 = vunpack.c.0.s8 %v4733
        %v4735 = vlaneseq
        %v4736 = vshrl.u32 %v4735, 7
        %v4737 = vsub.s32 %v4734, %v4736
        %v4738 = vrot.slane %v4716, %v4737
        %v4740 = vunpack.c.l.s4 1966171168
        %v4741 = vunpack.c.0.s8 %v4740
        %v4742 = vlaneseq
        %v4743 = vshrl.u32 %v4742, 7
        %v4744 = vsub.s32 %v4741, %v4743
        %v4745 = vrot.slane %v4717, %v4744
        %v4746 = vcombine.high %v4724, %v4724
        %v4747 = vcombine.high %v4731, %v4731
        %v4748 = vcombine.high %v4738, %v4738
        %v4749 = vcombine.high %v4745, %v4745
        %v4750 = vlaneseq
        %v4751 = vshrl.u32 %v4750, 7
        %v4752 = vsub.s32 0, %v4751
        %v4753 = vrot.slane %v4724, %v4752
        %v4754 = vlaneseq
        %v4755 = vshrl.u32 %v4754, 7
        %v4756 = vsub.s32 0, %v4755
        %v4757 = vrot.slane %v4738, %v4756
        %v4758 = vlaneseq
        %v4759 = vshrl.u32 %v4758, 7
        %v4760 = vsub.s32 0, %v4759
        %v4761 = vrot.slane %v4746, %v4760
        %v4762 = vlaneseq
        %v4763 = vshrl.u32 %v4762, 7
        %v4764 = vsub.s32 0, %v4763
        %v4765 = vrot.slane %v4748, %v4764
        %v4766 = vlaneseq
        %v4767 = vshrl.u32 %v4766, 7
        %v4768 = vsub.s32 0, %v4767
        %v4769 = vrot.slane %v4731, %v4768
        %v4770 = vlaneseq
        %v4771 = vshrl.u32 %v4770, 7
        %v4772 = vsub.s32 0, %v4771
        %v4773 = vrot.slane %v4745, %v4772
        %v4774 = vlaneseq
        %v4775 = vshrl.u32 %v4774, 7
        %v4776 = vsub.s32 0, %v4775
        %v4777 = vrot.slane %v4747, %v4776
        %v4778 = vlaneseq
        %v4779 = vshrl.u32 %v4778, 7
        %v4780 = vsub.s32 0, %v4779
        %v4781 = vrot.slane %v4749, %v4780
        %v4790 = vadd.f32 %v984, %v4753
        %v4791 = vadd.f32 %v987, %v4757
        %v4792 = vadd.f32 %v992, %v4761
        %v4793 = vadd.f32 %v995, %v4765
        %v4794 = vadd.f32 %v1000, %v4769
        %v4795 = vadd.f32 %v1003, %v4773
        %v4796 = vadd.f32 %v1008, %v4777
        %v4797 = vadd.f32 %v1011, %v4781
        %v4798 = vtanh.pop %v4790
        %v4799 = vtanh.pop %v4791
        %v4800 = vtanh.pop %v4792
        %v4801 = vtanh.pop %v4793
        %v4802 = vtanh.pop %v4794
        %v4803 = vtanh.pop %v4795
        %v4804 = vtanh.pop %v4796
        %v4805 = vtanh.pop %v4797
        %v4806 = vld [vmem:[%s9] sm:$0x1]
        %v4808 = vlaneseq
        %v4809 = vshrl.u32 %v4808, 7
        %v4810 = vsub.s32 0, %v4809
        %v4811 = vrot.slane %v4806, %v4810
        %v4813 = vmul.f32 %v4798, %v4811
        %v4814 = vmul.f32 %v4799, %v4811
        %v4815 = vmul.f32 %v4800, %v4811
        %v4816 = vmul.f32 %v4801, %v4811
        %v4817 = vmul.f32 %v4802, %v4811
        %v4818 = vmul.f32 %v4803, %v4811
        %v4819 = vmul.f32 %v4804, %v4811
        %v4820 = vmul.f32 %v4805, %v4811
        %4821 = vadd.xlane.f32.xlu0 %v4813
        %v4822 = vpop.xlane.xlu0 %4821
        %4823 = vadd.xlane.f32.xlu0 %v4814
        %v4824 = vpop.xlane.xlu0 %4823
        %4825 = vadd.xlane.f32.xlu0 %v4815
        %v4826 = vpop.xlane.xlu0 %4825
        %4827 = vadd.xlane.f32.xlu0 %v4816
        %v4828 = vpop.xlane.xlu0 %4827
        %4829 = vadd.xlane.f32.xlu0 %v4817
        %v4830 = vpop.xlane.xlu0 %4829
        %4831 = vadd.xlane.f32.xlu0 %v4818
        %v4832 = vpop.xlane.xlu0 %4831
        %4833 = vadd.xlane.f32.xlu0 %v4819
        %v4834 = vpop.xlane.xlu0 %4833
        %4835 = vadd.xlane.f32.xlu0 %v4820
        %v4836 = vpop.xlane.xlu0 %4835
        %v4837 = vrot.slane %v4822, 4
        %v4838 = vmax.f32 %v4822, %v4837
        %v4839 = vrot.slane %v4838, 2
        %v4840 = vmax.f32 %v4838, %v4839
        %v4841 = vrot.slane %v4840, 1
        %v4842 = vmax.f32 %v4840, %v4841
        %v4843 = vrot.slane %v4824, 4
        %v4844 = vmax.f32 %v4824, %v4843
        %v4845 = vrot.slane %v4844, 2
        %v4846 = vmax.f32 %v4844, %v4845
        %v4847 = vrot.slane %v4846, 1
        %v4848 = vmax.f32 %v4846, %v4847
        %v4849 = vrot.slane %v4826, 4
        %v4850 = vmax.f32 %v4826, %v4849
        %v4851 = vrot.slane %v4850, 2
        %v4852 = vmax.f32 %v4850, %v4851
        %v4853 = vrot.slane %v4852, 1
        %v4854 = vmax.f32 %v4852, %v4853
        %v4855 = vrot.slane %v4828, 4
        %v4856 = vmax.f32 %v4828, %v4855
        %v4857 = vrot.slane %v4856, 2
        %v4858 = vmax.f32 %v4856, %v4857
        %v4859 = vrot.slane %v4858, 1
        %v4860 = vmax.f32 %v4858, %v4859
        %v4861 = vrot.slane %v4830, 4
        %v4862 = vmax.f32 %v4830, %v4861
        %v4863 = vrot.slane %v4862, 2
        %v4864 = vmax.f32 %v4862, %v4863
        %v4865 = vrot.slane %v4864, 1
        %v4866 = vmax.f32 %v4864, %v4865
        %v4867 = vrot.slane %v4832, 4
        %v4868 = vmax.f32 %v4832, %v4867
        %v4869 = vrot.slane %v4868, 2
        %v4870 = vmax.f32 %v4868, %v4869
        %v4871 = vrot.slane %v4870, 1
        %v4872 = vmax.f32 %v4870, %v4871
        %v4873 = vrot.slane %v4834, 4
        %v4874 = vmax.f32 %v4834, %v4873
        %v4875 = vrot.slane %v4874, 2
        %v4876 = vmax.f32 %v4874, %v4875
        %v4877 = vrot.slane %v4876, 1
        %v4878 = vmax.f32 %v4876, %v4877
        %v4879 = vrot.slane %v4836, 4
        %v4880 = vmax.f32 %v4836, %v4879
        %v4881 = vrot.slane %v4880, 2
        %v4882 = vmax.f32 %v4880, %v4881
        %v4883 = vrot.slane %v4882, 1
        %v4884 = vmax.f32 %v4882, %v4883
        %v4885 = vsub.f32 %v4822, %v4842
        %v4886 = vsub.f32 %v4824, %v4848
        %v4887 = vsub.f32 %v4826, %v4854
        %v4888 = vsub.f32 %v4828, %v4860
        %v4889 = vsub.f32 %v4830, %v4866
        %v4890 = vsub.f32 %v4832, %v4872
        %v4891 = vsub.f32 %v4834, %v4878
        %v4892 = vsub.f32 %v4836, %v4884
        %v4893 = vmul.f32 %v4885, 1.442695
        %v4894 = vpow.pop %v4893
        %v4895 = vmul.f32 %v4886, 1.442695
        %v4896 = vpow.pop %v4895
        %v4897 = vmul.f32 %v4887, 1.442695
        %v4898 = vpow.pop %v4897
        %v4899 = vmul.f32 %v4888, 1.442695
        %v4900 = vpow.pop %v4899
        %v4901 = vmul.f32 %v4889, 1.442695
        %v4902 = vpow.pop %v4901
        %v4903 = vmul.f32 %v4890, 1.442695
        %v4904 = vpow.pop %v4903
        %v4905 = vmul.f32 %v4891, 1.442695
        %v4906 = vpow.pop %v4905
        %v4907 = vmul.f32 %v4892, 1.442695
        %v4908 = vpow.pop %v4907
        %v4909 = vrot.slane %v4894, 4
        %v4910 = vadd.f32 %v4894, %v4909
        %v4911 = vrot.slane %v4910, 2
        %v4912 = vadd.f32 %v4910, %v4911
        %v4913 = vrot.slane %v4912, 1
        %v4914 = vadd.f32 %v4912, %v4913
        %v4915 = vrot.slane %v4896, 4
        %v4916 = vadd.f32 %v4896, %v4915
        %v4917 = vrot.slane %v4916, 2
        %v4918 = vadd.f32 %v4916, %v4917
        %v4919 = vrot.slane %v4918, 1
        %v4920 = vadd.f32 %v4918, %v4919
        %v4921 = vrot.slane %v4898, 4
        %v4922 = vadd.f32 %v4898, %v4921
        %v4923 = vrot.slane %v4922, 2
        %v4924 = vadd.f32 %v4922, %v4923
        %v4925 = vrot.slane %v4924, 1
        %v4926 = vadd.f32 %v4924, %v4925
        %v4927 = vrot.slane %v4900, 4
        %v4928 = vadd.f32 %v4900, %v4927
        %v4929 = vrot.slane %v4928, 2
        %v4930 = vadd.f32 %v4928, %v4929
        %v4931 = vrot.slane %v4930, 1
        %v4932 = vadd.f32 %v4930, %v4931
        %v4933 = vrot.slane %v4902, 4
        %v4934 = vadd.f32 %v4902, %v4933
        %v4935 = vrot.slane %v4934, 2
        %v4936 = vadd.f32 %v4934, %v4935
        %v4937 = vrot.slane %v4936, 1
        %v4938 = vadd.f32 %v4936, %v4937
        %v4939 = vrot.slane %v4904, 4
        %v4940 = vadd.f32 %v4904, %v4939
        %v4941 = vrot.slane %v4940, 2
        %v4942 = vadd.f32 %v4940, %v4941
        %v4943 = vrot.slane %v4942, 1
        %v4944 = vadd.f32 %v4942, %v4943
        %v4945 = vrot.slane %v4906, 4
        %v4946 = vadd.f32 %v4906, %v4945
        %v4947 = vrot.slane %v4946, 2
        %v4948 = vadd.f32 %v4946, %v4947
        %v4949 = vrot.slane %v4948, 1
        %v4950 = vadd.f32 %v4948, %v4949
        %v4951 = vrot.slane %v4908, 4
        %v4952 = vadd.f32 %v4908, %v4951
        %v4953 = vrot.slane %v4952, 2
        %v4954 = vadd.f32 %v4952, %v4953
        %v4955 = vrot.slane %v4954, 1
        %v4956 = vadd.f32 %v4954, %v4955
        %v4957 = vrcp.pop %v4914
        %v4958 = vrcp.pop %v4920
        %v4959 = vrcp.pop %v4926
        %v4960 = vrcp.pop %v4932
        %v4961 = vrcp.pop %v4938
        %v4962 = vrcp.pop %v4944
        %v4963 = vrcp.pop %v4950
        %v4964 = vrcp.pop %v4956
        %v4965 = vmul.f32 %v4894, %v4957
        %v4966 = vmul.f32 %v4896, %v4958
        %v4967 = vmul.f32 %v4898, %v4959
        %v4968 = vmul.f32 %v4900, %v4960
        %v4969 = vmul.f32 %v4902, %v4961
        %v4970 = vmul.f32 %v4904, %v4962
        %v4971 = vmul.f32 %v4906, %v4963
        %v4972 = vmul.f32 %v4908, %v4964
        %v4973 = vld [vmem:[%s597] sm:$0xff]
        %v4974 = vld [vmem:[%s597 + $0x8] sm:$0xff]
        %v4975 = vld [vmem:[%s597 + $0x10] sm:$0xff]
        %v4976 = vld [vmem:[%s597 + $0x18] sm:$0xff]
        %v4977 = vld [vmem:[%s597 + $0x20] sm:$0xff]
        %v4978 = vld [vmem:[%s597 + $0x28] sm:$0xff]
        %v4979 = vld [vmem:[%s597 + $0x30] sm:$0xff]
        %v4980 = vld [vmem:[%s597 + $0x38] sm:$0xff]
        %v4981 = vmul.f32 %v4965, %v4973
        %v4982 = vmul.f32 %v4966, %v4974
        %v4983 = vmul.f32 %v4967, %v4975
        %v4984 = vmul.f32 %v4968, %v4976
        %v4985 = vmul.f32 %v4969, %v4977
        %v4986 = vmul.f32 %v4970, %v4978
        %v4987 = vmul.f32 %v4971, %v4979
        %v4988 = vmul.f32 %v4972, %v4980
        %v4989 = vrot.slane %v4981, 4
        %v4990 = vadd.f32 %v4981, %v4989
        %v4991 = vrot.slane %v4990, 2
        %v4992 = vadd.f32 %v4990, %v4991
        %v4993 = vrot.slane %v4992, 1
        %v4994 = vadd.f32 %v4992, %v4993
        %v4995 = vrot.slane %v4982, 4
        %v4996 = vadd.f32 %v4982, %v4995
        %v4997 = vrot.slane %v4996, 2
        %v4998 = vadd.f32 %v4996, %v4997
        %v4999 = vrot.slane %v4998, 1
        %v5000 = vadd.f32 %v4998, %v4999
        %v5001 = vrot.slane %v4983, 4
        %v5002 = vadd.f32 %v4983, %v5001
        %v5003 = vrot.slane %v5002, 2
        %v5004 = vadd.f32 %v5002, %v5003
        %v5005 = vrot.slane %v5004, 1
        %v5006 = vadd.f32 %v5004, %v5005
        %v5007 = vrot.slane %v4984, 4
        %v5008 = vadd.f32 %v4984, %v5007
        %v5009 = vrot.slane %v5008, 2
        %v5010 = vadd.f32 %v5008, %v5009
        %v5011 = vrot.slane %v5010, 1
        %v5012 = vadd.f32 %v5010, %v5011
        %v5013 = vrot.slane %v4985, 4
        %v5014 = vadd.f32 %v4985, %v5013
        %v5015 = vrot.slane %v5014, 2
        %v5016 = vadd.f32 %v5014, %v5015
        %v5017 = vrot.slane %v5016, 1
        %v5018 = vadd.f32 %v5016, %v5017
        %v5019 = vrot.slane %v4986, 4
        %v5020 = vadd.f32 %v4986, %v5019
        %v5021 = vrot.slane %v5020, 2
        %v5022 = vadd.f32 %v5020, %v5021
        %v5023 = vrot.slane %v5022, 1
        %v5024 = vadd.f32 %v5022, %v5023
        %v5025 = vrot.slane %v4987, 4
        %v5026 = vadd.f32 %v4987, %v5025
        %v5027 = vrot.slane %v5026, 2
        %v5028 = vadd.f32 %v5026, %v5027
        %v5029 = vrot.slane %v5028, 1
        %v5030 = vadd.f32 %v5028, %v5029
        %v5031 = vrot.slane %v4988, 4
        %v5032 = vadd.f32 %v4988, %v5031
        %v5033 = vrot.slane %v5032, 2
        %v5034 = vadd.f32 %v5032, %v5033
        %v5035 = vrot.slane %v5034, 1
        %v5036 = vadd.f32 %v5034, %v5035
        %v5045 = vsel %vm696, %v5000, %v4994
        %v5046 = vsel %vm698, %v5006, %v5045
        %v5047 = vsel %vm700, %v5012, %v5046
        %v5048 = vsel %vm702, %v5018, %v5047
        %v5049 = vsel %vm704, %v5024, %v5048
        %v5050 = vsel %vm706, %v5030, %v5049
        %v5051 = vsel %vm708, %v5036, %v5050
        %v5053 = vpack.c.bf16 %v5051, %v5051
        %v5054 = vld [vmem:[%s10] sm:$0xff]
        %v5055 = vld [vmem:[%s10 + $0x8] sm:$0xff]
        %v5056 = vld [vmem:[%s10 + $0x10] sm:$0xff]
        %v5057 = vld [vmem:[%s10 + $0x18] sm:$0xff]
        %v5058 = vld [vmem:[%s10 + $0x20] sm:$0xff]
        %v5059 = vld [vmem:[%s10 + $0x28] sm:$0xff]
        %v5060 = vld [vmem:[%s10 + $0x30] sm:$0xff]
        %v5061 = vld [vmem:[%s10 + $0x38] sm:$0xff]
        %v5062 = vld [vmem:[%s10 + $0x40] sm:$0xff]
        %v5063 = vld [vmem:[%s10 + $0x48] sm:$0xff]
        %v5064 = vld [vmem:[%s10 + $0x50] sm:$0xff]
        %v5065 = vld [vmem:[%s10 + $0x58] sm:$0xff]
        %v5066 = vld [vmem:[%s10 + $0x60] sm:$0xff]
        %v5067 = vld [vmem:[%s10 + $0x68] sm:$0xff]
        %v5068 = vld [vmem:[%s10 + $0x70] sm:$0xff]
        %v5069 = vld [vmem:[%s10 + $0x78] sm:$0xff]
        %v5070 = vld [vmem:[%s10 + $0x80] sm:$0xff]
        %v5071 = vld [vmem:[%s10 + $0x88] sm:$0xff]
        %v5072 = vld [vmem:[%s10 + $0x90] sm:$0xff]
        %v5073 = vld [vmem:[%s10 + $0x98] sm:$0xff]
        %v5074 = vld [vmem:[%s10 + $0xa0] sm:$0xff]
        %v5075 = vld [vmem:[%s10 + $0xa8] sm:$0xff]
        %v5076 = vld [vmem:[%s10 + $0xb0] sm:$0xff]
        %v5077 = vld [vmem:[%s10 + $0xb8] sm:$0xff]
        %v5078 = vld [vmem:[%s10 + $0xc0] sm:$0xff]
        %v5079 = vld [vmem:[%s10 + $0xc8] sm:$0xff]
        %v5080 = vld [vmem:[%s10 + $0xd0] sm:$0xff]
        %v5081 = vld [vmem:[%s10 + $0xd8] sm:$0xff]
        %v5082 = vld [vmem:[%s10 + $0xe0] sm:$0xff]
        %v5083 = vld [vmem:[%s10 + $0xe8] sm:$0xff]
        %v5084 = vld [vmem:[%s10 + $0xf0] sm:$0xff]
        %v5085 = vld [vmem:[%s10 + $0xf8] sm:$0xff]
        %v5086 = vld [vmem:[%s10 + $0x100] sm:$0xff]
        %v5087 = vld [vmem:[%s10 + $0x108] sm:$0xff]
        %v5088 = vld [vmem:[%s10 + $0x110] sm:$0xff]
        %v5089 = vld [vmem:[%s10 + $0x118] sm:$0xff]
        %v5090 = vld [vmem:[%s10 + $0x120] sm:$0xff]
        %v5091 = vld [vmem:[%s10 + $0x128] sm:$0xff]
        %v5092 = vld [vmem:[%s10 + $0x130] sm:$0xff]
        %v5093 = vld [vmem:[%s10 + $0x138] sm:$0xff]
        %v5094 = vld [vmem:[%s10 + $0x140] sm:$0xff]
        %v5095 = vld [vmem:[%s10 + $0x148] sm:$0xff]
        %v5096 = vld [vmem:[%s10 + $0x150] sm:$0xff]
        %v5097 = vld [vmem:[%s10 + $0x158] sm:$0xff]
        %v5098 = vld [vmem:[%s10 + $0x160] sm:$0xff]
        %v5099 = vld [vmem:[%s10 + $0x168] sm:$0xff]
        %v5100 = vld [vmem:[%s10 + $0x170] sm:$0xff]
        %v5101 = vld [vmem:[%s10 + $0x178] sm:$0xff]
        %v5102 = vld [vmem:[%s10 + $0x180] sm:$0xff]
        %v5103 = vld [vmem:[%s10 + $0x188] sm:$0xff]
        %v5104 = vld [vmem:[%s10 + $0x190] sm:$0xff]
        %v5105 = vld [vmem:[%s10 + $0x198] sm:$0xff]
        %v5106 = vld [vmem:[%s10 + $0x1a0] sm:$0xff]
        %v5107 = vld [vmem:[%s10 + $0x1a8] sm:$0xff]
        %v5108 = vld [vmem:[%s10 + $0x1b0] sm:$0xff]
        %v5109 = vld [vmem:[%s10 + $0x1b8] sm:$0xff]
        %v5110 = vld [vmem:[%s10 + $0x1c0] sm:$0xff]
        %v5111 = vld [vmem:[%s10 + $0x1c8] sm:$0xff]
        %v5112 = vld [vmem:[%s10 + $0x1d0] sm:$0xff]
        %v5113 = vld [vmem:[%s10 + $0x1d8] sm:$0xff]
        %v5114 = vld [vmem:[%s10 + $0x1e0] sm:$0xff]
        %v5115 = vld [vmem:[%s10 + $0x1e8] sm:$0xff]
        %v5116 = vld [vmem:[%s10 + $0x1f0] sm:$0xff]
        %v5117 = vld [vmem:[%s10 + $0x1f8] sm:$0xff]
        %s5118 = scalar_lea.vmem [#allocation2], 96
        %v5119 = vld [vmem:[%s5118] sm:$0xff]
        %v5120 = vld [vmem:[%s5118 + $0x8] sm:$0xff]
        %v5121 = vld [vmem:[%s5118 + $0x10] sm:$0xff]
        %v5122 = vld [vmem:[%s5118 + $0x18] sm:$0xff]
        %v5187 = vunpack.c.l.b16 %v5054
        %v5188 = vunpack.c.h.b16 %v5054
        %v5189 = vunpack.c.l.b16 %v5055
        %v5190 = vunpack.c.h.b16 %v5055
        %v5191 = vunpack.c.l.b16 %v5056
        %v5192 = vunpack.c.h.b16 %v5056
        %v5193 = vunpack.c.l.b16 %v5057
        %v5194 = vunpack.c.h.b16 %v5057
        %v5195 = vunpack.c.l.b16 %v5058
        %v5196 = vunpack.c.h.b16 %v5058
        %v5197 = vunpack.c.l.b16 %v5059
        %v5198 = vunpack.c.h.b16 %v5059
        %v5199 = vunpack.c.l.b16 %v5060
        %v5200 = vunpack.c.h.b16 %v5060
        %v5201 = vunpack.c.l.b16 %v5061
        %v5202 = vunpack.c.h.b16 %v5061
        %v5203 = vunpack.c.l.b16 %v5062
        %v5204 = vunpack.c.h.b16 %v5062
        %v5205 = vunpack.c.l.b16 %v5063
        %v5206 = vunpack.c.h.b16 %v5063
        %v5207 = vunpack.c.l.b16 %v5064
        %v5208 = vunpack.c.h.b16 %v5064
        %v5209 = vunpack.c.l.b16 %v5065
        %v5210 = vunpack.c.h.b16 %v5065
        %v5211 = vunpack.c.l.b16 %v5066
        %v5212 = vunpack.c.h.b16 %v5066
        %v5213 = vunpack.c.l.b16 %v5067
        %v5214 = vunpack.c.h.b16 %v5067
        %v5215 = vunpack.c.l.b16 %v5068
        %v5216 = vunpack.c.h.b16 %v5068
        %v5217 = vunpack.c.l.b16 %v5069
        %v5218 = vunpack.c.h.b16 %v5069
        %v5219 = vunpack.c.l.b16 %v5070
        %v5220 = vunpack.c.h.b16 %v5070
        %v5221 = vunpack.c.l.b16 %v5071
        %v5222 = vunpack.c.h.b16 %v5071
        %v5223 = vunpack.c.l.b16 %v5072
        %v5224 = vunpack.c.h.b16 %v5072
        %v5225 = vunpack.c.l.b16 %v5073
        %v5226 = vunpack.c.h.b16 %v5073
        %v5227 = vunpack.c.l.b16 %v5074
        %v5228 = vunpack.c.h.b16 %v5074
        %v5229 = vunpack.c.l.b16 %v5075
        %v5230 = vunpack.c.h.b16 %v5075
        %v5231 = vunpack.c.l.b16 %v5076
        %v5232 = vunpack.c.h.b16 %v5076
        %v5233 = vunpack.c.l.b16 %v5077
        %v5234 = vunpack.c.h.b16 %v5077
        %v5235 = vunpack.c.l.b16 %v5078
        %v5236 = vunpack.c.h.b16 %v5078
        %v5237 = vunpack.c.l.b16 %v5079
        %v5238 = vunpack.c.h.b16 %v5079
        %v5239 = vunpack.c.l.b16 %v5080
        %v5240 = vunpack.c.h.b16 %v5080
        %v5241 = vunpack.c.l.b16 %v5081
        %v5242 = vunpack.c.h.b16 %v5081
        %v5243 = vunpack.c.l.b16 %v5082
        %v5244 = vunpack.c.h.b16 %v5082
        %v5245 = vunpack.c.l.b16 %v5083
        %v5246 = vunpack.c.h.b16 %v5083
        %v5247 = vunpack.c.l.b16 %v5084
        %v5248 = vunpack.c.h.b16 %v5084
        %v5249 = vunpack.c.l.b16 %v5085
        %v5250 = vunpack.c.h.b16 %v5085
        %v5251 = vunpack.c.l.b16 %v5086
        %v5252 = vunpack.c.h.b16 %v5086
        %v5253 = vunpack.c.l.b16 %v5087
        %v5254 = vunpack.c.h.b16 %v5087
        %v5255 = vunpack.c.l.b16 %v5088
        %v5256 = vunpack.c.h.b16 %v5088
        %v5257 = vunpack.c.l.b16 %v5089
        %v5258 = vunpack.c.h.b16 %v5089
        %v5259 = vunpack.c.l.b16 %v5090
        %v5260 = vunpack.c.h.b16 %v5090
        %v5261 = vunpack.c.l.b16 %v5091
        %v5262 = vunpack.c.h.b16 %v5091
        %v5263 = vunpack.c.l.b16 %v5092
        %v5264 = vunpack.c.h.b16 %v5092
        %v5265 = vunpack.c.l.b16 %v5093
        %v5266 = vunpack.c.h.b16 %v5093
        %v5267 = vunpack.c.l.b16 %v5094
        %v5268 = vunpack.c.h.b16 %v5094
        %v5269 = vunpack.c.l.b16 %v5095
        %v5270 = vunpack.c.h.b16 %v5095
        %v5271 = vunpack.c.l.b16 %v5096
        %v5272 = vunpack.c.h.b16 %v5096
        %v5273 = vunpack.c.l.b16 %v5097
        %v5274 = vunpack.c.h.b16 %v5097
        %v5275 = vunpack.c.l.b16 %v5098
        %v5276 = vunpack.c.h.b16 %v5098
        %v5277 = vunpack.c.l.b16 %v5099
        %v5278 = vunpack.c.h.b16 %v5099
        %v5279 = vunpack.c.l.b16 %v5100
        %v5280 = vunpack.c.h.b16 %v5100
        %v5281 = vunpack.c.l.b16 %v5101
        %v5282 = vunpack.c.h.b16 %v5101
        %v5283 = vunpack.c.l.b16 %v5102
        %v5284 = vunpack.c.h.b16 %v5102
        %v5285 = vunpack.c.l.b16 %v5103
        %v5286 = vunpack.c.h.b16 %v5103
        %v5287 = vunpack.c.l.b16 %v5104
        %v5288 = vunpack.c.h.b16 %v5104
        %v5289 = vunpack.c.l.b16 %v5105
        %v5290 = vunpack.c.h.b16 %v5105
        %v5291 = vunpack.c.l.b16 %v5106
        %v5292 = vunpack.c.h.b16 %v5106
        %v5293 = vunpack.c.l.b16 %v5107
        %v5294 = vunpack.c.h.b16 %v5107
        %v5295 = vunpack.c.l.b16 %v5108
        %v5296 = vunpack.c.h.b16 %v5108
        %v5297 = vunpack.c.l.b16 %v5109
        %v5298 = vunpack.c.h.b16 %v5109
        %v5299 = vunpack.c.l.b16 %v5110
        %v5300 = vunpack.c.h.b16 %v5110
        %v5301 = vunpack.c.l.b16 %v5111
        %v5302 = vunpack.c.h.b16 %v5111
        %v5303 = vunpack.c.l.b16 %v5112
        %v5304 = vunpack.c.h.b16 %v5112
        %v5305 = vunpack.c.l.b16 %v5113
        %v5306 = vunpack.c.h.b16 %v5113
        %v5307 = vunpack.c.l.b16 %v5114
        %v5308 = vunpack.c.h.b16 %v5114
        %v5309 = vunpack.c.l.b16 %v5115
        %v5310 = vunpack.c.h.b16 %v5115
        %v5311 = vunpack.c.l.b16 %v5116
        %v5312 = vunpack.c.h.b16 %v5116
        %v5313 = vunpack.c.l.b16 %v5117
        %v5314 = vunpack.c.h.b16 %v5117
        %v5315 = vpack.c.b16 %v5191, %v5187
        %v5316 = vpack.c.b16 %v5192, %v5188
        %v5317 = vpack.c.b16 %v5193, %v5189
        %v5318 = vpack.c.b16 %v5194, %v5190
        %v5319 = vpack.c.b16 %v5199, %v5195
        %v5320 = vpack.c.b16 %v5200, %v5196
        %v5321 = vpack.c.b16 %v5201, %v5197
        %v5322 = vpack.c.b16 %v5202, %v5198
        %v5323 = vpack.c.b16 %v5207, %v5203
        %v5324 = vpack.c.b16 %v5208, %v5204
        %v5325 = vpack.c.b16 %v5209, %v5205
        %v5326 = vpack.c.b16 %v5210, %v5206
        %v5327 = vpack.c.b16 %v5215, %v5211
        %v5328 = vpack.c.b16 %v5216, %v5212
        %v5329 = vpack.c.b16 %v5217, %v5213
        %v5330 = vpack.c.b16 %v5218, %v5214
        %v5331 = vpack.c.b16 %v5223, %v5219
        %v5332 = vpack.c.b16 %v5224, %v5220
        %v5333 = vpack.c.b16 %v5225, %v5221
        %v5334 = vpack.c.b16 %v5226, %v5222
        %v5335 = vpack.c.b16 %v5231, %v5227
        %v5336 = vpack.c.b16 %v5232, %v5228
        %v5337 = vpack.c.b16 %v5233, %v5229
        %v5338 = vpack.c.b16 %v5234, %v5230
        %v5339 = vpack.c.b16 %v5239, %v5235
        %v5340 = vpack.c.b16 %v5240, %v5236
        %v5341 = vpack.c.b16 %v5241, %v5237
        %v5342 = vpack.c.b16 %v5242, %v5238
        %v5343 = vpack.c.b16 %v5247, %v5243
        %v5344 = vpack.c.b16 %v5248, %v5244
        %v5345 = vpack.c.b16 %v5249, %v5245
        %v5346 = vpack.c.b16 %v5250, %v5246
        %v5347 = vpack.c.b16 %v5255, %v5251
        %v5348 = vpack.c.b16 %v5256, %v5252
        %v5349 = vpack.c.b16 %v5257, %v5253
        %v5350 = vpack.c.b16 %v5258, %v5254
        %v5351 = vpack.c.b16 %v5263, %v5259
        %v5352 = vpack.c.b16 %v5264, %v5260
        %v5353 = vpack.c.b16 %v5265, %v5261
        %v5354 = vpack.c.b16 %v5266, %v5262
        %v5355 = vpack.c.b16 %v5271, %v5267
        %v5356 = vpack.c.b16 %v5272, %v5268
        %v5357 = vpack.c.b16 %v5273, %v5269
        %v5358 = vpack.c.b16 %v5274, %v5270
        %v5359 = vpack.c.b16 %v5279, %v5275
        %v5360 = vpack.c.b16 %v5280, %v5276
        %v5361 = vpack.c.b16 %v5281, %v5277
        %v5362 = vpack.c.b16 %v5282, %v5278
        %v5363 = vpack.c.b16 %v5287, %v5283
        %v5364 = vpack.c.b16 %v5288, %v5284
        %v5365 = vpack.c.b16 %v5289, %v5285
        %v5366 = vpack.c.b16 %v5290, %v5286
        %v5367 = vpack.c.b16 %v5295, %v5291
        %v5368 = vpack.c.b16 %v5296, %v5292
        %v5369 = vpack.c.b16 %v5297, %v5293
        %v5370 = vpack.c.b16 %v5298, %v5294
        %v5371 = vpack.c.b16 %v5303, %v5299
        %v5372 = vpack.c.b16 %v5304, %v5300
        %v5373 = vpack.c.b16 %v5305, %v5301
        %v5374 = vpack.c.b16 %v5306, %v5302
        %v5375 = vpack.c.b16 %v5311, %v5307
        %v5376 = vpack.c.b16 %v5312, %v5308
        %v5377 = vpack.c.b16 %v5313, %v5309
        %v5378 = vpack.c.b16 %v5314, %v5310
        %5443 = vmatprep.subr.bf16.mxu0 %v5316
        %5444 = vmatpush1.bf16.msra.mxu0 %v5315
        %5445 = vmatprep.subr.bf16.mxu0 %v5320
        %5446 = vmatpush1.bf16.msra.mxu0 %v5319
        %5447 = vmatprep.subr.bf16.mxu0 %v5324
        %5448 = vmatpush1.bf16.msra.mxu0 %v5323
        %5449 = vmatprep.subr.bf16.mxu0 %v5328
        %5450 = vmatpush1.bf16.msra.mxu0 %v5327
        %5451 = vmatprep.subr.bf16.mxu0 %v5332
        %5452 = vmatpush1.bf16.msra.mxu0 %v5331
        %5453 = vmatprep.subr.bf16.mxu0 %v5336
        %5454 = vmatpush1.bf16.msra.mxu0 %v5335
        %5455 = vmatprep.subr.bf16.mxu0 %v5340
        %5456 = vmatpush1.bf16.msra.mxu0 %v5339
        %5457 = vmatprep.subr.bf16.mxu0 %v5344
        %5458 = vmatpush1.bf16.msra.mxu0 %v5343
        %5459 = vmatprep.subr.bf16.mxu0 %v5348
        %5460 = vmatpush1.bf16.msra.mxu0 %v5347
        %5461 = vmatprep.subr.bf16.mxu0 %v5352
        %5462 = vmatpush1.bf16.msra.mxu0 %v5351
        %5463 = vmatprep.subr.bf16.mxu0 %v5356
        %5464 = vmatpush1.bf16.msra.mxu0 %v5355
        %5465 = vmatprep.subr.bf16.mxu0 %v5360
        %5466 = vmatpush1.bf16.msra.mxu0 %v5359
        %5467 = vmatprep.subr.bf16.mxu0 %v5364
        %5468 = vmatpush1.bf16.msra.mxu0 %v5363
        %5469 = vmatprep.subr.bf16.mxu0 %v5368
        %5470 = vmatpush1.bf16.msra.mxu0 %v5367
        %5471 = vmatprep.subr.bf16.mxu0 %v5372
        %5472 = vmatpush1.bf16.msra.mxu0 %v5371
        %5473 = vmatprep.subr.bf16.mxu0 %v5376
        %5474 = vmatpush1.bf16.msra.mxu0 %v5375
        %5475 = vmatprep.mubr.bf16.mxu0 %v4432
        %5476 = vmatmul.mubr.bf16.gmra.mrb[0].mxu0 %v5053
        %v5477 = vpop.f32.mrb[0].mxu0
        %v5478 = vadd.f32 %v5119, %v5477
        %v5479 = vpop.f32.mrb[0].mxu0
        %v5480 = vadd.f32 %v5120, %v5479
        %v5481 = vpop.f32.mrb[0].mxu0
        %v5482 = vpop.f32.mrb[0].mxu0
        %5483 = vdwg.mxu0
        %5484 = vmatprep.subr.bf16.mxu0 %v5318
        %5485 = vmatpush1.bf16.msra.mxu0 %v5317
        %5486 = vmatprep.subr.bf16.mxu0 %v5322
        %5487 = vmatpush1.bf16.msra.mxu0 %v5321
        %5488 = vmatprep.subr.bf16.mxu0 %v5326
        %5489 = vmatpush1.bf16.msra.mxu0 %v5325
        %5490 = vmatprep.subr.bf16.mxu0 %v5330
        %5491 = vmatpush1.bf16.msra.mxu0 %v5329
        %5492 = vmatprep.subr.bf16.mxu0 %v5334
        %5493 = vmatpush1.bf16.msra.mxu0 %v5333
        %5494 = vmatprep.subr.bf16.mxu0 %v5338
        %5495 = vmatpush1.bf16.msra.mxu0 %v5337
        %5496 = vmatprep.subr.bf16.mxu0 %v5342
        %5497 = vmatpush1.bf16.msra.mxu0 %v5341
        %5498 = vmatprep.subr.bf16.mxu0 %v5346
        %5499 = vmatpush1.bf16.msra.mxu0 %v5345
        %5500 = vmatprep.subr.bf16.mxu0 %v5350
        %5501 = vmatpush1.bf16.msra.mxu0 %v5349
        %5502 = vmatprep.subr.bf16.mxu0 %v5354
        %5503 = vmatpush1.bf16.msra.mxu0 %v5353
        %5504 = vmatprep.subr.bf16.mxu0 %v5358
        %5505 = vmatpush1.bf16.msra.mxu0 %v5357
        %5506 = vmatprep.subr.bf16.mxu0 %v5362
        %5507 = vmatpush1.bf16.msra.mxu0 %v5361
        %5508 = vmatprep.subr.bf16.mxu0 %v5366
        %5509 = vmatpush1.bf16.msra.mxu0 %v5365
        %5510 = vmatprep.subr.bf16.mxu0 %v5370
        %5511 = vmatpush1.bf16.msra.mxu0 %v5369
        %5512 = vmatprep.subr.bf16.mxu0 %v5374
        %5513 = vmatpush1.bf16.msra.mxu0 %v5373
        %5514 = vmatprep.subr.bf16.mxu0 %v5378
        %5515 = vmatpush1.bf16.msra.mxu0 %v5377
        %5516 = vmatprep.mubr.bf16.mxu0 %v4432
        %5517 = vmatmul.mubr.bf16.gmra.mrb[0].mxu0 %v5053
        %v5518 = vpop.f32.mrb[0].mxu0
        %v5519 = vadd.f32 %v5121, %v5518
        %v5520 = vpop.f32.mrb[0].mxu0
        %v5521 = vadd.f32 %v5122, %v5520
        %v5522 = vpop.f32.mrb[0].mxu0
        %v5523 = vpop.f32.mrb[0].mxu0
        %5524 = vdwg.mxu0
        %v5525 = vxor.u32 %v5478, 2147483648
        %v5526 = vmul.f32 %v5525, 1.442695
        %v5527 = vpow.pop %v5526
        %v5528 = vadd.f32 %v5527, 1.0
        %v5529 = vrcp.pop %v5528
        %v5530 = vmul.f32 1.0, %v5529
        %v5531 = vxor.u32 %v5480, 2147483648
        %v5532 = vmul.f32 %v5531, 1.442695
        %v5533 = vpow.pop %v5532
        %v5534 = vadd.f32 %v5533, 1.0
        %v5535 = vrcp.pop %v5534
        %v5536 = vmul.f32 1.0, %v5535
        %v5537 = vtanh.pop %v5519
        %v5538 = vxor.u32 %v5521, 2147483648
        %v5539 = vmul.f32 %v5538, 1.442695
        %v5540 = vpow.pop %v5539
        %v5541 = vadd.f32 %v5540, 1.0
        %v5542 = vrcp.pop %v5541
        %v5543 = vmul.f32 1.0, %v5542
        %v5544 = vmul.f32 %v5536, %v4429
        %v5545 = vmul.f32 %v5530, %v5537
        %v5546 = vadd.f32 %v5544, %v5545
        %v5547 = vtanh.pop %v5546
        %v5548 = vmul.f32 %v5543, %v5547
        %v5549 = vpack.c.bf16 %v5548, %v5548
        %v5550 = vld [vmem:[%s13] sm:$0xf]
        %v5551 = vld [vmem:[%s13 + $0x4] sm:$0xf]
        %v5552 = vld [vmem:[%s13 + $0x8] sm:$0xf]
        %v5553 = vld [vmem:[%s13 + $0xc] sm:$0xf]
        %v5554 = vld [vmem:[%s13 + $0x10] sm:$0xf]
        %v5555 = vld [vmem:[%s13 + $0x14] sm:$0xf]
        %v5556 = vld [vmem:[%s13 + $0x18] sm:$0xf]
        %v5557 = vld [vmem:[%s13 + $0x1c] sm:$0xf]
        %v5558 = vld [vmem:[%s13 + $0x20] sm:$0xf]
        %v5559 = vld [vmem:[%s13 + $0x24] sm:$0xf]
        %v5560 = vld [vmem:[%s13 + $0x28] sm:$0xf]
        %v5561 = vld [vmem:[%s13 + $0x2c] sm:$0xf]
        %v5562 = vld [vmem:[%s13 + $0x30] sm:$0xf]
        %v5563 = vld [vmem:[%s13 + $0x34] sm:$0xf]
        %v5564 = vld [vmem:[%s13 + $0x38] sm:$0xf]
        %v5565 = vld [vmem:[%s13 + $0x3c] sm:$0xf]
        %v5566 = vld [vmem:[%s14] sm:$0x1]
        %v5568 = vlaneseq
        %v5569 = vshrl.u32 %v5568, 7
        %v5570 = vsub.s32 0, %v5569
        %v5571 = vrot.slane %v5566, %v5570
        %v5589 = vunpack.c.l.b16 %v5550
        %v5590 = vunpack.c.l.b16 %v5551
        %v5591 = vunpack.c.l.b16 %v5552
        %v5592 = vunpack.c.l.b16 %v5553
        %v5593 = vunpack.c.l.b16 %v5554
        %v5594 = vunpack.c.l.b16 %v5555
        %v5595 = vunpack.c.l.b16 %v5556
        %v5596 = vunpack.c.l.b16 %v5557
        %v5597 = vunpack.c.l.b16 %v5558
        %v5598 = vunpack.c.l.b16 %v5559
        %v5599 = vunpack.c.l.b16 %v5560
        %v5600 = vunpack.c.l.b16 %v5561
        %v5601 = vunpack.c.l.b16 %v5562
        %v5602 = vunpack.c.l.b16 %v5563
        %v5603 = vunpack.c.l.b16 %v5564
        %v5604 = vunpack.c.l.b16 %v5565
        %v5605 = vpack.c.b16 %v5590, %v5589
        %v5606 = vpack.c.b16 %v5592, %v5591
        %v5607 = vpack.c.b16 %v5594, %v5593
        %v5608 = vpack.c.b16 %v5596, %v5595
        %v5609 = vpack.c.b16 %v5598, %v5597
        %v5610 = vpack.c.b16 %v5600, %v5599
        %v5611 = vpack.c.b16 %v5602, %v5601
        %v5612 = vpack.c.b16 %v5604, %v5603
        %5621 = vmatprep.subr.bf16.mxu0 0
        %5622 = vmatpush1.bf16.msra.mxu0 %v5605
        %5623 = vmatprep.subr.bf16.mxu0 0
        %5624 = vmatpush1.bf16.msra.mxu0 %v5606
        %5625 = vmatprep.subr.bf16.mxu0 0
        %5626 = vmatpush1.bf16.msra.mxu0 %v5607
        %5627 = vmatprep.subr.bf16.mxu0 0
        %5628 = vmatpush1.bf16.msra.mxu0 %v5608
        %5629 = vmatprep.subr.bf16.mxu0 0
        %5630 = vmatpush1.bf16.msra.mxu0 %v5609
        %5631 = vmatprep.subr.bf16.mxu0 0
        %5632 = vmatpush1.bf16.msra.mxu0 %v5610
        %5633 = vmatprep.subr.bf16.mxu0 0
        %5634 = vmatpush1.bf16.msra.mxu0 %v5611
        %5635 = vmatprep.subr.bf16.mxu0 0
        %5636 = vmatpush1.bf16.msra.mxu0 %v5612
        %5637 = vmatprep.subr.bf16.mxu0 0
        %5638 = vmatpush1.bf16.msra.mxu0 0
        %5639 = vmatprep.subr.bf16.mxu0 0
        %5640 = vmatpush1.bf16.msra.mxu0 0
        %5641 = vmatprep.subr.bf16.mxu0 0
        %5642 = vmatpush1.bf16.msra.mxu0 0
        %5643 = vmatprep.subr.bf16.mxu0 0
        %5644 = vmatpush1.bf16.msra.mxu0 0
        %5645 = vmatprep.subr.bf16.mxu0 0
        %5646 = vmatpush1.bf16.msra.mxu0 0
        %5647 = vmatprep.subr.bf16.mxu0 0
        %5648 = vmatpush1.bf16.msra.mxu0 0
        %5649 = vmatprep.subr.bf16.mxu0 0
        %5650 = vmatpush1.bf16.msra.mxu0 0
        %5651 = vmatprep.subr.bf16.mxu0 0
        %5652 = vmatpush1.bf16.msra.mxu0 0
        %5653 = vmatprep.mubr.bf16.mxu0 0
        %5654 = vmatmul.mubr.bf16.gmra.mrb[0].mxu0 %v5549
        %v5655 = vpop.f32.mrb[0].mxu0
        %v5656 = vadd.f32 %v5571, %v5655
        %v5657 = vpop.f32.mrb[0].mxu0
        %v5658 = vpop.f32.mrb[0].mxu0
        %v5659 = vpop.f32.mrb[0].mxu0
        %5660 = vdwg.mxu0
        %s5661 = scalar_lea.vmem %s586, 24 [#allocation4]
        %5662 = vst [vmem:[%s5661] sm:$0xff] %v5656
        %v5671 = vlaneseq
        %v5672 = vshrl.u32 %v5671, 7
        %v5673 = vsub.s32 %v2319, %v5672
        %v5674 = vrot.slane %v4965, %v5673
        %v5675 = vlaneseq
        %v5676 = vshrl.u32 %v5675, 7
        %v5677 = vsub.s32 %v2319, %v5676
        %v5678 = vrot.slane %v4966, %v5677
        %v5679 = vlaneseq
        %v5680 = vshrl.u32 %v5679, 7
        %v5681 = vsub.s32 %v2319, %v5680
        %v5682 = vrot.slane %v4967, %v5681
        %v5683 = vlaneseq
        %v5684 = vshrl.u32 %v5683, 7
        %v5685 = vsub.s32 %v2319, %v5684
        %v5686 = vrot.slane %v4968, %v5685
        %v5687 = vlaneseq
        %v5688 = vshrl.u32 %v5687, 7
        %v5689 = vsub.s32 %v2319, %v5688
        %v5690 = vrot.slane %v4969, %v5689
        %v5691 = vlaneseq
        %v5692 = vshrl.u32 %v5691, 7
        %v5693 = vsub.s32 %v2319, %v5692
        %v5694 = vrot.slane %v4970, %v5693
        %v5695 = vlaneseq
        %v5696 = vshrl.u32 %v5695, 7
        %v5697 = vsub.s32 %v2319, %v5696
        %v5698 = vrot.slane %v4971, %v5697
        %v5699 = vlaneseq
        %v5700 = vshrl.u32 %v5699, 7
        %v5701 = vsub.s32 %v2319, %v5700
        %v5702 = vrot.slane %v4972, %v5701
        %v5703 = vsel %vm696, %v5678, %v5674
        %v5704 = vsel %vm698, %v5682, %v5703
        %v5705 = vsel %vm700, %v5686, %v5704
        %v5706 = vsel %vm702, %v5690, %v5705
        %v5707 = vsel %vm704, %v5694, %v5706
        %v5708 = vsel %vm706, %v5698, %v5707
        %v5709 = vsel %vm708, %v5702, %v5708
        %s5711 = scalar_lea.vmem %s592, 24 [#allocation6]
        %5712 = vst.msk [vmem:[%s5711] sm:$0xff] %vm2360, %v5709
        %v5713 = vld [vmem:[%s8] sm:$0xf]
        %v5714 = vld [vmem:[%s8 + $0x4] sm:$0xf]
        %v5715 = vld [vmem:[%s8 + $0x8] sm:$0xf]
        %v5716 = vld [vmem:[%s8 + $0xc] sm:$0xf]
        %v5717 = vld [vmem:[%s8 + $0x10] sm:$0xf]
        %v5718 = vld [vmem:[%s8 + $0x14] sm:$0xf]
        %v5719 = vld [vmem:[%s8 + $0x18] sm:$0xf]
        %v5720 = vld [vmem:[%s8 + $0x1c] sm:$0xf]
        %v5721 = vld [vmem:[%s8 + $0x20] sm:$0xf]
        %v5722 = vld [vmem:[%s8 + $0x24] sm:$0xf]
        %v5723 = vld [vmem:[%s8 + $0x28] sm:$0xf]
        %v5724 = vld [vmem:[%s8 + $0x2c] sm:$0xf]
        %v5725 = vld [vmem:[%s8 + $0x30] sm:$0xf]
        %v5726 = vld [vmem:[%s8 + $0x34] sm:$0xf]
        %v5727 = vld [vmem:[%s8 + $0x38] sm:$0xf]
        %v5728 = vld [vmem:[%s8 + $0x3c] sm:$0xf]
        %v5745 = vunpack.c.l.b16 %v5713
        %v5746 = vunpack.c.l.b16 %v5714
        %v5747 = vunpack.c.l.b16 %v5715
        %v5748 = vunpack.c.l.b16 %v5716
        %v5749 = vunpack.c.l.b16 %v5717
        %v5750 = vunpack.c.l.b16 %v5718
        %v5751 = vunpack.c.l.b16 %v5719
        %v5752 = vunpack.c.l.b16 %v5720
        %v5753 = vunpack.c.l.b16 %v5721
        %v5754 = vunpack.c.l.b16 %v5722
        %v5755 = vunpack.c.l.b16 %v5723
        %v5756 = vunpack.c.l.b16 %v5724
        %v5757 = vunpack.c.l.b16 %v5725
        %v5758 = vunpack.c.l.b16 %v5726
        %v5759 = vunpack.c.l.b16 %v5727
        %v5760 = vunpack.c.l.b16 %v5728
        %v5761 = vpack.c.b16 %v5746, %v5745
        %v5762 = vpack.c.b16 %v5748, %v5747
        %v5763 = vpack.c.b16 %v5750, %v5749
        %v5764 = vpack.c.b16 %v5752, %v5751
        %v5765 = vpack.c.b16 %v5754, %v5753
        %v5766 = vpack.c.b16 %v5756, %v5755
        %v5767 = vpack.c.b16 %v5758, %v5757
        %v5768 = vpack.c.b16 %v5760, %v5759
        %5777 = vmatprep.subr.bf16.mxu0 0
        %5778 = vmatpush1.bf16.msra.mxu0 %v5761
        %5779 = vmatprep.subr.bf16.mxu0 0
        %5780 = vmatpush1.bf16.msra.mxu0 %v5762
        %5781 = vmatprep.subr.bf16.mxu0 0
        %5782 = vmatpush1.bf16.msra.mxu0 %v5763
        %5783 = vmatprep.subr.bf16.mxu0 0
        %5784 = vmatpush1.bf16.msra.mxu0 %v5764
        %5785 = vmatprep.subr.bf16.mxu0 0
        %5786 = vmatpush1.bf16.msra.mxu0 %v5765
        %5787 = vmatprep.subr.bf16.mxu0 0
        %5788 = vmatpush1.bf16.msra.mxu0 %v5766
        %5789 = vmatprep.subr.bf16.mxu0 0
        %5790 = vmatpush1.bf16.msra.mxu0 %v5767
        %5791 = vmatprep.subr.bf16.mxu0 0
        %5792 = vmatpush1.bf16.msra.mxu0 %v5768
        %5793 = vmatprep.subr.bf16.mxu0 0
        %5794 = vmatpush1.bf16.msra.mxu0 0
        %5795 = vmatprep.subr.bf16.mxu0 0
        %5796 = vmatpush1.bf16.msra.mxu0 0
        %5797 = vmatprep.subr.bf16.mxu0 0
        %5798 = vmatpush1.bf16.msra.mxu0 0
        %5799 = vmatprep.subr.bf16.mxu0 0
        %5800 = vmatpush1.bf16.msra.mxu0 0
        %5801 = vmatprep.subr.bf16.mxu0 0
        %5802 = vmatpush1.bf16.msra.mxu0 0
        %5803 = vmatprep.subr.bf16.mxu0 0
        %5804 = vmatpush1.bf16.msra.mxu0 0
        %5805 = vmatprep.subr.bf16.mxu0 0
        %5806 = vmatpush1.bf16.msra.mxu0 0
        %5807 = vmatprep.subr.bf16.mxu0 0
        %5808 = vmatpush1.bf16.msra.mxu0 0
        %5809 = vmatprep.mubr.bf16.mxu0 0
        %5810 = vmatmul.mubr.bf16.gmra.mrb[0].mxu0 %v5549
        %v5811 = vpop.f32.mrb[0].mxu0
        %v5812 = vadd.f32 0.0, %v5811
        %v5813 = vpop.f32.mrb[0].mxu0
        %v5814 = vpop.f32.mrb[0].mxu0
        %v5815 = vpop.f32.mrb[0].mxu0
        %5816 = vdwg.mxu0
        %v5818 = vcombine.high %v5812, %v5812
        %v5820 = vunpack.c.l.s4 1966171168
        %v5821 = vunpack.c.0.s8 %v5820
        %v5822 = vlaneseq
        %v5823 = vshrl.u32 %v5822, 7
        %v5824 = vsub.s32 %v5821, %v5823
        %v5825 = vrot.slane %v5812, %v5824
        %v5827 = vunpack.c.l.s4 1966171168
        %v5828 = vunpack.c.0.s8 %v5827
        %v5829 = vlaneseq
        %v5830 = vshrl.u32 %v5829, 7
        %v5831 = vsub.s32 %v5828, %v5830
        %v5832 = vrot.slane %v5818, %v5831
        %v5833 = vcombine.high %v5825, %v5825
        %v5834 = vcombine.high %v5832, %v5832
        %v5836 = vunpack.c.l.s4 1966171168
        %v5837 = vunpack.c.0.s8 %v5836
        %v5838 = vlaneseq
        %v5839 = vshrl.u32 %v5838, 7
        %v5840 = vsub.s32 %v5837, %v5839
        %v5841 = vrot.slane %v5825, %v5840
        %v5843 = vunpack.c.l.s4 1966171168
        %v5844 = vunpack.c.0.s8 %v5843
        %v5845 = vlaneseq
        %v5846 = vshrl.u32 %v5845, 7
        %v5847 = vsub.s32 %v5844, %v5846
        %v5848 = vrot.slane %v5832, %v5847
        %v5850 = vunpack.c.l.s4 1966171168
        %v5851 = vunpack.c.0.s8 %v5850
        %v5852 = vlaneseq
        %v5853 = vshrl.u32 %v5852, 7
        %v5854 = vsub.s32 %v5851, %v5853
        %v5855 = vrot.slane %v5833, %v5854
        %v5857 = vunpack.c.l.s4 1966171168
        %v5858 = vunpack.c.0.s8 %v5857
        %v5859 = vlaneseq
        %v5860 = vshrl.u32 %v5859, 7
        %v5861 = vsub.s32 %v5858, %v5860
        %v5862 = vrot.slane %v5834, %v5861
        %v5863 = vcombine.high %v5841, %v5841
        %v5864 = vcombine.high %v5848, %v5848
        %v5865 = vcombine.high %v5855, %v5855
        %v5866 = vcombine.high %v5862, %v5862
        %v5867 = vlaneseq
        %v5868 = vshrl.u32 %v5867, 7
        %v5869 = vsub.s32 0, %v5868
        %v5870 = vrot.slane %v5841, %v5869
        %v5871 = vlaneseq
        %v5872 = vshrl.u32 %v5871, 7
        %v5873 = vsub.s32 0, %v5872
        %v5874 = vrot.slane %v5855, %v5873
        %v5875 = vlaneseq
        %v5876 = vshrl.u32 %v5875, 7
        %v5877 = vsub.s32 0, %v5876
        %v5878 = vrot.slane %v5863, %v5877
        %v5879 = vlaneseq
        %v5880 = vshrl.u32 %v5879, 7
        %v5881 = vsub.s32 0, %v5880
        %v5882 = vrot.slane %v5865, %v5881
        %v5883 = vlaneseq
        %v5884 = vshrl.u32 %v5883, 7
        %v5885 = vsub.s32 0, %v5884
        %v5886 = vrot.slane %v5848, %v5885
        %v5887 = vlaneseq
        %v5888 = vshrl.u32 %v5887, 7
        %v5889 = vsub.s32 0, %v5888
        %v5890 = vrot.slane %v5862, %v5889
        %v5891 = vlaneseq
        %v5892 = vshrl.u32 %v5891, 7
        %v5893 = vsub.s32 0, %v5892
        %v5894 = vrot.slane %v5864, %v5893
        %v5895 = vlaneseq
        %v5896 = vshrl.u32 %v5895, 7
        %v5897 = vsub.s32 0, %v5896
        %v5898 = vrot.slane %v5866, %v5897
        %v5907 = vadd.f32 %v984, %v5870
        %v5908 = vadd.f32 %v987, %v5874
        %v5909 = vadd.f32 %v992, %v5878
        %v5910 = vadd.f32 %v995, %v5882
        %v5911 = vadd.f32 %v1000, %v5886
        %v5912 = vadd.f32 %v1003, %v5890
        %v5913 = vadd.f32 %v1008, %v5894
        %v5914 = vadd.f32 %v1011, %v5898
        %v5915 = vtanh.pop %v5907
        %v5916 = vtanh.pop %v5908
        %v5917 = vtanh.pop %v5909
        %v5918 = vtanh.pop %v5910
        %v5919 = vtanh.pop %v5911
        %v5920 = vtanh.pop %v5912
        %v5921 = vtanh.pop %v5913
        %v5922 = vtanh.pop %v5914
        %v5923 = vld [vmem:[%s9] sm:$0x1]
        %v5925 = vlaneseq
        %v5926 = vshrl.u32 %v5925, 7
        %v5927 = vsub.s32 0, %v5926
        %v5928 = vrot.slane %v5923, %v5927
        %v5930 = vmul.f32 %v5915, %v5928
        %v5931 = vmul.f32 %v5916, %v5928
        %v5932 = vmul.f32 %v5917, %v5928
        %v5933 = vmul.f32 %v5918, %v5928
        %v5934 = vmul.f32 %v5919, %v5928
        %v5935 = vmul.f32 %v5920, %v5928
        %v5936 = vmul.f32 %v5921, %v5928
        %v5937 = vmul.f32 %v5922, %v5928
        %5938 = vadd.xlane.f32.xlu0 %v5930
        %v5939 = vpop.xlane.xlu0 %5938
        %5940 = vadd.xlane.f32.xlu0 %v5931
        %v5941 = vpop.xlane.xlu0 %5940
        %5942 = vadd.xlane.f32.xlu0 %v5932
        %v5943 = vpop.xlane.xlu0 %5942
        %5944 = vadd.xlane.f32.xlu0 %v5933
        %v5945 = vpop.xlane.xlu0 %5944
        %5946 = vadd.xlane.f32.xlu0 %v5934
        %v5947 = vpop.xlane.xlu0 %5946
        %5948 = vadd.xlane.f32.xlu0 %v5935
        %v5949 = vpop.xlane.xlu0 %5948
        %5950 = vadd.xlane.f32.xlu0 %v5936
        %v5951 = vpop.xlane.xlu0 %5950
        %5952 = vadd.xlane.f32.xlu0 %v5937
        %v5953 = vpop.xlane.xlu0 %5952
        %v5954 = vrot.slane %v5939, 4
        %v5955 = vmax.f32 %v5939, %v5954
        %v5956 = vrot.slane %v5955, 2
        %v5957 = vmax.f32 %v5955, %v5956
        %v5958 = vrot.slane %v5957, 1
        %v5959 = vmax.f32 %v5957, %v5958
        %v5960 = vrot.slane %v5941, 4
        %v5961 = vmax.f32 %v5941, %v5960
        %v5962 = vrot.slane %v5961, 2
        %v5963 = vmax.f32 %v5961, %v5962
        %v5964 = vrot.slane %v5963, 1
        %v5965 = vmax.f32 %v5963, %v5964
        %v5966 = vrot.slane %v5943, 4
        %v5967 = vmax.f32 %v5943, %v5966
        %v5968 = vrot.slane %v5967, 2
        %v5969 = vmax.f32 %v5967, %v5968
        %v5970 = vrot.slane %v5969, 1
        %v5971 = vmax.f32 %v5969, %v5970
        %v5972 = vrot.slane %v5945, 4
        %v5973 = vmax.f32 %v5945, %v5972
        %v5974 = vrot.slane %v5973, 2
        %v5975 = vmax.f32 %v5973, %v5974
        %v5976 = vrot.slane %v5975, 1
        %v5977 = vmax.f32 %v5975, %v5976
        %v5978 = vrot.slane %v5947, 4
        %v5979 = vmax.f32 %v5947, %v5978
        %v5980 = vrot.slane %v5979, 2
        %v5981 = vmax.f32 %v5979, %v5980
        %v5982 = vrot.slane %v5981, 1
        %v5983 = vmax.f32 %v5981, %v5982
        %v5984 = vrot.slane %v5949, 4
        %v5985 = vmax.f32 %v5949, %v5984
        %v5986 = vrot.slane %v5985, 2
        %v5987 = vmax.f32 %v5985, %v5986
        %v5988 = vrot.slane %v5987, 1
        %v5989 = vmax.f32 %v5987, %v5988
        %v5990 = vrot.slane %v5951, 4
        %v5991 = vmax.f32 %v5951, %v5990
        %v5992 = vrot.slane %v5991, 2
        %v5993 = vmax.f32 %v5991, %v5992
        %v5994 = vrot.slane %v5993, 1
        %v5995 = vmax.f32 %v5993, %v5994
        %v5996 = vrot.slane %v5953, 4
        %v5997 = vmax.f32 %v5953, %v5996
        %v5998 = vrot.slane %v5997, 2
        %v5999 = vmax.f32 %v5997, %v5998
        %v6000 = vrot.slane %v5999, 1
        %v6001 = vmax.f32 %v5999, %v6000
        %v6002 = vsub.f32 %v5939, %v5959
        %v6003 = vsub.f32 %v5941, %v5965
        %v6004 = vsub.f32 %v5943, %v5971
        %v6005 = vsub.f32 %v5945, %v5977
        %v6006 = vsub.f32 %v5947, %v5983
        %v6007 = vsub.f32 %v5949, %v5989
        %v6008 = vsub.f32 %v5951, %v5995
        %v6009 = vsub.f32 %v5953, %v6001
        %v6010 = vmul.f32 %v6002, 1.442695
        %v6011 = vpow.pop %v6010
        %v6012 = vmul.f32 %v6003, 1.442695
        %v6013 = vpow.pop %v6012
        %v6014 = vmul.f32 %v6004, 1.442695
        %v6015 = vpow.pop %v6014
        %v6016 = vmul.f32 %v6005, 1.442695
        %v6017 = vpow.pop %v6016
        %v6018 = vmul.f32 %v6006, 1.442695
        %v6019 = vpow.pop %v6018
        %v6020 = vmul.f32 %v6007, 1.442695
        %v6021 = vpow.pop %v6020
        %v6022 = vmul.f32 %v6008, 1.442695
        %v6023 = vpow.pop %v6022
        %v6024 = vmul.f32 %v6009, 1.442695
        %v6025 = vpow.pop %v6024
        %v6026 = vrot.slane %v6011, 4
        %v6027 = vadd.f32 %v6011, %v6026
        %v6028 = vrot.slane %v6027, 2
        %v6029 = vadd.f32 %v6027, %v6028
        %v6030 = vrot.slane %v6029, 1
        %v6031 = vadd.f32 %v6029, %v6030
        %v6032 = vrot.slane %v6013, 4
        %v6033 = vadd.f32 %v6013, %v6032
        %v6034 = vrot.slane %v6033, 2
        %v6035 = vadd.f32 %v6033, %v6034
        %v6036 = vrot.slane %v6035, 1
        %v6037 = vadd.f32 %v6035, %v6036
        %v6038 = vrot.slane %v6015, 4
        %v6039 = vadd.f32 %v6015, %v6038
        %v6040 = vrot.slane %v6039, 2
        %v6041 = vadd.f32 %v6039, %v6040
        %v6042 = vrot.slane %v6041, 1
        %v6043 = vadd.f32 %v6041, %v6042
        %v6044 = vrot.slane %v6017, 4
        %v6045 = vadd.f32 %v6017, %v6044
        %v6046 = vrot.slane %v6045, 2
        %v6047 = vadd.f32 %v6045, %v6046
        %v6048 = vrot.slane %v6047, 1
        %v6049 = vadd.f32 %v6047, %v6048
        %v6050 = vrot.slane %v6019, 4
        %v6051 = vadd.f32 %v6019, %v6050
        %v6052 = vrot.slane %v6051, 2
        %v6053 = vadd.f32 %v6051, %v6052
        %v6054 = vrot.slane %v6053, 1
        %v6055 = vadd.f32 %v6053, %v6054
        %v6056 = vrot.slane %v6021, 4
        %v6057 = vadd.f32 %v6021, %v6056
        %v6058 = vrot.slane %v6057, 2
        %v6059 = vadd.f32 %v6057, %v6058
        %v6060 = vrot.slane %v6059, 1
        %v6061 = vadd.f32 %v6059, %v6060
        %v6062 = vrot.slane %v6023, 4
        %v6063 = vadd.f32 %v6023, %v6062
        %v6064 = vrot.slane %v6063, 2
        %v6065 = vadd.f32 %v6063, %v6064
        %v6066 = vrot.slane %v6065, 1
        %v6067 = vadd.f32 %v6065, %v6066
        %v6068 = vrot.slane %v6025, 4
        %v6069 = vadd.f32 %v6025, %v6068
        %v6070 = vrot.slane %v6069, 2
        %v6071 = vadd.f32 %v6069, %v6070
        %v6072 = vrot.slane %v6071, 1
        %v6073 = vadd.f32 %v6071, %v6072
        %v6074 = vrcp.pop %v6031
        %v6075 = vrcp.pop %v6037
        %v6076 = vrcp.pop %v6043
        %v6077 = vrcp.pop %v6049
        %v6078 = vrcp.pop %v6055
        %v6079 = vrcp.pop %v6061
        %v6080 = vrcp.pop %v6067
        %v6081 = vrcp.pop %v6073
        %v6082 = vmul.f32 %v6011, %v6074
        %v6083 = vmul.f32 %v6013, %v6075
        %v6084 = vmul.f32 %v6015, %v6076
        %v6085 = vmul.f32 %v6017, %v6077
        %v6086 = vmul.f32 %v6019, %v6078
        %v6087 = vmul.f32 %v6021, %v6079
        %v6088 = vmul.f32 %v6023, %v6080
        %v6089 = vmul.f32 %v6025, %v6081
        %v6090 = vld [vmem:[%s597] sm:$0xff]
        %v6091 = vld [vmem:[%s597 + $0x8] sm:$0xff]
        %v6092 = vld [vmem:[%s597 + $0x10] sm:$0xff]
        %v6093 = vld [vmem:[%s597 + $0x18] sm:$0xff]
        %v6094 = vld [vmem:[%s597 + $0x20] sm:$0xff]
        %v6095 = vld [vmem:[%s597 + $0x28] sm:$0xff]
        %v6096 = vld [vmem:[%s597 + $0x30] sm:$0xff]
        %v6097 = vld [vmem:[%s597 + $0x38] sm:$0xff]
        %v6098 = vmul.f32 %v6082, %v6090
        %v6099 = vmul.f32 %v6083, %v6091
        %v6100 = vmul.f32 %v6084, %v6092
        %v6101 = vmul.f32 %v6085, %v6093
        %v6102 = vmul.f32 %v6086, %v6094
        %v6103 = vmul.f32 %v6087, %v6095
        %v6104 = vmul.f32 %v6088, %v6096
        %v6105 = vmul.f32 %v6089, %v6097
        %v6106 = vrot.slane %v6098, 4
        %v6107 = vadd.f32 %v6098, %v6106
        %v6108 = vrot.slane %v6107, 2
        %v6109 = vadd.f32 %v6107, %v6108
        %v6110 = vrot.slane %v6109, 1
        %v6111 = vadd.f32 %v6109, %v6110
        %v6112 = vrot.slane %v6099, 4
        %v6113 = vadd.f32 %v6099, %v6112
        %v6114 = vrot.slane %v6113, 2
        %v6115 = vadd.f32 %v6113, %v6114
        %v6116 = vrot.slane %v6115, 1
        %v6117 = vadd.f32 %v6115, %v6116
        %v6118 = vrot.slane %v6100, 4
        %v6119 = vadd.f32 %v6100, %v6118
        %v6120 = vrot.slane %v6119, 2
        %v6121 = vadd.f32 %v6119, %v6120
        %v6122 = vrot.slane %v6121, 1
        %v6123 = vadd.f32 %v6121, %v6122
        %v6124 = vrot.slane %v6101, 4
        %v6125 = vadd.f32 %v6101, %v6124
        %v6126 = vrot.slane %v6125, 2
        %v6127 = vadd.f32 %v6125, %v6126
        %v6128 = vrot.slane %v6127, 1
        %v6129 = vadd.f32 %v6127, %v6128
        %v6130 = vrot.slane %v6102, 4
        %v6131 = vadd.f32 %v6102, %v6130
        %v6132 = vrot.slane %v6131, 2
        %v6133 = vadd.f32 %v6131, %v6132
        %v6134 = vrot.slane %v6133, 1
        %v6135 = vadd.f32 %v6133, %v6134
        %v6136 = vrot.slane %v6103, 4
        %v6137 = vadd.f32 %v6103, %v6136
        %v6138 = vrot.slane %v6137, 2
        %v6139 = vadd.f32 %v6137, %v6138
        %v6140 = vrot.slane %v6139, 1
        %v6141 = vadd.f32 %v6139, %v6140
        %v6142 = vrot.slane %v6104, 4
        %v6143 = vadd.f32 %v6104, %v6142
        %v6144 = vrot.slane %v6143, 2
        %v6145 = vadd.f32 %v6143, %v6144
        %v6146 = vrot.slane %v6145, 1
        %v6147 = vadd.f32 %v6145, %v6146
        %v6148 = vrot.slane %v6105, 4
        %v6149 = vadd.f32 %v6105, %v6148
        %v6150 = vrot.slane %v6149, 2
        %v6151 = vadd.f32 %v6149, %v6150
        %v6152 = vrot.slane %v6151, 1
        %v6153 = vadd.f32 %v6151, %v6152
        %v6162 = vsel %vm696, %v6117, %v6111
        %v6163 = vsel %vm698, %v6123, %v6162
        %v6164 = vsel %vm700, %v6129, %v6163
        %v6165 = vsel %vm702, %v6135, %v6164
        %v6166 = vsel %vm704, %v6141, %v6165
        %v6167 = vsel %vm706, %v6147, %v6166
        %v6168 = vsel %vm708, %v6153, %v6167
        %v6170 = vpack.c.bf16 %v6168, %v6168
        %v6171 = vld [vmem:[%s10] sm:$0xff]
        %v6172 = vld [vmem:[%s10 + $0x8] sm:$0xff]
        %v6173 = vld [vmem:[%s10 + $0x10] sm:$0xff]
        %v6174 = vld [vmem:[%s10 + $0x18] sm:$0xff]
        %v6175 = vld [vmem:[%s10 + $0x20] sm:$0xff]
        %v6176 = vld [vmem:[%s10 + $0x28] sm:$0xff]
        %v6177 = vld [vmem:[%s10 + $0x30] sm:$0xff]
        %v6178 = vld [vmem:[%s10 + $0x38] sm:$0xff]
        %v6179 = vld [vmem:[%s10 + $0x40] sm:$0xff]
        %v6180 = vld [vmem:[%s10 + $0x48] sm:$0xff]
        %v6181 = vld [vmem:[%s10 + $0x50] sm:$0xff]
        %v6182 = vld [vmem:[%s10 + $0x58] sm:$0xff]
        %v6183 = vld [vmem:[%s10 + $0x60] sm:$0xff]
        %v6184 = vld [vmem:[%s10 + $0x68] sm:$0xff]
        %v6185 = vld [vmem:[%s10 + $0x70] sm:$0xff]
        %v6186 = vld [vmem:[%s10 + $0x78] sm:$0xff]
        %v6187 = vld [vmem:[%s10 + $0x80] sm:$0xff]
        %v6188 = vld [vmem:[%s10 + $0x88] sm:$0xff]
        %v6189 = vld [vmem:[%s10 + $0x90] sm:$0xff]
        %v6190 = vld [vmem:[%s10 + $0x98] sm:$0xff]
        %v6191 = vld [vmem:[%s10 + $0xa0] sm:$0xff]
        %v6192 = vld [vmem:[%s10 + $0xa8] sm:$0xff]
        %v6193 = vld [vmem:[%s10 + $0xb0] sm:$0xff]
        %v6194 = vld [vmem:[%s10 + $0xb8] sm:$0xff]
        %v6195 = vld [vmem:[%s10 + $0xc0] sm:$0xff]
        %v6196 = vld [vmem:[%s10 + $0xc8] sm:$0xff]
        %v6197 = vld [vmem:[%s10 + $0xd0] sm:$0xff]
        %v6198 = vld [vmem:[%s10 + $0xd8] sm:$0xff]
        %v6199 = vld [vmem:[%s10 + $0xe0] sm:$0xff]
        %v6200 = vld [vmem:[%s10 + $0xe8] sm:$0xff]
        %v6201 = vld [vmem:[%s10 + $0xf0] sm:$0xff]
        %v6202 = vld [vmem:[%s10 + $0xf8] sm:$0xff]
        %v6203 = vld [vmem:[%s10 + $0x100] sm:$0xff]
        %v6204 = vld [vmem:[%s10 + $0x108] sm:$0xff]
        %v6205 = vld [vmem:[%s10 + $0x110] sm:$0xff]
        %v6206 = vld [vmem:[%s10 + $0x118] sm:$0xff]
        %v6207 = vld [vmem:[%s10 + $0x120] sm:$0xff]
        %v6208 = vld [vmem:[%s10 + $0x128] sm:$0xff]
        %v6209 = vld [vmem:[%s10 + $0x130] sm:$0xff]
        %v6210 = vld [vmem:[%s10 + $0x138] sm:$0xff]
        %v6211 = vld [vmem:[%s10 + $0x140] sm:$0xff]
        %v6212 = vld [vmem:[%s10 + $0x148] sm:$0xff]
        %v6213 = vld [vmem:[%s10 + $0x150] sm:$0xff]
        %v6214 = vld [vmem:[%s10 + $0x158] sm:$0xff]
        %v6215 = vld [vmem:[%s10 + $0x160] sm:$0xff]
        %v6216 = vld [vmem:[%s10 + $0x168] sm:$0xff]
        %v6217 = vld [vmem:[%s10 + $0x170] sm:$0xff]
        %v6218 = vld [vmem:[%s10 + $0x178] sm:$0xff]
        %v6219 = vld [vmem:[%s10 + $0x180] sm:$0xff]
        %v6220 = vld [vmem:[%s10 + $0x188] sm:$0xff]
        %v6221 = vld [vmem:[%s10 + $0x190] sm:$0xff]
        %v6222 = vld [vmem:[%s10 + $0x198] sm:$0xff]
        %v6223 = vld [vmem:[%s10 + $0x1a0] sm:$0xff]
        %v6224 = vld [vmem:[%s10 + $0x1a8] sm:$0xff]
        %v6225 = vld [vmem:[%s10 + $0x1b0] sm:$0xff]
        %v6226 = vld [vmem:[%s10 + $0x1b8] sm:$0xff]
        %v6227 = vld [vmem:[%s10 + $0x1c0] sm:$0xff]
        %v6228 = vld [vmem:[%s10 + $0x1c8] sm:$0xff]
        %v6229 = vld [vmem:[%s10 + $0x1d0] sm:$0xff]
        %v6230 = vld [vmem:[%s10 + $0x1d8] sm:$0xff]
        %v6231 = vld [vmem:[%s10 + $0x1e0] sm:$0xff]
        %v6232 = vld [vmem:[%s10 + $0x1e8] sm:$0xff]
        %v6233 = vld [vmem:[%s10 + $0x1f0] sm:$0xff]
        %v6234 = vld [vmem:[%s10 + $0x1f8] sm:$0xff]
        %s6235 = scalar_lea.vmem [#allocation2], 128
        %v6236 = vld [vmem:[%s6235] sm:$0xff]
        %v6237 = vld [vmem:[%s6235 + $0x8] sm:$0xff]
        %v6238 = vld [vmem:[%s6235 + $0x10] sm:$0xff]
        %v6239 = vld [vmem:[%s6235 + $0x18] sm:$0xff]
        %v6304 = vunpack.c.l.b16 %v6171
        %v6305 = vunpack.c.h.b16 %v6171
        %v6306 = vunpack.c.l.b16 %v6172
        %v6307 = vunpack.c.h.b16 %v6172
        %v6308 = vunpack.c.l.b16 %v6173
        %v6309 = vunpack.c.h.b16 %v6173
        %v6310 = vunpack.c.l.b16 %v6174
        %v6311 = vunpack.c.h.b16 %v6174
        %v6312 = vunpack.c.l.b16 %v6175
        %v6313 = vunpack.c.h.b16 %v6175
        %v6314 = vunpack.c.l.b16 %v6176
        %v6315 = vunpack.c.h.b16 %v6176
        %v6316 = vunpack.c.l.b16 %v6177
        %v6317 = vunpack.c.h.b16 %v6177
        %v6318 = vunpack.c.l.b16 %v6178
        %v6319 = vunpack.c.h.b16 %v6178
        %v6320 = vunpack.c.l.b16 %v6179
        %v6321 = vunpack.c.h.b16 %v6179
        %v6322 = vunpack.c.l.b16 %v6180
        %v6323 = vunpack.c.h.b16 %v6180
        %v6324 = vunpack.c.l.b16 %v6181
        %v6325 = vunpack.c.h.b16 %v6181
        %v6326 = vunpack.c.l.b16 %v6182
        %v6327 = vunpack.c.h.b16 %v6182
        %v6328 = vunpack.c.l.b16 %v6183
        %v6329 = vunpack.c.h.b16 %v6183
        %v6330 = vunpack.c.l.b16 %v6184
        %v6331 = vunpack.c.h.b16 %v6184
        %v6332 = vunpack.c.l.b16 %v6185
        %v6333 = vunpack.c.h.b16 %v6185
        %v6334 = vunpack.c.l.b16 %v6186
        %v6335 = vunpack.c.h.b16 %v6186
        %v6336 = vunpack.c.l.b16 %v6187
        %v6337 = vunpack.c.h.b16 %v6187
        %v6338 = vunpack.c.l.b16 %v6188
        %v6339 = vunpack.c.h.b16 %v6188
        %v6340 = vunpack.c.l.b16 %v6189
        %v6341 = vunpack.c.h.b16 %v6189
        %v6342 = vunpack.c.l.b16 %v6190
        %v6343 = vunpack.c.h.b16 %v6190
        %v6344 = vunpack.c.l.b16 %v6191
        %v6345 = vunpack.c.h.b16 %v6191
        %v6346 = vunpack.c.l.b16 %v6192
        %v6347 = vunpack.c.h.b16 %v6192
        %v6348 = vunpack.c.l.b16 %v6193
        %v6349 = vunpack.c.h.b16 %v6193
        %v6350 = vunpack.c.l.b16 %v6194
        %v6351 = vunpack.c.h.b16 %v6194
        %v6352 = vunpack.c.l.b16 %v6195
        %v6353 = vunpack.c.h.b16 %v6195
        %v6354 = vunpack.c.l.b16 %v6196
        %v6355 = vunpack.c.h.b16 %v6196
        %v6356 = vunpack.c.l.b16 %v6197
        %v6357 = vunpack.c.h.b16 %v6197
        %v6358 = vunpack.c.l.b16 %v6198
        %v6359 = vunpack.c.h.b16 %v6198
        %v6360 = vunpack.c.l.b16 %v6199
        %v6361 = vunpack.c.h.b16 %v6199
        %v6362 = vunpack.c.l.b16 %v6200
        %v6363 = vunpack.c.h.b16 %v6200
        %v6364 = vunpack.c.l.b16 %v6201
        %v6365 = vunpack.c.h.b16 %v6201
        %v6366 = vunpack.c.l.b16 %v6202
        %v6367 = vunpack.c.h.b16 %v6202
        %v6368 = vunpack.c.l.b16 %v6203
        %v6369 = vunpack.c.h.b16 %v6203
        %v6370 = vunpack.c.l.b16 %v6204
        %v6371 = vunpack.c.h.b16 %v6204
        %v6372 = vunpack.c.l.b16 %v6205
        %v6373 = vunpack.c.h.b16 %v6205
        %v6374 = vunpack.c.l.b16 %v6206
        %v6375 = vunpack.c.h.b16 %v6206
        %v6376 = vunpack.c.l.b16 %v6207
        %v6377 = vunpack.c.h.b16 %v6207
        %v6378 = vunpack.c.l.b16 %v6208
        %v6379 = vunpack.c.h.b16 %v6208
        %v6380 = vunpack.c.l.b16 %v6209
        %v6381 = vunpack.c.h.b16 %v6209
        %v6382 = vunpack.c.l.b16 %v6210
        %v6383 = vunpack.c.h.b16 %v6210
        %v6384 = vunpack.c.l.b16 %v6211
        %v6385 = vunpack.c.h.b16 %v6211
        %v6386 = vunpack.c.l.b16 %v6212
        %v6387 = vunpack.c.h.b16 %v6212
        %v6388 = vunpack.c.l.b16 %v6213
        %v6389 = vunpack.c.h.b16 %v6213
        %v6390 = vunpack.c.l.b16 %v6214
        %v6391 = vunpack.c.h.b16 %v6214
        %v6392 = vunpack.c.l.b16 %v6215
        %v6393 = vunpack.c.h.b16 %v6215
        %v6394 = vunpack.c.l.b16 %v6216
        %v6395 = vunpack.c.h.b16 %v6216
        %v6396 = vunpack.c.l.b16 %v6217
        %v6397 = vunpack.c.h.b16 %v6217
        %v6398 = vunpack.c.l.b16 %v6218
        %v6399 = vunpack.c.h.b16 %v6218
        %v6400 = vunpack.c.l.b16 %v6219
        %v6401 = vunpack.c.h.b16 %v6219
        %v6402 = vunpack.c.l.b16 %v6220
        %v6403 = vunpack.c.h.b16 %v6220
        %v6404 = vunpack.c.l.b16 %v6221
        %v6405 = vunpack.c.h.b16 %v6221
        %v6406 = vunpack.c.l.b16 %v6222
        %v6407 = vunpack.c.h.b16 %v6222
        %v6408 = vunpack.c.l.b16 %v6223
        %v6409 = vunpack.c.h.b16 %v6223
        %v6410 = vunpack.c.l.b16 %v6224
        %v6411 = vunpack.c.h.b16 %v6224
        %v6412 = vunpack.c.l.b16 %v6225
        %v6413 = vunpack.c.h.b16 %v6225
        %v6414 = vunpack.c.l.b16 %v6226
        %v6415 = vunpack.c.h.b16 %v6226
        %v6416 = vunpack.c.l.b16 %v6227
        %v6417 = vunpack.c.h.b16 %v6227
        %v6418 = vunpack.c.l.b16 %v6228
        %v6419 = vunpack.c.h.b16 %v6228
        %v6420 = vunpack.c.l.b16 %v6229
        %v6421 = vunpack.c.h.b16 %v6229
        %v6422 = vunpack.c.l.b16 %v6230
        %v6423 = vunpack.c.h.b16 %v6230
        %v6424 = vunpack.c.l.b16 %v6231
        %v6425 = vunpack.c.h.b16 %v6231
        %v6426 = vunpack.c.l.b16 %v6232
        %v6427 = vunpack.c.h.b16 %v6232
        %v6428 = vunpack.c.l.b16 %v6233
        %v6429 = vunpack.c.h.b16 %v6233
        %v6430 = vunpack.c.l.b16 %v6234
        %v6431 = vunpack.c.h.b16 %v6234
        %v6432 = vpack.c.b16 %v6308, %v6304
        %v6433 = vpack.c.b16 %v6309, %v6305
        %v6434 = vpack.c.b16 %v6310, %v6306
        %v6435 = vpack.c.b16 %v6311, %v6307
        %v6436 = vpack.c.b16 %v6316, %v6312
        %v6437 = vpack.c.b16 %v6317, %v6313
        %v6438 = vpack.c.b16 %v6318, %v6314
        %v6439 = vpack.c.b16 %v6319, %v6315
        %v6440 = vpack.c.b16 %v6324, %v6320
        %v6441 = vpack.c.b16 %v6325, %v6321
        %v6442 = vpack.c.b16 %v6326, %v6322
        %v6443 = vpack.c.b16 %v6327, %v6323
        %v6444 = vpack.c.b16 %v6332, %v6328
        %v6445 = vpack.c.b16 %v6333, %v6329
        %v6446 = vpack.c.b16 %v6334, %v6330
        %v6447 = vpack.c.b16 %v6335, %v6331
        %v6448 = vpack.c.b16 %v6340, %v6336
        %v6449 = vpack.c.b16 %v6341, %v6337
        %v6450 = vpack.c.b16 %v6342, %v6338
        %v6451 = vpack.c.b16 %v6343, %v6339
        %v6452 = vpack.c.b16 %v6348, %v6344
        %v6453 = vpack.c.b16 %v6349, %v6345
        %v6454 = vpack.c.b16 %v6350, %v6346
        %v6455 = vpack.c.b16 %v6351, %v6347
        %v6456 = vpack.c.b16 %v6356, %v6352
        %v6457 = vpack.c.b16 %v6357, %v6353
        %v6458 = vpack.c.b16 %v6358, %v6354
        %v6459 = vpack.c.b16 %v6359, %v6355
        %v6460 = vpack.c.b16 %v6364, %v6360
        %v6461 = vpack.c.b16 %v6365, %v6361
        %v6462 = vpack.c.b16 %v6366, %v6362
        %v6463 = vpack.c.b16 %v6367, %v6363
        %v6464 = vpack.c.b16 %v6372, %v6368
        %v6465 = vpack.c.b16 %v6373, %v6369
        %v6466 = vpack.c.b16 %v6374, %v6370
        %v6467 = vpack.c.b16 %v6375, %v6371
        %v6468 = vpack.c.b16 %v6380, %v6376
        %v6469 = vpack.c.b16 %v6381, %v6377
        %v6470 = vpack.c.b16 %v6382, %v6378
        %v6471 = vpack.c.b16 %v6383, %v6379
        %v6472 = vpack.c.b16 %v6388, %v6384
        %v6473 = vpack.c.b16 %v6389, %v6385
        %v6474 = vpack.c.b16 %v6390, %v6386
        %v6475 = vpack.c.b16 %v6391, %v6387
        %v6476 = vpack.c.b16 %v6396, %v6392
        %v6477 = vpack.c.b16 %v6397, %v6393
        %v6478 = vpack.c.b16 %v6398, %v6394
        %v6479 = vpack.c.b16 %v6399, %v6395
        %v6480 = vpack.c.b16 %v6404, %v6400
        %v6481 = vpack.c.b16 %v6405, %v6401
        %v6482 = vpack.c.b16 %v6406, %v6402
        %v6483 = vpack.c.b16 %v6407, %v6403
        %v6484 = vpack.c.b16 %v6412, %v6408
        %v6485 = vpack.c.b16 %v6413, %v6409
        %v6486 = vpack.c.b16 %v6414, %v6410
        %v6487 = vpack.c.b16 %v6415, %v6411
        %v6488 = vpack.c.b16 %v6420, %v6416
        %v6489 = vpack.c.b16 %v6421, %v6417
        %v6490 = vpack.c.b16 %v6422, %v6418
        %v6491 = vpack.c.b16 %v6423, %v6419
        %v6492 = vpack.c.b16 %v6428, %v6424
        %v6493 = vpack.c.b16 %v6429, %v6425
        %v6494 = vpack.c.b16 %v6430, %v6426
        %v6495 = vpack.c.b16 %v6431, %v6427
        %6560 = vmatprep.subr.bf16.mxu0 %v6433
        %6561 = vmatpush1.bf16.msra.mxu0 %v6432
        %6562 = vmatprep.subr.bf16.mxu0 %v6437
        %6563 = vmatpush1.bf16.msra.mxu0 %v6436
        %6564 = vmatprep.subr.bf16.mxu0 %v6441
        %6565 = vmatpush1.bf16.msra.mxu0 %v6440
        %6566 = vmatprep.subr.bf16.mxu0 %v6445
        %6567 = vmatpush1.bf16.msra.mxu0 %v6444
        %6568 = vmatprep.subr.bf16.mxu0 %v6449
        %6569 = vmatpush1.bf16.msra.mxu0 %v6448
        %6570 = vmatprep.subr.bf16.mxu0 %v6453
        %6571 = vmatpush1.bf16.msra.mxu0 %v6452
        %6572 = vmatprep.subr.bf16.mxu0 %v6457
        %6573 = vmatpush1.bf16.msra.mxu0 %v6456
        %6574 = vmatprep.subr.bf16.mxu0 %v6461
        %6575 = vmatpush1.bf16.msra.mxu0 %v6460
        %6576 = vmatprep.subr.bf16.mxu0 %v6465
        %6577 = vmatpush1.bf16.msra.mxu0 %v6464
        %6578 = vmatprep.subr.bf16.mxu0 %v6469
        %6579 = vmatpush1.bf16.msra.mxu0 %v6468
        %6580 = vmatprep.subr.bf16.mxu0 %v6473
        %6581 = vmatpush1.bf16.msra.mxu0 %v6472
        %6582 = vmatprep.subr.bf16.mxu0 %v6477
        %6583 = vmatpush1.bf16.msra.mxu0 %v6476
        %6584 = vmatprep.subr.bf16.mxu0 %v6481
        %6585 = vmatpush1.bf16.msra.mxu0 %v6480
        %6586 = vmatprep.subr.bf16.mxu0 %v6485
        %6587 = vmatpush1.bf16.msra.mxu0 %v6484
        %6588 = vmatprep.subr.bf16.mxu0 %v6489
        %6589 = vmatpush1.bf16.msra.mxu0 %v6488
        %6590 = vmatprep.subr.bf16.mxu0 %v6493
        %6591 = vmatpush1.bf16.msra.mxu0 %v6492
        %6592 = vmatprep.mubr.bf16.mxu0 %v5549
        %6593 = vmatmul.mubr.bf16.gmra.mrb[0].mxu0 %v6170
        %v6594 = vpop.f32.mrb[0].mxu0
        %v6595 = vadd.f32 %v6236, %v6594
        %v6596 = vpop.f32.mrb[0].mxu0
        %v6597 = vadd.f32 %v6237, %v6596
        %v6598 = vpop.f32.mrb[0].mxu0
        %v6599 = vpop.f32.mrb[0].mxu0
        %6600 = vdwg.mxu0
        %6601 = vmatprep.subr.bf16.mxu0 %v6435
        %6602 = vmatpush1.bf16.msra.mxu0 %v6434
        %6603 = vmatprep.subr.bf16.mxu0 %v6439
        %6604 = vmatpush1.bf16.msra.mxu0 %v6438
        %6605 = vmatprep.subr.bf16.mxu0 %v6443
        %6606 = vmatpush1.bf16.msra.mxu0 %v6442
        %6607 = vmatprep.subr.bf16.mxu0 %v6447
        %6608 = vmatpush1.bf16.msra.mxu0 %v6446
        %6609 = vmatprep.subr.bf16.mxu0 %v6451
        %6610 = vmatpush1.bf16.msra.mxu0 %v6450
        %6611 = vmatprep.subr.bf16.mxu0 %v6455
        %6612 = vmatpush1.bf16.msra.mxu0 %v6454
        %6613 = vmatprep.subr.bf16.mxu0 %v6459
        %6614 = vmatpush1.bf16.msra.mxu0 %v6458
        %6615 = vmatprep.subr.bf16.mxu0 %v6463
        %6616 = vmatpush1.bf16.msra.mxu0 %v6462
        %6617 = vmatprep.subr.bf16.mxu0 %v6467
        %6618 = vmatpush1.bf16.msra.mxu0 %v6466
        %6619 = vmatprep.subr.bf16.mxu0 %v6471
        %6620 = vmatpush1.bf16.msra.mxu0 %v6470
        %6621 = vmatprep.subr.bf16.mxu0 %v6475
        %6622 = vmatpush1.bf16.msra.mxu0 %v6474
        %6623 = vmatprep.subr.bf16.mxu0 %v6479
        %6624 = vmatpush1.bf16.msra.mxu0 %v6478
        %6625 = vmatprep.subr.bf16.mxu0 %v6483
        %6626 = vmatpush1.bf16.msra.mxu0 %v6482
        %6627 = vmatprep.subr.bf16.mxu0 %v6487
        %6628 = vmatpush1.bf16.msra.mxu0 %v6486
        %6629 = vmatprep.subr.bf16.mxu0 %v6491
        %6630 = vmatpush1.bf16.msra.mxu0 %v6490
        %6631 = vmatprep.subr.bf16.mxu0 %v6495
        %6632 = vmatpush1.bf16.msra.mxu0 %v6494
        %6633 = vmatprep.mubr.bf16.mxu0 %v5549
        %6634 = vmatmul.mubr.bf16.gmra.mrb[0].mxu0 %v6170
        %v6635 = vpop.f32.mrb[0].mxu0
        %v6636 = vadd.f32 %v6238, %v6635
        %v6637 = vpop.f32.mrb[0].mxu0
        %v6638 = vadd.f32 %v6239, %v6637
        %v6639 = vpop.f32.mrb[0].mxu0
        %v6640 = vpop.f32.mrb[0].mxu0
        %6641 = vdwg.mxu0
        %v6642 = vxor.u32 %v6595, 2147483648
        %v6643 = vmul.f32 %v6642, 1.442695
        %v6644 = vpow.pop %v6643
        %v6645 = vadd.f32 %v6644, 1.0
        %v6646 = vrcp.pop %v6645
        %v6647 = vmul.f32 1.0, %v6646
        %v6648 = vxor.u32 %v6597, 2147483648
        %v6649 = vmul.f32 %v6648, 1.442695
        %v6650 = vpow.pop %v6649
        %v6651 = vadd.f32 %v6650, 1.0
        %v6652 = vrcp.pop %v6651
        %v6653 = vmul.f32 1.0, %v6652
        %v6654 = vtanh.pop %v6636
        %v6655 = vxor.u32 %v6638, 2147483648
        %v6656 = vmul.f32 %v6655, 1.442695
        %v6657 = vpow.pop %v6656
        %v6658 = vadd.f32 %v6657, 1.0
        %v6659 = vrcp.pop %v6658
        %v6660 = vmul.f32 1.0, %v6659
        %v6661 = vmul.f32 %v6653, %v5546
        %v6662 = vmul.f32 %v6647, %v6654
        %v6663 = vadd.f32 %v6661, %v6662
        %v6664 = vtanh.pop %v6663
        %v6665 = vmul.f32 %v6660, %v6664
        %v6666 = vpack.c.bf16 %v6665, %v6665
        %v6667 = vld [vmem:[%s13] sm:$0xf]
        %v6668 = vld [vmem:[%s13 + $0x4] sm:$0xf]
        %v6669 = vld [vmem:[%s13 + $0x8] sm:$0xf]
        %v6670 = vld [vmem:[%s13 + $0xc] sm:$0xf]
        %v6671 = vld [vmem:[%s13 + $0x10] sm:$0xf]
        %v6672 = vld [vmem:[%s13 + $0x14] sm:$0xf]
        %v6673 = vld [vmem:[%s13 + $0x18] sm:$0xf]
        %v6674 = vld [vmem:[%s13 + $0x1c] sm:$0xf]
        %v6675 = vld [vmem:[%s13 + $0x20] sm:$0xf]
        %v6676 = vld [vmem:[%s13 + $0x24] sm:$0xf]
        %v6677 = vld [vmem:[%s13 + $0x28] sm:$0xf]
        %v6678 = vld [vmem:[%s13 + $0x2c] sm:$0xf]
        %v6679 = vld [vmem:[%s13 + $0x30] sm:$0xf]
        %v6680 = vld [vmem:[%s13 + $0x34] sm:$0xf]
        %v6681 = vld [vmem:[%s13 + $0x38] sm:$0xf]
        %v6682 = vld [vmem:[%s13 + $0x3c] sm:$0xf]
        %v6683 = vld [vmem:[%s14] sm:$0x1]
        %v6685 = vlaneseq
        %v6686 = vshrl.u32 %v6685, 7
        %v6687 = vsub.s32 0, %v6686
        %v6688 = vrot.slane %v6683, %v6687
        %v6706 = vunpack.c.l.b16 %v6667
        %v6707 = vunpack.c.l.b16 %v6668
        %v6708 = vunpack.c.l.b16 %v6669
        %v6709 = vunpack.c.l.b16 %v6670
        %v6710 = vunpack.c.l.b16 %v6671
        %v6711 = vunpack.c.l.b16 %v6672
        %v6712 = vunpack.c.l.b16 %v6673
        %v6713 = vunpack.c.l.b16 %v6674
        %v6714 = vunpack.c.l.b16 %v6675
        %v6715 = vunpack.c.l.b16 %v6676
        %v6716 = vunpack.c.l.b16 %v6677
        %v6717 = vunpack.c.l.b16 %v6678
        %v6718 = vunpack.c.l.b16 %v6679
        %v6719 = vunpack.c.l.b16 %v6680
        %v6720 = vunpack.c.l.b16 %v6681
        %v6721 = vunpack.c.l.b16 %v6682
        %v6722 = vpack.c.b16 %v6707, %v6706
        %v6723 = vpack.c.b16 %v6709, %v6708
        %v6724 = vpack.c.b16 %v6711, %v6710
        %v6725 = vpack.c.b16 %v6713, %v6712
        %v6726 = vpack.c.b16 %v6715, %v6714
        %v6727 = vpack.c.b16 %v6717, %v6716
        %v6728 = vpack.c.b16 %v6719, %v6718
        %v6729 = vpack.c.b16 %v6721, %v6720
        %6738 = vmatprep.subr.bf16.mxu0 0
        %6739 = vmatpush1.bf16.msra.mxu0 %v6722
        %6740 = vmatprep.subr.bf16.mxu0 0
        %6741 = vmatpush1.bf16.msra.mxu0 %v6723
        %6742 = vmatprep.subr.bf16.mxu0 0
        %6743 = vmatpush1.bf16.msra.mxu0 %v6724
        %6744 = vmatprep.subr.bf16.mxu0 0
        %6745 = vmatpush1.bf16.msra.mxu0 %v6725
        %6746 = vmatprep.subr.bf16.mxu0 0
        %6747 = vmatpush1.bf16.msra.mxu0 %v6726
        %6748 = vmatprep.subr.bf16.mxu0 0
        %6749 = vmatpush1.bf16.msra.mxu0 %v6727
        %6750 = vmatprep.subr.bf16.mxu0 0
        %6751 = vmatpush1.bf16.msra.mxu0 %v6728
        %6752 = vmatprep.subr.bf16.mxu0 0
        %6753 = vmatpush1.bf16.msra.mxu0 %v6729
        %6754 = vmatprep.subr.bf16.mxu0 0
        %6755 = vmatpush1.bf16.msra.mxu0 0
        %6756 = vmatprep.subr.bf16.mxu0 0
        %6757 = vmatpush1.bf16.msra.mxu0 0
        %6758 = vmatprep.subr.bf16.mxu0 0
        %6759 = vmatpush1.bf16.msra.mxu0 0
        %6760 = vmatprep.subr.bf16.mxu0 0
        %6761 = vmatpush1.bf16.msra.mxu0 0
        %6762 = vmatprep.subr.bf16.mxu0 0
        %6763 = vmatpush1.bf16.msra.mxu0 0
        %6764 = vmatprep.subr.bf16.mxu0 0
        %6765 = vmatpush1.bf16.msra.mxu0 0
        %6766 = vmatprep.subr.bf16.mxu0 0
        %6767 = vmatpush1.bf16.msra.mxu0 0
        %6768 = vmatprep.subr.bf16.mxu0 0
        %6769 = vmatpush1.bf16.msra.mxu0 0
        %6770 = vmatprep.mubr.bf16.mxu0 0
        %6771 = vmatmul.mubr.bf16.gmra.mrb[0].mxu0 %v6666
        %v6772 = vpop.f32.mrb[0].mxu0
        %v6773 = vadd.f32 %v6688, %v6772
        %v6774 = vpop.f32.mrb[0].mxu0
        %v6775 = vpop.f32.mrb[0].mxu0
        %v6776 = vpop.f32.mrb[0].mxu0
        %6777 = vdwg.mxu0
        %s6778 = scalar_lea.vmem %s586, 32 [#allocation4]
        %6779 = vst [vmem:[%s6778] sm:$0xff] %v6773
        %v6788 = vlaneseq
        %v6789 = vshrl.u32 %v6788, 7
        %v6790 = vsub.s32 %v2319, %v6789
        %v6791 = vrot.slane %v6082, %v6790
        %v6792 = vlaneseq
        %v6793 = vshrl.u32 %v6792, 7
        %v6794 = vsub.s32 %v2319, %v6793
        %v6795 = vrot.slane %v6083, %v6794
        %v6796 = vlaneseq
        %v6797 = vshrl.u32 %v6796, 7
        %v6798 = vsub.s32 %v2319, %v6797
        %v6799 = vrot.slane %v6084, %v6798
        %v6800 = vlaneseq
        %v6801 = vshrl.u32 %v6800, 7
        %v6802 = vsub.s32 %v2319, %v6801
        %v6803 = vrot.slane %v6085, %v6802
        %v6804 = vlaneseq
        %v6805 = vshrl.u32 %v6804, 7
        %v6806 = vsub.s32 %v2319, %v6805
        %v6807 = vrot.slane %v6086, %v6806
        %v6808 = vlaneseq
        %v6809 = vshrl.u32 %v6808, 7
        %v6810 = vsub.s32 %v2319, %v6809
        %v6811 = vrot.slane %v6087, %v6810
        %v6812 = vlaneseq
        %v6813 = vshrl.u32 %v6812, 7
        %v6814 = vsub.s32 %v2319, %v6813
        %v6815 = vrot.slane %v6088, %v6814
        %v6816 = vlaneseq
        %v6817 = vshrl.u32 %v6816, 7
        %v6818 = vsub.s32 %v2319, %v6817
        %v6819 = vrot.slane %v6089, %v6818
        %v6820 = vsel %vm696, %v6795, %v6791
        %v6821 = vsel %vm698, %v6799, %v6820
        %v6822 = vsel %vm700, %v6803, %v6821
        %v6823 = vsel %vm702, %v6807, %v6822
        %v6824 = vsel %vm704, %v6811, %v6823
        %v6825 = vsel %vm706, %v6815, %v6824
        %v6826 = vsel %vm708, %v6819, %v6825
        %s6828 = scalar_lea.vmem %s592, 32 [#allocation6]
        %6829 = vst.msk [vmem:[%s6828] sm:$0xff] %vm2360, %v6826
        %s6830 = sand.u32 %s364, 1
        %s6831 = scalar_lea.sflag [#allocation5], %s6830
        %s6832 = sand.u32 %s364, 1
        %s6833 = smul.addr %s6832, 40
        %s6834 = scalar_lea.vmem [#allocation4], %s6833
        %s6835 = sand.u32 %s390, 1
        %s6836 = sand.u32 %s390, 1
        %s6837 = smul.addr %s6836, 40
        %s6838 = scalar_lea.vmem [#allocation6], %s6837
        // Predicated region
        $region119: #{decoder_forward.1} parent=113 // pred_check
          %p6839 = pneg %p374
        $region120: #{decoder_forward.1} parent=113 // pred_check_branch
          %6841 = sbr.rel (%p6839) target = $region122
        $region121: #{decoder_forward.1} parent=113 // pred_region
          %s6843 = ssub.s32 640, 640
          %6844 = vsyncadd %s6831, %s6843
          %s6845 = smul.addr %s31, 128
          %s6846 = scalar_lea.hbm %s15, %s6845
          %s6847 = sshll.u32 %s6834, 4
          %s6848 = int_to_ptr.vmem [resolvable:$true] %s6847
          %6853 = dma.vmem_to_hbm [thread:$0]  %s6848, 640, %s6846, %s6831, 128, 256, 8
        $region122: #{decoder_forward.1} parent=113 // pred_fallthru
          _
        // Predicated region
        $region123: #{decoder_forward.1} parent=113 // pred_check
          %p6854 = pneg %p400
        $region124: #{decoder_forward.1} parent=113 // pred_check_branch
          %6856 = sbr.rel (%p6854) target = $region126
        $region125: #{decoder_forward.1} parent=113 // pred_region
          %s6857 = smul.addr %s31, 8
          %s6858 = scalar_lea.vmem %s16, %s6857
          // Predicated region
          $region127: #{decoder_forward.1} parent=125 // pred_check
            _
          $region128: #{decoder_forward.1} parent=125 // pred_check_branch
            %6860 = sbr.rel (0) target = $region130
          $region129: #{decoder_forward.1} parent=125 // pred_region
            // Predicated region
            $region131: #{decoder_forward.1} parent=129 // pred_check
              _
            $region132: #{decoder_forward.1} parent=129 // pred_check_branch
              %6862 = sbr.rel (0) target = $region134
            $region133: #{decoder_forward.1} parent=129 // pred_region
              // Predicated region
              $region146: #{decoder_forward.1} parent=133 // pred_check
                _
              $region147: #{decoder_forward.1} parent=133 // pred_check_branch
                %6885 = sbr.rel (0) target = $region149
              $region148: #{decoder_forward.1} parent=133 // pred_region
                loop: start=0, step=1, limit=1
                $region150: #{decoder_forward.1} parent=148 // loop_pre_header
                  _
                $region151: #{decoder_forward.1} parent=148 // loop_header
                  %s6887 = sphi 0, %s6891
                  %p6888 = scmp.ge.s32.totalorder %s6887, 1
                  %s6892 = sphi %s6838, %s6838
                  %s6893 = sphi %s6858, %s6858
                $region152: #{decoder_forward.1} parent=148 // loop_header_branch
                  %6890 = sbr.rel (%p6888) target = $region156
                $region153: #{decoder_forward.1} parent=148 // loop_body
                  %v6894 = vld [vmem:[%s6892] sm:$0xff]
                  %6895 = vst [vmem:[%s6893] sm:$0xff] %v6894
                  %v6896 = vld [vmem:[%s6892 + $0x8] sm:$0xff]
                  %6897 = vst [vmem:[%s6893 + $0x10] sm:$0xff] %v6896
                  %v6898 = vld [vmem:[%s6892 + $0x10] sm:$0xff]
                  %6899 = vst [vmem:[%s6893 + $0x20] sm:$0xff] %v6898
                  %v6900 = vld [vmem:[%s6892 + $0x18] sm:$0xff]
                  %6901 = vst [vmem:[%s6893 + $0x30] sm:$0xff] %v6900
                  %v6902 = vld [vmem:[%s6892 + $0x20] sm:$0xff]
                  %6903 = vst [vmem:[%s6893 + $0x40] sm:$0xff] %v6902
                $region154: #{decoder_forward.1} parent=148 // loop_footer
                  %s6891 = sadd.s32 1, %s6887
                $region155: #{decoder_forward.1} parent=148 // loop_footer_branch
                  %6886 = sbr.rel target = $region151
                $region156: #{decoder_forward.1} parent=148 // loop_exit
                  _
              $region149: #{decoder_forward.1} parent=133 // pred_fallthru
                _
              // Predicated region
              $region157: #{decoder_forward.1} parent=133 // pred_check
                _
              $region158: #{decoder_forward.1} parent=133 // pred_check_branch
                %6905 = sbr.rel target = $region160
              $region159: #{decoder_forward.1} parent=133 // pred_region
                _
              $region160: #{decoder_forward.1} parent=133 // pred_fallthru
                _
            $region134: #{decoder_forward.1} parent=129 // pred_fallthru
              _
            // Predicated region
            $region135: #{decoder_forward.1} parent=129 // pred_check
              _
            $region136: #{decoder_forward.1} parent=129 // pred_check_branch
              %6864 = sbr.rel target = $region138
            $region137: #{decoder_forward.1} parent=129 // pred_region
              loop: start=0, step=1, limit=1
              $region139: #{decoder_forward.1} parent=137 // loop_pre_header
                _
              $region140: #{decoder_forward.1} parent=137 // loop_header
                %s6867 = sphi 0, %s6871
                %p6868 = scmp.ge.s32.totalorder %s6867, 1
                %s6872 = sphi %s6838, %s6838
                %s6873 = sphi %s6858, %s6858
              $region141: #{decoder_forward.1} parent=137 // loop_header_branch
                %6870 = sbr.rel (%p6868) target = $region145
              $region142: #{decoder_forward.1} parent=137 // loop_body
                %v6874 = vld [vmem:[%s6872] sm:$0xff]
                %6875 = vst [vmem:[%s6873] sm:$0xff] %v6874
                %v6876 = vld [vmem:[%s6872 + $0x8] sm:$0xff]
                %6877 = vst [vmem:[%s6873 + $0x10] sm:$0xff] %v6876
                %v6878 = vld [vmem:[%s6872 + $0x10] sm:$0xff]
                %6879 = vst [vmem:[%s6873 + $0x20] sm:$0xff] %v6878
                %v6880 = vld [vmem:[%s6872 + $0x18] sm:$0xff]
                %6881 = vst [vmem:[%s6873 + $0x30] sm:$0xff] %v6880
                %v6882 = vld [vmem:[%s6872 + $0x20] sm:$0xff]
                %6883 = vst [vmem:[%s6873 + $0x40] sm:$0xff] %v6882
              $region143: #{decoder_forward.1} parent=137 // loop_footer
                %s6871 = sadd.s32 1, %s6867
              $region144: #{decoder_forward.1} parent=137 // loop_footer_branch
                %6866 = sbr.rel target = $region140
              $region145: #{decoder_forward.1} parent=137 // loop_exit
                _
            $region138: #{decoder_forward.1} parent=129 // pred_fallthru
              _
          $region130: #{decoder_forward.1} parent=125 // pred_fallthru
            _
          %6906 = vnop
        $region126: #{decoder_forward.1} parent=113 // pred_fallthru
          _
      $region114: #{decoder_forward.1} parent=5 // pred_fallthru
        _
      %p6907 = scmp.le.s32.totalorder 2, %s26
      // Predicated region
      $region161: #{decoder_forward.1} parent=5 // pred_check
        %p6908 = pneg %p6907
      $region162: #{decoder_forward.1} parent=5 // pred_check_branch
        %6910 = sbr.rel (%p6908) target = $region164
      $region163: #{decoder_forward.1} parent=5 // pred_region
        %s6911 = ssub.s32 %s26, 2
        // Predicated region
        $region165: #{decoder_forward.1} parent=163 // pred_check
          %p6912 = pneg %p380
        $region166: #{decoder_forward.1} parent=163 // pred_check_branch
          %6914 = sbr.rel (%p6912) target = $region168
        $region167: #{decoder_forward.1} parent=163 // pred_region
          %s6915 = sand.u32 %s365, 1
          %s6916 = scalar_lea.sflag [#allocation5], %s6915
          %s6917 = sand.u32 %s365, 1
          %s6918 = smul.addr %s6917, 40
          %s6919 = scalar_lea.vmem [#allocation4], %s6918
          %6920 = dma.done %s6916, 640
        $region168: #{decoder_forward.1} parent=163 // pred_fallthru
          _
        // Predicated region
        $region169: #{decoder_forward.1} parent=163 // pred_check
          %p6921 = pneg %p406
        $region170: #{decoder_forward.1} parent=163 // pred_check_branch
          %6923 = sbr.rel (%p6921) target = $region172
        $region171: #{decoder_forward.1} parent=163 // pred_region
          %s6924 = sand.u32 %s391, 1
          %s6925 = sand.u32 %s391, 1
          %s6926 = smul.addr %s6925, 40
          %s6927 = scalar_lea.vmem [#allocation6], %s6926
        $region172: #{decoder_forward.1} parent=163 // pred_fallthru
          _
      $region164: #{decoder_forward.1} parent=5 // pred_fallthru
        _
    $region6: #{decoder_forward.1} parent=1 // loop_footer
      %s30 = sadd.s32 1, %s26
    $region7: #{decoder_forward.1} parent=1 // loop_footer_branch
      %25 = sbr.rel target = $region3
    $region8: #{decoder_forward.1} parent=1 // loop_exit
      _
    %6928 = vsyncpa [#allocation5], 1
    %s6929 = scalar_lea.sflag [#allocation5], 1
    %6930 = vsyncpa %s6929, 1

</llo_original>
